<compile_context>
chip_gen: v6e
topology: v6e:2x2x1
jax: 0.10.0
libtpu: 0.0.40
codegen_flags: <defaults>
</compile_context>

<pallas_src>
import functools

import jax
import jax.numpy as jnp
from jax.experimental import pallas as pl
from jax.experimental.pallas import tpu as pltpu

_CP = 128               # padded channel count = lane width (lane-dense I/O)
NUM_CHANNELS = 64

_STAGES = [("stem", 3, 8), ("layer1", 8, 8), ("layer2", 8, 16),
           ("layer3", 16, 32), ("layer4", 32, 64)]

_MAX_M = 2048           # cap on matmul M rows per grid step (VMEM headroom)


# --------------------------------------------------------------------------
# Pallas kernel: whole 3x3 / stride-2 / pad-1 conv tile as 6 MXU matmuls.
# --------------------------------------------------------------------------
def _make_conv_kernel(m, cb, cp):
    """Kernel for one (batch, row-tile) grid step.

    Ref shapes (bf16 unless noted):
      x_ref  : (1, 1, 2, slab, 2*cp)  flat phase-split input slab,
                                      slab = m + 2*cb  (2 halo row-blocks)
      w01_ref: (3, 2*cp, cp)          fused (kw=0 | kw=1) taps, one per kh
      w2_ref : (3, cp, cp)            kw=2 taps, one per kh
      b_ref  : (1, cp) float32
      o_ref  : (1, m, cp)             bf16 output rows (flat, incl. junk col)

    Flat layout: output position (oh, oc) lives at flat row p = oh*cb + oc.
    Tap (kh, kw) of that output reads flat row p + (kh//2)*cb + (kw//2) of
    row-phase kh%2, lane half kw%2 — i.e. the conv is 6 big matmuls with only
    static sublane offsets (0, 1, cb, cb+1) and no im2col / per-row loop.
    """

    def kernel(x_ref, w01_ref, w2_ref, b_ref, o_ref):
        f32 = jnp.float32
        # kh = 0 : row-phase 0, row-block offset 0
        acc = jnp.dot(x_ref[0, 0, 0, 0:m, :], w01_ref[0],
                      preferred_element_type=f32)
        acc += jnp.dot(x_ref[0, 0, 0, 1:1 + m, 0:cp], w2_ref[0],
                       preferred_element_type=f32)
        # kh = 1 : row-phase 1, row-block offset 0
        acc += jnp.dot(x_ref[0, 0, 1, 0:m, :], w01_ref[1],
                       preferred_element_type=f32)
        acc += jnp.dot(x_ref[0, 0, 1, 1:1 + m, 0:cp], w2_ref[1],
                       preferred_element_type=f32)
        # kh = 2 : row-phase 0, row-block offset +1  (= +cb flat rows)
        acc += jnp.dot(x_ref[0, 0, 0, cb:cb + m, :], w01_ref[2],
                       preferred_element_type=f32)
        acc += jnp.dot(x_ref[0, 0, 0, cb + 1:cb + 1 + m, 0:cp], w2_ref[2],
                       preferred_element_type=f32)
        # bias broadcast + ReLU once per tile (not per row)
        o_ref[0] = jnp.maximum(acc + b_ref[...], 0.0).astype(o_ref.dtype)

    return kernel


def _pick_row_tile(oh, cb):
    """Largest legal row-tile (in output rows) whose M = toh*cb fits budget."""
    if oh * cb <= _MAX_M:          # full height per block (toy sizes)
        return oh
    divisors = [t for t in range(1, oh + 1) if oh % t == 0]
    # when tiling (block != full array), the out block's sublane dim (toh*cb)
    # must be a multiple of 8
    ok = [t for t in divisors if (t * cb) % 8 == 0]
    fit = [t for t in ok if t * cb <= _MAX_M]
    if fit:
        return max(fit)
    if ok:
        return min(ok)
    return oh


# --------------------------------------------------------------------------
# One conv stage: layout prep (fused by XLA into one copy) + pallas_call.
# --------------------------------------------------------------------------
def conv3x3_s2_relu_nhwc(x, w01, w2, b_row):
    """x: (N, H, W, _CP) bf16 -> (N, OH, OW, _CP) bf16, OH=ceil(H/2)."""
    n, h, w, cp = x.shape
    oh = -(-h // 2)
    ow = -(-w // 2)
    cb = ow + 1                                   # col-blocks incl. junk col

    # pad=1 on top/left; pad bottom/right so the plane is 2*(oh+2) x 2*cb.
    # The two extra junk row-blocks keep every shifted in-kernel window in
    # bounds.  XLA fuses pad + transpose + reshape into one input-prep copy.
    xp = jnp.pad(x, ((0, 0), (1, 2 * (oh + 2) - 1 - h),
                     (1, 2 * cb - 1 - w), (0, 0)))
    xr = xp.reshape(n, oh + 2, 2, cb, 2 * cp)            # phase-split
    xf = jnp.transpose(xr, (0, 2, 1, 3, 4)).reshape(n, 2, (oh + 2) * cb,
                                                    2 * cp)

    toh = _pick_row_tile(oh, cb)
    ntiles = oh // toh
    slab = (toh + 2) * cb
    m = toh * cb

    if ntiles == 1:
        xs = xf[:, None]                                  # (n, 1, 2, slab, 2cp)
    else:
        # duplicate the 2-row-block halo per tile so blocks never overlap
        starts = jnp.arange(ntiles) * m
        idx = starts[:, None] + jnp.arange(slab)[None, :]
        xs = jnp.transpose(jnp.take(xf, idx, axis=2), (0, 2, 1, 3, 4))

    out_flat = pl.pallas_call(
        _make_conv_kernel(m, cb, cp),
        out_shape=jax.ShapeDtypeStruct((n, oh * cb, cp), jnp.bfloat16),
        grid=(n, ntiles),
        in_specs=[
            pl.BlockSpec((1, 1, 2, slab, 2 * cp), lambda b, i: (b, i, 0, 0, 0)),
            # weights / bias stay resident across the grid (constant index map)
            pl.BlockSpec((3, 2 * cp, cp), lambda b, i: (0, 0, 0)),
            pl.BlockSpec((3, cp, cp), lambda b, i: (0, 0, 0)),
            pl.BlockSpec((1, cp), lambda b, i: (0, 0)),
        ],
        out_specs=pl.BlockSpec((1, m, cp), lambda b, i: (b, i, 0)),
        compiler_params=pltpu.CompilerParams(
            dimension_semantics=("parallel", "parallel"),
            vmem_limit_bytes=32 * 1024 * 1024),
    )(xs, w01, w2, b_row)

    # strip the junk column; this reshape/slice fuses into the next stage's
    # (or the API-boundary's) copy.
    return out_flat.reshape(n, oh, cb, cp)[:, :, :ow, :]


# --------------------------------------------------------------------------
# Parameter handling
# --------------------------------------------------------------------------
def init_backbone_params(key):
    params = {}
    for name, cin, cout in _STAGES:
        key, kw, kb = jax.random.split(key, 3)
        params[name] = {
            "w": jax.random.normal(kw, (cout, cin, 3, 3), jnp.float32)
                 * jnp.sqrt(2.0 / (cin * 9)),
            "b": 0.01 * jax.random.normal(kb, (cout,), jnp.float32),
        }
    return params


def _prep_stage(w, b):
    """torch (Cout,Cin,3,3)/(Cout,) -> fused (3,256,128) + (3,128,128) bf16 taps
    and (1,128) f32 bias.  w01 stacks the kw=0 and kw=1 taps along K so the
    kernel can issue a single K=256 matmul per kh."""
    cout, cin = w.shape[0], w.shape[1]
    wt = jnp.transpose(w, (2, 3, 1, 0)).astype(jnp.float32)   # (3,3,Cin,Cout)
    w_pad = jnp.zeros((3, 3, _CP, _CP), jnp.float32)
    w_pad = w_pad.at[:, :, :cin, :cout].set(wt)
    w01 = jnp.concatenate([w_pad[:, 0], w_pad[:, 1]],
                          axis=1).astype(jnp.bfloat16)        # (3, 2*_CP, _CP)
    w2 = w_pad[:, 2].astype(jnp.bfloat16)                     # (3, _CP, _CP)
    b_row = jnp.zeros((1, _CP), jnp.float32).at[0, :cout].set(
        b.astype(jnp.float32))
    return w01, w2, b_row


# --------------------------------------------------------------------------
# Mask resize (F.interpolate, mode='nearest')
# --------------------------------------------------------------------------
def interpolate_mask_nearest(mask_bool, out_h, out_w):
    """== F.interpolate(mask[None].float(), size=(h,w)).to(bool)[0].

    Legacy 'nearest' picks src = (dst*in)//out; for the integer-factor
    downsampling here this is a pure strided gather (data movement only), so
    it is left to XLA rather than spending MXU matmuls on it."""
    n, h, w = mask_bool.shape
    idx_h = (jnp.arange(out_h) * h) // out_h
    idx_w = (jnp.arange(out_w) * w) // out_w
    return mask_bool[:, idx_h[:, None], idx_w[None, :]]


# --------------------------------------------------------------------------
# BackboneBase.forward equivalent
# --------------------------------------------------------------------------
@functools.partial(jax.jit, static_argnames=("return_interm_layers",))
def backbone_base_forward(tensors, mask, params, return_interm_layers=True):
    """Mirrors BackboneBase.forward(NestedTensor(tensors, mask))."""
    assert mask is not None
    n, c, _, _ = tensors.shape

    # API boundary: NCHW f32 -> NHWC bf16, channels zero-padded to 128 lanes.
    x = jnp.transpose(tensors, (0, 2, 3, 1)).astype(jnp.bfloat16)
    x = jnp.pad(x, ((0, 0), (0, 0), (0, 0), (0, _CP - c)))

    feats = {}
    for name, _, cout in _STAGES:
        w01, w2, b_row = _prep_stage(params[name]["w"], params[name]["b"])
        x = conv3x3_s2_relu_nhwc(x, w01, w2, b_row)  # NHWC / 128-padded / bf16
        feats[name] = (x, cout)

    return_layers = ({"layer1": "0", "layer2": "1", "layer3": "2",
                      "layer4": "3"} if return_interm_layers
                     else {"layer4": "0"})
    out = {}
    for lname, oname in return_layers.items():
        xf, cout = feats[lname]
        # API boundary: strip channel padding, back to NCHW f32.
        feat = jnp.transpose(xf[..., :cout], (0, 3, 1, 2)).astype(jnp.float32)
        m = interpolate_mask_nearest(mask, xf.shape[1], xf.shape[2])
        out[oname] = (feat, m)                       # == NestedTensor(x, mask)
    return out


# --------------------------------------------------------------------------
if __name__ == "__main__":
    key = jax.random.PRNGKey(0)
    kp, kx = jax.random.split(key, 2)
    params = init_backbone_params(kp)

    N, C, H, W = 2, 3, 32, 32
    x = jax.random.normal(kx, (N, C, H, W), jnp.float32)
    # DETR convention: mask True = padded pixel; image 1 padded right/bottom.
    col = jnp.arange(W)[None, None, :] >= jnp.array([W, W - 8])[:, None, None]
    row = jnp.arange(H)[None, :, None] >= jnp.array([H, H - 4])[:, None, None]
    mask = jnp.logical_or(col, row)                         # (N, H, W) bool

    out = backbone_base_forward(x, mask, params, return_interm_layers=True)
    out = jax.tree_util.tree_map(jax.block_until_ready, out)

    # shape checks
    expected = {"0": (8, 8), "1": (16, 4), "2": (32, 2), "3": (64, 1)}
    for name, (feat, m) in out.items():
        cexp, s = expected[name]
        assert feat.shape == (N, cexp, s, s), (name, feat.shape)
        assert m.shape == (N, s, s) and m.dtype == jnp.bool_, (name, m.shape)

    # numeric sanity: Pallas stem conv vs XLA conv at matching bf16 precision
    x0 = jnp.transpose(x, (0, 2, 3, 1)).astype(jnp.bfloat16)
    w0 = params["stem"]["w"].astype(jnp.bfloat16)
    b0 = params["stem"]["b"].astype(jnp.float32)
    ref = jax.lax.conv_general_dilated(
        x0.astype(jnp.float32),
        jnp.transpose(w0, (2, 3, 1, 0)).astype(jnp.float32),
        window_strides=(2, 2), padding=((1, 1), (1, 1)),
        dimension_numbers=("NHWC", "HWIO", "NHWC"),
        precision=jax.lax.Precision.HIGHEST)
    ref = jnp.maximum(ref + b0[None, None, None, :], 0.0)
    w01, w2, b_row = _prep_stage(params["stem"]["w"], params["stem"]["b"])
    xin = jnp.pad(x0, ((0, 0), (0, 0), (0, 0), (0, _CP - C)))
    got = conv3x3_s2_relu_nhwc(xin, w01, w2, b_row)[..., :8].astype(jnp.float32)
    err = float(jnp.max(jnp.abs(jax.block_until_ready(got) - ref)))
    assert err < 5e-2, ("stem conv mismatch", err)

    print("KERNEL_OK")
</pallas_src>

<mosaic_0001>
module attributes {stable_mosaic.version = 11 : i64} {
  func.func @kernel(%arg0: i32, %arg1: i32, %arg2: memref<1x1x2x306x256xbf16, #tpu.memory_space<vmem>>, %arg3: memref<3x256x128xbf16, #tpu.memory_space<vmem>>, %arg4: memref<3x128x128xbf16, #tpu.memory_space<vmem>>, %arg5: memref<1x128xf32, #tpu.memory_space<vmem>>, %arg6: memref<1x272x128xbf16, #tpu.memory_space<vmem>>) attributes {dimension_semantics = [#tpu.dimension_semantics<parallel>, #tpu.dimension_semantics<parallel>], iteration_bounds = array<i64: 2, 1>, scalar_prefetch = 0 : i64, scratch_operands = 0 : i64, tpu.core_type = #tpu.core_type<tc>, window_params = [{transform_indices = @transform_0, window_bounds = array<i64: 1, 1, 2, 306, 256>}, {pipeline_mode = #tpu.pipeline_mode<synchronous>, transform_indices = @transform_1, window_bounds = array<i64: 3, 256, 128>}, {pipeline_mode = #tpu.pipeline_mode<synchronous>, transform_indices = @transform_2, window_bounds = array<i64: 3, 128, 128>}, {pipeline_mode = #tpu.pipeline_mode<synchronous>, transform_indices = @transform_3, window_bounds = array<i64: 1, 128>}, {transform_indices = @transform_4, window_bounds = array<i64: 1, 272, 128>}]} {
    %c0 = arith.constant 0 : index
    %c0_0 = arith.constant 0 : index
    %c0_1 = arith.constant 0 : index
    %c0_2 = arith.constant 0 : index
    %c0_3 = arith.constant 0 : index
    %0 = vector.load %arg2[%c0, %c0_0, %c0_1, %c0_2, %c0_3] : memref<1x1x2x306x256xbf16, #tpu.memory_space<vmem>>, vector<1x1x1x272x256xbf16>
    %1 = vector.shape_cast %0 : vector<1x1x1x272x256xbf16> to vector<272x256xbf16>
    %c0_4 = arith.constant 0 : index
    %c0_5 = arith.constant 0 : index
    %c0_6 = arith.constant 0 : index
    %2 = vector.load %arg3[%c0_4, %c0_5, %c0_6] : memref<3x256x128xbf16, #tpu.memory_space<vmem>>, vector<1x256x128xbf16>
    %3 = vector.shape_cast %2 : vector<1x256x128xbf16> to vector<256x128xbf16>
    %cst = arith.constant dense<0.000000e+00> : vector<272x128xf32>
    %4 = tpu.matmul %1, %3, %cst {dimension_numbers = #tpu.dot_dimension_numbers<[1], [0], [0], [1], [0, 0, 1, 1], [], []>} : vector<272x256xbf16>, vector<256x128xbf16>, vector<272x128xf32> -> vector<272x128xf32>
    %c0_7 = arith.constant 0 : index
    %c0_8 = arith.constant 0 : index
    %c0_9 = arith.constant 0 : index
    %c1 = arith.constant 1 : index
    %c0_10 = arith.constant 0 : index
    %5 = vector.load %arg2[%c0_7, %c0_8, %c0_9, %c1, %c0_10] : memref<1x1x2x306x256xbf16, #tpu.memory_space<vmem>>, vector<1x1x1x272x128xbf16>
    %6 = vector.shape_cast %5 : vector<1x1x1x272x128xbf16> to vector<272x128xbf16>
    %c0_11 = arith.constant 0 : index
    %c0_12 = arith.constant 0 : index
    %c0_13 = arith.constant 0 : index
    %7 = vector.load %arg4[%c0_11, %c0_12, %c0_13] : memref<3x128x128xbf16, #tpu.memory_space<vmem>>, vector<1x128x128xbf16>
    %8 = vector.shape_cast %7 : vector<1x128x128xbf16> to vector<128x128xbf16>
    %cst_14 = arith.constant dense<0.000000e+00> : vector<272x128xf32>
    %9 = tpu.matmul %6, %8, %cst_14 {dimension_numbers = #tpu.dot_dimension_numbers<[1], [0], [0], [1], [0, 0, 1, 1], [], []>} : vector<272x128xbf16>, vector<128x128xbf16>, vector<272x128xf32> -> vector<272x128xf32>
    %10 = arith.addf %4, %9 : vector<272x128xf32>
    %c0_15 = arith.constant 0 : index
    %c0_16 = arith.constant 0 : index
    %c1_17 = arith.constant 1 : index
    %c0_18 = arith.constant 0 : index
    %c0_19 = arith.constant 0 : index
    %11 = vector.load %arg2[%c0_15, %c0_16, %c1_17, %c0_18, %c0_19] : memref<1x1x2x306x256xbf16, #tpu.memory_space<vmem>>, vector<1x1x1x272x256xbf16>
    %12 = vector.shape_cast %11 : vector<1x1x1x272x256xbf16> to vector<272x256xbf16>
    %c1_20 = arith.constant 1 : index
    %c0_21 = arith.constant 0 : index
    %c0_22 = arith.constant 0 : index
    %13 = vector.load %arg3[%c1_20, %c0_21, %c0_22] : memref<3x256x128xbf16, #tpu.memory_space<vmem>>, vector<1x256x128xbf16>
    %14 = vector.shape_cast %13 : vector<1x256x128xbf16> to vector<256x128xbf16>
    %cst_23 = arith.constant dense<0.000000e+00> : vector<272x128xf32>
    %15 = tpu.matmul %12, %14, %cst_23 {dimension_numbers = #tpu.dot_dimension_numbers<[1], [0], [0], [1], [0, 0, 1, 1], [], []>} : vector<272x256xbf16>, vector<256x128xbf16>, vector<272x128xf32> -> vector<272x128xf32>
    %16 = arith.addf %10, %15 : vector<272x128xf32>
    %c0_24 = arith.constant 0 : index
    %c0_25 = arith.constant 0 : index
    %c1_26 = arith.constant 1 : index
    %c1_27 = arith.constant 1 : index
    %c0_28 = arith.constant 0 : index
    %17 = vector.load %arg2[%c0_24, %c0_25, %c1_26, %c1_27, %c0_28] : memref<1x1x2x306x256xbf16, #tpu.memory_space<vmem>>, vector<1x1x1x272x128xbf16>
    %18 = vector.shape_cast %17 : vector<1x1x1x272x128xbf16> to vector<272x128xbf16>
    %c1_29 = arith.constant 1 : index
    %c0_30 = arith.constant 0 : index
    %c0_31 = arith.constant 0 : index
    %19 = vector.load %arg4[%c1_29, %c0_30, %c0_31] : memref<3x128x128xbf16, #tpu.memory_space<vmem>>, vector<1x128x128xbf16>
    %20 = vector.shape_cast %19 : vector<1x128x128xbf16> to vector<128x128xbf16>
    %cst_32 = arith.constant dense<0.000000e+00> : vector<272x128xf32>
    %21 = tpu.matmul %18, %20, %cst_32 {dimension_numbers = #tpu.dot_dimension_numbers<[1], [0], [0], [1], [0, 0, 1, 1], [], []>} : vector<272x128xbf16>, vector<128x128xbf16>, vector<272x128xf32> -> vector<272x128xf32>
    %22 = arith.addf %16, %21 : vector<272x128xf32>
    %c0_33 = arith.constant 0 : index
    %c0_34 = arith.constant 0 : index
    %c0_35 = arith.constant 0 : index
    %c17 = arith.constant 17 : index
    %c0_36 = arith.constant 0 : index
    %23 = vector.load %arg2[%c0_33, %c0_34, %c0_35, %c17, %c0_36] : memref<1x1x2x306x256xbf16, #tpu.memory_space<vmem>>, vector<1x1x1x272x256xbf16>
    %24 = vector.shape_cast %23 : vector<1x1x1x272x256xbf16> to vector<272x256xbf16>
    %c2 = arith.constant 2 : index
    %c0_37 = arith.constant 0 : index
    %c0_38 = arith.constant 0 : index
    %25 = vector.load %arg3[%c2, %c0_37, %c0_38] : memref<3x256x128xbf16, #tpu.memory_space<vmem>>, vector<1x256x128xbf16>
    %26 = vector.shape_cast %25 : vector<1x256x128xbf16> to vector<256x128xbf16>
    %cst_39 = arith.constant dense<0.000000e+00> : vector<272x128xf32>
    %27 = tpu.matmul %24, %26, %cst_39 {dimension_numbers = #tpu.dot_dimension_numbers<[1], [0], [0], [1], [0, 0, 1, 1], [], []>} : vector<272x256xbf16>, vector<256x128xbf16>, vector<272x128xf32> -> vector<272x128xf32>
    %28 = arith.addf %22, %27 : vector<272x128xf32>
    %c0_40 = arith.constant 0 : index
    %c0_41 = arith.constant 0 : index
    %c0_42 = arith.constant 0 : index
    %c18 = arith.constant 18 : index
    %c0_43 = arith.constant 0 : index
    %29 = vector.load %arg2[%c0_40, %c0_41, %c0_42, %c18, %c0_43] : memref<1x1x2x306x256xbf16, #tpu.memory_space<vmem>>, vector<1x1x1x272x128xbf16>
    %30 = vector.shape_cast %29 : vector<1x1x1x272x128xbf16> to vector<272x128xbf16>
    %c2_44 = arith.constant 2 : index
    %c0_45 = arith.constant 0 : index
    %c0_46 = arith.constant 0 : index
    %31 = vector.load %arg4[%c2_44, %c0_45, %c0_46] : memref<3x128x128xbf16, #tpu.memory_space<vmem>>, vector<1x128x128xbf16>
    %32 = vector.shape_cast %31 : vector<1x128x128xbf16> to vector<128x128xbf16>
    %cst_47 = arith.constant dense<0.000000e+00> : vector<272x128xf32>
    %33 = tpu.matmul %30, %32, %cst_47 {dimension_numbers = #tpu.dot_dimension_numbers<[1], [0], [0], [1], [0, 0, 1, 1], [], []>} : vector<272x128xbf16>, vector<128x128xbf16>, vector<272x128xf32> -> vector<272x128xf32>
    %34 = arith.addf %28, %33 : vector<272x128xf32>
    %c0_48 = arith.constant 0 : index
    %c0_49 = arith.constant 0 : index
    %35 = vector.load %arg5[%c0_48, %c0_49] : memref<1x128xf32, #tpu.memory_space<vmem>>, vector<1x128xf32>
    %36 = vector.broadcast %35 : vector<1x128xf32> to vector<272x128xf32>
    %37 = arith.addf %34, %36 : vector<272x128xf32>
    %cst_50 = arith.constant 0.000000e+00 : f32
    %38 = vector.broadcast %cst_50 : f32 to vector<272x128xf32>
    %39 = arith.maximumf %37, %38 : vector<272x128xf32>
    %40 = arith.truncf %39 : vector<272x128xf32> to vector<272x128xbf16>
    %c0_51 = arith.constant 0 : index
    %c0_52 = arith.constant 0 : index
    %c0_53 = arith.constant 0 : index
    %41 = vector.load %arg6[%c0_51, %c0_52, %c0_53] : memref<1x272x128xbf16, #tpu.memory_space<vmem>>, vector<1x272x128xbf16>
    %42 = vector.shape_cast %41 : vector<1x272x128xbf16> to vector<272x128xbf16>
    %43 = vector.shape_cast %40 : vector<272x128xbf16> to vector<1x272x128xbf16>
    tpu.vector_store %arg6[%c0_51, %c0_52, %c0_53], %43 {strides = array<i32>} : memref<1x272x128xbf16, #tpu.memory_space<vmem>>, vector<1x272x128xbf16>,
    return
  }
  func.func @transform_0(%arg0: i32, %arg1: i32) -> (i32, i32, i32, i32, i32) {
    %c0_i32 = arith.constant 0 : i32
    %c0_i32_0 = arith.constant 0 : i32
    %c0_i32_1 = arith.constant 0 : i32
    %c0_i32_2 = arith.constant 0 : i32
    return %arg0, %arg1, %c0_i32, %c0_i32_0, %c0_i32_1 : i32, i32, i32, i32, i32
  }
  func.func @transform_1(%arg0: i32, %arg1: i32) -> (i32, i32, i32) {
    %c0_i32 = arith.constant 0 : i32
    %c0_i32_0 = arith.constant 0 : i32
    %c0_i32_1 = arith.constant 0 : i32
    %c0_i32_2 = arith.constant 0 : i32
    return %c0_i32, %c0_i32_0, %c0_i32_1 : i32, i32, i32
  }
  func.func @transform_2(%arg0: i32, %arg1: i32) -> (i32, i32, i32) {
    %c0_i32 = arith.constant 0 : i32
    %c0_i32_0 = arith.constant 0 : i32
    %c0_i32_1 = arith.constant 0 : i32
    %c0_i32_2 = arith.constant 0 : i32
    return %c0_i32, %c0_i32_0, %c0_i32_1 : i32, i32, i32
  }
  func.func @transform_3(%arg0: i32, %arg1: i32) -> (i32, i32) {
    %c0_i32 = arith.constant 0 : i32
    %c0_i32_0 = arith.constant 0 : i32
    %c0_i32_1 = arith.constant 0 : i32
    return %c0_i32, %c0_i32_0 : i32, i32
  }
  func.func @transform_4(%arg0: i32, %arg1: i32) -> (i32, i32, i32) {
    %c0_i32 = arith.constant 0 : i32
    %c0_i32_0 = arith.constant 0 : i32
    return %arg0, %arg1, %c0_i32 : i32, i32, i32
  }
}

module attributes {stable_mosaic.version = 11 : i64} {
  func.func @kernel(%arg0: i32, %arg1: i32, %arg2: memref<1x1x2x90x256xbf16, #tpu.memory_space<vmem>>, %arg3: memref<3x256x128xbf16, #tpu.memory_space<vmem>>, %arg4: memref<3x128x128xbf16, #tpu.memory_space<vmem>>, %arg5: memref<1x128xf32, #tpu.memory_space<vmem>>, %arg6: memref<1x72x128xbf16, #tpu.memory_space<vmem>>) attributes {dimension_semantics = [#tpu.dimension_semantics<parallel>, #tpu.dimension_semantics<parallel>], iteration_bounds = array<i64: 2, 1>, scalar_prefetch = 0 : i64, scratch_operands = 0 : i64, tpu.core_type = #tpu.core_type<tc>, window_params = [{transform_indices = @transform_0, window_bounds = array<i64: 1, 1, 2, 90, 256>}, {pipeline_mode = #tpu.pipeline_mode<synchronous>, transform_indices = @transform_1, window_bounds = array<i64: 3, 256, 128>}, {pipeline_mode = #tpu.pipeline_mode<synchronous>, transform_indices = @transform_2, window_bounds = array<i64: 3, 128, 128>}, {pipeline_mode = #tpu.pipeline_mode<synchronous>, transform_indices = @transform_3, window_bounds = array<i64: 1, 128>}, {transform_indices = @transform_4, window_bounds = array<i64: 1, 72, 128>}]} {
    %c0 = arith.constant 0 : index
    %c0_0 = arith.constant 0 : index
    %c0_1 = arith.constant 0 : index
    %c0_2 = arith.constant 0 : index
    %c0_3 = arith.constant 0 : index
    %0 = vector.load %arg2[%c0, %c0_0, %c0_1, %c0_2, %c0_3] : memref<1x1x2x90x256xbf16, #tpu.memory_space<vmem>>, vector<1x1x1x72x256xbf16>
    %1 = vector.shape_cast %0 : vector<1x1x1x72x256xbf16> to vector<72x256xbf16>
    %c0_4 = arith.constant 0 : index
    %c0_5 = arith.constant 0 : index
    %c0_6 = arith.constant 0 : index
    %2 = vector.load %arg3[%c0_4, %c0_5, %c0_6] : memref<3x256x128xbf16, #tpu.memory_space<vmem>>, vector<1x256x128xbf16>
    %3 = vector.shape_cast %2 : vector<1x256x128xbf16> to vector<256x128xbf16>
    %cst = arith.constant dense<0.000000e+00> : vector<72x128xf32>
    %4 = tpu.matmul %1, %3, %cst {dimension_numbers = #tpu.dot_dimension_numbers<[1], [0], [0], [1], [0, 0, 1, 1], [], []>} : vector<72x256xbf16>, vector<256x128xbf16>, vector<72x128xf32> -> vector<72x128xf32>
    %c0_7 = arith.constant 0 : index
    %c0_8 = arith.constant 0 : index
    %c0_9 = arith.constant 0 : index
    %c1 = arith.constant 1 : index
    %c0_10 = arith.constant 0 : index
    %5 = vector.load %arg2[%c0_7, %c0_8, %c0_9, %c1, %c0_10] : memref<1x1x2x90x256xbf16, #tpu.memory_space<vmem>>, vector<1x1x1x72x128xbf16>
    %6 = vector.shape_cast %5 : vector<1x1x1x72x128xbf16> to vector<72x128xbf16>
    %c0_11 = arith.constant 0 : index
    %c0_12 = arith.constant 0 : index
    %c0_13 = arith.constant 0 : index
    %7 = vector.load %arg4[%c0_11, %c0_12, %c0_13] : memref<3x128x128xbf16, #tpu.memory_space<vmem>>, vector<1x128x128xbf16>
    %8 = vector.shape_cast %7 : vector<1x128x128xbf16> to vector<128x128xbf16>
    %cst_14 = arith.constant dense<0.000000e+00> : vector<72x128xf32>
    %9 = tpu.matmul %6, %8, %cst_14 {dimension_numbers = #tpu.dot_dimension_numbers<[1], [0], [0], [1], [0, 0, 1, 1], [], []>} : vector<72x128xbf16>, vector<128x128xbf16>, vector<72x128xf32> -> vector<72x128xf32>
    %10 = arith.addf %4, %9 : vector<72x128xf32>
    %c0_15 = arith.constant 0 : index
    %c0_16 = arith.constant 0 : index
    %c1_17 = arith.constant 1 : index
    %c0_18 = arith.constant 0 : index
    %c0_19 = arith.constant 0 : index
    %11 = vector.load %arg2[%c0_15, %c0_16, %c1_17, %c0_18, %c0_19] : memref<1x1x2x90x256xbf16, #tpu.memory_space<vmem>>, vector<1x1x1x72x256xbf16>
    %12 = vector.shape_cast %11 : vector<1x1x1x72x256xbf16> to vector<72x256xbf16>
    %c1_20 = arith.constant 1 : index
    %c0_21 = arith.constant 0 : index
    %c0_22 = arith.constant 0 : index
    %13 = vector.load %arg3[%c1_20, %c0_21, %c0_22] : memref<3x256x128xbf16, #tpu.memory_space<vmem>>, vector<1x256x128xbf16>
    %14 = vector.shape_cast %13 : vector<1x256x128xbf16> to vector<256x128xbf16>
    %cst_23 = arith.constant dense<0.000000e+00> : vector<72x128xf32>
    %15 = tpu.matmul %12, %14, %cst_23 {dimension_numbers = #tpu.dot_dimension_numbers<[1], [0], [0], [1], [0, 0, 1, 1], [], []>} : vector<72x256xbf16>, vector<256x128xbf16>, vector<72x128xf32> -> vector<72x128xf32>
    %16 = arith.addf %10, %15 : vector<72x128xf32>
    %c0_24 = arith.constant 0 : index
    %c0_25 = arith.constant 0 : index
    %c1_26 = arith.constant 1 : index
    %c1_27 = arith.constant 1 : index
    %c0_28 = arith.constant 0 : index
    %17 = vector.load %arg2[%c0_24, %c0_25, %c1_26, %c1_27, %c0_28] : memref<1x1x2x90x256xbf16, #tpu.memory_space<vmem>>, vector<1x1x1x72x128xbf16>
    %18 = vector.shape_cast %17 : vector<1x1x1x72x128xbf16> to vector<72x128xbf16>
    %c1_29 = arith.constant 1 : index
    %c0_30 = arith.constant 0 : index
    %c0_31 = arith.constant 0 : index
    %19 = vector.load %arg4[%c1_29, %c0_30, %c0_31] : memref<3x128x128xbf16, #tpu.memory_space<vmem>>, vector<1x128x128xbf16>
    %20 = vector.shape_cast %19 : vector<1x128x128xbf16> to vector<128x128xbf16>
    %cst_32 = arith.constant dense<0.000000e+00> : vector<72x128xf32>
    %21 = tpu.matmul %18, %20, %cst_32 {dimension_numbers = #tpu.dot_dimension_numbers<[1], [0], [0], [1], [0, 0, 1, 1], [], []>} : vector<72x128xbf16>, vector<128x128xbf16>, vector<72x128xf32> -> vector<72x128xf32>
    %22 = arith.addf %16, %21 : vector<72x128xf32>
    %c0_33 = arith.constant 0 : index
    %c0_34 = arith.constant 0 : index
    %c0_35 = arith.constant 0 : index
    %c9 = arith.constant 9 : index
    %c0_36 = arith.constant 0 : index
    %23 = vector.load %arg2[%c0_33, %c0_34, %c0_35, %c9, %c0_36] : memref<1x1x2x90x256xbf16, #tpu.memory_space<vmem>>, vector<1x1x1x72x256xbf16>
    %24 = vector.shape_cast %23 : vector<1x1x1x72x256xbf16> to vector<72x256xbf16>
    %c2 = arith.constant 2 : index
    %c0_37 = arith.constant 0 : index
    %c0_38 = arith.constant 0 : index
    %25 = vector.load %arg3[%c2, %c0_37, %c0_38] : memref<3x256x128xbf16, #tpu.memory_space<vmem>>, vector<1x256x128xbf16>
    %26 = vector.shape_cast %25 : vector<1x256x128xbf16> to vector<256x128xbf16>
    %cst_39 = arith.constant dense<0.000000e+00> : vector<72x128xf32>
    %27 = tpu.matmul %24, %26, %cst_39 {dimension_numbers = #tpu.dot_dimension_numbers<[1], [0], [0], [1], [0, 0, 1, 1], [], []>} : vector<72x256xbf16>, vector<256x128xbf16>, vector<72x128xf32> -> vector<72x128xf32>
    %28 = arith.addf %22, %27 : vector<72x128xf32>
    %c0_40 = arith.constant 0 : index
    %c0_41 = arith.constant 0 : index
    %c0_42 = arith.constant 0 : index
    %c10 = arith.constant 10 : index
    %c0_43 = arith.constant 0 : index
    %29 = vector.load %arg2[%c0_40, %c0_41, %c0_42, %c10, %c0_43] : memref<1x1x2x90x256xbf16, #tpu.memory_space<vmem>>, vector<1x1x1x72x128xbf16>
    %30 = vector.shape_cast %29 : vector<1x1x1x72x128xbf16> to vector<72x128xbf16>
    %c2_44 = arith.constant 2 : index
    %c0_45 = arith.constant 0 : index
    %c0_46 = arith.constant 0 : index
    %31 = vector.load %arg4[%c2_44, %c0_45, %c0_46] : memref<3x128x128xbf16, #tpu.memory_space<vmem>>, vector<1x128x128xbf16>
    %32 = vector.shape_cast %31 : vector<1x128x128xbf16> to vector<128x128xbf16>
    %cst_47 = arith.constant dense<0.000000e+00> : vector<72x128xf32>
    %33 = tpu.matmul %30, %32, %cst_47 {dimension_numbers = #tpu.dot_dimension_numbers<[1], [0], [0], [1], [0, 0, 1, 1], [], []>} : vector<72x128xbf16>, vector<128x128xbf16>, vector<72x128xf32> -> vector<72x128xf32>
    %34 = arith.addf %28, %33 : vector<72x128xf32>
    %c0_48 = arith.constant 0 : index
    %c0_49 = arith.constant 0 : index
    %35 = vector.load %arg5[%c0_48, %c0_49] : memref<1x128xf32, #tpu.memory_space<vmem>>, vector<1x128xf32>
    %36 = vector.broadcast %35 : vector<1x128xf32> to vector<72x128xf32>
    %37 = arith.addf %34, %36 : vector<72x128xf32>
    %cst_50 = arith.constant 0.000000e+00 : f32
    %38 = vector.broadcast %cst_50 : f32 to vector<72x128xf32>
    %39 = arith.maximumf %37, %38 : vector<72x128xf32>
    %40 = arith.truncf %39 : vector<72x128xf32> to vector<72x128xbf16>
    %c0_51 = arith.constant 0 : index
    %c0_52 = arith.constant 0 : index
    %c0_53 = arith.constant 0 : index
    %41 = vector.load %arg6[%c0_51, %c0_52, %c0_53] : memref<1x72x128xbf16, #tpu.memory_space<vmem>>, vector<1x72x128xbf16>
    %42 = vector.shape_cast %41 : vector<1x72x128xbf16> to vector<72x128xbf16>
    %43 = vector.shape_cast %40 : vector<72x128xbf16> to vector<1x72x128xbf16>
    tpu.vector_store %arg6[%c0_51, %c0_52, %c0_53], %43 {strides = array<i32>} : memref<1x72x128xbf16, #tpu.memory_space<vmem>>, vector<1x72x128xbf16>,
    return
  }
  func.func @transform_0(%arg0: i32, %arg1: i32) -> (i32, i32, i32, i32, i32) {
    %c0_i32 = arith.constant 0 : i32
    %c0_i32_0 = arith.constant 0 : i32
    %c0_i32_1 = arith.constant 0 : i32
    %c0_i32_2 = arith.constant 0 : i32
    return %arg0, %arg1, %c0_i32, %c0_i32_0, %c0_i32_1 : i32, i32, i32, i32, i32
  }
  func.func @transform_1(%arg0: i32, %arg1: i32) -> (i32, i32, i32) {
    %c0_i32 = arith.constant 0 : i32
    %c0_i32_0 = arith.constant 0 : i32
    %c0_i32_1 = arith.constant 0 : i32
    %c0_i32_2 = arith.constant 0 : i32
    return %c0_i32, %c0_i32_0, %c0_i32_1 : i32, i32, i32
  }
  func.func @transform_2(%arg0: i32, %arg1: i32) -> (i32, i32, i32) {
    %c0_i32 = arith.constant 0 : i32
    %c0_i32_0 = arith.constant 0 : i32
    %c0_i32_1 = arith.constant 0 : i32
    %c0_i32_2 = arith.constant 0 : i32
    return %c0_i32, %c0_i32_0, %c0_i32_1 : i32, i32, i32
  }
  func.func @transform_3(%arg0: i32, %arg1: i32) -> (i32, i32) {
    %c0_i32 = arith.constant 0 : i32
    %c0_i32_0 = arith.constant 0 : i32
    %c0_i32_1 = arith.constant 0 : i32
    return %c0_i32, %c0_i32_0 : i32, i32
  }
  func.func @transform_4(%arg0: i32, %arg1: i32) -> (i32, i32, i32) {
    %c0_i32 = arith.constant 0 : i32
    %c0_i32_0 = arith.constant 0 : i32
    return %arg0, %arg1, %c0_i32 : i32, i32, i32
  }
}

module attributes {stable_mosaic.version = 11 : i64} {
  func.func @kernel(%arg0: i32, %arg1: i32, %arg2: memref<1x1x2x30x256xbf16, #tpu.memory_space<vmem>>, %arg3: memref<3x256x128xbf16, #tpu.memory_space<vmem>>, %arg4: memref<3x128x128xbf16, #tpu.memory_space<vmem>>, %arg5: memref<1x128xf32, #tpu.memory_space<vmem>>, %arg6: memref<1x20x128xbf16, #tpu.memory_space<vmem>>) attributes {dimension_semantics = [#tpu.dimension_semantics<parallel>, #tpu.dimension_semantics<parallel>], iteration_bounds = array<i64: 2, 1>, scalar_prefetch = 0 : i64, scratch_operands = 0 : i64, tpu.core_type = #tpu.core_type<tc>, window_params = [{transform_indices = @transform_0, window_bounds = array<i64: 1, 1, 2, 30, 256>}, {pipeline_mode = #tpu.pipeline_mode<synchronous>, transform_indices = @transform_1, window_bounds = array<i64: 3, 256, 128>}, {pipeline_mode = #tpu.pipeline_mode<synchronous>, transform_indices = @transform_2, window_bounds = array<i64: 3, 128, 128>}, {pipeline_mode = #tpu.pipeline_mode<synchronous>, transform_indices = @transform_3, window_bounds = array<i64: 1, 128>}, {transform_indices = @transform_4, window_bounds = array<i64: 1, 20, 128>}]} {
    %c0 = arith.constant 0 : index
    %c0_0 = arith.constant 0 : index
    %c0_1 = arith.constant 0 : index
    %c0_2 = arith.constant 0 : index
    %c0_3 = arith.constant 0 : index
    %0 = vector.load %arg2[%c0, %c0_0, %c0_1, %c0_2, %c0_3] : memref<1x1x2x30x256xbf16, #tpu.memory_space<vmem>>, vector<1x1x1x20x256xbf16>
    %1 = vector.shape_cast %0 : vector<1x1x1x20x256xbf16> to vector<20x256xbf16>
    %c0_4 = arith.constant 0 : index
    %c0_5 = arith.constant 0 : index
    %c0_6 = arith.constant 0 : index
    %2 = vector.load %arg3[%c0_4, %c0_5, %c0_6] : memref<3x256x128xbf16, #tpu.memory_space<vmem>>, vector<1x256x128xbf16>
    %3 = vector.shape_cast %2 : vector<1x256x128xbf16> to vector<256x128xbf16>
    %cst = arith.constant dense<0.000000e+00> : vector<20x128xf32>
    %4 = tpu.matmul %1, %3, %cst {dimension_numbers = #tpu.dot_dimension_numbers<[1], [0], [0], [1], [0, 0, 1, 1], [], []>} : vector<20x256xbf16>, vector<256x128xbf16>, vector<20x128xf32> -> vector<20x128xf32>
    %c0_7 = arith.constant 0 : index
    %c0_8 = arith.constant 0 : index
    %c0_9 = arith.constant 0 : index
    %c1 = arith.constant 1 : index
    %c0_10 = arith.constant 0 : index
    %5 = vector.load %arg2[%c0_7, %c0_8, %c0_9, %c1, %c0_10] : memref<1x1x2x30x256xbf16, #tpu.memory_space<vmem>>, vector<1x1x1x20x128xbf16>
    %6 = vector.shape_cast %5 : vector<1x1x1x20x128xbf16> to vector<20x128xbf16>
    %c0_11 = arith.constant 0 : index
    %c0_12 = arith.constant 0 : index
    %c0_13 = arith.constant 0 : index
    %7 = vector.load %arg4[%c0_11, %c0_12, %c0_13] : memref<3x128x128xbf16, #tpu.memory_space<vmem>>, vector<1x128x128xbf16>
    %8 = vector.shape_cast %7 : vector<1x128x128xbf16> to vector<128x128xbf16>
    %cst_14 = arith.constant dense<0.000000e+00> : vector<20x128xf32>
    %9 = tpu.matmul %6, %8, %cst_14 {dimension_numbers = #tpu.dot_dimension_numbers<[1], [0], [0], [1], [0, 0, 1, 1], [], []>} : vector<20x128xbf16>, vector<128x128xbf16>, vector<20x128xf32> -> vector<20x128xf32>
    %10 = arith.addf %4, %9 : vector<20x128xf32>
    %c0_15 = arith.constant 0 : index
    %c0_16 = arith.constant 0 : index
    %c1_17 = arith.constant 1 : index
    %c0_18 = arith.constant 0 : index
    %c0_19 = arith.constant 0 : index
    %11 = vector.load %arg2[%c0_15, %c0_16, %c1_17, %c0_18, %c0_19] : memref<1x1x2x30x256xbf16, #tpu.memory_space<vmem>>, vector<1x1x1x20x256xbf16>
    %12 = vector.shape_cast %11 : vector<1x1x1x20x256xbf16> to vector<20x256xbf16>
    %c1_20 = arith.constant 1 : index
    %c0_21 = arith.constant 0 : index
    %c0_22 = arith.constant 0 : index
    %13 = vector.load %arg3[%c1_20, %c0_21, %c0_22] : memref<3x256x128xbf16, #tpu.memory_space<vmem>>, vector<1x256x128xbf16>
    %14 = vector.shape_cast %13 : vector<1x256x128xbf16> to vector<256x128xbf16>
    %cst_23 = arith.constant dense<0.000000e+00> : vector<20x128xf32>
    %15 = tpu.matmul %12, %14, %cst_23 {dimension_numbers = #tpu.dot_dimension_numbers<[1], [0], [0], [1], [0, 0, 1, 1], [], []>} : vector<20x256xbf16>, vector<256x128xbf16>, vector<20x128xf32> -> vector<20x128xf32>
    %16 = arith.addf %10, %15 : vector<20x128xf32>
    %c0_24 = arith.constant 0 : index
    %c0_25 = arith.constant 0 : index
    %c1_26 = arith.constant 1 : index
    %c1_27 = arith.constant 1 : index
    %c0_28 = arith.constant 0 : index
    %17 = vector.load %arg2[%c0_24, %c0_25, %c1_26, %c1_27, %c0_28] : memref<1x1x2x30x256xbf16, #tpu.memory_space<vmem>>, vector<1x1x1x20x128xbf16>
    %18 = vector.shape_cast %17 : vector<1x1x1x20x128xbf16> to vector<20x128xbf16>
    %c1_29 = arith.constant 1 : index
    %c0_30 = arith.constant 0 : index
    %c0_31 = arith.constant 0 : index
    %19 = vector.load %arg4[%c1_29, %c0_30, %c0_31] : memref<3x128x128xbf16, #tpu.memory_space<vmem>>, vector<1x128x128xbf16>
    %20 = vector.shape_cast %19 : vector<1x128x128xbf16> to vector<128x128xbf16>
    %cst_32 = arith.constant dense<0.000000e+00> : vector<20x128xf32>
    %21 = tpu.matmul %18, %20, %cst_32 {dimension_numbers = #tpu.dot_dimension_numbers<[1], [0], [0], [1], [0, 0, 1, 1], [], []>} : vector<20x128xbf16>, vector<128x128xbf16>, vector<20x128xf32> -> vector<20x128xf32>
    %22 = arith.addf %16, %21 : vector<20x128xf32>
    %c0_33 = arith.constant 0 : index
    %c0_34 = arith.constant 0 : index
    %c0_35 = arith.constant 0 : index
    %c5 = arith.constant 5 : index
    %c0_36 = arith.constant 0 : index
    %23 = vector.load %arg2[%c0_33, %c0_34, %c0_35, %c5, %c0_36] : memref<1x1x2x30x256xbf16, #tpu.memory_space<vmem>>, vector<1x1x1x20x256xbf16>
    %24 = vector.shape_cast %23 : vector<1x1x1x20x256xbf16> to vector<20x256xbf16>
    %c2 = arith.constant 2 : index
    %c0_37 = arith.constant 0 : index
    %c0_38 = arith.constant 0 : index
    %25 = vector.load %arg3[%c2, %c0_37, %c0_38] : memref<3x256x128xbf16, #tpu.memory_space<vmem>>, vector<1x256x128xbf16>
    %26 = vector.shape_cast %25 : vector<1x256x128xbf16> to vector<256x128xbf16>
    %cst_39 = arith.constant dense<0.000000e+00> : vector<20x128xf32>
    %27 = tpu.matmul %24, %26, %cst_39 {dimension_numbers = #tpu.dot_dimension_numbers<[1], [0], [0], [1], [0, 0, 1, 1], [], []>} : vector<20x256xbf16>, vector<256x128xbf16>, vector<20x128xf32> -> vector<20x128xf32>
    %28 = arith.addf %22, %27 : vector<20x128xf32>
    %c0_40 = arith.constant 0 : index
    %c0_41 = arith.constant 0 : index
    %c0_42 = arith.constant 0 : index
    %c6 = arith.constant 6 : index
    %c0_43 = arith.constant 0 : index
    %29 = vector.load %arg2[%c0_40, %c0_41, %c0_42, %c6, %c0_43] : memref<1x1x2x30x256xbf16, #tpu.memory_space<vmem>>, vector<1x1x1x20x128xbf16>
    %30 = vector.shape_cast %29 : vector<1x1x1x20x128xbf16> to vector<20x128xbf16>
    %c2_44 = arith.constant 2 : index
    %c0_45 = arith.constant 0 : index
    %c0_46 = arith.constant 0 : index
    %31 = vector.load %arg4[%c2_44, %c0_45, %c0_46] : memref<3x128x128xbf16, #tpu.memory_space<vmem>>, vector<1x128x128xbf16>
    %32 = vector.shape_cast %31 : vector<1x128x128xbf16> to vector<128x128xbf16>
    %cst_47 = arith.constant dense<0.000000e+00> : vector<20x128xf32>
    %33 = tpu.matmul %30, %32, %cst_47 {dimension_numbers = #tpu.dot_dimension_numbers<[1], [0], [0], [1], [0, 0, 1, 1], [], []>} : vector<20x128xbf16>, vector<128x128xbf16>, vector<20x128xf32> -> vector<20x128xf32>
    %34 = arith.addf %28, %33 : vector<20x128xf32>
    %c0_48 = arith.constant 0 : index
    %c0_49 = arith.constant 0 : index
    %35 = vector.load %arg5[%c0_48, %c0_49] : memref<1x128xf32, #tpu.memory_space<vmem>>, vector<1x128xf32>
    %36 = vector.broadcast %35 : vector<1x128xf32> to vector<20x128xf32>
    %37 = arith.addf %34, %36 : vector<20x128xf32>
    %cst_50 = arith.constant 0.000000e+00 : f32
    %38 = vector.broadcast %cst_50 : f32 to vector<20x128xf32>
    %39 = arith.maximumf %37, %38 : vector<20x128xf32>
    %40 = arith.truncf %39 : vector<20x128xf32> to vector<20x128xbf16>
    %c0_51 = arith.constant 0 : index
    %c0_52 = arith.constant 0 : index
    %c0_53 = arith.constant 0 : index
    %41 = vector.load %arg6[%c0_51, %c0_52, %c0_53] : memref<1x20x128xbf16, #tpu.memory_space<vmem>>, vector<1x20x128xbf16>
    %42 = vector.shape_cast %41 : vector<1x20x128xbf16> to vector<20x128xbf16>
    %43 = vector.shape_cast %40 : vector<20x128xbf16> to vector<1x20x128xbf16>
    tpu.vector_store %arg6[%c0_51, %c0_52, %c0_53], %43 {strides = array<i32>} : memref<1x20x128xbf16, #tpu.memory_space<vmem>>, vector<1x20x128xbf16>,
    return
  }
  func.func @transform_0(%arg0: i32, %arg1: i32) -> (i32, i32, i32, i32, i32) {
    %c0_i32 = arith.constant 0 : i32
    %c0_i32_0 = arith.constant 0 : i32
    %c0_i32_1 = arith.constant 0 : i32
    %c0_i32_2 = arith.constant 0 : i32
    return %arg0, %arg1, %c0_i32, %c0_i32_0, %c0_i32_1 : i32, i32, i32, i32, i32
  }
  func.func @transform_1(%arg0: i32, %arg1: i32) -> (i32, i32, i32) {
    %c0_i32 = arith.constant 0 : i32
    %c0_i32_0 = arith.constant 0 : i32
    %c0_i32_1 = arith.constant 0 : i32
    %c0_i32_2 = arith.constant 0 : i32
    return %c0_i32, %c0_i32_0, %c0_i32_1 : i32, i32, i32
  }
  func.func @transform_2(%arg0: i32, %arg1: i32) -> (i32, i32, i32) {
    %c0_i32 = arith.constant 0 : i32
    %c0_i32_0 = arith.constant 0 : i32
    %c0_i32_1 = arith.constant 0 : i32
    %c0_i32_2 = arith.constant 0 : i32
    return %c0_i32, %c0_i32_0, %c0_i32_1 : i32, i32, i32
  }
  func.func @transform_3(%arg0: i32, %arg1: i32) -> (i32, i32) {
    %c0_i32 = arith.constant 0 : i32
    %c0_i32_0 = arith.constant 0 : i32
    %c0_i32_1 = arith.constant 0 : i32
    return %c0_i32, %c0_i32_0 : i32, i32
  }
  func.func @transform_4(%arg0: i32, %arg1: i32) -> (i32, i32, i32) {
    %c0_i32 = arith.constant 0 : i32
    %c0_i32_0 = arith.constant 0 : i32
    return %arg0, %arg1, %c0_i32 : i32, i32, i32
  }
}

module attributes {stable_mosaic.version = 11 : i64} {
  func.func @kernel(%arg0: i32, %arg1: i32, %arg2: memref<1x1x2x12x256xbf16, #tpu.memory_space<vmem>>, %arg3: memref<3x256x128xbf16, #tpu.memory_space<vmem>>, %arg4: memref<3x128x128xbf16, #tpu.memory_space<vmem>>, %arg5: memref<1x128xf32, #tpu.memory_space<vmem>>, %arg6: memref<1x6x128xbf16, #tpu.memory_space<vmem>>) attributes {dimension_semantics = [#tpu.dimension_semantics<parallel>, #tpu.dimension_semantics<parallel>], iteration_bounds = array<i64: 2, 1>, scalar_prefetch = 0 : i64, scratch_operands = 0 : i64, tpu.core_type = #tpu.core_type<tc>, window_params = [{transform_indices = @transform_0, window_bounds = array<i64: 1, 1, 2, 12, 256>}, {pipeline_mode = #tpu.pipeline_mode<synchronous>, transform_indices = @transform_1, window_bounds = array<i64: 3, 256, 128>}, {pipeline_mode = #tpu.pipeline_mode<synchronous>, transform_indices = @transform_2, window_bounds = array<i64: 3, 128, 128>}, {pipeline_mode = #tpu.pipeline_mode<synchronous>, transform_indices = @transform_3, window_bounds = array<i64: 1, 128>}, {transform_indices = @transform_4, window_bounds = array<i64: 1, 6, 128>}]} {
    %c0 = arith.constant 0 : index
    %c0_0 = arith.constant 0 : index
    %c0_1 = arith.constant 0 : index
    %c0_2 = arith.constant 0 : index
    %c0_3 = arith.constant 0 : index
    %0 = vector.load %arg2[%c0, %c0_0, %c0_1, %c0_2, %c0_3] : memref<1x1x2x12x256xbf16, #tpu.memory_space<vmem>>, vector<1x1x1x6x256xbf16>
    %1 = vector.shape_cast %0 : vector<1x1x1x6x256xbf16> to vector<6x256xbf16>
    %c0_4 = arith.constant 0 : index
    %c0_5 = arith.constant 0 : index
    %c0_6 = arith.constant 0 : index
    %2 = vector.load %arg3[%c0_4, %c0_5, %c0_6] : memref<3x256x128xbf16, #tpu.memory_space<vmem>>, vector<1x256x128xbf16>
    %3 = vector.shape_cast %2 : vector<1x256x128xbf16> to vector<256x128xbf16>
    %cst = arith.constant dense<0.000000e+00> : vector<6x128xf32>
    %4 = tpu.matmul %1, %3, %cst {dimension_numbers = #tpu.dot_dimension_numbers<[1], [0], [0], [1], [0, 0, 1, 1], [], []>} : vector<6x256xbf16>, vector<256x128xbf16>, vector<6x128xf32> -> vector<6x128xf32>
    %c0_7 = arith.constant 0 : index
    %c0_8 = arith.constant 0 : index
    %c0_9 = arith.constant 0 : index
    %c1 = arith.constant 1 : index
    %c0_10 = arith.constant 0 : index
    %5 = vector.load %arg2[%c0_7, %c0_8, %c0_9, %c1, %c0_10] : memref<1x1x2x12x256xbf16, #tpu.memory_space<vmem>>, vector<1x1x1x6x128xbf16>
    %6 = vector.shape_cast %5 : vector<1x1x1x6x128xbf16> to vector<6x128xbf16>
    %c0_11 = arith.constant 0 : index
    %c0_12 = arith.constant 0 : index
    %c0_13 = arith.constant 0 : index
    %7 = vector.load %arg4[%c0_11, %c0_12, %c0_13] : memref<3x128x128xbf16, #tpu.memory_space<vmem>>, vector<1x128x128xbf16>
    %8 = vector.shape_cast %7 : vector<1x128x128xbf16> to vector<128x128xbf16>
    %cst_14 = arith.constant dense<0.000000e+00> : vector<6x128xf32>
    %9 = tpu.matmul %6, %8, %cst_14 {dimension_numbers = #tpu.dot_dimension_numbers<[1], [0], [0], [1], [0, 0, 1, 1], [], []>} : vector<6x128xbf16>, vector<128x128xbf16>, vector<6x128xf32> -> vector<6x128xf32>
    %10 = arith.addf %4, %9 : vector<6x128xf32>
    %c0_15 = arith.constant 0 : index
    %c0_16 = arith.constant 0 : index
    %c1_17 = arith.constant 1 : index
    %c0_18 = arith.constant 0 : index
    %c0_19 = arith.constant 0 : index
    %11 = vector.load %arg2[%c0_15, %c0_16, %c1_17, %c0_18, %c0_19] : memref<1x1x2x12x256xbf16, #tpu.memory_space<vmem>>, vector<1x1x1x6x256xbf16>
    %12 = vector.shape_cast %11 : vector<1x1x1x6x256xbf16> to vector<6x256xbf16>
    %c1_20 = arith.constant 1 : index
    %c0_21 = arith.constant 0 : index
    %c0_22 = arith.constant 0 : index
    %13 = vector.load %arg3[%c1_20, %c0_21, %c0_22] : memref<3x256x128xbf16, #tpu.memory_space<vmem>>, vector<1x256x128xbf16>
    %14 = vector.shape_cast %13 : vector<1x256x128xbf16> to vector<256x128xbf16>
    %cst_23 = arith.constant dense<0.000000e+00> : vector<6x128xf32>
    %15 = tpu.matmul %12, %14, %cst_23 {dimension_numbers = #tpu.dot_dimension_numbers<[1], [0], [0], [1], [0, 0, 1, 1], [], []>} : vector<6x256xbf16>, vector<256x128xbf16>, vector<6x128xf32> -> vector<6x128xf32>
    %16 = arith.addf %10, %15 : vector<6x128xf32>
    %c0_24 = arith.constant 0 : index
    %c0_25 = arith.constant 0 : index
    %c1_26 = arith.constant 1 : index
    %c1_27 = arith.constant 1 : index
    %c0_28 = arith.constant 0 : index
    %17 = vector.load %arg2[%c0_24, %c0_25, %c1_26, %c1_27, %c0_28] : memref<1x1x2x12x256xbf16, #tpu.memory_space<vmem>>, vector<1x1x1x6x128xbf16>
    %18 = vector.shape_cast %17 : vector<1x1x1x6x128xbf16> to vector<6x128xbf16>
    %c1_29 = arith.constant 1 : index
    %c0_30 = arith.constant 0 : index
    %c0_31 = arith.constant 0 : index
    %19 = vector.load %arg4[%c1_29, %c0_30, %c0_31] : memref<3x128x128xbf16, #tpu.memory_space<vmem>>, vector<1x128x128xbf16>
    %20 = vector.shape_cast %19 : vector<1x128x128xbf16> to vector<128x128xbf16>
    %cst_32 = arith.constant dense<0.000000e+00> : vector<6x128xf32>
    %21 = tpu.matmul %18, %20, %cst_32 {dimension_numbers = #tpu.dot_dimension_numbers<[1], [0], [0], [1], [0, 0, 1, 1], [], []>} : vector<6x128xbf16>, vector<128x128xbf16>, vector<6x128xf32> -> vector<6x128xf32>
    %22 = arith.addf %16, %21 : vector<6x128xf32>
    %c0_33 = arith.constant 0 : index
    %c0_34 = arith.constant 0 : index
    %c0_35 = arith.constant 0 : index
    %c3 = arith.constant 3 : index
    %c0_36 = arith.constant 0 : index
    %23 = vector.load %arg2[%c0_33, %c0_34, %c0_35, %c3, %c0_36] : memref<1x1x2x12x256xbf16, #tpu.memory_space<vmem>>, vector<1x1x1x6x256xbf16>
    %24 = vector.shape_cast %23 : vector<1x1x1x6x256xbf16> to vector<6x256xbf16>
    %c2 = arith.constant 2 : index
    %c0_37 = arith.constant 0 : index
    %c0_38 = arith.constant 0 : index
    %25 = vector.load %arg3[%c2, %c0_37, %c0_38] : memref<3x256x128xbf16, #tpu.memory_space<vmem>>, vector<1x256x128xbf16>
    %26 = vector.shape_cast %25 : vector<1x256x128xbf16> to vector<256x128xbf16>
    %cst_39 = arith.constant dense<0.000000e+00> : vector<6x128xf32>
    %27 = tpu.matmul %24, %26, %cst_39 {dimension_numbers = #tpu.dot_dimension_numbers<[1], [0], [0], [1], [0, 0, 1, 1], [], []>} : vector<6x256xbf16>, vector<256x128xbf16>, vector<6x128xf32> -> vector<6x128xf32>
    %28 = arith.addf %22, %27 : vector<6x128xf32>
    %c0_40 = arith.constant 0 : index
    %c0_41 = arith.constant 0 : index
    %c0_42 = arith.constant 0 : index
    %c4 = arith.constant 4 : index
    %c0_43 = arith.constant 0 : index
    %29 = vector.load %arg2[%c0_40, %c0_41, %c0_42, %c4, %c0_43] : memref<1x1x2x12x256xbf16, #tpu.memory_space<vmem>>, vector<1x1x1x6x128xbf16>
    %30 = vector.shape_cast %29 : vector<1x1x1x6x128xbf16> to vector<6x128xbf16>
    %c2_44 = arith.constant 2 : index
    %c0_45 = arith.constant 0 : index
    %c0_46 = arith.constant 0 : index
    %31 = vector.load %arg4[%c2_44, %c0_45, %c0_46] : memref<3x128x128xbf16, #tpu.memory_space<vmem>>, vector<1x128x128xbf16>
    %32 = vector.shape_cast %31 : vector<1x128x128xbf16> to vector<128x128xbf16>
    %cst_47 = arith.constant dense<0.000000e+00> : vector<6x128xf32>
    %33 = tpu.matmul %30, %32, %cst_47 {dimension_numbers = #tpu.dot_dimension_numbers<[1], [0], [0], [1], [0, 0, 1, 1], [], []>} : vector<6x128xbf16>, vector<128x128xbf16>, vector<6x128xf32> -> vector<6x128xf32>
    %34 = arith.addf %28, %33 : vector<6x128xf32>
    %c0_48 = arith.constant 0 : index
    %c0_49 = arith.constant 0 : index
    %35 = vector.load %arg5[%c0_48, %c0_49] : memref<1x128xf32, #tpu.memory_space<vmem>>, vector<1x128xf32>
    %36 = vector.broadcast %35 : vector<1x128xf32> to vector<6x128xf32>
    %37 = arith.addf %34, %36 : vector<6x128xf32>
    %cst_50 = arith.constant 0.000000e+00 : f32
    %38 = vector.broadcast %cst_50 : f32 to vector<6x128xf32>
    %39 = arith.maximumf %37, %38 : vector<6x128xf32>
    %40 = arith.truncf %39 : vector<6x128xf32> to vector<6x128xbf16>
    %c0_51 = arith.constant 0 : index
    %c0_52 = arith.constant 0 : index
    %c0_53 = arith.constant 0 : index
    %41 = vector.load %arg6[%c0_51, %c0_52, %c0_53] : memref<1x6x128xbf16, #tpu.memory_space<vmem>>, vector<1x6x128xbf16>
    %42 = vector.shape_cast %41 : vector<1x6x128xbf16> to vector<6x128xbf16>
    %43 = vector.shape_cast %40 : vector<6x128xbf16> to vector<1x6x128xbf16>
    tpu.vector_store %arg6[%c0_51, %c0_52, %c0_53], %43 {strides = array<i32>} : memref<1x6x128xbf16, #tpu.memory_space<vmem>>, vector<1x6x128xbf16>,
    return
  }
  func.func @transform_0(%arg0: i32, %arg1: i32) -> (i32, i32, i32, i32, i32) {
    %c0_i32 = arith.constant 0 : i32
    %c0_i32_0 = arith.constant 0 : i32
    %c0_i32_1 = arith.constant 0 : i32
    %c0_i32_2 = arith.constant 0 : i32
    return %arg0, %arg1, %c0_i32, %c0_i32_0, %c0_i32_1 : i32, i32, i32, i32, i32
  }
  func.func @transform_1(%arg0: i32, %arg1: i32) -> (i32, i32, i32) {
    %c0_i32 = arith.constant 0 : i32
    %c0_i32_0 = arith.constant 0 : i32
    %c0_i32_1 = arith.constant 0 : i32
    %c0_i32_2 = arith.constant 0 : i32
    return %c0_i32, %c0_i32_0, %c0_i32_1 : i32, i32, i32
  }
  func.func @transform_2(%arg0: i32, %arg1: i32) -> (i32, i32, i32) {
    %c0_i32 = arith.constant 0 : i32
    %c0_i32_0 = arith.constant 0 : i32
    %c0_i32_1 = arith.constant 0 : i32
    %c0_i32_2 = arith.constant 0 : i32
    return %c0_i32, %c0_i32_0, %c0_i32_1 : i32, i32, i32
  }
  func.func @transform_3(%arg0: i32, %arg1: i32) -> (i32, i32) {
    %c0_i32 = arith.constant 0 : i32
    %c0_i32_0 = arith.constant 0 : i32
    %c0_i32_1 = arith.constant 0 : i32
    return %c0_i32, %c0_i32_0 : i32, i32
  }
  func.func @transform_4(%arg0: i32, %arg1: i32) -> (i32, i32, i32) {
    %c0_i32 = arith.constant 0 : i32
    %c0_i32_0 = arith.constant 0 : i32
    return %arg0, %arg1, %c0_i32 : i32, i32, i32
  }
}

module attributes {stable_mosaic.version = 11 : i64} {
  func.func @kernel(%arg0: i32, %arg1: i32, %arg2: memref<1x1x2x6x256xbf16, #tpu.memory_space<vmem>>, %arg3: memref<3x256x128xbf16, #tpu.memory_space<vmem>>, %arg4: memref<3x128x128xbf16, #tpu.memory_space<vmem>>, %arg5: memref<1x128xf32, #tpu.memory_space<vmem>>, %arg6: memref<1x2x128xbf16, #tpu.memory_space<vmem>>) attributes {dimension_semantics = [#tpu.dimension_semantics<parallel>, #tpu.dimension_semantics<parallel>], iteration_bounds = array<i64: 2, 1>, scalar_prefetch = 0 : i64, scratch_operands = 0 : i64, tpu.core_type = #tpu.core_type<tc>, window_params = [{transform_indices = @transform_0, window_bounds = array<i64: 1, 1, 2, 6, 256>}, {pipeline_mode = #tpu.pipeline_mode<synchronous>, transform_indices = @transform_1, window_bounds = array<i64: 3, 256, 128>}, {pipeline_mode = #tpu.pipeline_mode<synchronous>, transform_indices = @transform_2, window_bounds = array<i64: 3, 128, 128>}, {pipeline_mode = #tpu.pipeline_mode<synchronous>, transform_indices = @transform_3, window_bounds = array<i64: 1, 128>}, {transform_indices = @transform_4, window_bounds = array<i64: 1, 2, 128>}]} {
    %c0 = arith.constant 0 : index
    %c0_0 = arith.constant 0 : index
    %c0_1 = arith.constant 0 : index
    %c0_2 = arith.constant 0 : index
    %c0_3 = arith.constant 0 : index
    %0 = vector.load %arg2[%c0, %c0_0, %c0_1, %c0_2, %c0_3] : memref<1x1x2x6x256xbf16, #tpu.memory_space<vmem>>, vector<1x1x1x2x256xbf16>
    %1 = vector.shape_cast %0 : vector<1x1x1x2x256xbf16> to vector<2x256xbf16>
    %c0_4 = arith.constant 0 : index
    %c0_5 = arith.constant 0 : index
    %c0_6 = arith.constant 0 : index
    %2 = vector.load %arg3[%c0_4, %c0_5, %c0_6] : memref<3x256x128xbf16, #tpu.memory_space<vmem>>, vector<1x256x128xbf16>
    %3 = vector.shape_cast %2 : vector<1x256x128xbf16> to vector<256x128xbf16>
    %cst = arith.constant dense<0.000000e+00> : vector<2x128xf32>
    %4 = tpu.matmul %1, %3, %cst {dimension_numbers = #tpu.dot_dimension_numbers<[1], [0], [0], [1], [0, 0, 1, 1], [], []>} : vector<2x256xbf16>, vector<256x128xbf16>, vector<2x128xf32> -> vector<2x128xf32>
    %c0_7 = arith.constant 0 : index
    %c0_8 = arith.constant 0 : index
    %c0_9 = arith.constant 0 : index
    %c1 = arith.constant 1 : index
    %c0_10 = arith.constant 0 : index
    %5 = vector.load %arg2[%c0_7, %c0_8, %c0_9, %c1, %c0_10] : memref<1x1x2x6x256xbf16, #tpu.memory_space<vmem>>, vector<1x1x1x2x128xbf16>
    %6 = vector.shape_cast %5 : vector<1x1x1x2x128xbf16> to vector<2x128xbf16>
    %c0_11 = arith.constant 0 : index
    %c0_12 = arith.constant 0 : index
    %c0_13 = arith.constant 0 : index
    %7 = vector.load %arg4[%c0_11, %c0_12, %c0_13] : memref<3x128x128xbf16, #tpu.memory_space<vmem>>, vector<1x128x128xbf16>
    %8 = vector.shape_cast %7 : vector<1x128x128xbf16> to vector<128x128xbf16>
    %cst_14 = arith.constant dense<0.000000e+00> : vector<2x128xf32>
    %9 = tpu.matmul %6, %8, %cst_14 {dimension_numbers = #tpu.dot_dimension_numbers<[1], [0], [0], [1], [0, 0, 1, 1], [], []>} : vector<2x128xbf16>, vector<128x128xbf16>, vector<2x128xf32> -> vector<2x128xf32>
    %10 = arith.addf %4, %9 : vector<2x128xf32>
    %c0_15 = arith.constant 0 : index
    %c0_16 = arith.constant 0 : index
    %c1_17 = arith.constant 1 : index
    %c0_18 = arith.constant 0 : index
    %c0_19 = arith.constant 0 : index
    %11 = vector.load %arg2[%c0_15, %c0_16, %c1_17, %c0_18, %c0_19] : memref<1x1x2x6x256xbf16, #tpu.memory_space<vmem>>, vector<1x1x1x2x256xbf16>
    %12 = vector.shape_cast %11 : vector<1x1x1x2x256xbf16> to vector<2x256xbf16>
    %c1_20 = arith.constant 1 : index
    %c0_21 = arith.constant 0 : index
    %c0_22 = arith.constant 0 : index
    %13 = vector.load %arg3[%c1_20, %c0_21, %c0_22] : memref<3x256x128xbf16, #tpu.memory_space<vmem>>, vector<1x256x128xbf16>
    %14 = vector.shape_cast %13 : vector<1x256x128xbf16> to vector<256x128xbf16>
    %cst_23 = arith.constant dense<0.000000e+00> : vector<2x128xf32>
    %15 = tpu.matmul %12, %14, %cst_23 {dimension_numbers = #tpu.dot_dimension_numbers<[1], [0], [0], [1], [0, 0, 1, 1], [], []>} : vector<2x256xbf16>, vector<256x128xbf16>, vector<2x128xf32> -> vector<2x128xf32>
    %16 = arith.addf %10, %15 : vector<2x128xf32>
    %c0_24 = arith.constant 0 : index
    %c0_25 = arith.constant 0 : index
    %c1_26 = arith.constant 1 : index
    %c1_27 = arith.constant 1 : index
    %c0_28 = arith.constant 0 : index
    %17 = vector.load %arg2[%c0_24, %c0_25, %c1_26, %c1_27, %c0_28] : memref<1x1x2x6x256xbf16, #tpu.memory_space<vmem>>, vector<1x1x1x2x128xbf16>
    %18 = vector.shape_cast %17 : vector<1x1x1x2x128xbf16> to vector<2x128xbf16>
    %c1_29 = arith.constant 1 : index
    %c0_30 = arith.constant 0 : index
    %c0_31 = arith.constant 0 : index
    %19 = vector.load %arg4[%c1_29, %c0_30, %c0_31] : memref<3x128x128xbf16, #tpu.memory_space<vmem>>, vector<1x128x128xbf16>
    %20 = vector.shape_cast %19 : vector<1x128x128xbf16> to vector<128x128xbf16>
    %cst_32 = arith.constant dense<0.000000e+00> : vector<2x128xf32>
    %21 = tpu.matmul %18, %20, %cst_32 {dimension_numbers = #tpu.dot_dimension_numbers<[1], [0], [0], [1], [0, 0, 1, 1], [], []>} : vector<2x128xbf16>, vector<128x128xbf16>, vector<2x128xf32> -> vector<2x128xf32>
    %22 = arith.addf %16, %21 : vector<2x128xf32>
    %c0_33 = arith.constant 0 : index
    %c0_34 = arith.constant 0 : index
    %c0_35 = arith.constant 0 : index
    %c2 = arith.constant 2 : index
    %c0_36 = arith.constant 0 : index
    %23 = vector.load %arg2[%c0_33, %c0_34, %c0_35, %c2, %c0_36] : memref<1x1x2x6x256xbf16, #tpu.memory_space<vmem>>, vector<1x1x1x2x256xbf16>
    %24 = vector.shape_cast %23 : vector<1x1x1x2x256xbf16> to vector<2x256xbf16>
    %c2_37 = arith.constant 2 : index
    %c0_38 = arith.constant 0 : index
    %c0_39 = arith.constant 0 : index
    %25 = vector.load %arg3[%c2_37, %c0_38, %c0_39] : memref<3x256x128xbf16, #tpu.memory_space<vmem>>, vector<1x256x128xbf16>
    %26 = vector.shape_cast %25 : vector<1x256x128xbf16> to vector<256x128xbf16>
    %cst_40 = arith.constant dense<0.000000e+00> : vector<2x128xf32>
    %27 = tpu.matmul %24, %26, %cst_40 {dimension_numbers = #tpu.dot_dimension_numbers<[1], [0], [0], [1], [0, 0, 1, 1], [], []>} : vector<2x256xbf16>, vector<256x128xbf16>, vector<2x128xf32> -> vector<2x128xf32>
    %28 = arith.addf %22, %27 : vector<2x128xf32>
    %c0_41 = arith.constant 0 : index
    %c0_42 = arith.constant 0 : index
    %c0_43 = arith.constant 0 : index
    %c3 = arith.constant 3 : index
    %c0_44 = arith.constant 0 : index
    %29 = vector.load %arg2[%c0_41, %c0_42, %c0_43, %c3, %c0_44] : memref<1x1x2x6x256xbf16, #tpu.memory_space<vmem>>, vector<1x1x1x2x128xbf16>
    %30 = vector.shape_cast %29 : vector<1x1x1x2x128xbf16> to vector<2x128xbf16>
    %c2_45 = arith.constant 2 : index
    %c0_46 = arith.constant 0 : index
    %c0_47 = arith.constant 0 : index
    %31 = vector.load %arg4[%c2_45, %c0_46, %c0_47] : memref<3x128x128xbf16, #tpu.memory_space<vmem>>, vector<1x128x128xbf16>
    %32 = vector.shape_cast %31 : vector<1x128x128xbf16> to vector<128x128xbf16>
    %cst_48 = arith.constant dense<0.000000e+00> : vector<2x128xf32>
    %33 = tpu.matmul %30, %32, %cst_48 {dimension_numbers = #tpu.dot_dimension_numbers<[1], [0], [0], [1], [0, 0, 1, 1], [], []>} : vector<2x128xbf16>, vector<128x128xbf16>, vector<2x128xf32> -> vector<2x128xf32>
    %34 = arith.addf %28, %33 : vector<2x128xf32>
    %c0_49 = arith.constant 0 : index
    %c0_50 = arith.constant 0 : index
    %35 = vector.load %arg5[%c0_49, %c0_50] : memref<1x128xf32, #tpu.memory_space<vmem>>, vector<1x128xf32>
    %36 = vector.broadcast %35 : vector<1x128xf32> to vector<2x128xf32>
    %37 = arith.addf %34, %36 : vector<2x128xf32>
    %cst_51 = arith.constant 0.000000e+00 : f32
    %38 = vector.broadcast %cst_51 : f32 to vector<2x128xf32>
    %39 = arith.maximumf %37, %38 : vector<2x128xf32>
    %40 = arith.truncf %39 : vector<2x128xf32> to vector<2x128xbf16>
    %c0_52 = arith.constant 0 : index
    %c0_53 = arith.constant 0 : index
    %c0_54 = arith.constant 0 : index
    %41 = vector.load %arg6[%c0_52, %c0_53, %c0_54] : memref<1x2x128xbf16, #tpu.memory_space<vmem>>, vector<1x2x128xbf16>
    %42 = vector.shape_cast %41 : vector<1x2x128xbf16> to vector<2x128xbf16>
    %43 = vector.shape_cast %40 : vector<2x128xbf16> to vector<1x2x128xbf16>
    tpu.vector_store %arg6[%c0_52, %c0_53, %c0_54], %43 {strides = array<i32>} : memref<1x2x128xbf16, #tpu.memory_space<vmem>>, vector<1x2x128xbf16>,
    return
  }
  func.func @transform_0(%arg0: i32, %arg1: i32) -> (i32, i32, i32, i32, i32) {
    %c0_i32 = arith.constant 0 : i32
    %c0_i32_0 = arith.constant 0 : i32
    %c0_i32_1 = arith.constant 0 : i32
    %c0_i32_2 = arith.constant 0 : i32
    return %arg0, %arg1, %c0_i32, %c0_i32_0, %c0_i32_1 : i32, i32, i32, i32, i32
  }
  func.func @transform_1(%arg0: i32, %arg1: i32) -> (i32, i32, i32) {
    %c0_i32 = arith.constant 0 : i32
    %c0_i32_0 = arith.constant 0 : i32
    %c0_i32_1 = arith.constant 0 : i32
    %c0_i32_2 = arith.constant 0 : i32
    return %c0_i32, %c0_i32_0, %c0_i32_1 : i32, i32, i32
  }
  func.func @transform_2(%arg0: i32, %arg1: i32) -> (i32, i32, i32) {
    %c0_i32 = arith.constant 0 : i32
    %c0_i32_0 = arith.constant 0 : i32
    %c0_i32_1 = arith.constant 0 : i32
    %c0_i32_2 = arith.constant 0 : i32
    return %c0_i32, %c0_i32_0, %c0_i32_1 : i32, i32, i32
  }
  func.func @transform_3(%arg0: i32, %arg1: i32) -> (i32, i32) {
    %c0_i32 = arith.constant 0 : i32
    %c0_i32_0 = arith.constant 0 : i32
    %c0_i32_1 = arith.constant 0 : i32
    return %c0_i32, %c0_i32_0 : i32, i32
  }
  func.func @transform_4(%arg0: i32, %arg1: i32) -> (i32, i32, i32) {
    %c0_i32 = arith.constant 0 : i32
    %c0_i32_0 = arith.constant 0 : i32
    return %arg0, %arg1, %c0_i32 : i32, i32, i32
  }
}

</mosaic_0001>

<llo_original>
// kernel: backbone_base_forward.5
$region0: #{backbone_base_forward.5}
  #allocation0 [shape = 'u32[]', space=smem, size = 0x4, offset = 0x4, fixed_abs, tag = 'smem constant byte address 0x4 - core index']
  #allocation1 [shape = 'u32[144,128]{1,0:T(1,128)}', space=vmem, size = 0x12000, scoped, tag = 'internal scratch']
  %s0 = inlined_call_operand.vmem [shape: bf16[2,1,2,306,256], index: 0, kind: input, shape index: {}]
  %s1 = inlined_call_operand.vmem [shape: bf16[3,256,128], index: 1, kind: input, shape index: {}]
  %s2 = inlined_call_operand.vmem [shape: bf16[3,128,128], index: 2, kind: input, shape index: {}]
  %s3 = inlined_call_operand.vmem [shape: f32[1,128], index: 3, kind: input, shape index: {}]
  %s4 = inlined_call_operand.vmem [shape: bf16[2,272,128], index: 4, kind: output, shape index: {}]
  %s5 = sld [smem:[#allocation0]]
  $region49: #{backbone_base_forward.5} parent=0
    _
  %s7 = ssub.s32 1, %s5
  %s8 = scalar_select 0, %s7, %s5
  loop: start=0, step=1, limit=4
  $region2: #{backbone_base_forward.5} parent=0 // loop_pre_header
    _
  $region3: #{backbone_base_forward.5} parent=0 // loop_header
    %s10 = sphi 0, %s14
    %p11 = scmp.ge.s32.totalorder %s10, 4
    %s17 = sphi 0, %s29
    %s18 = sphi 0, %s25
    %s19 = sphi 0, %s17
    %s20 = sphi 0, %s18
    %s21 = sphi 0, %s19
    %s22 = sphi 0, %s20
    %s34 = sphi 0, %s36
    %s37 = sphi 0, %s34
    %s38 = sphi 0, %s37
    %s54 = sphi 0, %s38
    %s58 = sphi 0, %s58
    %s60 = sphi 0, %s58
    %s61 = sphi 0, %s60
    %s75 = sphi 0, %s61
    %s79 = sphi 0, %s79
    %s81 = sphi 0, %s79
    %s82 = sphi 0, %s81
    %s96 = sphi 0, %s82
    %s100 = sphi 0, %s100
    %s102 = sphi 0, %s100
    %s103 = sphi 0, %s102
    %s117 = sphi 0, %s103
    %s125 = sphi 0, %s127
    %s128 = sphi 0, %s125
    %s129 = sphi 0, %s128
    %s145 = sphi 0, %s129
  $region4: #{backbone_base_forward.5} parent=0 // loop_header_branch
    %13 = sbr.rel (%p11) target = $region8
  $region5: #{backbone_base_forward.5} parent=0 // loop_body
    %s15 = ssub.s32 %s10, 1
    %s16 = ssub.s32 %s10, 2
    %s23 = sadd.s32 1, %s18
    %p24 = scmp.ge.s32.totalorder %s23, 1
    %s25 = scalar_select %p24, 0, %s23
    %s26 = sadd.s32 1, %s17
    %s27 = scalar_select %p24, %s26, %s17
    %p28 = scmp.ge.s32.totalorder %s27, 2
    %s29 = scalar_select %p28, 0, %s27
    %s30 = ssub.s32 %s17, %s29
    %s31 = ssub.s32 %s18, %s25
    %s32 = sor.u32 %s30, %s31
    %p33 = scmp.eq.s32.totalorder %s32, 0
    %s35 = sadd.s32 %s34, 1
    %s36 = scalar_select %p33, %s34, %s35
    %p39 = pneg %p33
    %p40 = scmp.eq.s32.totalorder %s10, 1
    %p41 = por %p39, %p40
    %p42 = scmp.ne.s32.totalorder %s34, %s37
    %p43 = scmp.eq.s32.totalorder %s10, 0
    %p44 = por %p42, %p43
    %p45 = scmp.ne.s32.totalorder %s34, %s37
    %p46 = scmp.eq.s32.totalorder %s15, 1
    %p47 = por %p45, %p46
    %p48 = scmp.ne.s32.totalorder %s37, %s38
    %p49 = scmp.eq.s32.totalorder %s15, 0
    %p50 = por %p48, %p49
    %p51 = scmp.ne.s32.totalorder %s37, %s38
    %p52 = scmp.eq.s32.totalorder %s16, 1
    %p53 = por %p51, %p52
    %p55 = scmp.ne.s32.totalorder %s38, %s54
    %p56 = scmp.eq.s32.totalorder %s16, 0
    %p57 = por %p55, %p56
    %s59 = sadd.s32 %s58, 1
    %p62 = scmp.eq.s32.totalorder %s10, 1
    %p63 = scmp.ne.s32.totalorder %s58, %s60
    %p64 = scmp.eq.s32.totalorder %s10, 0
    %p65 = por %p63, %p64
    %p66 = scmp.ne.s32.totalorder %s58, %s60
    %p67 = scmp.eq.s32.totalorder %s15, 1
    %p68 = por %p66, %p67
    %p69 = scmp.ne.s32.totalorder %s60, %s61
    %p70 = scmp.eq.s32.totalorder %s15, 0
    %p71 = por %p69, %p70
    %p72 = scmp.ne.s32.totalorder %s60, %s61
    %p73 = scmp.eq.s32.totalorder %s16, 1
    %p74 = por %p72, %p73
    %p76 = scmp.ne.s32.totalorder %s61, %s75
    %p77 = scmp.eq.s32.totalorder %s16, 0
    %p78 = por %p76, %p77
    %s80 = sadd.s32 %s79, 1
    %p83 = scmp.eq.s32.totalorder %s10, 1
    %p84 = scmp.ne.s32.totalorder %s79, %s81
    %p85 = scmp.eq.s32.totalorder %s10, 0
    %p86 = por %p84, %p85
    %p87 = scmp.ne.s32.totalorder %s79, %s81
    %p88 = scmp.eq.s32.totalorder %s15, 1
    %p89 = por %p87, %p88
    %p90 = scmp.ne.s32.totalorder %s81, %s82
    %p91 = scmp.eq.s32.totalorder %s15, 0
    %p92 = por %p90, %p91
    %p93 = scmp.ne.s32.totalorder %s81, %s82
    %p94 = scmp.eq.s32.totalorder %s16, 1
    %p95 = por %p93, %p94
    %p97 = scmp.ne.s32.totalorder %s82, %s96
    %p98 = scmp.eq.s32.totalorder %s16, 0
    %p99 = por %p97, %p98
    %s101 = sadd.s32 %s100, 1
    %p104 = scmp.eq.s32.totalorder %s10, 1
    %p105 = scmp.ne.s32.totalorder %s100, %s102
    %p106 = scmp.eq.s32.totalorder %s10, 0
    %p107 = por %p105, %p106
    %p108 = scmp.ne.s32.totalorder %s100, %s102
    %p109 = scmp.eq.s32.totalorder %s15, 1
    %p110 = por %p108, %p109
    %p111 = scmp.ne.s32.totalorder %s102, %s103
    %p112 = scmp.eq.s32.totalorder %s15, 0
    %p113 = por %p111, %p112
    %p114 = scmp.ne.s32.totalorder %s102, %s103
    %p115 = scmp.eq.s32.totalorder %s16, 1
    %p116 = por %p114, %p115
    %p118 = scmp.ne.s32.totalorder %s103, %s117
    %p119 = scmp.eq.s32.totalorder %s16, 0
    %p120 = por %p118, %p119
    %s121 = ssub.s32 %s17, %s29
    %s122 = ssub.s32 %s18, %s25
    %s123 = sor.u32 %s121, %s122
    %p124 = scmp.eq.s32.totalorder %s123, 0
    %s126 = sadd.s32 %s125, 1
    %s127 = scalar_select %p124, %s125, %s126
    %p130 = pneg %p124
    %p131 = scmp.eq.s32.totalorder %s10, 1
    %p132 = por %p130, %p131
    %p133 = scmp.ne.s32.totalorder %s125, %s128
    %p134 = scmp.eq.s32.totalorder %s10, 0
    %p135 = por %p133, %p134
    %p136 = scmp.ne.s32.totalorder %s125, %s128
    %p137 = scmp.eq.s32.totalorder %s15, 1
    %p138 = por %p136, %p137
    %p139 = scmp.ne.s32.totalorder %s128, %s129
    %p140 = scmp.eq.s32.totalorder %s15, 0
    %p141 = por %p139, %p140
    %p142 = scmp.ne.s32.totalorder %s128, %s129
    %p143 = scmp.eq.s32.totalorder %s16, 1
    %p144 = por %p142, %p143
    %p146 = scmp.ne.s32.totalorder %s129, %s145
    %p147 = scmp.eq.s32.totalorder %s16, 0
    %p148 = por %p146, %p147
    %p149 = scmp.le.s32.totalorder 1, %s10
    %p150 = scmp.lt.s32.totalorder %s10, 3
    %p151 = pnand %p149, %p150
    %p152 = pneg %p151
    // Predicated region
    $region9: #{backbone_base_forward.5} parent=5 // pred_check
      _
    $region10: #{backbone_base_forward.5} parent=5 // pred_check_branch
      %154 = sbr.rel (%p151) target = $region12
    $region11: #{backbone_base_forward.5} parent=5 // pred_region
      %s155 = ssub.s32 %s10, 1
      // Predicated region
      $region13: #{backbone_base_forward.5} parent=11 // pred_check
        %p156 = pneg %p71
      $region14: #{backbone_base_forward.5} parent=11 // pred_check_branch
        %158 = sbr.rel (%p156) target = $region16
      $region15: #{backbone_base_forward.5} parent=11 // pred_region
        _
      $region16: #{backbone_base_forward.5} parent=11 // pred_fallthru
        _
      // Predicated region
      $region17: #{backbone_base_forward.5} parent=11 // pred_check
        %p159 = pneg %p92
      $region18: #{backbone_base_forward.5} parent=11 // pred_check_branch
        %161 = sbr.rel (%p159) target = $region20
      $region19: #{backbone_base_forward.5} parent=11 // pred_region
        _
      $region20: #{backbone_base_forward.5} parent=11 // pred_fallthru
        _
      // Predicated region
      $region21: #{backbone_base_forward.5} parent=11 // pred_check
        %p162 = pneg %p113
      $region22: #{backbone_base_forward.5} parent=11 // pred_check_branch
        %164 = sbr.rel (%p162) target = $region24
      $region23: #{backbone_base_forward.5} parent=11 // pred_region
        _
      $region24: #{backbone_base_forward.5} parent=11 // pred_fallthru
        _
    $region12: #{backbone_base_forward.5} parent=5 // pred_fallthru
      _
    %p165 = scmp.lt.s32.totalorder %s10, 2
    // Predicated region
    $region25: #{backbone_base_forward.5} parent=5 // pred_check
      %p166 = pneg %p165
    $region26: #{backbone_base_forward.5} parent=5 // pred_check_branch
      %168 = sbr.rel (%p166) target = $region28
    $region27: #{backbone_base_forward.5} parent=5 // pred_region
      // Predicated region
      $region29: #{backbone_base_forward.5} parent=27 // pred_check
        %p169 = pneg %p44
      $region30: #{backbone_base_forward.5} parent=27 // pred_check_branch
        %171 = sbr.rel (%p169) target = $region32
      $region31: #{backbone_base_forward.5} parent=27 // pred_region
        %p172 = scmp.lt.s32.totalorder %s17, 1
        %s173 = scalar_select %p172, %s17, 1
        %p174 = scmp.lt.s32.totalorder %s18, 0
        %s175 = scalar_select %p174, %s18, 0
        %s176 = smul.addr %s175, 156
        %s177 = smul.addr %s173, 156
        %s178 = sadd.s32 %s176, %s177
        %s179 = smul.addr %s178, 4
        %s180 = scalar_lea.vmem %s0, %s179
      $region32: #{backbone_base_forward.5} parent=27 // pred_fallthru
        _
    $region28: #{backbone_base_forward.5} parent=5 // pred_fallthru
      _
    %p181 = scmp.le.s32.totalorder 1, %s10
    %p182 = scmp.lt.s32.totalorder %s10, 3
    %p183 = pnand %p181, %p182
    %p184 = pneg %p183
    // Predicated region
    $region33: #{backbone_base_forward.5} parent=5 // pred_check
      _
    $region34: #{backbone_base_forward.5} parent=5 // pred_check_branch
      %186 = sbr.rel (%p183) target = $region36
    $region35: #{backbone_base_forward.5} parent=5 // pred_region
      %s187 = ssub.s32 %s10, 1
      %p188 = scmp.lt.s32.totalorder %s19, 1
      %s189 = scalar_select %p188, %s19, 1
      %p190 = scmp.lt.s32.totalorder %s20, 0
      %s191 = scalar_select %p190, %s20, 0
      %s192 = smul.addr %s191, 156
      %s193 = smul.addr %s189, 156
      %s194 = sadd.s32 %s192, %s193
      %s195 = smul.addr %s194, 4
      %s196 = scalar_lea.vmem %s0, %s195
      %p197 = pneg %p50
      %p198 = pneg %p47
      %p199 = pneg %p71
      %p200 = pneg %p68
      %p201 = pneg %p92
      %p202 = pneg %p89
      %p203 = pneg %p113
      %p204 = pneg %p110
      %p205 = pneg %p141
      %p206 = pneg %p138
      %s207 = smul.u32 34, %s20
      %p208 = scmp.lt.s32.totalorder %s19, 1
      %s209 = scalar_select %p208, %s19, 1
      %p210 = scmp.lt.s32.totalorder %s207, 33
      %s211 = scalar_select %p210, %s207, 33
      %s212 = smul.addr %s209, 34
      %s213 = sadd.s32 %s211, %s212
      %s214 = smul.addr %s213, 4
      %s215 = scalar_lea.vmem %s4, %s214
      %p216 = scmp.lt.s32.totalorder %s19, 1
      %s217 = scalar_select %p216, %s19, 1
      %p218 = scmp.lt.s32.totalorder %s20, 0
      %s219 = scalar_select %p218, %s20, 0
      %s220 = smul.addr %s219, 156
      %s221 = smul.addr %s217, 156
      %s222 = sadd.s32 %s220, %s221
      %s223 = smul.addr %s222, 4
      %s224 = scalar_lea.vmem %s0, %s223
      %s225 = smul.u32 34, %s20
      %p226 = scmp.lt.s32.totalorder %s19, 1
      %s227 = scalar_select %p226, %s19, 1
      %p228 = scmp.lt.s32.totalorder %s225, 33
      %s229 = scalar_select %p228, %s225, 33
      %s230 = smul.addr %s227, 34
      %s231 = sadd.s32 %s229, %s230
      %s232 = smul.addr %s231, 4
      %s233 = scalar_lea.vmem %s4, %s232
      %s234 = smul.u32 34, %s20
      %v236 = vld [vmem:[%s224] sm:$0xff]
      %v237 = vld [vmem:[%s224 + $0x8] sm:$0xff]
      %v238 = vld [vmem:[%s224 + $0x10] sm:$0xff]
      %v239 = vld [vmem:[%s224 + $0x18] sm:$0xff]
      %v240 = vld [vmem:[%s224 + $0x20] sm:$0xff]
      %v241 = vld [vmem:[%s224 + $0x28] sm:$0xff]
      %v242 = vld [vmem:[%s224 + $0x30] sm:$0xff]
      %v243 = vld [vmem:[%s224 + $0x38] sm:$0xff]
      %v244 = vld [vmem:[%s224 + $0x40] sm:$0xff]
      %v245 = vld [vmem:[%s224 + $0x48] sm:$0xff]
      %v246 = vld [vmem:[%s224 + $0x50] sm:$0xff]
      %v247 = vld [vmem:[%s224 + $0x58] sm:$0xff]
      %v248 = vld [vmem:[%s224 + $0x60] sm:$0xff]
      %v249 = vld [vmem:[%s224 + $0x68] sm:$0xff]
      %v250 = vld [vmem:[%s224 + $0x70] sm:$0xff]
      %v251 = vld [vmem:[%s224 + $0x78] sm:$0xff]
      %v252 = vld [vmem:[%s224 + $0x80] sm:$0xff]
      %v253 = vld [vmem:[%s224 + $0x88] sm:$0xff]
      %v254 = vld [vmem:[%s224 + $0x90] sm:$0xff]
      %v255 = vld [vmem:[%s224 + $0x98] sm:$0xff]
      %v256 = vld [vmem:[%s224 + $0xa0] sm:$0xff]
      %v257 = vld [vmem:[%s224 + $0xa8] sm:$0xff]
      %v258 = vld [vmem:[%s224 + $0xb0] sm:$0xff]
      %v259 = vld [vmem:[%s224 + $0xb8] sm:$0xff]
      %v260 = vld [vmem:[%s224 + $0xc0] sm:$0xff]
      %v261 = vld [vmem:[%s224 + $0xc8] sm:$0xff]
      %v262 = vld [vmem:[%s224 + $0xd0] sm:$0xff]
      %v263 = vld [vmem:[%s224 + $0xd8] sm:$0xff]
      %v264 = vld [vmem:[%s224 + $0xe0] sm:$0xff]
      %v265 = vld [vmem:[%s224 + $0xe8] sm:$0xff]
      %v266 = vld [vmem:[%s224 + $0xf0] sm:$0xff]
      %v267 = vld [vmem:[%s224 + $0xf8] sm:$0xff]
      %v268 = vld [vmem:[%s224 + $0x100] sm:$0xff]
      %v269 = vld [vmem:[%s224 + $0x108] sm:$0xff]
      %v270 = vld [vmem:[%s1] sm:$0xf]
      %v271 = vld [vmem:[%s1 + $0x4] sm:$0xf]
      %v272 = vld [vmem:[%s1 + $0x8] sm:$0xf]
      %v273 = vld [vmem:[%s1 + $0xc] sm:$0xf]
      %v274 = vld [vmem:[%s1 + $0x10] sm:$0xf]
      %v275 = vld [vmem:[%s1 + $0x14] sm:$0xf]
      %v276 = vld [vmem:[%s1 + $0x18] sm:$0xf]
      %v277 = vld [vmem:[%s1 + $0x1c] sm:$0xf]
      %v278 = vld [vmem:[%s1 + $0x20] sm:$0xf]
      %v279 = vld [vmem:[%s1 + $0x24] sm:$0xf]
      %v280 = vld [vmem:[%s1 + $0x28] sm:$0xf]
      %v281 = vld [vmem:[%s1 + $0x2c] sm:$0xf]
      %v282 = vld [vmem:[%s1 + $0x30] sm:$0xf]
      %v283 = vld [vmem:[%s1 + $0x34] sm:$0xf]
      %v284 = vld [vmem:[%s1 + $0x38] sm:$0xf]
      %v285 = vld [vmem:[%s1 + $0x3c] sm:$0xf]
      %v286 = vld [vmem:[%s1 + $0x40] sm:$0xf]
      %v287 = vld [vmem:[%s1 + $0x44] sm:$0xf]
      %v288 = vld [vmem:[%s1 + $0x48] sm:$0xf]
      %v289 = vld [vmem:[%s1 + $0x4c] sm:$0xf]
      %v290 = vld [vmem:[%s1 + $0x50] sm:$0xf]
      %v291 = vld [vmem:[%s1 + $0x54] sm:$0xf]
      %v292 = vld [vmem:[%s1 + $0x58] sm:$0xf]
      %v293 = vld [vmem:[%s1 + $0x5c] sm:$0xf]
      %v294 = vld [vmem:[%s1 + $0x60] sm:$0xf]
      %v295 = vld [vmem:[%s1 + $0x64] sm:$0xf]
      %v296 = vld [vmem:[%s1 + $0x68] sm:$0xf]
      %v297 = vld [vmem:[%s1 + $0x6c] sm:$0xf]
      %v298 = vld [vmem:[%s1 + $0x70] sm:$0xf]
      %v299 = vld [vmem:[%s1 + $0x74] sm:$0xf]
      %v300 = vld [vmem:[%s1 + $0x78] sm:$0xf]
      %v301 = vld [vmem:[%s1 + $0x7c] sm:$0xf]
      %v302 = vld [vmem:[%s224] sm:$0xf]
      %v303 = vld [vmem:[%s224 + $0x8] sm:$0xf]
      %v304 = vld [vmem:[%s224 + $0x10] sm:$0xf]
      %v305 = vld [vmem:[%s224 + $0x18] sm:$0xf]
      %v306 = vld [vmem:[%s224 + $0x20] sm:$0xf]
      %v307 = vld [vmem:[%s224 + $0x28] sm:$0xf]
      %v308 = vld [vmem:[%s224 + $0x30] sm:$0xf]
      %v309 = vld [vmem:[%s224 + $0x38] sm:$0xf]
      %v310 = vld [vmem:[%s224 + $0x40] sm:$0xf]
      %v311 = vld [vmem:[%s224 + $0x48] sm:$0xf]
      %v312 = vld [vmem:[%s224 + $0x50] sm:$0xf]
      %v313 = vld [vmem:[%s224 + $0x58] sm:$0xf]
      %v314 = vld [vmem:[%s224 + $0x60] sm:$0xf]
      %v315 = vld [vmem:[%s224 + $0x68] sm:$0xf]
      %v316 = vld [vmem:[%s224 + $0x70] sm:$0xf]
      %v317 = vld [vmem:[%s224 + $0x78] sm:$0xf]
      %v318 = vld [vmem:[%s224 + $0x80] sm:$0xf]
      %v319 = vld [vmem:[%s224 + $0x88] sm:$0xf]
      %v320 = vld [vmem:[%s224 + $0x90] sm:$0xf]
      %v321 = vld [vmem:[%s224 + $0x98] sm:$0xf]
      %v322 = vld [vmem:[%s224 + $0xa0] sm:$0xf]
      %v323 = vld [vmem:[%s224 + $0xa8] sm:$0xf]
      %v324 = vld [vmem:[%s224 + $0xb0] sm:$0xf]
      %v325 = vld [vmem:[%s224 + $0xb8] sm:$0xf]
      %v326 = vld [vmem:[%s224 + $0xc0] sm:$0xf]
      %v327 = vld [vmem:[%s224 + $0xc8] sm:$0xf]
      %v328 = vld [vmem:[%s224 + $0xd0] sm:$0xf]
      %v329 = vld [vmem:[%s224 + $0xd8] sm:$0xf]
      %v330 = vld [vmem:[%s224 + $0xe0] sm:$0xf]
      %v331 = vld [vmem:[%s224 + $0xe8] sm:$0xf]
      %v332 = vld [vmem:[%s224 + $0xf0] sm:$0xf]
      %v333 = vld [vmem:[%s224 + $0xf8] sm:$0xf]
      %v334 = vld [vmem:[%s224 + $0x100] sm:$0xf]
      %v335 = vld [vmem:[%s224 + $0x108] sm:$0xf]
      %v336 = vld [vmem:[%s224 + $0x110] sm:$0x1]
      %v337 = vld [vmem:[%s2] sm:$0xf]
      %v338 = vld [vmem:[%s2 + $0x4] sm:$0xf]
      %v339 = vld [vmem:[%s2 + $0x8] sm:$0xf]
      %v340 = vld [vmem:[%s2 + $0xc] sm:$0xf]
      %v341 = vld [vmem:[%s2 + $0x10] sm:$0xf]
      %v342 = vld [vmem:[%s2 + $0x14] sm:$0xf]
      %v343 = vld [vmem:[%s2 + $0x18] sm:$0xf]
      %v344 = vld [vmem:[%s2 + $0x1c] sm:$0xf]
      %v345 = vld [vmem:[%s2 + $0x20] sm:$0xf]
      %v346 = vld [vmem:[%s2 + $0x24] sm:$0xf]
      %v347 = vld [vmem:[%s2 + $0x28] sm:$0xf]
      %v348 = vld [vmem:[%s2 + $0x2c] sm:$0xf]
      %v349 = vld [vmem:[%s2 + $0x30] sm:$0xf]
      %v350 = vld [vmem:[%s2 + $0x34] sm:$0xf]
      %v351 = vld [vmem:[%s2 + $0x38] sm:$0xf]
      %v352 = vld [vmem:[%s2 + $0x3c] sm:$0xf]
      %v388 = vunpack.c.l.b16 %v302
      %v389 = vunpack.c.l.b16 %v303
      %v390 = vunpack.c.l.b16 %v304
      %v391 = vunpack.c.l.b16 %v305
      %v392 = vunpack.c.l.b16 %v306
      %v393 = vunpack.c.l.b16 %v307
      %v394 = vunpack.c.l.b16 %v308
      %v395 = vunpack.c.l.b16 %v309
      %v396 = vunpack.c.l.b16 %v310
      %v397 = vunpack.c.l.b16 %v311
      %v398 = vunpack.c.l.b16 %v312
      %v399 = vunpack.c.l.b16 %v313
      %v400 = vunpack.c.l.b16 %v314
      %v401 = vunpack.c.l.b16 %v315
      %v402 = vunpack.c.l.b16 %v316
      %v403 = vunpack.c.l.b16 %v317
      %v404 = vunpack.c.l.b16 %v318
      %v405 = vunpack.c.l.b16 %v319
      %v406 = vunpack.c.l.b16 %v320
      %v407 = vunpack.c.l.b16 %v321
      %v408 = vunpack.c.l.b16 %v322
      %v409 = vunpack.c.l.b16 %v323
      %v410 = vunpack.c.l.b16 %v324
      %v411 = vunpack.c.l.b16 %v325
      %v412 = vunpack.c.l.b16 %v326
      %v413 = vunpack.c.l.b16 %v327
      %v414 = vunpack.c.l.b16 %v328
      %v415 = vunpack.c.l.b16 %v329
      %v416 = vunpack.c.l.b16 %v330
      %v417 = vunpack.c.l.b16 %v331
      %v418 = vunpack.c.l.b16 %v332
      %v419 = vunpack.c.l.b16 %v333
      %v420 = vunpack.c.l.b16 %v334
      %v421 = vunpack.c.l.b16 %v335
      %v422 = vunpack.c.l.b16 %v336
      %v423 = vpack.c.b16 %v389, %v388
      %v424 = vpack.c.b16 %v391, %v390
      %v425 = vpack.c.b16 %v393, %v392
      %v426 = vpack.c.b16 %v395, %v394
      %v427 = vpack.c.b16 %v397, %v396
      %v428 = vpack.c.b16 %v399, %v398
      %v429 = vpack.c.b16 %v401, %v400
      %v430 = vpack.c.b16 %v403, %v402
      %v431 = vpack.c.b16 %v405, %v404
      %v432 = vpack.c.b16 %v407, %v406
      %v433 = vpack.c.b16 %v409, %v408
      %v434 = vpack.c.b16 %v411, %v410
      %v435 = vpack.c.b16 %v413, %v412
      %v436 = vpack.c.b16 %v415, %v414
      %v437 = vpack.c.b16 %v417, %v416
      %v438 = vpack.c.b16 %v419, %v418
      %v439 = vpack.c.b16 %v421, %v420
      %v440 = vpack.c.b16 %v422, %v422
      %vm441 = vsmask.f32 7424
      %v443 = vshrl.u32 %v423, 16
      %v445 = vshll.u32 %v423, 16
      %v447 = vrot.slane %v445, 1
      %v448 = vor.u32 %v443, %v447
      %v450 = vshll.u32 %v424, 16
      %v452 = vrot.slane %v450, 1
      %v453 = vsel %vm441, %v448, %v452
      %v454 = vshrl.u32 %v424, 16
      %v456 = vor.u32 %v454, %v452
      %v458 = vshll.u32 %v425, 16
      %v460 = vrot.slane %v458, 1
      %v461 = vsel %vm441, %v456, %v460
      %v462 = vshrl.u32 %v425, 16
      %v464 = vor.u32 %v462, %v460
      %v466 = vshll.u32 %v426, 16
      %v468 = vrot.slane %v466, 1
      %v469 = vsel %vm441, %v464, %v468
      %v470 = vshrl.u32 %v426, 16
      %v472 = vor.u32 %v470, %v468
      %v474 = vshll.u32 %v427, 16
      %v476 = vrot.slane %v474, 1
      %v477 = vsel %vm441, %v472, %v476
      %v478 = vshrl.u32 %v427, 16
      %v480 = vor.u32 %v478, %v476
      %v482 = vshll.u32 %v428, 16
      %v484 = vrot.slane %v482, 1
      %v485 = vsel %vm441, %v480, %v484
      %v486 = vshrl.u32 %v428, 16
      %v488 = vor.u32 %v486, %v484
      %v490 = vshll.u32 %v429, 16
      %v492 = vrot.slane %v490, 1
      %v493 = vsel %vm441, %v488, %v492
      %v494 = vshrl.u32 %v429, 16
      %v496 = vor.u32 %v494, %v492
      %v498 = vshll.u32 %v430, 16
      %v500 = vrot.slane %v498, 1
      %v501 = vsel %vm441, %v496, %v500
      %v502 = vshrl.u32 %v430, 16
      %v504 = vor.u32 %v502, %v500
      %v506 = vshll.u32 %v431, 16
      %v508 = vrot.slane %v506, 1
      %v509 = vsel %vm441, %v504, %v508
      %v510 = vshrl.u32 %v431, 16
      %v512 = vor.u32 %v510, %v508
      %v514 = vshll.u32 %v432, 16
      %v516 = vrot.slane %v514, 1
      %v517 = vsel %vm441, %v512, %v516
      %v518 = vshrl.u32 %v432, 16
      %v520 = vor.u32 %v518, %v516
      %v522 = vshll.u32 %v433, 16
      %v524 = vrot.slane %v522, 1
      %v525 = vsel %vm441, %v520, %v524
      %v526 = vshrl.u32 %v433, 16
      %v528 = vor.u32 %v526, %v524
      %v530 = vshll.u32 %v434, 16
      %v532 = vrot.slane %v530, 1
      %v533 = vsel %vm441, %v528, %v532
      %v534 = vshrl.u32 %v434, 16
      %v536 = vor.u32 %v534, %v532
      %v538 = vshll.u32 %v435, 16
      %v540 = vrot.slane %v538, 1
      %v541 = vsel %vm441, %v536, %v540
      %v542 = vshrl.u32 %v435, 16
      %v544 = vor.u32 %v542, %v540
      %v546 = vshll.u32 %v436, 16
      %v548 = vrot.slane %v546, 1
      %v549 = vsel %vm441, %v544, %v548
      %v550 = vshrl.u32 %v436, 16
      %v552 = vor.u32 %v550, %v548
      %v554 = vshll.u32 %v437, 16
      %v556 = vrot.slane %v554, 1
      %v557 = vsel %vm441, %v552, %v556
      %v558 = vshrl.u32 %v437, 16
      %v560 = vor.u32 %v558, %v556
      %v562 = vshll.u32 %v438, 16
      %v564 = vrot.slane %v562, 1
      %v565 = vsel %vm441, %v560, %v564
      %v566 = vshrl.u32 %v438, 16
      %v568 = vor.u32 %v566, %v564
      %v570 = vshll.u32 %v439, 16
      %v572 = vrot.slane %v570, 1
      %v573 = vsel %vm441, %v568, %v572
      %v574 = vshrl.u32 %v439, 16
      %v576 = vor.u32 %v574, %v572
      %v578 = vshll.u32 %v440, 16
      %v580 = vrot.slane %v578, 1
      %v581 = vsel %vm441, %v576, %v580
      %v615 = vunpack.c.l.b16 %v337
      %v616 = vunpack.c.l.b16 %v338
      %v617 = vunpack.c.l.b16 %v339
      %v618 = vunpack.c.l.b16 %v340
      %v619 = vunpack.c.l.b16 %v341
      %v620 = vunpack.c.l.b16 %v342
      %v621 = vunpack.c.l.b16 %v343
      %v622 = vunpack.c.l.b16 %v344
      %v623 = vunpack.c.l.b16 %v345
      %v624 = vunpack.c.l.b16 %v346
      %v625 = vunpack.c.l.b16 %v347
      %v626 = vunpack.c.l.b16 %v348
      %v627 = vunpack.c.l.b16 %v349
      %v628 = vunpack.c.l.b16 %v350
      %v629 = vunpack.c.l.b16 %v351
      %v630 = vunpack.c.l.b16 %v352
      %v631 = vpack.c.b16 %v616, %v615
      %v632 = vpack.c.b16 %v618, %v617
      %v633 = vpack.c.b16 %v620, %v619
      %v634 = vpack.c.b16 %v622, %v621
      %v635 = vpack.c.b16 %v624, %v623
      %v636 = vpack.c.b16 %v626, %v625
      %v637 = vpack.c.b16 %v628, %v627
      %v638 = vpack.c.b16 %v630, %v629
      %647 = vmatprep.subr.bf16.mxu0 0
      %648 = vmatpush1.bf16.msra.mxu0 %v638
      %649 = vmatprep.subr.bf16.mxu0 0
      %650 = vmatpush1.bf16.msra.mxu0 %v637
      %651 = vmatprep.subr.bf16.mxu0 0
      %652 = vmatpush1.bf16.msra.mxu0 %v636
      %653 = vmatprep.subr.bf16.mxu0 0
      %654 = vmatpush1.bf16.msra.mxu0 %v635
      %655 = vmatprep.subr.bf16.mxu0 0
      %656 = vmatpush1.bf16.msra.mxu0 %v634
      %657 = vmatprep.subr.bf16.mxu0 0
      %658 = vmatpush1.bf16.msra.mxu0 %v633
      %659 = vmatprep.subr.bf16.mxu0 0
      %660 = vmatpush1.bf16.msra.mxu0 %v632
      %661 = vmatprep.subr.bf16.mxu0 0
      %662 = vmatpush1.bf16.msra.mxu0 %v631
      %663 = vmatprep.subr.bf16.mxu0 0
      %664 = vmatpush2.bf16.msra.mxu0 0
      %665 = vmatprep.subr.bf16.mxu0 0
      %666 = vmatpush2.bf16.msra.mxu0 0
      %667 = vmatprep.subr.bf16.mxu0 0
      %668 = vmatpush2.bf16.msra.mxu0 0
      %669 = vmatprep.subr.bf16.mxu0 0
      %670 = vmatpush2.bf16.msra.mxu0 0
      %671 = vmatprep.subr.bf16.mxu0 0
      %672 = vmatpush2.bf16.msra.mxu0 0
      %673 = vmatprep.subr.bf16.mxu0 0
      %674 = vmatpush2.bf16.msra.mxu0 0
      %675 = vmatprep.subr.bf16.mxu0 0
      %676 = vmatpush2.bf16.msra.mxu0 0
      %677 = vmatprep.subr.bf16.mxu0 0
      %678 = vmatpush2.bf16.msra.mxu0 0
      %679 = vmatprep.mubr.bf16.mxu0 0
      %680 = vmatmul.mubr.bf16.gmra.mxu0 %v453
      %v681 = vpop.f32.mrf.mxu0
      %v682 = vadd.f32 0.0, %v681
      %v683 = vpop.f32.mrf.mxu0
      %v684 = vpop.f32.mrf.mxu0
      %v685 = vadd.f32 0.0, %v684
      %v686 = vpop.f32.mrf.mxu0
      %687 = vmatprep.mubr.bf16.mxu0 0
      %688 = vmatmul.mubr.bf16.gmra.mxu0 %v461
      %v689 = vpop.f32.mrf.mxu0
      %v690 = vadd.f32 0.0, %v689
      %v691 = vpop.f32.mrf.mxu0
      %v692 = vpop.f32.mrf.mxu0
      %v693 = vadd.f32 0.0, %v692
      %v694 = vpop.f32.mrf.mxu0
      %695 = vmatprep.mubr.bf16.mxu0 0
      %696 = vmatmul.mubr.bf16.gmra.mxu0 %v469
      %v697 = vpop.f32.mrf.mxu0
      %v698 = vadd.f32 0.0, %v697
      %v699 = vpop.f32.mrf.mxu0
      %v700 = vpop.f32.mrf.mxu0
      %v701 = vadd.f32 0.0, %v700
      %v702 = vpop.f32.mrf.mxu0
      %703 = vmatprep.mubr.bf16.mxu0 0
      %704 = vmatmul.mubr.bf16.gmra.mxu0 %v477
      %v705 = vpop.f32.mrf.mxu0
      %v706 = vadd.f32 0.0, %v705
      %v707 = vpop.f32.mrf.mxu0
      %v708 = vpop.f32.mrf.mxu0
      %v709 = vadd.f32 0.0, %v708
      %v710 = vpop.f32.mrf.mxu0
      %711 = vmatprep.mubr.bf16.mxu0 0
      %712 = vmatmul.mubr.bf16.gmra.mxu0 %v485
      %v713 = vpop.f32.mrf.mxu0
      %v714 = vadd.f32 0.0, %v713
      %v715 = vpop.f32.mrf.mxu0
      %v716 = vpop.f32.mrf.mxu0
      %v717 = vadd.f32 0.0, %v716
      %v718 = vpop.f32.mrf.mxu0
      %719 = vmatprep.mubr.bf16.mxu0 0
      %720 = vmatmul.mubr.bf16.gmra.mxu0 %v493
      %v721 = vpop.f32.mrf.mxu0
      %v722 = vadd.f32 0.0, %v721
      %v723 = vpop.f32.mrf.mxu0
      %v724 = vpop.f32.mrf.mxu0
      %v725 = vadd.f32 0.0, %v724
      %v726 = vpop.f32.mrf.mxu0
      %727 = vmatprep.mubr.bf16.mxu0 0
      %728 = vmatmul.mubr.bf16.gmra.mxu0 %v501
      %v729 = vpop.f32.mrf.mxu0
      %v730 = vadd.f32 0.0, %v729
      %v731 = vpop.f32.mrf.mxu0
      %v732 = vpop.f32.mrf.mxu0
      %v733 = vadd.f32 0.0, %v732
      %v734 = vpop.f32.mrf.mxu0
      %735 = vmatprep.mubr.bf16.mxu0 0
      %736 = vmatmul.mubr.bf16.gmra.mxu0 %v509
      %v737 = vpop.f32.mrf.mxu0
      %v738 = vadd.f32 0.0, %v737
      %v739 = vpop.f32.mrf.mxu0
      %v740 = vpop.f32.mrf.mxu0
      %v741 = vadd.f32 0.0, %v740
      %v742 = vpop.f32.mrf.mxu0
      %743 = vmatprep.mubr.bf16.mxu0 0
      %744 = vmatmul.mubr.bf16.gmra.mxu0 %v517
      %v745 = vpop.f32.mrf.mxu0
      %v746 = vadd.f32 0.0, %v745
      %v747 = vpop.f32.mrf.mxu0
      %v748 = vpop.f32.mrf.mxu0
      %v749 = vadd.f32 0.0, %v748
      %v750 = vpop.f32.mrf.mxu0
      %751 = vmatprep.mubr.bf16.mxu0 0
      %752 = vmatmul.mubr.bf16.gmra.mxu0 %v525
      %v753 = vpop.f32.mrf.mxu0
      %v754 = vadd.f32 0.0, %v753
      %v755 = vpop.f32.mrf.mxu0
      %v756 = vpop.f32.mrf.mxu0
      %v757 = vadd.f32 0.0, %v756
      %v758 = vpop.f32.mrf.mxu0
      %759 = vmatprep.mubr.bf16.mxu0 0
      %760 = vmatmul.mubr.bf16.gmra.mxu0 %v533
      %v761 = vpop.f32.mrf.mxu0
      %v762 = vadd.f32 0.0, %v761
      %v763 = vpop.f32.mrf.mxu0
      %v764 = vpop.f32.mrf.mxu0
      %v765 = vadd.f32 0.0, %v764
      %v766 = vpop.f32.mrf.mxu0
      %767 = vmatprep.mubr.bf16.mxu0 0
      %768 = vmatmul.mubr.bf16.gmra.mxu0 %v541
      %v769 = vpop.f32.mrf.mxu0
      %v770 = vadd.f32 0.0, %v769
      %v771 = vpop.f32.mrf.mxu0
      %v772 = vpop.f32.mrf.mxu0
      %v773 = vadd.f32 0.0, %v772
      %v774 = vpop.f32.mrf.mxu0
      %775 = vmatprep.mubr.bf16.mxu0 0
      %776 = vmatmul.mubr.bf16.gmra.mxu0 %v549
      %v777 = vpop.f32.mrf.mxu0
      %v778 = vadd.f32 0.0, %v777
      %v779 = vpop.f32.mrf.mxu0
      %v780 = vpop.f32.mrf.mxu0
      %v781 = vadd.f32 0.0, %v780
      %v782 = vpop.f32.mrf.mxu0
      %783 = vmatprep.mubr.bf16.mxu0 0
      %784 = vmatmul.mubr.bf16.gmra.mxu0 %v557
      %v785 = vpop.f32.mrf.mxu0
      %v786 = vadd.f32 0.0, %v785
      %v787 = vpop.f32.mrf.mxu0
      %v788 = vpop.f32.mrf.mxu0
      %v789 = vadd.f32 0.0, %v788
      %v790 = vpop.f32.mrf.mxu0
      %791 = vmatprep.mubr.bf16.mxu0 0
      %792 = vmatmul.mubr.bf16.gmra.mxu0 %v565
      %v793 = vpop.f32.mrf.mxu0
      %v794 = vadd.f32 0.0, %v793
      %v795 = vpop.f32.mrf.mxu0
      %v796 = vpop.f32.mrf.mxu0
      %v797 = vadd.f32 0.0, %v796
      %v798 = vpop.f32.mrf.mxu0
      %799 = vmatprep.mubr.bf16.mxu0 0
      %800 = vmatmul.mubr.bf16.gmra.mxu0 %v573
      %v801 = vpop.f32.mrf.mxu0
      %v802 = vadd.f32 0.0, %v801
      %v803 = vpop.f32.mrf.mxu0
      %v804 = vpop.f32.mrf.mxu0
      %v805 = vadd.f32 0.0, %v804
      %v806 = vpop.f32.mrf.mxu0
      %807 = vmatprep.mubr.bf16.mxu0 0
      %808 = vmatmul.mubr.bf16.gmra.mxu0 %v581
      %v809 = vpop.f32.mrf.mxu0
      %v810 = vadd.f32 0.0, %v809
      %v811 = vpop.f32.mrf.mxu0
      %v812 = vpop.f32.mrf.mxu0
      %v813 = vadd.f32 0.0, %v812
      %v814 = vpop.f32.mrf.mxu0
      %815 = vdwg.mxu0
      %v850 = vunpack.c.l.b16 %v236
      %v851 = vunpack.c.h.b16 %v236
      %v852 = vunpack.c.l.b16 %v237
      %v853 = vunpack.c.h.b16 %v237
      %v854 = vunpack.c.l.b16 %v238
      %v855 = vunpack.c.h.b16 %v238
      %v856 = vunpack.c.l.b16 %v239
      %v857 = vunpack.c.h.b16 %v239
      %v858 = vunpack.c.l.b16 %v240
      %v859 = vunpack.c.h.b16 %v240
      %v860 = vunpack.c.l.b16 %v241
      %v861 = vunpack.c.h.b16 %v241
      %v862 = vunpack.c.l.b16 %v242
      %v863 = vunpack.c.h.b16 %v242
      %v864 = vunpack.c.l.b16 %v243
      %v865 = vunpack.c.h.b16 %v243
      %v866 = vunpack.c.l.b16 %v244
      %v867 = vunpack.c.h.b16 %v244
      %v868 = vunpack.c.l.b16 %v245
      %v869 = vunpack.c.h.b16 %v245
      %v870 = vunpack.c.l.b16 %v246
      %v871 = vunpack.c.h.b16 %v246
      %v872 = vunpack.c.l.b16 %v247
      %v873 = vunpack.c.h.b16 %v247
      %v874 = vunpack.c.l.b16 %v248
      %v875 = vunpack.c.h.b16 %v248
      %v876 = vunpack.c.l.b16 %v249
      %v877 = vunpack.c.h.b16 %v249
      %v878 = vunpack.c.l.b16 %v250
      %v879 = vunpack.c.h.b16 %v250
      %v880 = vunpack.c.l.b16 %v251
      %v881 = vunpack.c.h.b16 %v251
      %v882 = vunpack.c.l.b16 %v252
      %v883 = vunpack.c.h.b16 %v252
      %v884 = vunpack.c.l.b16 %v253
      %v885 = vunpack.c.h.b16 %v253
      %v886 = vunpack.c.l.b16 %v254
      %v887 = vunpack.c.h.b16 %v254
      %v888 = vunpack.c.l.b16 %v255
      %v889 = vunpack.c.h.b16 %v255
      %v890 = vunpack.c.l.b16 %v256
      %v891 = vunpack.c.h.b16 %v256
      %v892 = vunpack.c.l.b16 %v257
      %v893 = vunpack.c.h.b16 %v257
      %v894 = vunpack.c.l.b16 %v258
      %v895 = vunpack.c.h.b16 %v258
      %v896 = vunpack.c.l.b16 %v259
      %v897 = vunpack.c.h.b16 %v259
      %v898 = vunpack.c.l.b16 %v260
      %v899 = vunpack.c.h.b16 %v260
      %v900 = vunpack.c.l.b16 %v261
      %v901 = vunpack.c.h.b16 %v261
      %v902 = vunpack.c.l.b16 %v262
      %v903 = vunpack.c.h.b16 %v262
      %v904 = vunpack.c.l.b16 %v263
      %v905 = vunpack.c.h.b16 %v263
      %v906 = vunpack.c.l.b16 %v264
      %v907 = vunpack.c.h.b16 %v264
      %v908 = vunpack.c.l.b16 %v265
      %v909 = vunpack.c.h.b16 %v265
      %v910 = vunpack.c.l.b16 %v266
      %v911 = vunpack.c.h.b16 %v266
      %v912 = vunpack.c.l.b16 %v267
      %v913 = vunpack.c.h.b16 %v267
      %v914 = vunpack.c.l.b16 %v268
      %v915 = vunpack.c.h.b16 %v268
      %v916 = vunpack.c.l.b16 %v269
      %v917 = vunpack.c.h.b16 %v269
      %v918 = vpack.c.b16 %v852, %v850
      %v919 = vpack.c.b16 %v853, %v851
      %v920 = vpack.c.b16 %v856, %v854
      %v921 = vpack.c.b16 %v857, %v855
      %v922 = vpack.c.b16 %v860, %v858
      %v923 = vpack.c.b16 %v861, %v859
      %v924 = vpack.c.b16 %v864, %v862
      %v925 = vpack.c.b16 %v865, %v863
      %v926 = vpack.c.b16 %v868, %v866
      %v927 = vpack.c.b16 %v869, %v867
      %v928 = vpack.c.b16 %v872, %v870
      %v929 = vpack.c.b16 %v873, %v871
      %v930 = vpack.c.b16 %v876, %v874
      %v931 = vpack.c.b16 %v877, %v875
      %v932 = vpack.c.b16 %v880, %v878
      %v933 = vpack.c.b16 %v881, %v879
      %v934 = vpack.c.b16 %v884, %v882
      %v935 = vpack.c.b16 %v885, %v883
      %v936 = vpack.c.b16 %v888, %v886
      %v937 = vpack.c.b16 %v889, %v887
      %v938 = vpack.c.b16 %v892, %v890
      %v939 = vpack.c.b16 %v893, %v891
      %v940 = vpack.c.b16 %v896, %v894
      %v941 = vpack.c.b16 %v897, %v895
      %v942 = vpack.c.b16 %v900, %v898
      %v943 = vpack.c.b16 %v901, %v899
      %v944 = vpack.c.b16 %v904, %v902
      %v945 = vpack.c.b16 %v905, %v903
      %v946 = vpack.c.b16 %v908, %v906
      %v947 = vpack.c.b16 %v909, %v907
      %v948 = vpack.c.b16 %v912, %v910
      %v949 = vpack.c.b16 %v913, %v911
      %v950 = vpack.c.b16 %v916, %v914
      %v951 = vpack.c.b16 %v917, %v915
      %v1018 = vunpack.c.l.b16 %v270
      %v1019 = vunpack.c.l.b16 %v271
      %v1020 = vunpack.c.l.b16 %v272
      %v1021 = vunpack.c.l.b16 %v273
      %v1022 = vunpack.c.l.b16 %v274
      %v1023 = vunpack.c.l.b16 %v275
      %v1024 = vunpack.c.l.b16 %v276
      %v1025 = vunpack.c.l.b16 %v277
      %v1026 = vunpack.c.l.b16 %v278
      %v1027 = vunpack.c.l.b16 %v279
      %v1028 = vunpack.c.l.b16 %v280
      %v1029 = vunpack.c.l.b16 %v281
      %v1030 = vunpack.c.l.b16 %v282
      %v1031 = vunpack.c.l.b16 %v283
      %v1032 = vunpack.c.l.b16 %v284
      %v1033 = vunpack.c.l.b16 %v285
      %v1034 = vunpack.c.l.b16 %v286
      %v1035 = vunpack.c.l.b16 %v287
      %v1036 = vunpack.c.l.b16 %v288
      %v1037 = vunpack.c.l.b16 %v289
      %v1038 = vunpack.c.l.b16 %v290
      %v1039 = vunpack.c.l.b16 %v291
      %v1040 = vunpack.c.l.b16 %v292
      %v1041 = vunpack.c.l.b16 %v293
      %v1042 = vunpack.c.l.b16 %v294
      %v1043 = vunpack.c.l.b16 %v295
      %v1044 = vunpack.c.l.b16 %v296
      %v1045 = vunpack.c.l.b16 %v297
      %v1046 = vunpack.c.l.b16 %v298
      %v1047 = vunpack.c.l.b16 %v299
      %v1048 = vunpack.c.l.b16 %v300
      %v1049 = vunpack.c.l.b16 %v301
      %v1050 = vpack.c.b16 %v1019, %v1018
      %v1051 = vpack.c.b16 %v1021, %v1020
      %v1052 = vpack.c.b16 %v1023, %v1022
      %v1053 = vpack.c.b16 %v1025, %v1024
      %v1054 = vpack.c.b16 %v1027, %v1026
      %v1055 = vpack.c.b16 %v1029, %v1028
      %v1056 = vpack.c.b16 %v1031, %v1030
      %v1057 = vpack.c.b16 %v1033, %v1032
      %v1058 = vpack.c.b16 %v1035, %v1034
      %v1059 = vpack.c.b16 %v1037, %v1036
      %v1060 = vpack.c.b16 %v1039, %v1038
      %v1061 = vpack.c.b16 %v1041, %v1040
      %v1062 = vpack.c.b16 %v1043, %v1042
      %v1063 = vpack.c.b16 %v1045, %v1044
      %v1064 = vpack.c.b16 %v1047, %v1046
      %v1065 = vpack.c.b16 %v1049, %v1048
      %1082 = vmatprep.subr.bf16.mxu0 0
      %1083 = vmatpush1.bf16.msra.mxu0 %v1057
      %1084 = vmatprep.subr.bf16.mxu0 0
      %1085 = vmatpush1.bf16.msra.mxu0 %v1056
      %1086 = vmatprep.subr.bf16.mxu0 0
      %1087 = vmatpush1.bf16.msra.mxu0 %v1055
      %1088 = vmatprep.subr.bf16.mxu0 0
      %1089 = vmatpush1.bf16.msra.mxu0 %v1054
      %1090 = vmatprep.subr.bf16.mxu0 0
      %1091 = vmatpush1.bf16.msra.mxu0 %v1053
      %1092 = vmatprep.subr.bf16.mxu0 0
      %1093 = vmatpush1.bf16.msra.mxu0 %v1052
      %1094 = vmatprep.subr.bf16.mxu0 0
      %1095 = vmatpush1.bf16.msra.mxu0 %v1051
      %1096 = vmatprep.subr.bf16.mxu0 0
      %1097 = vmatpush1.bf16.msra.mxu0 %v1050
      %1098 = vmatprep.subr.bf16.mxu0 0
      %1099 = vmatpush2.bf16.msra.mxu0 %v1065
      %1100 = vmatprep.subr.bf16.mxu0 0
      %1101 = vmatpush2.bf16.msra.mxu0 %v1064
      %1102 = vmatprep.subr.bf16.mxu0 0
      %1103 = vmatpush2.bf16.msra.mxu0 %v1063
      %1104 = vmatprep.subr.bf16.mxu0 0
      %1105 = vmatpush2.bf16.msra.mxu0 %v1062
      %1106 = vmatprep.subr.bf16.mxu0 0
      %1107 = vmatpush2.bf16.msra.mxu0 %v1061
      %1108 = vmatprep.subr.bf16.mxu0 0
      %1109 = vmatpush2.bf16.msra.mxu0 %v1060
      %1110 = vmatprep.subr.bf16.mxu0 0
      %1111 = vmatpush2.bf16.msra.mxu0 %v1059
      %1112 = vmatprep.subr.bf16.mxu0 0
      %1113 = vmatpush2.bf16.msra.mxu0 %v1058
      %1114 = vmatprep.mubr.bf16.mxu0 %v919
      %1115 = vmatmul.mubr.bf16.gmra.mxu0 %v918
      %v1116 = vpop.f32.mrf.mxu0
      %v1117 = vadd.f32 %v682, %v1116
      %v1118 = vpop.f32.mrf.mxu0
      %v1119 = vpop.f32.mrf.mxu0
      %v1120 = vadd.f32 %v685, %v1119
      %v1121 = vpop.f32.mrf.mxu0
      %1122 = vmatprep.mubr.bf16.mxu0 %v921
      %1123 = vmatmul.mubr.bf16.gmra.mxu0 %v920
      %v1124 = vpop.f32.mrf.mxu0
      %v1125 = vadd.f32 %v690, %v1124
      %v1126 = vpop.f32.mrf.mxu0
      %v1127 = vpop.f32.mrf.mxu0
      %v1128 = vadd.f32 %v693, %v1127
      %v1129 = vpop.f32.mrf.mxu0
      %1130 = vmatprep.mubr.bf16.mxu0 %v923
      %1131 = vmatmul.mubr.bf16.gmra.mxu0 %v922
      %v1132 = vpop.f32.mrf.mxu0
      %v1133 = vadd.f32 %v698, %v1132
      %v1134 = vpop.f32.mrf.mxu0
      %v1135 = vpop.f32.mrf.mxu0
      %v1136 = vadd.f32 %v701, %v1135
      %v1137 = vpop.f32.mrf.mxu0
      %1138 = vmatprep.mubr.bf16.mxu0 %v925
      %1139 = vmatmul.mubr.bf16.gmra.mxu0 %v924
      %v1140 = vpop.f32.mrf.mxu0
      %v1141 = vadd.f32 %v706, %v1140
      %v1142 = vpop.f32.mrf.mxu0
      %v1143 = vpop.f32.mrf.mxu0
      %v1144 = vadd.f32 %v709, %v1143
      %v1145 = vpop.f32.mrf.mxu0
      %1146 = vmatprep.mubr.bf16.mxu0 %v927
      %1147 = vmatmul.mubr.bf16.gmra.mxu0 %v926
      %v1148 = vpop.f32.mrf.mxu0
      %v1149 = vadd.f32 %v714, %v1148
      %v1150 = vpop.f32.mrf.mxu0
      %v1151 = vpop.f32.mrf.mxu0
      %v1152 = vadd.f32 %v717, %v1151
      %v1153 = vpop.f32.mrf.mxu0
      %1154 = vmatprep.mubr.bf16.mxu0 %v929
      %1155 = vmatmul.mubr.bf16.gmra.mxu0 %v928
      %v1156 = vpop.f32.mrf.mxu0
      %v1157 = vadd.f32 %v722, %v1156
      %v1158 = vpop.f32.mrf.mxu0
      %v1159 = vpop.f32.mrf.mxu0
      %v1160 = vadd.f32 %v725, %v1159
      %v1161 = vpop.f32.mrf.mxu0
      %1162 = vmatprep.mubr.bf16.mxu0 %v931
      %1163 = vmatmul.mubr.bf16.gmra.mxu0 %v930
      %v1164 = vpop.f32.mrf.mxu0
      %v1165 = vadd.f32 %v730, %v1164
      %v1166 = vpop.f32.mrf.mxu0
      %v1167 = vpop.f32.mrf.mxu0
      %v1168 = vadd.f32 %v733, %v1167
      %v1169 = vpop.f32.mrf.mxu0
      %1170 = vmatprep.mubr.bf16.mxu0 %v933
      %1171 = vmatmul.mubr.bf16.gmra.mxu0 %v932
      %v1172 = vpop.f32.mrf.mxu0
      %v1173 = vadd.f32 %v738, %v1172
      %v1174 = vpop.f32.mrf.mxu0
      %v1175 = vpop.f32.mrf.mxu0
      %v1176 = vadd.f32 %v741, %v1175
      %v1177 = vpop.f32.mrf.mxu0
      %1178 = vmatprep.mubr.bf16.mxu0 %v935
      %1179 = vmatmul.mubr.bf16.gmra.mxu0 %v934
      %v1180 = vpop.f32.mrf.mxu0
      %v1181 = vadd.f32 %v746, %v1180
      %v1182 = vpop.f32.mrf.mxu0
      %v1183 = vpop.f32.mrf.mxu0
      %v1184 = vadd.f32 %v749, %v1183
      %v1185 = vpop.f32.mrf.mxu0
      %1186 = vmatprep.mubr.bf16.mxu0 %v937
      %1187 = vmatmul.mubr.bf16.gmra.mxu0 %v936
      %v1188 = vpop.f32.mrf.mxu0
      %v1189 = vadd.f32 %v754, %v1188
      %v1190 = vpop.f32.mrf.mxu0
      %v1191 = vpop.f32.mrf.mxu0
      %v1192 = vadd.f32 %v757, %v1191
      %v1193 = vpop.f32.mrf.mxu0
      %1194 = vmatprep.mubr.bf16.mxu0 %v939
      %1195 = vmatmul.mubr.bf16.gmra.mxu0 %v938
      %v1196 = vpop.f32.mrf.mxu0
      %v1197 = vadd.f32 %v762, %v1196
      %v1198 = vpop.f32.mrf.mxu0
      %v1199 = vpop.f32.mrf.mxu0
      %v1200 = vadd.f32 %v765, %v1199
      %v1201 = vpop.f32.mrf.mxu0
      %1202 = vmatprep.mubr.bf16.mxu0 %v941
      %1203 = vmatmul.mubr.bf16.gmra.mxu0 %v940
      %v1204 = vpop.f32.mrf.mxu0
      %v1205 = vadd.f32 %v770, %v1204
      %v1206 = vpop.f32.mrf.mxu0
      %v1207 = vpop.f32.mrf.mxu0
      %v1208 = vadd.f32 %v773, %v1207
      %v1209 = vpop.f32.mrf.mxu0
      %1210 = vmatprep.mubr.bf16.mxu0 %v943
      %1211 = vmatmul.mubr.bf16.gmra.mxu0 %v942
      %v1212 = vpop.f32.mrf.mxu0
      %v1213 = vadd.f32 %v778, %v1212
      %v1214 = vpop.f32.mrf.mxu0
      %v1215 = vpop.f32.mrf.mxu0
      %v1216 = vadd.f32 %v781, %v1215
      %v1217 = vpop.f32.mrf.mxu0
      %1218 = vmatprep.mubr.bf16.mxu0 %v945
      %1219 = vmatmul.mubr.bf16.gmra.mxu0 %v944
      %v1220 = vpop.f32.mrf.mxu0
      %v1221 = vadd.f32 %v786, %v1220
      %v1222 = vpop.f32.mrf.mxu0
      %v1223 = vpop.f32.mrf.mxu0
      %v1224 = vadd.f32 %v789, %v1223
      %v1225 = vpop.f32.mrf.mxu0
      %1226 = vmatprep.mubr.bf16.mxu0 %v947
      %1227 = vmatmul.mubr.bf16.gmra.mxu0 %v946
      %v1228 = vpop.f32.mrf.mxu0
      %v1229 = vadd.f32 %v794, %v1228
      %v1230 = vpop.f32.mrf.mxu0
      %v1231 = vpop.f32.mrf.mxu0
      %v1232 = vadd.f32 %v797, %v1231
      %v1233 = vpop.f32.mrf.mxu0
      %1234 = vmatprep.mubr.bf16.mxu0 %v949
      %1235 = vmatmul.mubr.bf16.gmra.mxu0 %v948
      %v1236 = vpop.f32.mrf.mxu0
      %v1237 = vadd.f32 %v802, %v1236
      %v1238 = vpop.f32.mrf.mxu0
      %v1239 = vpop.f32.mrf.mxu0
      %v1240 = vadd.f32 %v805, %v1239
      %v1241 = vpop.f32.mrf.mxu0
      %1242 = vmatprep.mubr.bf16.mxu0 %v951
      %1243 = vmatmul.mubr.bf16.gmra.mxu0 %v950
      %v1244 = vpop.f32.mrf.mxu0
      %v1245 = vadd.f32 %v810, %v1244
      %v1246 = vpop.f32.mrf.mxu0
      %v1247 = vpop.f32.mrf.mxu0
      %v1248 = vadd.f32 %v813, %v1247
      %v1249 = vpop.f32.mrf.mxu0
      %1250 = vdwg.mxu0
      %s1251 = scalar_lea.vmem %s224, 312
      %v1252 = vld [vmem:[%s1251] sm:$0xff]
      %v1253 = vld [vmem:[%s1251 + $0x8] sm:$0xff]
      %v1254 = vld [vmem:[%s1251 + $0x10] sm:$0xff]
      %v1255 = vld [vmem:[%s1251 + $0x18] sm:$0xff]
      %v1256 = vld [vmem:[%s1251 + $0x20] sm:$0xff]
      %v1257 = vld [vmem:[%s1251 + $0x28] sm:$0xff]
      %v1258 = vld [vmem:[%s1251 + $0x30] sm:$0xff]
      %v1259 = vld [vmem:[%s1251 + $0x38] sm:$0xff]
      %v1260 = vld [vmem:[%s1251 + $0x40] sm:$0xff]
      %v1261 = vld [vmem:[%s1251 + $0x48] sm:$0xff]
      %v1262 = vld [vmem:[%s1251 + $0x50] sm:$0xff]
      %v1263 = vld [vmem:[%s1251 + $0x58] sm:$0xff]
      %v1264 = vld [vmem:[%s1251 + $0x60] sm:$0xff]
      %v1265 = vld [vmem:[%s1251 + $0x68] sm:$0xff]
      %v1266 = vld [vmem:[%s1251 + $0x70] sm:$0xff]
      %v1267 = vld [vmem:[%s1251 + $0x78] sm:$0xff]
      %v1268 = vld [vmem:[%s1251 + $0x80] sm:$0xff]
      %v1269 = vld [vmem:[%s1251 + $0x88] sm:$0xff]
      %v1270 = vld [vmem:[%s1251 + $0x90] sm:$0xff]
      %v1271 = vld [vmem:[%s1251 + $0x98] sm:$0xff]
      %v1272 = vld [vmem:[%s1251 + $0xa0] sm:$0xff]
      %v1273 = vld [vmem:[%s1251 + $0xa8] sm:$0xff]
      %v1274 = vld [vmem:[%s1251 + $0xb0] sm:$0xff]
      %v1275 = vld [vmem:[%s1251 + $0xb8] sm:$0xff]
      %v1276 = vld [vmem:[%s1251 + $0xc0] sm:$0xff]
      %v1277 = vld [vmem:[%s1251 + $0xc8] sm:$0xff]
      %v1278 = vld [vmem:[%s1251 + $0xd0] sm:$0xff]
      %v1279 = vld [vmem:[%s1251 + $0xd8] sm:$0xff]
      %v1280 = vld [vmem:[%s1251 + $0xe0] sm:$0xff]
      %v1281 = vld [vmem:[%s1251 + $0xe8] sm:$0xff]
      %v1282 = vld [vmem:[%s1251 + $0xf0] sm:$0xff]
      %v1283 = vld [vmem:[%s1251 + $0xf8] sm:$0xff]
      %v1284 = vld [vmem:[%s1251 + $0x100] sm:$0xff]
      %v1285 = vld [vmem:[%s1251 + $0x108] sm:$0xff]
      %s1286 = scalar_lea.vmem %s1, 128
      %v1287 = vld [vmem:[%s1286] sm:$0xf]
      %v1288 = vld [vmem:[%s1286 + $0x4] sm:$0xf]
      %v1289 = vld [vmem:[%s1286 + $0x8] sm:$0xf]
      %v1290 = vld [vmem:[%s1286 + $0xc] sm:$0xf]
      %v1291 = vld [vmem:[%s1286 + $0x10] sm:$0xf]
      %v1292 = vld [vmem:[%s1286 + $0x14] sm:$0xf]
      %v1293 = vld [vmem:[%s1286 + $0x18] sm:$0xf]
      %v1294 = vld [vmem:[%s1286 + $0x1c] sm:$0xf]
      %v1295 = vld [vmem:[%s1286 + $0x20] sm:$0xf]
      %v1296 = vld [vmem:[%s1286 + $0x24] sm:$0xf]
      %v1297 = vld [vmem:[%s1286 + $0x28] sm:$0xf]
      %v1298 = vld [vmem:[%s1286 + $0x2c] sm:$0xf]
      %v1299 = vld [vmem:[%s1286 + $0x30] sm:$0xf]
      %v1300 = vld [vmem:[%s1286 + $0x34] sm:$0xf]
      %v1301 = vld [vmem:[%s1286 + $0x38] sm:$0xf]
      %v1302 = vld [vmem:[%s1286 + $0x3c] sm:$0xf]
      %v1303 = vld [vmem:[%s1286 + $0x40] sm:$0xf]
      %v1304 = vld [vmem:[%s1286 + $0x44] sm:$0xf]
      %v1305 = vld [vmem:[%s1286 + $0x48] sm:$0xf]
      %v1306 = vld [vmem:[%s1286 + $0x4c] sm:$0xf]
      %v1307 = vld [vmem:[%s1286 + $0x50] sm:$0xf]
      %v1308 = vld [vmem:[%s1286 + $0x54] sm:$0xf]
      %v1309 = vld [vmem:[%s1286 + $0x58] sm:$0xf]
      %v1310 = vld [vmem:[%s1286 + $0x5c] sm:$0xf]
      %v1311 = vld [vmem:[%s1286 + $0x60] sm:$0xf]
      %v1312 = vld [vmem:[%s1286 + $0x64] sm:$0xf]
      %v1313 = vld [vmem:[%s1286 + $0x68] sm:$0xf]
      %v1314 = vld [vmem:[%s1286 + $0x6c] sm:$0xf]
      %v1315 = vld [vmem:[%s1286 + $0x70] sm:$0xf]
      %v1316 = vld [vmem:[%s1286 + $0x74] sm:$0xf]
      %v1317 = vld [vmem:[%s1286 + $0x78] sm:$0xf]
      %v1318 = vld [vmem:[%s1286 + $0x7c] sm:$0xf]
      %v1353 = vunpack.c.l.b16 %v1252
      %v1354 = vunpack.c.h.b16 %v1252
      %v1355 = vunpack.c.l.b16 %v1253
      %v1356 = vunpack.c.h.b16 %v1253
      %v1357 = vunpack.c.l.b16 %v1254
      %v1358 = vunpack.c.h.b16 %v1254
      %v1359 = vunpack.c.l.b16 %v1255
      %v1360 = vunpack.c.h.b16 %v1255
      %v1361 = vunpack.c.l.b16 %v1256
      %v1362 = vunpack.c.h.b16 %v1256
      %v1363 = vunpack.c.l.b16 %v1257
      %v1364 = vunpack.c.h.b16 %v1257
      %v1365 = vunpack.c.l.b16 %v1258
      %v1366 = vunpack.c.h.b16 %v1258
      %v1367 = vunpack.c.l.b16 %v1259
      %v1368 = vunpack.c.h.b16 %v1259
      %v1369 = vunpack.c.l.b16 %v1260
      %v1370 = vunpack.c.h.b16 %v1260
      %v1371 = vunpack.c.l.b16 %v1261
      %v1372 = vunpack.c.h.b16 %v1261
      %v1373 = vunpack.c.l.b16 %v1262
      %v1374 = vunpack.c.h.b16 %v1262
      %v1375 = vunpack.c.l.b16 %v1263
      %v1376 = vunpack.c.h.b16 %v1263
      %v1377 = vunpack.c.l.b16 %v1264
      %v1378 = vunpack.c.h.b16 %v1264
      %v1379 = vunpack.c.l.b16 %v1265
      %v1380 = vunpack.c.h.b16 %v1265
      %v1381 = vunpack.c.l.b16 %v1266
      %v1382 = vunpack.c.h.b16 %v1266
      %v1383 = vunpack.c.l.b16 %v1267
      %v1384 = vunpack.c.h.b16 %v1267
      %v1385 = vunpack.c.l.b16 %v1268
      %v1386 = vunpack.c.h.b16 %v1268
      %v1387 = vunpack.c.l.b16 %v1269
      %v1388 = vunpack.c.h.b16 %v1269
      %v1389 = vunpack.c.l.b16 %v1270
      %v1390 = vunpack.c.h.b16 %v1270
      %v1391 = vunpack.c.l.b16 %v1271
      %v1392 = vunpack.c.h.b16 %v1271
      %v1393 = vunpack.c.l.b16 %v1272
      %v1394 = vunpack.c.h.b16 %v1272
      %v1395 = vunpack.c.l.b16 %v1273
      %v1396 = vunpack.c.h.b16 %v1273
      %v1397 = vunpack.c.l.b16 %v1274
      %v1398 = vunpack.c.h.b16 %v1274
      %v1399 = vunpack.c.l.b16 %v1275
      %v1400 = vunpack.c.h.b16 %v1275
      %v1401 = vunpack.c.l.b16 %v1276
      %v1402 = vunpack.c.h.b16 %v1276
      %v1403 = vunpack.c.l.b16 %v1277
      %v1404 = vunpack.c.h.b16 %v1277
      %v1405 = vunpack.c.l.b16 %v1278
      %v1406 = vunpack.c.h.b16 %v1278
      %v1407 = vunpack.c.l.b16 %v1279
      %v1408 = vunpack.c.h.b16 %v1279
      %v1409 = vunpack.c.l.b16 %v1280
      %v1410 = vunpack.c.h.b16 %v1280
      %v1411 = vunpack.c.l.b16 %v1281
      %v1412 = vunpack.c.h.b16 %v1281
      %v1413 = vunpack.c.l.b16 %v1282
      %v1414 = vunpack.c.h.b16 %v1282
      %v1415 = vunpack.c.l.b16 %v1283
      %v1416 = vunpack.c.h.b16 %v1283
      %v1417 = vunpack.c.l.b16 %v1284
      %v1418 = vunpack.c.h.b16 %v1284
      %v1419 = vunpack.c.l.b16 %v1285
      %v1420 = vunpack.c.h.b16 %v1285
      %v1421 = vpack.c.b16 %v1355, %v1353
      %v1422 = vpack.c.b16 %v1356, %v1354
      %v1423 = vpack.c.b16 %v1359, %v1357
      %v1424 = vpack.c.b16 %v1360, %v1358
      %v1425 = vpack.c.b16 %v1363, %v1361
      %v1426 = vpack.c.b16 %v1364, %v1362
      %v1427 = vpack.c.b16 %v1367, %v1365
      %v1428 = vpack.c.b16 %v1368, %v1366
      %v1429 = vpack.c.b16 %v1371, %v1369
      %v1430 = vpack.c.b16 %v1372, %v1370
      %v1431 = vpack.c.b16 %v1375, %v1373
      %v1432 = vpack.c.b16 %v1376, %v1374
      %v1433 = vpack.c.b16 %v1379, %v1377
      %v1434 = vpack.c.b16 %v1380, %v1378
      %v1435 = vpack.c.b16 %v1383, %v1381
      %v1436 = vpack.c.b16 %v1384, %v1382
      %v1437 = vpack.c.b16 %v1387, %v1385
      %v1438 = vpack.c.b16 %v1388, %v1386
      %v1439 = vpack.c.b16 %v1391, %v1389
      %v1440 = vpack.c.b16 %v1392, %v1390
      %v1441 = vpack.c.b16 %v1395, %v1393
      %v1442 = vpack.c.b16 %v1396, %v1394
      %v1443 = vpack.c.b16 %v1399, %v1397
      %v1444 = vpack.c.b16 %v1400, %v1398
      %v1445 = vpack.c.b16 %v1403, %v1401
      %v1446 = vpack.c.b16 %v1404, %v1402
      %v1447 = vpack.c.b16 %v1407, %v1405
      %v1448 = vpack.c.b16 %v1408, %v1406
      %v1449 = vpack.c.b16 %v1411, %v1409
      %v1450 = vpack.c.b16 %v1412, %v1410
      %v1451 = vpack.c.b16 %v1415, %v1413
      %v1452 = vpack.c.b16 %v1416, %v1414
      %v1453 = vpack.c.b16 %v1419, %v1417
      %v1454 = vpack.c.b16 %v1420, %v1418
      %v1521 = vunpack.c.l.b16 %v1287
      %v1522 = vunpack.c.l.b16 %v1288
      %v1523 = vunpack.c.l.b16 %v1289
      %v1524 = vunpack.c.l.b16 %v1290
      %v1525 = vunpack.c.l.b16 %v1291
      %v1526 = vunpack.c.l.b16 %v1292
      %v1527 = vunpack.c.l.b16 %v1293
      %v1528 = vunpack.c.l.b16 %v1294
      %v1529 = vunpack.c.l.b16 %v1295
      %v1530 = vunpack.c.l.b16 %v1296
      %v1531 = vunpack.c.l.b16 %v1297
      %v1532 = vunpack.c.l.b16 %v1298
      %v1533 = vunpack.c.l.b16 %v1299
      %v1534 = vunpack.c.l.b16 %v1300
      %v1535 = vunpack.c.l.b16 %v1301
      %v1536 = vunpack.c.l.b16 %v1302
      %v1537 = vunpack.c.l.b16 %v1303
      %v1538 = vunpack.c.l.b16 %v1304
      %v1539 = vunpack.c.l.b16 %v1305
      %v1540 = vunpack.c.l.b16 %v1306
      %v1541 = vunpack.c.l.b16 %v1307
      %v1542 = vunpack.c.l.b16 %v1308
      %v1543 = vunpack.c.l.b16 %v1309
      %v1544 = vunpack.c.l.b16 %v1310
      %v1545 = vunpack.c.l.b16 %v1311
      %v1546 = vunpack.c.l.b16 %v1312
      %v1547 = vunpack.c.l.b16 %v1313
      %v1548 = vunpack.c.l.b16 %v1314
      %v1549 = vunpack.c.l.b16 %v1315
      %v1550 = vunpack.c.l.b16 %v1316
      %v1551 = vunpack.c.l.b16 %v1317
      %v1552 = vunpack.c.l.b16 %v1318
      %v1553 = vpack.c.b16 %v1522, %v1521
      %v1554 = vpack.c.b16 %v1524, %v1523
      %v1555 = vpack.c.b16 %v1526, %v1525
      %v1556 = vpack.c.b16 %v1528, %v1527
      %v1557 = vpack.c.b16 %v1530, %v1529
      %v1558 = vpack.c.b16 %v1532, %v1531
      %v1559 = vpack.c.b16 %v1534, %v1533
      %v1560 = vpack.c.b16 %v1536, %v1535
      %v1561 = vpack.c.b16 %v1538, %v1537
      %v1562 = vpack.c.b16 %v1540, %v1539
      %v1563 = vpack.c.b16 %v1542, %v1541
      %v1564 = vpack.c.b16 %v1544, %v1543
      %v1565 = vpack.c.b16 %v1546, %v1545
      %v1566 = vpack.c.b16 %v1548, %v1547
      %v1567 = vpack.c.b16 %v1550, %v1549
      %v1568 = vpack.c.b16 %v1552, %v1551
      %1585 = vmatprep.subr.bf16.mxu0 0
      %1586 = vmatpush1.bf16.msra.mxu0 %v1560
      %1587 = vmatprep.subr.bf16.mxu0 0
      %1588 = vmatpush1.bf16.msra.mxu0 %v1559
      %1589 = vmatprep.subr.bf16.mxu0 0
      %1590 = vmatpush1.bf16.msra.mxu0 %v1558
      %1591 = vmatprep.subr.bf16.mxu0 0
      %1592 = vmatpush1.bf16.msra.mxu0 %v1557
      %1593 = vmatprep.subr.bf16.mxu0 0
      %1594 = vmatpush1.bf16.msra.mxu0 %v1556
      %1595 = vmatprep.subr.bf16.mxu0 0
      %1596 = vmatpush1.bf16.msra.mxu0 %v1555
      %1597 = vmatprep.subr.bf16.mxu0 0
      %1598 = vmatpush1.bf16.msra.mxu0 %v1554
      %1599 = vmatprep.subr.bf16.mxu0 0
      %1600 = vmatpush1.bf16.msra.mxu0 %v1553
      %1601 = vmatprep.subr.bf16.mxu0 0
      %1602 = vmatpush2.bf16.msra.mxu0 %v1568
      %1603 = vmatprep.subr.bf16.mxu0 0
      %1604 = vmatpush2.bf16.msra.mxu0 %v1567
      %1605 = vmatprep.subr.bf16.mxu0 0
      %1606 = vmatpush2.bf16.msra.mxu0 %v1566
      %1607 = vmatprep.subr.bf16.mxu0 0
      %1608 = vmatpush2.bf16.msra.mxu0 %v1565
      %1609 = vmatprep.subr.bf16.mxu0 0
      %1610 = vmatpush2.bf16.msra.mxu0 %v1564
      %1611 = vmatprep.subr.bf16.mxu0 0
      %1612 = vmatpush2.bf16.msra.mxu0 %v1563
      %1613 = vmatprep.subr.bf16.mxu0 0
      %1614 = vmatpush2.bf16.msra.mxu0 %v1562
      %1615 = vmatprep.subr.bf16.mxu0 0
      %1616 = vmatpush2.bf16.msra.mxu0 %v1561
      %1617 = vmatprep.mubr.bf16.mxu0 %v1422
      %1618 = vmatmul.mubr.bf16.gmra.mxu0 %v1421
      %v1619 = vpop.f32.mrf.mxu0
      %v1620 = vadd.f32 0.0, %v1619
      %v1621 = vpop.f32.mrf.mxu0
      %v1622 = vpop.f32.mrf.mxu0
      %v1623 = vadd.f32 0.0, %v1622
      %v1624 = vpop.f32.mrf.mxu0
      %1625 = vmatprep.mubr.bf16.mxu0 %v1424
      %1626 = vmatmul.mubr.bf16.gmra.mxu0 %v1423
      %v1627 = vpop.f32.mrf.mxu0
      %v1628 = vadd.f32 0.0, %v1627
      %v1629 = vpop.f32.mrf.mxu0
      %v1630 = vpop.f32.mrf.mxu0
      %v1631 = vadd.f32 0.0, %v1630
      %v1632 = vpop.f32.mrf.mxu0
      %1633 = vmatprep.mubr.bf16.mxu0 %v1426
      %1634 = vmatmul.mubr.bf16.gmra.mxu0 %v1425
      %v1635 = vpop.f32.mrf.mxu0
      %v1636 = vadd.f32 0.0, %v1635
      %v1637 = vpop.f32.mrf.mxu0
      %v1638 = vpop.f32.mrf.mxu0
      %v1639 = vadd.f32 0.0, %v1638
      %v1640 = vpop.f32.mrf.mxu0
      %1641 = vmatprep.mubr.bf16.mxu0 %v1428
      %1642 = vmatmul.mubr.bf16.gmra.mxu0 %v1427
      %v1643 = vpop.f32.mrf.mxu0
      %v1644 = vadd.f32 0.0, %v1643
      %v1645 = vpop.f32.mrf.mxu0
      %v1646 = vpop.f32.mrf.mxu0
      %v1647 = vadd.f32 0.0, %v1646
      %v1648 = vpop.f32.mrf.mxu0
      %1649 = vmatprep.mubr.bf16.mxu0 %v1430
      %1650 = vmatmul.mubr.bf16.gmra.mxu0 %v1429
      %v1651 = vpop.f32.mrf.mxu0
      %v1652 = vadd.f32 0.0, %v1651
      %v1653 = vpop.f32.mrf.mxu0
      %v1654 = vpop.f32.mrf.mxu0
      %v1655 = vadd.f32 0.0, %v1654
      %v1656 = vpop.f32.mrf.mxu0
      %1657 = vmatprep.mubr.bf16.mxu0 %v1432
      %1658 = vmatmul.mubr.bf16.gmra.mxu0 %v1431
      %v1659 = vpop.f32.mrf.mxu0
      %v1660 = vadd.f32 0.0, %v1659
      %v1661 = vpop.f32.mrf.mxu0
      %v1662 = vpop.f32.mrf.mxu0
      %v1663 = vadd.f32 0.0, %v1662
      %v1664 = vpop.f32.mrf.mxu0
      %1665 = vmatprep.mubr.bf16.mxu0 %v1434
      %1666 = vmatmul.mubr.bf16.gmra.mxu0 %v1433
      %v1667 = vpop.f32.mrf.mxu0
      %v1668 = vadd.f32 0.0, %v1667
      %v1669 = vpop.f32.mrf.mxu0
      %v1670 = vpop.f32.mrf.mxu0
      %v1671 = vadd.f32 0.0, %v1670
      %v1672 = vpop.f32.mrf.mxu0
      %1673 = vmatprep.mubr.bf16.mxu0 %v1436
      %1674 = vmatmul.mubr.bf16.gmra.mxu0 %v1435
      %v1675 = vpop.f32.mrf.mxu0
      %v1676 = vadd.f32 0.0, %v1675
      %v1677 = vpop.f32.mrf.mxu0
      %v1678 = vpop.f32.mrf.mxu0
      %v1679 = vadd.f32 0.0, %v1678
      %v1680 = vpop.f32.mrf.mxu0
      %1681 = vmatprep.mubr.bf16.mxu0 %v1438
      %1682 = vmatmul.mubr.bf16.gmra.mxu0 %v1437
      %v1683 = vpop.f32.mrf.mxu0
      %v1684 = vadd.f32 0.0, %v1683
      %v1685 = vpop.f32.mrf.mxu0
      %v1686 = vpop.f32.mrf.mxu0
      %v1687 = vadd.f32 0.0, %v1686
      %v1688 = vpop.f32.mrf.mxu0
      %1689 = vmatprep.mubr.bf16.mxu0 %v1440
      %1690 = vmatmul.mubr.bf16.gmra.mxu0 %v1439
      %v1691 = vpop.f32.mrf.mxu0
      %v1692 = vadd.f32 0.0, %v1691
      %v1693 = vpop.f32.mrf.mxu0
      %v1694 = vpop.f32.mrf.mxu0
      %v1695 = vadd.f32 0.0, %v1694
      %v1696 = vpop.f32.mrf.mxu0
      %1697 = vmatprep.mubr.bf16.mxu0 %v1442
      %1698 = vmatmul.mubr.bf16.gmra.mxu0 %v1441
      %v1699 = vpop.f32.mrf.mxu0
      %v1700 = vadd.f32 0.0, %v1699
      %v1701 = vpop.f32.mrf.mxu0
      %v1702 = vpop.f32.mrf.mxu0
      %v1703 = vadd.f32 0.0, %v1702
      %v1704 = vpop.f32.mrf.mxu0
      %1705 = vmatprep.mubr.bf16.mxu0 %v1444
      %1706 = vmatmul.mubr.bf16.gmra.mxu0 %v1443
      %v1707 = vpop.f32.mrf.mxu0
      %v1708 = vadd.f32 0.0, %v1707
      %v1709 = vpop.f32.mrf.mxu0
      %v1710 = vpop.f32.mrf.mxu0
      %v1711 = vadd.f32 0.0, %v1710
      %v1712 = vpop.f32.mrf.mxu0
      %1713 = vmatprep.mubr.bf16.mxu0 %v1446
      %1714 = vmatmul.mubr.bf16.gmra.mxu0 %v1445
      %v1715 = vpop.f32.mrf.mxu0
      %v1716 = vadd.f32 0.0, %v1715
      %v1717 = vpop.f32.mrf.mxu0
      %v1718 = vpop.f32.mrf.mxu0
      %v1719 = vadd.f32 0.0, %v1718
      %v1720 = vpop.f32.mrf.mxu0
      %1721 = vmatprep.mubr.bf16.mxu0 %v1448
      %1722 = vmatmul.mubr.bf16.gmra.mxu0 %v1447
      %v1723 = vpop.f32.mrf.mxu0
      %v1724 = vadd.f32 0.0, %v1723
      %v1725 = vpop.f32.mrf.mxu0
      %v1726 = vpop.f32.mrf.mxu0
      %v1727 = vadd.f32 0.0, %v1726
      %v1728 = vpop.f32.mrf.mxu0
      %1729 = vmatprep.mubr.bf16.mxu0 %v1450
      %1730 = vmatmul.mubr.bf16.gmra.mxu0 %v1449
      %v1731 = vpop.f32.mrf.mxu0
      %v1732 = vadd.f32 0.0, %v1731
      %v1733 = vpop.f32.mrf.mxu0
      %v1734 = vpop.f32.mrf.mxu0
      %v1735 = vadd.f32 0.0, %v1734
      %v1736 = vpop.f32.mrf.mxu0
      %1737 = vmatprep.mubr.bf16.mxu0 %v1452
      %1738 = vmatmul.mubr.bf16.gmra.mxu0 %v1451
      %v1739 = vpop.f32.mrf.mxu0
      %v1740 = vadd.f32 0.0, %v1739
      %v1741 = vpop.f32.mrf.mxu0
      %v1742 = vpop.f32.mrf.mxu0
      %v1743 = vadd.f32 0.0, %v1742
      %v1744 = vpop.f32.mrf.mxu0
      %1745 = vmatprep.mubr.bf16.mxu0 %v1454
      %1746 = vmatmul.mubr.bf16.gmra.mxu0 %v1453
      %v1747 = vpop.f32.mrf.mxu0
      %v1748 = vadd.f32 0.0, %v1747
      %v1749 = vpop.f32.mrf.mxu0
      %v1750 = vpop.f32.mrf.mxu0
      %v1751 = vadd.f32 0.0, %v1750
      %v1752 = vpop.f32.mrf.mxu0
      %1753 = vdwg.mxu0
      %v1754 = vadd.f32 %v1117, %v1620
      %v1755 = vadd.f32 %v1120, %v1623
      %v1756 = vadd.f32 %v1125, %v1628
      %v1757 = vadd.f32 %v1128, %v1631
      %v1758 = vadd.f32 %v1133, %v1636
      %v1759 = vadd.f32 %v1136, %v1639
      %v1760 = vadd.f32 %v1141, %v1644
      %v1761 = vadd.f32 %v1144, %v1647
      %v1762 = vadd.f32 %v1149, %v1652
      %v1763 = vadd.f32 %v1152, %v1655
      %v1764 = vadd.f32 %v1157, %v1660
      %v1765 = vadd.f32 %v1160, %v1663
      %v1766 = vadd.f32 %v1165, %v1668
      %v1767 = vadd.f32 %v1168, %v1671
      %v1768 = vadd.f32 %v1173, %v1676
      %v1769 = vadd.f32 %v1176, %v1679
      %v1770 = vadd.f32 %v1181, %v1684
      %v1771 = vadd.f32 %v1184, %v1687
      %v1772 = vadd.f32 %v1189, %v1692
      %v1773 = vadd.f32 %v1192, %v1695
      %v1774 = vadd.f32 %v1197, %v1700
      %v1775 = vadd.f32 %v1200, %v1703
      %v1776 = vadd.f32 %v1205, %v1708
      %v1777 = vadd.f32 %v1208, %v1711
      %v1778 = vadd.f32 %v1213, %v1716
      %v1779 = vadd.f32 %v1216, %v1719
      %v1780 = vadd.f32 %v1221, %v1724
      %v1781 = vadd.f32 %v1224, %v1727
      %v1782 = vadd.f32 %v1229, %v1732
      %v1783 = vadd.f32 %v1232, %v1735
      %v1784 = vadd.f32 %v1237, %v1740
      %v1785 = vadd.f32 %v1240, %v1743
      %v1786 = vadd.f32 %v1245, %v1748
      %v1787 = vadd.f32 %v1248, %v1751
      %v1788 = vld [vmem:[%s1251] sm:$0xf]
      %v1789 = vld [vmem:[%s1251 + $0x8] sm:$0xf]
      %v1790 = vld [vmem:[%s1251 + $0x10] sm:$0xf]
      %v1791 = vld [vmem:[%s1251 + $0x18] sm:$0xf]
      %v1792 = vld [vmem:[%s1251 + $0x20] sm:$0xf]
      %v1793 = vld [vmem:[%s1251 + $0x28] sm:$0xf]
      %v1794 = vld [vmem:[%s1251 + $0x30] sm:$0xf]
      %v1795 = vld [vmem:[%s1251 + $0x38] sm:$0xf]
      %v1796 = vld [vmem:[%s1251 + $0x40] sm:$0xf]
      %v1797 = vld [vmem:[%s1251 + $0x48] sm:$0xf]
      %v1798 = vld [vmem:[%s1251 + $0x50] sm:$0xf]
      %v1799 = vld [vmem:[%s1251 + $0x58] sm:$0xf]
      %v1800 = vld [vmem:[%s1251 + $0x60] sm:$0xf]
      %v1801 = vld [vmem:[%s1251 + $0x68] sm:$0xf]
      %v1802 = vld [vmem:[%s1251 + $0x70] sm:$0xf]
      %v1803 = vld [vmem:[%s1251 + $0x78] sm:$0xf]
      %v1804 = vld [vmem:[%s1251 + $0x80] sm:$0xf]
      %v1805 = vld [vmem:[%s1251 + $0x88] sm:$0xf]
      %v1806 = vld [vmem:[%s1251 + $0x90] sm:$0xf]
      %v1807 = vld [vmem:[%s1251 + $0x98] sm:$0xf]
      %v1808 = vld [vmem:[%s1251 + $0xa0] sm:$0xf]
      %v1809 = vld [vmem:[%s1251 + $0xa8] sm:$0xf]
      %v1810 = vld [vmem:[%s1251 + $0xb0] sm:$0xf]
      %v1811 = vld [vmem:[%s1251 + $0xb8] sm:$0xf]
      %v1812 = vld [vmem:[%s1251 + $0xc0] sm:$0xf]
      %v1813 = vld [vmem:[%s1251 + $0xc8] sm:$0xf]
      %v1814 = vld [vmem:[%s1251 + $0xd0] sm:$0xf]
      %v1815 = vld [vmem:[%s1251 + $0xd8] sm:$0xf]
      %v1816 = vld [vmem:[%s1251 + $0xe0] sm:$0xf]
      %v1817 = vld [vmem:[%s1251 + $0xe8] sm:$0xf]
      %v1818 = vld [vmem:[%s1251 + $0xf0] sm:$0xf]
      %v1819 = vld [vmem:[%s1251 + $0xf8] sm:$0xf]
      %v1820 = vld [vmem:[%s1251 + $0x100] sm:$0xf]
      %v1821 = vld [vmem:[%s1251 + $0x108] sm:$0xf]
      %v1822 = vld [vmem:[%s1251 + $0x110] sm:$0x1]
      %s1823 = scalar_lea.vmem %s2, 64
      %v1824 = vld [vmem:[%s1823] sm:$0xf]
      %v1825 = vld [vmem:[%s1823 + $0x4] sm:$0xf]
      %v1826 = vld [vmem:[%s1823 + $0x8] sm:$0xf]
      %v1827 = vld [vmem:[%s1823 + $0xc] sm:$0xf]
      %v1828 = vld [vmem:[%s1823 + $0x10] sm:$0xf]
      %v1829 = vld [vmem:[%s1823 + $0x14] sm:$0xf]
      %v1830 = vld [vmem:[%s1823 + $0x18] sm:$0xf]
      %v1831 = vld [vmem:[%s1823 + $0x1c] sm:$0xf]
      %v1832 = vld [vmem:[%s1823 + $0x20] sm:$0xf]
      %v1833 = vld [vmem:[%s1823 + $0x24] sm:$0xf]
      %v1834 = vld [vmem:[%s1823 + $0x28] sm:$0xf]
      %v1835 = vld [vmem:[%s1823 + $0x2c] sm:$0xf]
      %v1836 = vld [vmem:[%s1823 + $0x30] sm:$0xf]
      %v1837 = vld [vmem:[%s1823 + $0x34] sm:$0xf]
      %v1838 = vld [vmem:[%s1823 + $0x38] sm:$0xf]
      %v1839 = vld [vmem:[%s1823 + $0x3c] sm:$0xf]
      %v1875 = vunpack.c.l.b16 %v1788
      %v1876 = vunpack.c.l.b16 %v1789
      %v1877 = vunpack.c.l.b16 %v1790
      %v1878 = vunpack.c.l.b16 %v1791
      %v1879 = vunpack.c.l.b16 %v1792
      %v1880 = vunpack.c.l.b16 %v1793
      %v1881 = vunpack.c.l.b16 %v1794
      %v1882 = vunpack.c.l.b16 %v1795
      %v1883 = vunpack.c.l.b16 %v1796
      %v1884 = vunpack.c.l.b16 %v1797
      %v1885 = vunpack.c.l.b16 %v1798
      %v1886 = vunpack.c.l.b16 %v1799
      %v1887 = vunpack.c.l.b16 %v1800
      %v1888 = vunpack.c.l.b16 %v1801
      %v1889 = vunpack.c.l.b16 %v1802
      %v1890 = vunpack.c.l.b16 %v1803
      %v1891 = vunpack.c.l.b16 %v1804
      %v1892 = vunpack.c.l.b16 %v1805
      %v1893 = vunpack.c.l.b16 %v1806
      %v1894 = vunpack.c.l.b16 %v1807
      %v1895 = vunpack.c.l.b16 %v1808
      %v1896 = vunpack.c.l.b16 %v1809
      %v1897 = vunpack.c.l.b16 %v1810
      %v1898 = vunpack.c.l.b16 %v1811
      %v1899 = vunpack.c.l.b16 %v1812
      %v1900 = vunpack.c.l.b16 %v1813
      %v1901 = vunpack.c.l.b16 %v1814
      %v1902 = vunpack.c.l.b16 %v1815
      %v1903 = vunpack.c.l.b16 %v1816
      %v1904 = vunpack.c.l.b16 %v1817
      %v1905 = vunpack.c.l.b16 %v1818
      %v1906 = vunpack.c.l.b16 %v1819
      %v1907 = vunpack.c.l.b16 %v1820
      %v1908 = vunpack.c.l.b16 %v1821
      %v1909 = vunpack.c.l.b16 %v1822
      %v1910 = vpack.c.b16 %v1876, %v1875
      %v1911 = vpack.c.b16 %v1878, %v1877
      %v1912 = vpack.c.b16 %v1880, %v1879
      %v1913 = vpack.c.b16 %v1882, %v1881
      %v1914 = vpack.c.b16 %v1884, %v1883
      %v1915 = vpack.c.b16 %v1886, %v1885
      %v1916 = vpack.c.b16 %v1888, %v1887
      %v1917 = vpack.c.b16 %v1890, %v1889
      %v1918 = vpack.c.b16 %v1892, %v1891
      %v1919 = vpack.c.b16 %v1894, %v1893
      %v1920 = vpack.c.b16 %v1896, %v1895
      %v1921 = vpack.c.b16 %v1898, %v1897
      %v1922 = vpack.c.b16 %v1900, %v1899
      %v1923 = vpack.c.b16 %v1902, %v1901
      %v1924 = vpack.c.b16 %v1904, %v1903
      %v1925 = vpack.c.b16 %v1906, %v1905
      %v1926 = vpack.c.b16 %v1908, %v1907
      %v1927 = vpack.c.b16 %v1909, %v1909
      %v1929 = vshrl.u32 %v1910, 16
      %v1931 = vshll.u32 %v1910, 16
      %v1933 = vrot.slane %v1931, 1
      %v1934 = vor.u32 %v1929, %v1933
      %v1936 = vshll.u32 %v1911, 16
      %v1938 = vrot.slane %v1936, 1
      %v1939 = vsel %vm441, %v1934, %v1938
      %v1940 = vshrl.u32 %v1911, 16
      %v1942 = vor.u32 %v1940, %v1938
      %v1944 = vshll.u32 %v1912, 16
      %v1946 = vrot.slane %v1944, 1
      %v1947 = vsel %vm441, %v1942, %v1946
      %v1948 = vshrl.u32 %v1912, 16
      %v1950 = vor.u32 %v1948, %v1946
      %v1952 = vshll.u32 %v1913, 16
      %v1954 = vrot.slane %v1952, 1
      %v1955 = vsel %vm441, %v1950, %v1954
      %v1956 = vshrl.u32 %v1913, 16
      %v1958 = vor.u32 %v1956, %v1954
      %v1960 = vshll.u32 %v1914, 16
      %v1962 = vrot.slane %v1960, 1
      %v1963 = vsel %vm441, %v1958, %v1962
      %v1964 = vshrl.u32 %v1914, 16
      %v1966 = vor.u32 %v1964, %v1962
      %v1968 = vshll.u32 %v1915, 16
      %v1970 = vrot.slane %v1968, 1
      %v1971 = vsel %vm441, %v1966, %v1970
      %v1972 = vshrl.u32 %v1915, 16
      %v1974 = vor.u32 %v1972, %v1970
      %v1976 = vshll.u32 %v1916, 16
      %v1978 = vrot.slane %v1976, 1
      %v1979 = vsel %vm441, %v1974, %v1978
      %v1980 = vshrl.u32 %v1916, 16
      %v1982 = vor.u32 %v1980, %v1978
      %v1984 = vshll.u32 %v1917, 16
      %v1986 = vrot.slane %v1984, 1
      %v1987 = vsel %vm441, %v1982, %v1986
      %v1988 = vshrl.u32 %v1917, 16
      %v1990 = vor.u32 %v1988, %v1986
      %v1992 = vshll.u32 %v1918, 16
      %v1994 = vrot.slane %v1992, 1
      %v1995 = vsel %vm441, %v1990, %v1994
      %v1996 = vshrl.u32 %v1918, 16
      %v1998 = vor.u32 %v1996, %v1994
      %v2000 = vshll.u32 %v1919, 16
      %v2002 = vrot.slane %v2000, 1
      %v2003 = vsel %vm441, %v1998, %v2002
      %v2004 = vshrl.u32 %v1919, 16
      %v2006 = vor.u32 %v2004, %v2002
      %v2008 = vshll.u32 %v1920, 16
      %v2010 = vrot.slane %v2008, 1
      %v2011 = vsel %vm441, %v2006, %v2010
      %v2012 = vshrl.u32 %v1920, 16
      %v2014 = vor.u32 %v2012, %v2010
      %v2016 = vshll.u32 %v1921, 16
      %v2018 = vrot.slane %v2016, 1
      %v2019 = vsel %vm441, %v2014, %v2018
      %v2020 = vshrl.u32 %v1921, 16
      %v2022 = vor.u32 %v2020, %v2018
      %v2024 = vshll.u32 %v1922, 16
      %v2026 = vrot.slane %v2024, 1
      %v2027 = vsel %vm441, %v2022, %v2026
      %v2028 = vshrl.u32 %v1922, 16
      %v2030 = vor.u32 %v2028, %v2026
      %v2032 = vshll.u32 %v1923, 16
      %v2034 = vrot.slane %v2032, 1
      %v2035 = vsel %vm441, %v2030, %v2034
      %v2036 = vshrl.u32 %v1923, 16
      %v2038 = vor.u32 %v2036, %v2034
      %v2040 = vshll.u32 %v1924, 16
      %v2042 = vrot.slane %v2040, 1
      %v2043 = vsel %vm441, %v2038, %v2042
      %v2044 = vshrl.u32 %v1924, 16
      %v2046 = vor.u32 %v2044, %v2042
      %v2048 = vshll.u32 %v1925, 16
      %v2050 = vrot.slane %v2048, 1
      %v2051 = vsel %vm441, %v2046, %v2050
      %v2052 = vshrl.u32 %v1925, 16
      %v2054 = vor.u32 %v2052, %v2050
      %v2056 = vshll.u32 %v1926, 16
      %v2058 = vrot.slane %v2056, 1
      %v2059 = vsel %vm441, %v2054, %v2058
      %v2060 = vshrl.u32 %v1926, 16
      %v2062 = vor.u32 %v2060, %v2058
      %v2064 = vshll.u32 %v1927, 16
      %v2066 = vrot.slane %v2064, 1
      %v2067 = vsel %vm441, %v2062, %v2066
      %v2101 = vunpack.c.l.b16 %v1824
      %v2102 = vunpack.c.l.b16 %v1825
      %v2103 = vunpack.c.l.b16 %v1826
      %v2104 = vunpack.c.l.b16 %v1827
      %v2105 = vunpack.c.l.b16 %v1828
      %v2106 = vunpack.c.l.b16 %v1829
      %v2107 = vunpack.c.l.b16 %v1830
      %v2108 = vunpack.c.l.b16 %v1831
      %v2109 = vunpack.c.l.b16 %v1832
      %v2110 = vunpack.c.l.b16 %v1833
      %v2111 = vunpack.c.l.b16 %v1834
      %v2112 = vunpack.c.l.b16 %v1835
      %v2113 = vunpack.c.l.b16 %v1836
      %v2114 = vunpack.c.l.b16 %v1837
      %v2115 = vunpack.c.l.b16 %v1838
      %v2116 = vunpack.c.l.b16 %v1839
      %v2117 = vpack.c.b16 %v2102, %v2101
      %v2118 = vpack.c.b16 %v2104, %v2103
      %v2119 = vpack.c.b16 %v2106, %v2105
      %v2120 = vpack.c.b16 %v2108, %v2107
      %v2121 = vpack.c.b16 %v2110, %v2109
      %v2122 = vpack.c.b16 %v2112, %v2111
      %v2123 = vpack.c.b16 %v2114, %v2113
      %v2124 = vpack.c.b16 %v2116, %v2115
      %2133 = vmatprep.subr.bf16.mxu0 0
      %2134 = vmatpush1.bf16.msra.mxu0 %v2124
      %2135 = vmatprep.subr.bf16.mxu0 0
      %2136 = vmatpush1.bf16.msra.mxu0 %v2123
      %2137 = vmatprep.subr.bf16.mxu0 0
      %2138 = vmatpush1.bf16.msra.mxu0 %v2122
      %2139 = vmatprep.subr.bf16.mxu0 0
      %2140 = vmatpush1.bf16.msra.mxu0 %v2121
      %2141 = vmatprep.subr.bf16.mxu0 0
      %2142 = vmatpush1.bf16.msra.mxu0 %v2120
      %2143 = vmatprep.subr.bf16.mxu0 0
      %2144 = vmatpush1.bf16.msra.mxu0 %v2119
      %2145 = vmatprep.subr.bf16.mxu0 0
      %2146 = vmatpush1.bf16.msra.mxu0 %v2118
      %2147 = vmatprep.subr.bf16.mxu0 0
      %2148 = vmatpush1.bf16.msra.mxu0 %v2117
      %2149 = vmatprep.subr.bf16.mxu0 0
      %2150 = vmatpush2.bf16.msra.mxu0 0
      %2151 = vmatprep.subr.bf16.mxu0 0
      %2152 = vmatpush2.bf16.msra.mxu0 0
      %2153 = vmatprep.subr.bf16.mxu0 0
      %2154 = vmatpush2.bf16.msra.mxu0 0
      %2155 = vmatprep.subr.bf16.mxu0 0
      %2156 = vmatpush2.bf16.msra.mxu0 0
      %2157 = vmatprep.subr.bf16.mxu0 0
      %2158 = vmatpush2.bf16.msra.mxu0 0
      %2159 = vmatprep.subr.bf16.mxu0 0
      %2160 = vmatpush2.bf16.msra.mxu0 0
      %2161 = vmatprep.subr.bf16.mxu0 0
      %2162 = vmatpush2.bf16.msra.mxu0 0
      %2163 = vmatprep.subr.bf16.mxu0 0
      %2164 = vmatpush2.bf16.msra.mxu0 0
      %2165 = vmatprep.mubr.bf16.mxu0 0
      %2166 = vmatmul.mubr.bf16.gmra.mxu0 %v1939
      %v2167 = vpop.f32.mrf.mxu0
      %v2168 = vadd.f32 0.0, %v2167
      %v2169 = vpop.f32.mrf.mxu0
      %v2170 = vpop.f32.mrf.mxu0
      %v2171 = vadd.f32 0.0, %v2170
      %v2172 = vpop.f32.mrf.mxu0
      %2173 = vmatprep.mubr.bf16.mxu0 0
      %2174 = vmatmul.mubr.bf16.gmra.mxu0 %v1947
      %v2175 = vpop.f32.mrf.mxu0
      %v2176 = vadd.f32 0.0, %v2175
      %v2177 = vpop.f32.mrf.mxu0
      %v2178 = vpop.f32.mrf.mxu0
      %v2179 = vadd.f32 0.0, %v2178
      %v2180 = vpop.f32.mrf.mxu0
      %2181 = vmatprep.mubr.bf16.mxu0 0
      %2182 = vmatmul.mubr.bf16.gmra.mxu0 %v1955
      %v2183 = vpop.f32.mrf.mxu0
      %v2184 = vadd.f32 0.0, %v2183
      %v2185 = vpop.f32.mrf.mxu0
      %v2186 = vpop.f32.mrf.mxu0
      %v2187 = vadd.f32 0.0, %v2186
      %v2188 = vpop.f32.mrf.mxu0
      %2189 = vmatprep.mubr.bf16.mxu0 0
      %2190 = vmatmul.mubr.bf16.gmra.mxu0 %v1963
      %v2191 = vpop.f32.mrf.mxu0
      %v2192 = vadd.f32 0.0, %v2191
      %v2193 = vpop.f32.mrf.mxu0
      %v2194 = vpop.f32.mrf.mxu0
      %v2195 = vadd.f32 0.0, %v2194
      %v2196 = vpop.f32.mrf.mxu0
      %2197 = vmatprep.mubr.bf16.mxu0 0
      %2198 = vmatmul.mubr.bf16.gmra.mxu0 %v1971
      %v2199 = vpop.f32.mrf.mxu0
      %v2200 = vadd.f32 0.0, %v2199
      %v2201 = vpop.f32.mrf.mxu0
      %v2202 = vpop.f32.mrf.mxu0
      %v2203 = vadd.f32 0.0, %v2202
      %v2204 = vpop.f32.mrf.mxu0
      %2205 = vmatprep.mubr.bf16.mxu0 0
      %2206 = vmatmul.mubr.bf16.gmra.mxu0 %v1979
      %v2207 = vpop.f32.mrf.mxu0
      %v2208 = vadd.f32 0.0, %v2207
      %v2209 = vpop.f32.mrf.mxu0
      %v2210 = vpop.f32.mrf.mxu0
      %v2211 = vadd.f32 0.0, %v2210
      %v2212 = vpop.f32.mrf.mxu0
      %2213 = vmatprep.mubr.bf16.mxu0 0
      %2214 = vmatmul.mubr.bf16.gmra.mxu0 %v1987
      %v2215 = vpop.f32.mrf.mxu0
      %v2216 = vadd.f32 0.0, %v2215
      %v2217 = vpop.f32.mrf.mxu0
      %v2218 = vpop.f32.mrf.mxu0
      %v2219 = vadd.f32 0.0, %v2218
      %v2220 = vpop.f32.mrf.mxu0
      %2221 = vmatprep.mubr.bf16.mxu0 0
      %2222 = vmatmul.mubr.bf16.gmra.mxu0 %v1995
      %v2223 = vpop.f32.mrf.mxu0
      %v2224 = vadd.f32 0.0, %v2223
      %v2225 = vpop.f32.mrf.mxu0
      %v2226 = vpop.f32.mrf.mxu0
      %v2227 = vadd.f32 0.0, %v2226
      %v2228 = vpop.f32.mrf.mxu0
      %2229 = vmatprep.mubr.bf16.mxu0 0
      %2230 = vmatmul.mubr.bf16.gmra.mxu0 %v2003
      %v2231 = vpop.f32.mrf.mxu0
      %v2232 = vadd.f32 0.0, %v2231
      %v2233 = vpop.f32.mrf.mxu0
      %v2234 = vpop.f32.mrf.mxu0
      %v2235 = vadd.f32 0.0, %v2234
      %v2236 = vpop.f32.mrf.mxu0
      %2237 = vmatprep.mubr.bf16.mxu0 0
      %2238 = vmatmul.mubr.bf16.gmra.mxu0 %v2011
      %v2239 = vpop.f32.mrf.mxu0
      %v2240 = vadd.f32 0.0, %v2239
      %v2241 = vpop.f32.mrf.mxu0
      %v2242 = vpop.f32.mrf.mxu0
      %v2243 = vadd.f32 0.0, %v2242
      %v2244 = vpop.f32.mrf.mxu0
      %2245 = vmatprep.mubr.bf16.mxu0 0
      %2246 = vmatmul.mubr.bf16.gmra.mxu0 %v2019
      %v2247 = vpop.f32.mrf.mxu0
      %v2248 = vadd.f32 0.0, %v2247
      %v2249 = vpop.f32.mrf.mxu0
      %v2250 = vpop.f32.mrf.mxu0
      %v2251 = vadd.f32 0.0, %v2250
      %v2252 = vpop.f32.mrf.mxu0
      %2253 = vmatprep.mubr.bf16.mxu0 0
      %2254 = vmatmul.mubr.bf16.gmra.mxu0 %v2027
      %v2255 = vpop.f32.mrf.mxu0
      %v2256 = vadd.f32 0.0, %v2255
      %v2257 = vpop.f32.mrf.mxu0
      %v2258 = vpop.f32.mrf.mxu0
      %v2259 = vadd.f32 0.0, %v2258
      %v2260 = vpop.f32.mrf.mxu0
      %2261 = vmatprep.mubr.bf16.mxu0 0
      %2262 = vmatmul.mubr.bf16.gmra.mxu0 %v2035
      %v2263 = vpop.f32.mrf.mxu0
      %v2264 = vadd.f32 0.0, %v2263
      %v2265 = vpop.f32.mrf.mxu0
      %v2266 = vpop.f32.mrf.mxu0
      %v2267 = vadd.f32 0.0, %v2266
      %v2268 = vpop.f32.mrf.mxu0
      %2269 = vmatprep.mubr.bf16.mxu0 0
      %2270 = vmatmul.mubr.bf16.gmra.mxu0 %v2043
      %v2271 = vpop.f32.mrf.mxu0
      %v2272 = vadd.f32 0.0, %v2271
      %v2273 = vpop.f32.mrf.mxu0
      %v2274 = vpop.f32.mrf.mxu0
      %v2275 = vadd.f32 0.0, %v2274
      %v2276 = vpop.f32.mrf.mxu0
      %2277 = vmatprep.mubr.bf16.mxu0 0
      %2278 = vmatmul.mubr.bf16.gmra.mxu0 %v2051
      %v2279 = vpop.f32.mrf.mxu0
      %v2280 = vadd.f32 0.0, %v2279
      %v2281 = vpop.f32.mrf.mxu0
      %v2282 = vpop.f32.mrf.mxu0
      %v2283 = vadd.f32 0.0, %v2282
      %v2284 = vpop.f32.mrf.mxu0
      %2285 = vmatprep.mubr.bf16.mxu0 0
      %2286 = vmatmul.mubr.bf16.gmra.mxu0 %v2059
      %v2287 = vpop.f32.mrf.mxu0
      %v2288 = vadd.f32 0.0, %v2287
      %v2289 = vpop.f32.mrf.mxu0
      %v2290 = vpop.f32.mrf.mxu0
      %v2291 = vadd.f32 0.0, %v2290
      %v2292 = vpop.f32.mrf.mxu0
      %2293 = vmatprep.mubr.bf16.mxu0 0
      %2294 = vmatmul.mubr.bf16.gmra.mxu0 %v2067
      %v2295 = vpop.f32.mrf.mxu0
      %v2296 = vadd.f32 0.0, %v2295
      %v2297 = vpop.f32.mrf.mxu0
      %v2298 = vpop.f32.mrf.mxu0
      %v2299 = vadd.f32 0.0, %v2298
      %v2300 = vpop.f32.mrf.mxu0
      %2301 = vdwg.mxu0
      %v2302 = vadd.f32 %v1754, %v2168
      %v2303 = vadd.f32 %v1755, %v2171
      %v2304 = vadd.f32 %v1756, %v2176
      %v2305 = vadd.f32 %v1757, %v2179
      %v2306 = vadd.f32 %v1758, %v2184
      %v2307 = vadd.f32 %v1759, %v2187
      %v2308 = vadd.f32 %v1760, %v2192
      %v2309 = vadd.f32 %v1761, %v2195
      %v2310 = vadd.f32 %v1762, %v2200
      %v2311 = vadd.f32 %v1763, %v2203
      %v2312 = vadd.f32 %v1764, %v2208
      %v2313 = vadd.f32 %v1765, %v2211
      %v2314 = vadd.f32 %v1766, %v2216
      %v2315 = vadd.f32 %v1767, %v2219
      %v2316 = vadd.f32 %v1768, %v2224
      %v2317 = vadd.f32 %v1769, %v2227
      %v2318 = vadd.f32 %v1770, %v2232
      %v2319 = vadd.f32 %v1771, %v2235
      %v2320 = vadd.f32 %v1772, %v2240
      %v2321 = vadd.f32 %v1773, %v2243
      %v2322 = vadd.f32 %v1774, %v2248
      %v2323 = vadd.f32 %v1775, %v2251
      %v2324 = vadd.f32 %v1776, %v2256
      %v2325 = vadd.f32 %v1777, %v2259
      %v2326 = vadd.f32 %v1778, %v2264
      %v2327 = vadd.f32 %v1779, %v2267
      %v2328 = vadd.f32 %v1780, %v2272
      %v2329 = vadd.f32 %v1781, %v2275
      %v2330 = vadd.f32 %v1782, %v2280
      %v2331 = vadd.f32 %v1783, %v2283
      %v2332 = vadd.f32 %v1784, %v2288
      %v2333 = vadd.f32 %v1785, %v2291
      %v2334 = vadd.f32 %v1786, %v2296
      %v2335 = vadd.f32 %v1787, %v2299
      %v2336 = vld [vmem:[%s224 + $0x10] sm:$0xff]
      %v2337 = vld [vmem:[%s224 + $0x18] sm:$0xff]
      %v2338 = vld [vmem:[%s224 + $0x20] sm:$0xff]
      %v2339 = vld [vmem:[%s224 + $0x28] sm:$0xff]
      %v2340 = vld [vmem:[%s224 + $0x30] sm:$0xff]
      %v2341 = vld [vmem:[%s224 + $0x38] sm:$0xff]
      %v2342 = vld [vmem:[%s224 + $0x40] sm:$0xff]
      %v2343 = vld [vmem:[%s224 + $0x48] sm:$0xff]
      %v2344 = vld [vmem:[%s224 + $0x50] sm:$0xff]
      %v2345 = vld [vmem:[%s224 + $0x58] sm:$0xff]
      %v2346 = vld [vmem:[%s224 + $0x60] sm:$0xff]
      %v2347 = vld [vmem:[%s224 + $0x68] sm:$0xff]
      %v2348 = vld [vmem:[%s224 + $0x70] sm:$0xff]
      %v2349 = vld [vmem:[%s224 + $0x78] sm:$0xff]
      %v2350 = vld [vmem:[%s224 + $0x80] sm:$0xff]
      %v2351 = vld [vmem:[%s224 + $0x88] sm:$0xff]
      %v2352 = vld [vmem:[%s224 + $0x90] sm:$0xff]
      %v2353 = vld [vmem:[%s224 + $0x98] sm:$0xff]
      %v2354 = vld [vmem:[%s224 + $0xa0] sm:$0xff]
      %v2355 = vld [vmem:[%s224 + $0xa8] sm:$0xff]
      %v2356 = vld [vmem:[%s224 + $0xb0] sm:$0xff]
      %v2357 = vld [vmem:[%s224 + $0xb8] sm:$0xff]
      %v2358 = vld [vmem:[%s224 + $0xc0] sm:$0xff]
      %v2359 = vld [vmem:[%s224 + $0xc8] sm:$0xff]
      %v2360 = vld [vmem:[%s224 + $0xd0] sm:$0xff]
      %v2361 = vld [vmem:[%s224 + $0xd8] sm:$0xff]
      %v2362 = vld [vmem:[%s224 + $0xe0] sm:$0xff]
      %v2363 = vld [vmem:[%s224 + $0xe8] sm:$0xff]
      %v2364 = vld [vmem:[%s224 + $0xf0] sm:$0xff]
      %v2365 = vld [vmem:[%s224 + $0xf8] sm:$0xff]
      %v2366 = vld [vmem:[%s224 + $0x100] sm:$0xff]
      %v2367 = vld [vmem:[%s224 + $0x108] sm:$0xff]
      %v2368 = vld [vmem:[%s224 + $0x110] sm:$0xff]
      %v2369 = vld [vmem:[%s224 + $0x118] sm:$0xff]
      %v2370 = vld [vmem:[%s224 + $0x120] sm:$0x11]
      %s2371 = scalar_lea.vmem %s1, 256
      %v2372 = vld [vmem:[%s2371] sm:$0xf]
      %v2373 = vld [vmem:[%s2371 + $0x4] sm:$0xf]
      %v2374 = vld [vmem:[%s2371 + $0x8] sm:$0xf]
      %v2375 = vld [vmem:[%s2371 + $0xc] sm:$0xf]
      %v2376 = vld [vmem:[%s2371 + $0x10] sm:$0xf]
      %v2377 = vld [vmem:[%s2371 + $0x14] sm:$0xf]
      %v2378 = vld [vmem:[%s2371 + $0x18] sm:$0xf]
      %v2379 = vld [vmem:[%s2371 + $0x1c] sm:$0xf]
      %v2380 = vld [vmem:[%s2371 + $0x20] sm:$0xf]
      %v2381 = vld [vmem:[%s2371 + $0x24] sm:$0xf]
      %v2382 = vld [vmem:[%s2371 + $0x28] sm:$0xf]
      %v2383 = vld [vmem:[%s2371 + $0x2c] sm:$0xf]
      %v2384 = vld [vmem:[%s2371 + $0x30] sm:$0xf]
      %v2385 = vld [vmem:[%s2371 + $0x34] sm:$0xf]
      %v2386 = vld [vmem:[%s2371 + $0x38] sm:$0xf]
      %v2387 = vld [vmem:[%s2371 + $0x3c] sm:$0xf]
      %v2388 = vld [vmem:[%s2371 + $0x40] sm:$0xf]
      %v2389 = vld [vmem:[%s2371 + $0x44] sm:$0xf]
      %v2390 = vld [vmem:[%s2371 + $0x48] sm:$0xf]
      %v2391 = vld [vmem:[%s2371 + $0x4c] sm:$0xf]
      %v2392 = vld [vmem:[%s2371 + $0x50] sm:$0xf]
      %v2393 = vld [vmem:[%s2371 + $0x54] sm:$0xf]
      %v2394 = vld [vmem:[%s2371 + $0x58] sm:$0xf]
      %v2395 = vld [vmem:[%s2371 + $0x5c] sm:$0xf]
      %v2396 = vld [vmem:[%s2371 + $0x60] sm:$0xf]
      %v2397 = vld [vmem:[%s2371 + $0x64] sm:$0xf]
      %v2398 = vld [vmem:[%s2371 + $0x68] sm:$0xf]
      %v2399 = vld [vmem:[%s2371 + $0x6c] sm:$0xf]
      %v2400 = vld [vmem:[%s2371 + $0x70] sm:$0xf]
      %v2401 = vld [vmem:[%s2371 + $0x74] sm:$0xf]
      %v2402 = vld [vmem:[%s2371 + $0x78] sm:$0xf]
      %v2403 = vld [vmem:[%s2371 + $0x7c] sm:$0xf]
      %v2439 = vunpack.c.l.b16 %v2336
      %v2440 = vunpack.c.h.b16 %v2336
      %v2441 = vunpack.c.l.b16 %v2337
      %v2442 = vunpack.c.h.b16 %v2337
      %v2443 = vunpack.c.l.b16 %v2338
      %v2444 = vunpack.c.h.b16 %v2338
      %v2445 = vunpack.c.l.b16 %v2339
      %v2446 = vunpack.c.h.b16 %v2339
      %v2447 = vunpack.c.l.b16 %v2340
      %v2448 = vunpack.c.h.b16 %v2340
      %v2449 = vunpack.c.l.b16 %v2341
      %v2450 = vunpack.c.h.b16 %v2341
      %v2451 = vunpack.c.l.b16 %v2342
      %v2452 = vunpack.c.h.b16 %v2342
      %v2453 = vunpack.c.l.b16 %v2343
      %v2454 = vunpack.c.h.b16 %v2343
      %v2455 = vunpack.c.l.b16 %v2344
      %v2456 = vunpack.c.h.b16 %v2344
      %v2457 = vunpack.c.l.b16 %v2345
      %v2458 = vunpack.c.h.b16 %v2345
      %v2459 = vunpack.c.l.b16 %v2346
      %v2460 = vunpack.c.h.b16 %v2346
      %v2461 = vunpack.c.l.b16 %v2347
      %v2462 = vunpack.c.h.b16 %v2347
      %v2463 = vunpack.c.l.b16 %v2348
      %v2464 = vunpack.c.h.b16 %v2348
      %v2465 = vunpack.c.l.b16 %v2349
      %v2466 = vunpack.c.h.b16 %v2349
      %v2467 = vunpack.c.l.b16 %v2350
      %v2468 = vunpack.c.h.b16 %v2350
      %v2469 = vunpack.c.l.b16 %v2351
      %v2470 = vunpack.c.h.b16 %v2351
      %v2471 = vunpack.c.l.b16 %v2352
      %v2472 = vunpack.c.h.b16 %v2352
      %v2473 = vunpack.c.l.b16 %v2353
      %v2474 = vunpack.c.h.b16 %v2353
      %v2475 = vunpack.c.l.b16 %v2354
      %v2476 = vunpack.c.h.b16 %v2354
      %v2477 = vunpack.c.l.b16 %v2355
      %v2478 = vunpack.c.h.b16 %v2355
      %v2479 = vunpack.c.l.b16 %v2356
      %v2480 = vunpack.c.h.b16 %v2356
      %v2481 = vunpack.c.l.b16 %v2357
      %v2482 = vunpack.c.h.b16 %v2357
      %v2483 = vunpack.c.l.b16 %v2358
      %v2484 = vunpack.c.h.b16 %v2358
      %v2485 = vunpack.c.l.b16 %v2359
      %v2486 = vunpack.c.h.b16 %v2359
      %v2487 = vunpack.c.l.b16 %v2360
      %v2488 = vunpack.c.h.b16 %v2360
      %v2489 = vunpack.c.l.b16 %v2361
      %v2490 = vunpack.c.h.b16 %v2361
      %v2491 = vunpack.c.l.b16 %v2362
      %v2492 = vunpack.c.h.b16 %v2362
      %v2493 = vunpack.c.l.b16 %v2363
      %v2494 = vunpack.c.h.b16 %v2363
      %v2495 = vunpack.c.l.b16 %v2364
      %v2496 = vunpack.c.h.b16 %v2364
      %v2497 = vunpack.c.l.b16 %v2365
      %v2498 = vunpack.c.h.b16 %v2365
      %v2499 = vunpack.c.l.b16 %v2366
      %v2500 = vunpack.c.h.b16 %v2366
      %v2501 = vunpack.c.l.b16 %v2367
      %v2502 = vunpack.c.h.b16 %v2367
      %v2503 = vunpack.c.l.b16 %v2368
      %v2504 = vunpack.c.h.b16 %v2368
      %v2505 = vunpack.c.l.b16 %v2369
      %v2506 = vunpack.c.h.b16 %v2369
      %v2507 = vunpack.c.l.b16 %v2370
      %v2508 = vunpack.c.h.b16 %v2370
      %v2509 = vpack.c.b16 %v2441, %v2439
      %v2510 = vpack.c.b16 %v2442, %v2440
      %v2511 = vpack.c.b16 %v2445, %v2443
      %v2512 = vpack.c.b16 %v2446, %v2444
      %v2513 = vpack.c.b16 %v2449, %v2447
      %v2514 = vpack.c.b16 %v2450, %v2448
      %v2515 = vpack.c.b16 %v2453, %v2451
      %v2516 = vpack.c.b16 %v2454, %v2452
      %v2517 = vpack.c.b16 %v2457, %v2455
      %v2518 = vpack.c.b16 %v2458, %v2456
      %v2519 = vpack.c.b16 %v2461, %v2459
      %v2520 = vpack.c.b16 %v2462, %v2460
      %v2521 = vpack.c.b16 %v2465, %v2463
      %v2522 = vpack.c.b16 %v2466, %v2464
      %v2523 = vpack.c.b16 %v2469, %v2467
      %v2524 = vpack.c.b16 %v2470, %v2468
      %v2525 = vpack.c.b16 %v2473, %v2471
      %v2526 = vpack.c.b16 %v2474, %v2472
      %v2527 = vpack.c.b16 %v2477, %v2475
      %v2528 = vpack.c.b16 %v2478, %v2476
      %v2529 = vpack.c.b16 %v2481, %v2479
      %v2530 = vpack.c.b16 %v2482, %v2480
      %v2531 = vpack.c.b16 %v2485, %v2483
      %v2532 = vpack.c.b16 %v2486, %v2484
      %v2533 = vpack.c.b16 %v2489, %v2487
      %v2534 = vpack.c.b16 %v2490, %v2488
      %v2535 = vpack.c.b16 %v2493, %v2491
      %v2536 = vpack.c.b16 %v2494, %v2492
      %v2537 = vpack.c.b16 %v2497, %v2495
      %v2538 = vpack.c.b16 %v2498, %v2496
      %v2539 = vpack.c.b16 %v2501, %v2499
      %v2540 = vpack.c.b16 %v2502, %v2500
      %v2541 = vpack.c.b16 %v2505, %v2503
      %v2542 = vpack.c.b16 %v2506, %v2504
      %v2543 = vpack.c.b16 %v2507, %v2507
      %v2544 = vpack.c.b16 %v2508, %v2508
      %v2546 = vshrl.u32 %v2509, 16
      %v2548 = vshll.u32 %v2509, 16
      %v2550 = vrot.slane %v2548, 1
      %v2551 = vor.u32 %v2546, %v2550
      %v2553 = vshll.u32 %v2511, 16
      %v2555 = vrot.slane %v2553, 1
      %v2556 = vsel %vm441, %v2551, %v2555
      %v2558 = vshrl.u32 %v2510, 16
      %v2560 = vshll.u32 %v2510, 16
      %v2562 = vrot.slane %v2560, 1
      %v2563 = vor.u32 %v2558, %v2562
      %v2565 = vshll.u32 %v2512, 16
      %v2567 = vrot.slane %v2565, 1
      %v2568 = vsel %vm441, %v2563, %v2567
      %v2569 = vshrl.u32 %v2511, 16
      %v2571 = vor.u32 %v2569, %v2555
      %v2573 = vshll.u32 %v2513, 16
      %v2575 = vrot.slane %v2573, 1
      %v2576 = vsel %vm441, %v2571, %v2575
      %v2577 = vshrl.u32 %v2512, 16
      %v2579 = vor.u32 %v2577, %v2567
      %v2581 = vshll.u32 %v2514, 16
      %v2583 = vrot.slane %v2581, 1
      %v2584 = vsel %vm441, %v2579, %v2583
      %v2585 = vshrl.u32 %v2513, 16
      %v2587 = vor.u32 %v2585, %v2575
      %v2589 = vshll.u32 %v2515, 16
      %v2591 = vrot.slane %v2589, 1
      %v2592 = vsel %vm441, %v2587, %v2591
      %v2593 = vshrl.u32 %v2514, 16
      %v2595 = vor.u32 %v2593, %v2583
      %v2597 = vshll.u32 %v2516, 16
      %v2599 = vrot.slane %v2597, 1
      %v2600 = vsel %vm441, %v2595, %v2599
      %v2601 = vshrl.u32 %v2515, 16
      %v2603 = vor.u32 %v2601, %v2591
      %v2605 = vshll.u32 %v2517, 16
      %v2607 = vrot.slane %v2605, 1
      %v2608 = vsel %vm441, %v2603, %v2607
      %v2609 = vshrl.u32 %v2516, 16
      %v2611 = vor.u32 %v2609, %v2599
      %v2613 = vshll.u32 %v2518, 16
      %v2615 = vrot.slane %v2613, 1
      %v2616 = vsel %vm441, %v2611, %v2615
      %v2617 = vshrl.u32 %v2517, 16
      %v2619 = vor.u32 %v2617, %v2607
      %v2621 = vshll.u32 %v2519, 16
      %v2623 = vrot.slane %v2621, 1
      %v2624 = vsel %vm441, %v2619, %v2623
      %v2625 = vshrl.u32 %v2518, 16
      %v2627 = vor.u32 %v2625, %v2615
      %v2629 = vshll.u32 %v2520, 16
      %v2631 = vrot.slane %v2629, 1
      %v2632 = vsel %vm441, %v2627, %v2631
      %v2633 = vshrl.u32 %v2519, 16
      %v2635 = vor.u32 %v2633, %v2623
      %v2637 = vshll.u32 %v2521, 16
      %v2639 = vrot.slane %v2637, 1
      %v2640 = vsel %vm441, %v2635, %v2639
      %v2641 = vshrl.u32 %v2520, 16
      %v2643 = vor.u32 %v2641, %v2631
      %v2645 = vshll.u32 %v2522, 16
      %v2647 = vrot.slane %v2645, 1
      %v2648 = vsel %vm441, %v2643, %v2647
      %v2649 = vshrl.u32 %v2521, 16
      %v2651 = vor.u32 %v2649, %v2639
      %v2653 = vshll.u32 %v2523, 16
      %v2655 = vrot.slane %v2653, 1
      %v2656 = vsel %vm441, %v2651, %v2655
      %v2657 = vshrl.u32 %v2522, 16
      %v2659 = vor.u32 %v2657, %v2647
      %v2661 = vshll.u32 %v2524, 16
      %v2663 = vrot.slane %v2661, 1
      %v2664 = vsel %vm441, %v2659, %v2663
      %v2665 = vshrl.u32 %v2523, 16
      %v2667 = vor.u32 %v2665, %v2655
      %v2669 = vshll.u32 %v2525, 16
      %v2671 = vrot.slane %v2669, 1
      %v2672 = vsel %vm441, %v2667, %v2671
      %v2673 = vshrl.u32 %v2524, 16
      %v2675 = vor.u32 %v2673, %v2663
      %v2677 = vshll.u32 %v2526, 16
      %v2679 = vrot.slane %v2677, 1
      %v2680 = vsel %vm441, %v2675, %v2679
      %v2681 = vshrl.u32 %v2525, 16
      %v2683 = vor.u32 %v2681, %v2671
      %v2685 = vshll.u32 %v2527, 16
      %v2687 = vrot.slane %v2685, 1
      %v2688 = vsel %vm441, %v2683, %v2687
      %v2689 = vshrl.u32 %v2526, 16
      %v2691 = vor.u32 %v2689, %v2679
      %v2693 = vshll.u32 %v2528, 16
      %v2695 = vrot.slane %v2693, 1
      %v2696 = vsel %vm441, %v2691, %v2695
      %v2697 = vshrl.u32 %v2527, 16
      %v2699 = vor.u32 %v2697, %v2687
      %v2701 = vshll.u32 %v2529, 16
      %v2703 = vrot.slane %v2701, 1
      %v2704 = vsel %vm441, %v2699, %v2703
      %v2705 = vshrl.u32 %v2528, 16
      %v2707 = vor.u32 %v2705, %v2695
      %v2709 = vshll.u32 %v2530, 16
      %v2711 = vrot.slane %v2709, 1
      %v2712 = vsel %vm441, %v2707, %v2711
      %v2713 = vshrl.u32 %v2529, 16
      %v2715 = vor.u32 %v2713, %v2703
      %v2717 = vshll.u32 %v2531, 16
      %v2719 = vrot.slane %v2717, 1
      %v2720 = vsel %vm441, %v2715, %v2719
      %v2721 = vshrl.u32 %v2530, 16
      %v2723 = vor.u32 %v2721, %v2711
      %v2725 = vshll.u32 %v2532, 16
      %v2727 = vrot.slane %v2725, 1
      %v2728 = vsel %vm441, %v2723, %v2727
      %v2729 = vshrl.u32 %v2531, 16
      %v2731 = vor.u32 %v2729, %v2719
      %v2733 = vshll.u32 %v2533, 16
      %v2735 = vrot.slane %v2733, 1
      %v2736 = vsel %vm441, %v2731, %v2735
      %v2737 = vshrl.u32 %v2532, 16
      %v2739 = vor.u32 %v2737, %v2727
      %v2741 = vshll.u32 %v2534, 16
      %v2743 = vrot.slane %v2741, 1
      %v2744 = vsel %vm441, %v2739, %v2743
      %v2745 = vshrl.u32 %v2533, 16
      %v2747 = vor.u32 %v2745, %v2735
      %v2749 = vshll.u32 %v2535, 16
      %v2751 = vrot.slane %v2749, 1
      %v2752 = vsel %vm441, %v2747, %v2751
      %v2753 = vshrl.u32 %v2534, 16
      %v2755 = vor.u32 %v2753, %v2743
      %v2757 = vshll.u32 %v2536, 16
      %v2759 = vrot.slane %v2757, 1
      %v2760 = vsel %vm441, %v2755, %v2759
      %v2761 = vshrl.u32 %v2535, 16
      %v2763 = vor.u32 %v2761, %v2751
      %v2765 = vshll.u32 %v2537, 16
      %v2767 = vrot.slane %v2765, 1
      %v2768 = vsel %vm441, %v2763, %v2767
      %v2769 = vshrl.u32 %v2536, 16
      %v2771 = vor.u32 %v2769, %v2759
      %v2773 = vshll.u32 %v2538, 16
      %v2775 = vrot.slane %v2773, 1
      %v2776 = vsel %vm441, %v2771, %v2775
      %v2777 = vshrl.u32 %v2537, 16
      %v2779 = vor.u32 %v2777, %v2767
      %v2781 = vshll.u32 %v2539, 16
      %v2783 = vrot.slane %v2781, 1
      %v2784 = vsel %vm441, %v2779, %v2783
      %v2785 = vshrl.u32 %v2538, 16
      %v2787 = vor.u32 %v2785, %v2775
      %v2789 = vshll.u32 %v2540, 16
      %v2791 = vrot.slane %v2789, 1
      %v2792 = vsel %vm441, %v2787, %v2791
      %v2793 = vshrl.u32 %v2539, 16
      %v2795 = vor.u32 %v2793, %v2783
      %v2797 = vshll.u32 %v2541, 16
      %v2799 = vrot.slane %v2797, 1
      %v2800 = vsel %vm441, %v2795, %v2799
      %v2801 = vshrl.u32 %v2540, 16
      %v2803 = vor.u32 %v2801, %v2791
      %v2805 = vshll.u32 %v2542, 16
      %v2807 = vrot.slane %v2805, 1
      %v2808 = vsel %vm441, %v2803, %v2807
      %v2809 = vshrl.u32 %v2541, 16
      %v2811 = vor.u32 %v2809, %v2799
      %v2813 = vshll.u32 %v2543, 16
      %v2815 = vrot.slane %v2813, 1
      %v2816 = vsel %vm441, %v2811, %v2815
      %v2817 = vshrl.u32 %v2542, 16
      %v2819 = vor.u32 %v2817, %v2807
      %v2821 = vshll.u32 %v2544, 16
      %v2823 = vrot.slane %v2821, 1
      %v2824 = vsel %vm441, %v2819, %v2823
      %v2891 = vunpack.c.l.b16 %v2372
      %v2892 = vunpack.c.l.b16 %v2373
      %v2893 = vunpack.c.l.b16 %v2374
      %v2894 = vunpack.c.l.b16 %v2375
      %v2895 = vunpack.c.l.b16 %v2376
      %v2896 = vunpack.c.l.b16 %v2377
      %v2897 = vunpack.c.l.b16 %v2378
      %v2898 = vunpack.c.l.b16 %v2379
      %v2899 = vunpack.c.l.b16 %v2380
      %v2900 = vunpack.c.l.b16 %v2381
      %v2901 = vunpack.c.l.b16 %v2382
      %v2902 = vunpack.c.l.b16 %v2383
      %v2903 = vunpack.c.l.b16 %v2384
      %v2904 = vunpack.c.l.b16 %v2385
      %v2905 = vunpack.c.l.b16 %v2386
      %v2906 = vunpack.c.l.b16 %v2387
      %v2907 = vunpack.c.l.b16 %v2388
      %v2908 = vunpack.c.l.b16 %v2389
      %v2909 = vunpack.c.l.b16 %v2390
      %v2910 = vunpack.c.l.b16 %v2391
      %v2911 = vunpack.c.l.b16 %v2392
      %v2912 = vunpack.c.l.b16 %v2393
      %v2913 = vunpack.c.l.b16 %v2394
      %v2914 = vunpack.c.l.b16 %v2395
      %v2915 = vunpack.c.l.b16 %v2396
      %v2916 = vunpack.c.l.b16 %v2397
      %v2917 = vunpack.c.l.b16 %v2398
      %v2918 = vunpack.c.l.b16 %v2399
      %v2919 = vunpack.c.l.b16 %v2400
      %v2920 = vunpack.c.l.b16 %v2401
      %v2921 = vunpack.c.l.b16 %v2402
      %v2922 = vunpack.c.l.b16 %v2403
      %v2923 = vpack.c.b16 %v2892, %v2891
      %v2924 = vpack.c.b16 %v2894, %v2893
      %v2925 = vpack.c.b16 %v2896, %v2895
      %v2926 = vpack.c.b16 %v2898, %v2897
      %v2927 = vpack.c.b16 %v2900, %v2899
      %v2928 = vpack.c.b16 %v2902, %v2901
      %v2929 = vpack.c.b16 %v2904, %v2903
      %v2930 = vpack.c.b16 %v2906, %v2905
      %v2931 = vpack.c.b16 %v2908, %v2907
      %v2932 = vpack.c.b16 %v2910, %v2909
      %v2933 = vpack.c.b16 %v2912, %v2911
      %v2934 = vpack.c.b16 %v2914, %v2913
      %v2935 = vpack.c.b16 %v2916, %v2915
      %v2936 = vpack.c.b16 %v2918, %v2917
      %v2937 = vpack.c.b16 %v2920, %v2919
      %v2938 = vpack.c.b16 %v2922, %v2921
      %2955 = vmatprep.subr.bf16.mxu0 0
      %2956 = vmatpush1.bf16.msra.mxu0 %v2930
      %2957 = vmatprep.subr.bf16.mxu0 0
      %2958 = vmatpush1.bf16.msra.mxu0 %v2929
      %2959 = vmatprep.subr.bf16.mxu0 0
      %2960 = vmatpush1.bf16.msra.mxu0 %v2928
      %2961 = vmatprep.subr.bf16.mxu0 0
      %2962 = vmatpush1.bf16.msra.mxu0 %v2927
      %2963 = vmatprep.subr.bf16.mxu0 0
      %2964 = vmatpush1.bf16.msra.mxu0 %v2926
      %2965 = vmatprep.subr.bf16.mxu0 0
      %2966 = vmatpush1.bf16.msra.mxu0 %v2925
      %2967 = vmatprep.subr.bf16.mxu0 0
      %2968 = vmatpush1.bf16.msra.mxu0 %v2924
      %2969 = vmatprep.subr.bf16.mxu0 0
      %2970 = vmatpush1.bf16.msra.mxu0 %v2923
      %2971 = vmatprep.subr.bf16.mxu0 0
      %2972 = vmatpush2.bf16.msra.mxu0 %v2938
      %2973 = vmatprep.subr.bf16.mxu0 0
      %2974 = vmatpush2.bf16.msra.mxu0 %v2937
      %2975 = vmatprep.subr.bf16.mxu0 0
      %2976 = vmatpush2.bf16.msra.mxu0 %v2936
      %2977 = vmatprep.subr.bf16.mxu0 0
      %2978 = vmatpush2.bf16.msra.mxu0 %v2935
      %2979 = vmatprep.subr.bf16.mxu0 0
      %2980 = vmatpush2.bf16.msra.mxu0 %v2934
      %2981 = vmatprep.subr.bf16.mxu0 0
      %2982 = vmatpush2.bf16.msra.mxu0 %v2933
      %2983 = vmatprep.subr.bf16.mxu0 0
      %2984 = vmatpush2.bf16.msra.mxu0 %v2932
      %2985 = vmatprep.subr.bf16.mxu0 0
      %2986 = vmatpush2.bf16.msra.mxu0 %v2931
      %2987 = vmatprep.mubr.bf16.mxu0 %v2568
      %2988 = vmatmul.mubr.bf16.gmra.mxu0 %v2556
      %v2989 = vpop.f32.mrf.mxu0
      %v2990 = vadd.f32 0.0, %v2989
      %v2991 = vpop.f32.mrf.mxu0
      %v2992 = vpop.f32.mrf.mxu0
      %v2993 = vadd.f32 0.0, %v2992
      %v2994 = vpop.f32.mrf.mxu0
      %2995 = vmatprep.mubr.bf16.mxu0 %v2584
      %2996 = vmatmul.mubr.bf16.gmra.mxu0 %v2576
      %v2997 = vpop.f32.mrf.mxu0
      %v2998 = vadd.f32 0.0, %v2997
      %v2999 = vpop.f32.mrf.mxu0
      %v3000 = vpop.f32.mrf.mxu0
      %v3001 = vadd.f32 0.0, %v3000
      %v3002 = vpop.f32.mrf.mxu0
      %3003 = vmatprep.mubr.bf16.mxu0 %v2600
      %3004 = vmatmul.mubr.bf16.gmra.mxu0 %v2592
      %v3005 = vpop.f32.mrf.mxu0
      %v3006 = vadd.f32 0.0, %v3005
      %v3007 = vpop.f32.mrf.mxu0
      %v3008 = vpop.f32.mrf.mxu0
      %v3009 = vadd.f32 0.0, %v3008
      %v3010 = vpop.f32.mrf.mxu0
      %3011 = vmatprep.mubr.bf16.mxu0 %v2616
      %3012 = vmatmul.mubr.bf16.gmra.mxu0 %v2608
      %v3013 = vpop.f32.mrf.mxu0
      %v3014 = vadd.f32 0.0, %v3013
      %v3015 = vpop.f32.mrf.mxu0
      %v3016 = vpop.f32.mrf.mxu0
      %v3017 = vadd.f32 0.0, %v3016
      %v3018 = vpop.f32.mrf.mxu0
      %3019 = vmatprep.mubr.bf16.mxu0 %v2632
      %3020 = vmatmul.mubr.bf16.gmra.mxu0 %v2624
      %v3021 = vpop.f32.mrf.mxu0
      %v3022 = vadd.f32 0.0, %v3021
      %v3023 = vpop.f32.mrf.mxu0
      %v3024 = vpop.f32.mrf.mxu0
      %v3025 = vadd.f32 0.0, %v3024
      %v3026 = vpop.f32.mrf.mxu0
      %3027 = vmatprep.mubr.bf16.mxu0 %v2648
      %3028 = vmatmul.mubr.bf16.gmra.mxu0 %v2640
      %v3029 = vpop.f32.mrf.mxu0
      %v3030 = vadd.f32 0.0, %v3029
      %v3031 = vpop.f32.mrf.mxu0
      %v3032 = vpop.f32.mrf.mxu0
      %v3033 = vadd.f32 0.0, %v3032
      %v3034 = vpop.f32.mrf.mxu0
      %3035 = vmatprep.mubr.bf16.mxu0 %v2664
      %3036 = vmatmul.mubr.bf16.gmra.mxu0 %v2656
      %v3037 = vpop.f32.mrf.mxu0
      %v3038 = vadd.f32 0.0, %v3037
      %v3039 = vpop.f32.mrf.mxu0
      %v3040 = vpop.f32.mrf.mxu0
      %v3041 = vadd.f32 0.0, %v3040
      %v3042 = vpop.f32.mrf.mxu0
      %3043 = vmatprep.mubr.bf16.mxu0 %v2680
      %3044 = vmatmul.mubr.bf16.gmra.mxu0 %v2672
      %v3045 = vpop.f32.mrf.mxu0
      %v3046 = vadd.f32 0.0, %v3045
      %v3047 = vpop.f32.mrf.mxu0
      %v3048 = vpop.f32.mrf.mxu0
      %v3049 = vadd.f32 0.0, %v3048
      %v3050 = vpop.f32.mrf.mxu0
      %3051 = vmatprep.mubr.bf16.mxu0 %v2696
      %3052 = vmatmul.mubr.bf16.gmra.mxu0 %v2688
      %v3053 = vpop.f32.mrf.mxu0
      %v3054 = vadd.f32 0.0, %v3053
      %v3055 = vpop.f32.mrf.mxu0
      %v3056 = vpop.f32.mrf.mxu0
      %v3057 = vadd.f32 0.0, %v3056
      %v3058 = vpop.f32.mrf.mxu0
      %3059 = vmatprep.mubr.bf16.mxu0 %v2712
      %3060 = vmatmul.mubr.bf16.gmra.mxu0 %v2704
      %v3061 = vpop.f32.mrf.mxu0
      %v3062 = vadd.f32 0.0, %v3061
      %v3063 = vpop.f32.mrf.mxu0
      %v3064 = vpop.f32.mrf.mxu0
      %v3065 = vadd.f32 0.0, %v3064
      %v3066 = vpop.f32.mrf.mxu0
      %3067 = vmatprep.mubr.bf16.mxu0 %v2728
      %3068 = vmatmul.mubr.bf16.gmra.mxu0 %v2720
      %v3069 = vpop.f32.mrf.mxu0
      %v3070 = vadd.f32 0.0, %v3069
      %v3071 = vpop.f32.mrf.mxu0
      %v3072 = vpop.f32.mrf.mxu0
      %v3073 = vadd.f32 0.0, %v3072
      %v3074 = vpop.f32.mrf.mxu0
      %3075 = vmatprep.mubr.bf16.mxu0 %v2744
      %3076 = vmatmul.mubr.bf16.gmra.mxu0 %v2736
      %v3077 = vpop.f32.mrf.mxu0
      %v3078 = vadd.f32 0.0, %v3077
      %v3079 = vpop.f32.mrf.mxu0
      %v3080 = vpop.f32.mrf.mxu0
      %v3081 = vadd.f32 0.0, %v3080
      %v3082 = vpop.f32.mrf.mxu0
      %3083 = vmatprep.mubr.bf16.mxu0 %v2760
      %3084 = vmatmul.mubr.bf16.gmra.mxu0 %v2752
      %v3085 = vpop.f32.mrf.mxu0
      %v3086 = vadd.f32 0.0, %v3085
      %v3087 = vpop.f32.mrf.mxu0
      %v3088 = vpop.f32.mrf.mxu0
      %v3089 = vadd.f32 0.0, %v3088
      %v3090 = vpop.f32.mrf.mxu0
      %3091 = vmatprep.mubr.bf16.mxu0 %v2776
      %3092 = vmatmul.mubr.bf16.gmra.mxu0 %v2768
      %v3093 = vpop.f32.mrf.mxu0
      %v3094 = vadd.f32 0.0, %v3093
      %v3095 = vpop.f32.mrf.mxu0
      %v3096 = vpop.f32.mrf.mxu0
      %v3097 = vadd.f32 0.0, %v3096
      %v3098 = vpop.f32.mrf.mxu0
      %3099 = vmatprep.mubr.bf16.mxu0 %v2792
      %3100 = vmatmul.mubr.bf16.gmra.mxu0 %v2784
      %v3101 = vpop.f32.mrf.mxu0
      %v3102 = vadd.f32 0.0, %v3101
      %v3103 = vpop.f32.mrf.mxu0
      %v3104 = vpop.f32.mrf.mxu0
      %v3105 = vadd.f32 0.0, %v3104
      %v3106 = vpop.f32.mrf.mxu0
      %3107 = vmatprep.mubr.bf16.mxu0 %v2808
      %3108 = vmatmul.mubr.bf16.gmra.mxu0 %v2800
      %v3109 = vpop.f32.mrf.mxu0
      %v3110 = vadd.f32 0.0, %v3109
      %v3111 = vpop.f32.mrf.mxu0
      %v3112 = vpop.f32.mrf.mxu0
      %v3113 = vadd.f32 0.0, %v3112
      %v3114 = vpop.f32.mrf.mxu0
      %3115 = vmatprep.mubr.bf16.mxu0 %v2824
      %3116 = vmatmul.mubr.bf16.gmra.mxu0 %v2816
      %v3117 = vpop.f32.mrf.mxu0
      %v3118 = vadd.f32 0.0, %v3117
      %v3119 = vpop.f32.mrf.mxu0
      %v3120 = vpop.f32.mrf.mxu0
      %v3121 = vadd.f32 0.0, %v3120
      %v3122 = vpop.f32.mrf.mxu0
      %3123 = vdwg.mxu0
      %v3124 = vadd.f32 %v2302, %v2990
      %v3125 = vadd.f32 %v2303, %v2993
      %v3126 = vadd.f32 %v2304, %v2998
      %v3127 = vadd.f32 %v2305, %v3001
      %v3128 = vadd.f32 %v2306, %v3006
      %v3129 = vadd.f32 %v2307, %v3009
      %v3130 = vadd.f32 %v2308, %v3014
      %v3131 = vadd.f32 %v2309, %v3017
      %v3132 = vadd.f32 %v2310, %v3022
      %v3133 = vadd.f32 %v2311, %v3025
      %v3134 = vadd.f32 %v2312, %v3030
      %v3135 = vadd.f32 %v2313, %v3033
      %v3136 = vadd.f32 %v2314, %v3038
      %v3137 = vadd.f32 %v2315, %v3041
      %v3138 = vadd.f32 %v2316, %v3046
      %v3139 = vadd.f32 %v2317, %v3049
      %v3140 = vadd.f32 %v2318, %v3054
      %v3141 = vadd.f32 %v2319, %v3057
      %v3142 = vadd.f32 %v2320, %v3062
      %v3143 = vadd.f32 %v2321, %v3065
      %v3144 = vadd.f32 %v2322, %v3070
      %v3145 = vadd.f32 %v2323, %v3073
      %v3146 = vadd.f32 %v2324, %v3078
      %v3147 = vadd.f32 %v2325, %v3081
      %v3148 = vadd.f32 %v2326, %v3086
      %v3149 = vadd.f32 %v2327, %v3089
      %v3150 = vadd.f32 %v2328, %v3094
      %v3151 = vadd.f32 %v2329, %v3097
      %v3152 = vadd.f32 %v2330, %v3102
      %v3153 = vadd.f32 %v2331, %v3105
      %v3154 = vadd.f32 %v2332, %v3110
      %v3155 = vadd.f32 %v2333, %v3113
      %v3156 = vadd.f32 %v2334, %v3118
      %v3157 = vadd.f32 %v2335, %v3121
      %v3158 = vld [vmem:[%s224 + $0x10] sm:$0xe]
      %v3159 = vld [vmem:[%s224 + $0x18] sm:$0xf]
      %v3160 = vld [vmem:[%s224 + $0x20] sm:$0xf]
      %v3161 = vld [vmem:[%s224 + $0x28] sm:$0xf]
      %v3162 = vld [vmem:[%s224 + $0x30] sm:$0xf]
      %v3163 = vld [vmem:[%s224 + $0x38] sm:$0xf]
      %v3164 = vld [vmem:[%s224 + $0x40] sm:$0xf]
      %v3165 = vld [vmem:[%s224 + $0x48] sm:$0xf]
      %v3166 = vld [vmem:[%s224 + $0x50] sm:$0xf]
      %v3167 = vld [vmem:[%s224 + $0x58] sm:$0xf]
      %v3168 = vld [vmem:[%s224 + $0x60] sm:$0xf]
      %v3169 = vld [vmem:[%s224 + $0x68] sm:$0xf]
      %v3170 = vld [vmem:[%s224 + $0x70] sm:$0xf]
      %v3171 = vld [vmem:[%s224 + $0x78] sm:$0xf]
      %v3172 = vld [vmem:[%s224 + $0x80] sm:$0xf]
      %v3173 = vld [vmem:[%s224 + $0x88] sm:$0xf]
      %v3174 = vld [vmem:[%s224 + $0x90] sm:$0xf]
      %v3175 = vld [vmem:[%s224 + $0x98] sm:$0xf]
      %v3176 = vld [vmem:[%s224 + $0xa0] sm:$0xf]
      %v3177 = vld [vmem:[%s224 + $0xa8] sm:$0xf]
      %v3178 = vld [vmem:[%s224 + $0xb0] sm:$0xf]
      %v3179 = vld [vmem:[%s224 + $0xb8] sm:$0xf]
      %v3180 = vld [vmem:[%s224 + $0xc0] sm:$0xf]
      %v3181 = vld [vmem:[%s224 + $0xc8] sm:$0xf]
      %v3182 = vld [vmem:[%s224 + $0xd0] sm:$0xf]
      %v3183 = vld [vmem:[%s224 + $0xd8] sm:$0xf]
      %v3184 = vld [vmem:[%s224 + $0xe0] sm:$0xf]
      %v3185 = vld [vmem:[%s224 + $0xe8] sm:$0xf]
      %v3186 = vld [vmem:[%s224 + $0xf0] sm:$0xf]
      %v3187 = vld [vmem:[%s224 + $0xf8] sm:$0xf]
      %v3188 = vld [vmem:[%s224 + $0x100] sm:$0xf]
      %v3189 = vld [vmem:[%s224 + $0x108] sm:$0xf]
      %v3190 = vld [vmem:[%s224 + $0x110] sm:$0xf]
      %v3191 = vld [vmem:[%s224 + $0x118] sm:$0xf]
      %v3192 = vld [vmem:[%s224 + $0x120] sm:$0x1]
      %s3193 = scalar_lea.vmem %s2, 128
      %v3194 = vld [vmem:[%s3193] sm:$0xf]
      %v3195 = vld [vmem:[%s3193 + $0x4] sm:$0xf]
      %v3196 = vld [vmem:[%s3193 + $0x8] sm:$0xf]
      %v3197 = vld [vmem:[%s3193 + $0xc] sm:$0xf]
      %v3198 = vld [vmem:[%s3193 + $0x10] sm:$0xf]
      %v3199 = vld [vmem:[%s3193 + $0x14] sm:$0xf]
      %v3200 = vld [vmem:[%s3193 + $0x18] sm:$0xf]
      %v3201 = vld [vmem:[%s3193 + $0x1c] sm:$0xf]
      %v3202 = vld [vmem:[%s3193 + $0x20] sm:$0xf]
      %v3203 = vld [vmem:[%s3193 + $0x24] sm:$0xf]
      %v3204 = vld [vmem:[%s3193 + $0x28] sm:$0xf]
      %v3205 = vld [vmem:[%s3193 + $0x2c] sm:$0xf]
      %v3206 = vld [vmem:[%s3193 + $0x30] sm:$0xf]
      %v3207 = vld [vmem:[%s3193 + $0x34] sm:$0xf]
      %v3208 = vld [vmem:[%s3193 + $0x38] sm:$0xf]
      %v3209 = vld [vmem:[%s3193 + $0x3c] sm:$0xf]
      %v3245 = vunpack.c.l.b16 %v3158
      %v3246 = vunpack.c.l.b16 %v3159
      %v3247 = vunpack.c.l.b16 %v3160
      %v3248 = vunpack.c.l.b16 %v3161
      %v3249 = vunpack.c.l.b16 %v3162
      %v3250 = vunpack.c.l.b16 %v3163
      %v3251 = vunpack.c.l.b16 %v3164
      %v3252 = vunpack.c.l.b16 %v3165
      %v3253 = vunpack.c.l.b16 %v3166
      %v3254 = vunpack.c.l.b16 %v3167
      %v3255 = vunpack.c.l.b16 %v3168
      %v3256 = vunpack.c.l.b16 %v3169
      %v3257 = vunpack.c.l.b16 %v3170
      %v3258 = vunpack.c.l.b16 %v3171
      %v3259 = vunpack.c.l.b16 %v3172
      %v3260 = vunpack.c.l.b16 %v3173
      %v3261 = vunpack.c.l.b16 %v3174
      %v3262 = vunpack.c.l.b16 %v3175
      %v3263 = vunpack.c.l.b16 %v3176
      %v3264 = vunpack.c.l.b16 %v3177
      %v3265 = vunpack.c.l.b16 %v3178
      %v3266 = vunpack.c.l.b16 %v3179
      %v3267 = vunpack.c.l.b16 %v3180
      %v3268 = vunpack.c.l.b16 %v3181
      %v3269 = vunpack.c.l.b16 %v3182
      %v3270 = vunpack.c.l.b16 %v3183
      %v3271 = vunpack.c.l.b16 %v3184
      %v3272 = vunpack.c.l.b16 %v3185
      %v3273 = vunpack.c.l.b16 %v3186
      %v3274 = vunpack.c.l.b16 %v3187
      %v3275 = vunpack.c.l.b16 %v3188
      %v3276 = vunpack.c.l.b16 %v3189
      %v3277 = vunpack.c.l.b16 %v3190
      %v3278 = vunpack.c.l.b16 %v3191
      %v3279 = vunpack.c.l.b16 %v3192
      %v3280 = vpack.c.b16 %v3246, %v3245
      %v3281 = vpack.c.b16 %v3248, %v3247
      %v3282 = vpack.c.b16 %v3250, %v3249
      %v3283 = vpack.c.b16 %v3252, %v3251
      %v3284 = vpack.c.b16 %v3254, %v3253
      %v3285 = vpack.c.b16 %v3256, %v3255
      %v3286 = vpack.c.b16 %v3258, %v3257
      %v3287 = vpack.c.b16 %v3260, %v3259
      %v3288 = vpack.c.b16 %v3262, %v3261
      %v3289 = vpack.c.b16 %v3264, %v3263
      %v3290 = vpack.c.b16 %v3266, %v3265
      %v3291 = vpack.c.b16 %v3268, %v3267
      %v3292 = vpack.c.b16 %v3270, %v3269
      %v3293 = vpack.c.b16 %v3272, %v3271
      %v3294 = vpack.c.b16 %v3274, %v3273
      %v3295 = vpack.c.b16 %v3276, %v3275
      %v3296 = vpack.c.b16 %v3278, %v3277
      %v3297 = vpack.c.b16 %v3279, %v3279
      %vm3298 = vcmask 1046528
      %v3299 = vrot.slane %v3280, 1
      %v3300 = vrot.slane %v3281, 1
      %v3301 = vsel %vm3298, %v3299, %v3300
      %v3302 = vrot.slane %v3282, 1
      %v3303 = vsel %vm3298, %v3300, %v3302
      %v3304 = vrot.slane %v3283, 1
      %v3305 = vsel %vm3298, %v3302, %v3304
      %v3306 = vrot.slane %v3284, 1
      %v3307 = vsel %vm3298, %v3304, %v3306
      %v3308 = vrot.slane %v3285, 1
      %v3309 = vsel %vm3298, %v3306, %v3308
      %v3310 = vrot.slane %v3286, 1
      %v3311 = vsel %vm3298, %v3308, %v3310
      %v3312 = vrot.slane %v3287, 1
      %v3313 = vsel %vm3298, %v3310, %v3312
      %v3314 = vrot.slane %v3288, 1
      %v3315 = vsel %vm3298, %v3312, %v3314
      %v3316 = vrot.slane %v3289, 1
      %v3317 = vsel %vm3298, %v3314, %v3316
      %v3318 = vrot.slane %v3290, 1
      %v3319 = vsel %vm3298, %v3316, %v3318
      %v3320 = vrot.slane %v3291, 1
      %v3321 = vsel %vm3298, %v3318, %v3320
      %v3322 = vrot.slane %v3292, 1
      %v3323 = vsel %vm3298, %v3320, %v3322
      %v3324 = vrot.slane %v3293, 1
      %v3325 = vsel %vm3298, %v3322, %v3324
      %v3326 = vrot.slane %v3294, 1
      %v3327 = vsel %vm3298, %v3324, %v3326
      %v3328 = vrot.slane %v3295, 1
      %v3329 = vsel %vm3298, %v3326, %v3328
      %v3330 = vrot.slane %v3296, 1
      %v3331 = vsel %vm3298, %v3328, %v3330
      %v3332 = vrot.slane %v3297, 1
      %v3333 = vsel %vm3298, %v3330, %v3332
      %v3367 = vunpack.c.l.b16 %v3194
      %v3368 = vunpack.c.l.b16 %v3195
      %v3369 = vunpack.c.l.b16 %v3196
      %v3370 = vunpack.c.l.b16 %v3197
      %v3371 = vunpack.c.l.b16 %v3198
      %v3372 = vunpack.c.l.b16 %v3199
      %v3373 = vunpack.c.l.b16 %v3200
      %v3374 = vunpack.c.l.b16 %v3201
      %v3375 = vunpack.c.l.b16 %v3202
      %v3376 = vunpack.c.l.b16 %v3203
      %v3377 = vunpack.c.l.b16 %v3204
      %v3378 = vunpack.c.l.b16 %v3205
      %v3379 = vunpack.c.l.b16 %v3206
      %v3380 = vunpack.c.l.b16 %v3207
      %v3381 = vunpack.c.l.b16 %v3208
      %v3382 = vunpack.c.l.b16 %v3209
      %v3383 = vpack.c.b16 %v3368, %v3367
      %v3384 = vpack.c.b16 %v3370, %v3369
      %v3385 = vpack.c.b16 %v3372, %v3371
      %v3386 = vpack.c.b16 %v3374, %v3373
      %v3387 = vpack.c.b16 %v3376, %v3375
      %v3388 = vpack.c.b16 %v3378, %v3377
      %v3389 = vpack.c.b16 %v3380, %v3379
      %v3390 = vpack.c.b16 %v3382, %v3381
      %3399 = vmatprep.subr.bf16.mxu0 0
      %3400 = vmatpush1.bf16.msra.mxu0 %v3390
      %3401 = vmatprep.subr.bf16.mxu0 0
      %3402 = vmatpush1.bf16.msra.mxu0 %v3389
      %3403 = vmatprep.subr.bf16.mxu0 0
      %3404 = vmatpush1.bf16.msra.mxu0 %v3388
      %3405 = vmatprep.subr.bf16.mxu0 0
      %3406 = vmatpush1.bf16.msra.mxu0 %v3387
      %3407 = vmatprep.subr.bf16.mxu0 0
      %3408 = vmatpush1.bf16.msra.mxu0 %v3386
      %3409 = vmatprep.subr.bf16.mxu0 0
      %3410 = vmatpush1.bf16.msra.mxu0 %v3385
      %3411 = vmatprep.subr.bf16.mxu0 0
      %3412 = vmatpush1.bf16.msra.mxu0 %v3384
      %3413 = vmatprep.subr.bf16.mxu0 0
      %3414 = vmatpush1.bf16.msra.mxu0 %v3383
      %3415 = vmatprep.subr.bf16.mxu0 0
      %3416 = vmatpush2.bf16.msra.mxu0 0
      %3417 = vmatprep.subr.bf16.mxu0 0
      %3418 = vmatpush2.bf16.msra.mxu0 0
      %3419 = vmatprep.subr.bf16.mxu0 0
      %3420 = vmatpush2.bf16.msra.mxu0 0
      %3421 = vmatprep.subr.bf16.mxu0 0
      %3422 = vmatpush2.bf16.msra.mxu0 0
      %3423 = vmatprep.subr.bf16.mxu0 0
      %3424 = vmatpush2.bf16.msra.mxu0 0
      %3425 = vmatprep.subr.bf16.mxu0 0
      %3426 = vmatpush2.bf16.msra.mxu0 0
      %3427 = vmatprep.subr.bf16.mxu0 0
      %3428 = vmatpush2.bf16.msra.mxu0 0
      %3429 = vmatprep.subr.bf16.mxu0 0
      %3430 = vmatpush2.bf16.msra.mxu0 0
      %3431 = vmatprep.mubr.bf16.mxu0 0
      %3432 = vmatmul.mubr.bf16.gmra.mxu0 %v3301
      %v3433 = vpop.f32.mrf.mxu0
      %v3434 = vadd.f32 0.0, %v3433
      %v3435 = vpop.f32.mrf.mxu0
      %v3436 = vpop.f32.mrf.mxu0
      %v3437 = vadd.f32 0.0, %v3436
      %v3438 = vpop.f32.mrf.mxu0
      %3439 = vmatprep.mubr.bf16.mxu0 0
      %3440 = vmatmul.mubr.bf16.gmra.mxu0 %v3303
      %v3441 = vpop.f32.mrf.mxu0
      %v3442 = vadd.f32 0.0, %v3441
      %v3443 = vpop.f32.mrf.mxu0
      %v3444 = vpop.f32.mrf.mxu0
      %v3445 = vadd.f32 0.0, %v3444
      %v3446 = vpop.f32.mrf.mxu0
      %3447 = vmatprep.mubr.bf16.mxu0 0
      %3448 = vmatmul.mubr.bf16.gmra.mxu0 %v3305
      %v3449 = vpop.f32.mrf.mxu0
      %v3450 = vadd.f32 0.0, %v3449
      %v3451 = vpop.f32.mrf.mxu0
      %v3452 = vpop.f32.mrf.mxu0
      %v3453 = vadd.f32 0.0, %v3452
      %v3454 = vpop.f32.mrf.mxu0
      %3455 = vmatprep.mubr.bf16.mxu0 0
      %3456 = vmatmul.mubr.bf16.gmra.mxu0 %v3307
      %v3457 = vpop.f32.mrf.mxu0
      %v3458 = vadd.f32 0.0, %v3457
      %v3459 = vpop.f32.mrf.mxu0
      %v3460 = vpop.f32.mrf.mxu0
      %v3461 = vadd.f32 0.0, %v3460
      %v3462 = vpop.f32.mrf.mxu0
      %3463 = vmatprep.mubr.bf16.mxu0 0
      %3464 = vmatmul.mubr.bf16.gmra.mxu0 %v3309
      %v3465 = vpop.f32.mrf.mxu0
      %v3466 = vadd.f32 0.0, %v3465
      %v3467 = vpop.f32.mrf.mxu0
      %v3468 = vpop.f32.mrf.mxu0
      %v3469 = vadd.f32 0.0, %v3468
      %v3470 = vpop.f32.mrf.mxu0
      %3471 = vmatprep.mubr.bf16.mxu0 0
      %3472 = vmatmul.mubr.bf16.gmra.mxu0 %v3311
      %v3473 = vpop.f32.mrf.mxu0
      %v3474 = vadd.f32 0.0, %v3473
      %v3475 = vpop.f32.mrf.mxu0
      %v3476 = vpop.f32.mrf.mxu0
      %v3477 = vadd.f32 0.0, %v3476
      %v3478 = vpop.f32.mrf.mxu0
      %3479 = vmatprep.mubr.bf16.mxu0 0
      %3480 = vmatmul.mubr.bf16.gmra.mxu0 %v3313
      %v3481 = vpop.f32.mrf.mxu0
      %v3482 = vadd.f32 0.0, %v3481
      %v3483 = vpop.f32.mrf.mxu0
      %v3484 = vpop.f32.mrf.mxu0
      %v3485 = vadd.f32 0.0, %v3484
      %v3486 = vpop.f32.mrf.mxu0
      %3487 = vmatprep.mubr.bf16.mxu0 0
      %3488 = vmatmul.mubr.bf16.gmra.mxu0 %v3315
      %v3489 = vpop.f32.mrf.mxu0
      %v3490 = vadd.f32 0.0, %v3489
      %v3491 = vpop.f32.mrf.mxu0
      %v3492 = vpop.f32.mrf.mxu0
      %v3493 = vadd.f32 0.0, %v3492
      %v3494 = vpop.f32.mrf.mxu0
      %3495 = vmatprep.mubr.bf16.mxu0 0
      %3496 = vmatmul.mubr.bf16.gmra.mxu0 %v3317
      %v3497 = vpop.f32.mrf.mxu0
      %v3498 = vadd.f32 0.0, %v3497
      %v3499 = vpop.f32.mrf.mxu0
      %v3500 = vpop.f32.mrf.mxu0
      %v3501 = vadd.f32 0.0, %v3500
      %v3502 = vpop.f32.mrf.mxu0
      %3503 = vmatprep.mubr.bf16.mxu0 0
      %3504 = vmatmul.mubr.bf16.gmra.mxu0 %v3319
      %v3505 = vpop.f32.mrf.mxu0
      %v3506 = vadd.f32 0.0, %v3505
      %v3507 = vpop.f32.mrf.mxu0
      %v3508 = vpop.f32.mrf.mxu0
      %v3509 = vadd.f32 0.0, %v3508
      %v3510 = vpop.f32.mrf.mxu0
      %3511 = vmatprep.mubr.bf16.mxu0 0
      %3512 = vmatmul.mubr.bf16.gmra.mxu0 %v3321
      %v3513 = vpop.f32.mrf.mxu0
      %v3514 = vadd.f32 0.0, %v3513
      %v3515 = vpop.f32.mrf.mxu0
      %v3516 = vpop.f32.mrf.mxu0
      %v3517 = vadd.f32 0.0, %v3516
      %v3518 = vpop.f32.mrf.mxu0
      %3519 = vmatprep.mubr.bf16.mxu0 0
      %3520 = vmatmul.mubr.bf16.gmra.mxu0 %v3323
      %v3521 = vpop.f32.mrf.mxu0
      %v3522 = vadd.f32 0.0, %v3521
      %v3523 = vpop.f32.mrf.mxu0
      %v3524 = vpop.f32.mrf.mxu0
      %v3525 = vadd.f32 0.0, %v3524
      %v3526 = vpop.f32.mrf.mxu0
      %3527 = vmatprep.mubr.bf16.mxu0 0
      %3528 = vmatmul.mubr.bf16.gmra.mxu0 %v3325
      %v3529 = vpop.f32.mrf.mxu0
      %v3530 = vadd.f32 0.0, %v3529
      %v3531 = vpop.f32.mrf.mxu0
      %v3532 = vpop.f32.mrf.mxu0
      %v3533 = vadd.f32 0.0, %v3532
      %v3534 = vpop.f32.mrf.mxu0
      %3535 = vmatprep.mubr.bf16.mxu0 0
      %3536 = vmatmul.mubr.bf16.gmra.mxu0 %v3327
      %v3537 = vpop.f32.mrf.mxu0
      %v3538 = vadd.f32 0.0, %v3537
      %v3539 = vpop.f32.mrf.mxu0
      %v3540 = vpop.f32.mrf.mxu0
      %v3541 = vadd.f32 0.0, %v3540
      %v3542 = vpop.f32.mrf.mxu0
      %3543 = vmatprep.mubr.bf16.mxu0 0
      %3544 = vmatmul.mubr.bf16.gmra.mxu0 %v3329
      %v3545 = vpop.f32.mrf.mxu0
      %v3546 = vadd.f32 0.0, %v3545
      %v3547 = vpop.f32.mrf.mxu0
      %v3548 = vpop.f32.mrf.mxu0
      %v3549 = vadd.f32 0.0, %v3548
      %v3550 = vpop.f32.mrf.mxu0
      %3551 = vmatprep.mubr.bf16.mxu0 0
      %3552 = vmatmul.mubr.bf16.gmra.mxu0 %v3331
      %v3553 = vpop.f32.mrf.mxu0
      %v3554 = vadd.f32 0.0, %v3553
      %v3555 = vpop.f32.mrf.mxu0
      %v3556 = vpop.f32.mrf.mxu0
      %v3557 = vadd.f32 0.0, %v3556
      %v3558 = vpop.f32.mrf.mxu0
      %3559 = vmatprep.mubr.bf16.mxu0 0
      %3560 = vmatmul.mubr.bf16.gmra.mxu0 %v3333
      %v3561 = vpop.f32.mrf.mxu0
      %v3562 = vadd.f32 0.0, %v3561
      %v3563 = vpop.f32.mrf.mxu0
      %v3564 = vpop.f32.mrf.mxu0
      %v3565 = vadd.f32 0.0, %v3564
      %v3566 = vpop.f32.mrf.mxu0
      %3567 = vdwg.mxu0
      %v3568 = vadd.f32 %v3124, %v3434
      %v3569 = vadd.f32 %v3125, %v3437
      %v3570 = vadd.f32 %v3126, %v3442
      %v3571 = vadd.f32 %v3127, %v3445
      %v3572 = vadd.f32 %v3128, %v3450
      %v3573 = vadd.f32 %v3129, %v3453
      %v3574 = vadd.f32 %v3130, %v3458
      %v3575 = vadd.f32 %v3131, %v3461
      %v3576 = vadd.f32 %v3132, %v3466
      %v3577 = vadd.f32 %v3133, %v3469
      %v3578 = vadd.f32 %v3134, %v3474
      %v3579 = vadd.f32 %v3135, %v3477
      %v3580 = vadd.f32 %v3136, %v3482
      %v3581 = vadd.f32 %v3137, %v3485
      %v3582 = vadd.f32 %v3138, %v3490
      %v3583 = vadd.f32 %v3139, %v3493
      %v3584 = vadd.f32 %v3140, %v3498
      %v3585 = vadd.f32 %v3141, %v3501
      %v3586 = vadd.f32 %v3142, %v3506
      %v3587 = vadd.f32 %v3143, %v3509
      %v3588 = vadd.f32 %v3144, %v3514
      %v3589 = vadd.f32 %v3145, %v3517
      %v3590 = vadd.f32 %v3146, %v3522
      %v3591 = vadd.f32 %v3147, %v3525
      %v3592 = vadd.f32 %v3148, %v3530
      %v3593 = vadd.f32 %v3149, %v3533
      %v3594 = vadd.f32 %v3150, %v3538
      %v3595 = vadd.f32 %v3151, %v3541
      %v3596 = vadd.f32 %v3152, %v3546
      %v3597 = vadd.f32 %v3153, %v3549
      %v3598 = vadd.f32 %v3154, %v3554
      %v3599 = vadd.f32 %v3155, %v3557
      %v3600 = vadd.f32 %v3156, %v3562
      %v3601 = vadd.f32 %v3157, %v3565
      %v3602 = vld [vmem:[%s3] sm:$0x1]
      %v3604 = vlaneseq
      %v3605 = vshrl.u32 %v3604, 7
      %v3606 = vsub.s32 0, %v3605
      %v3607 = vrot.slane %v3602, %v3606
      %v3609 = vadd.f32 %v3568, %v3607
      %v3610 = vadd.f32 %v3569, %v3607
      %v3611 = vadd.f32 %v3570, %v3607
      %v3612 = vadd.f32 %v3571, %v3607
      %v3613 = vadd.f32 %v3572, %v3607
      %v3614 = vadd.f32 %v3573, %v3607
      %v3615 = vadd.f32 %v3574, %v3607
      %v3616 = vadd.f32 %v3575, %v3607
      %v3617 = vadd.f32 %v3576, %v3607
      %v3618 = vadd.f32 %v3577, %v3607
      %v3619 = vadd.f32 %v3578, %v3607
      %v3620 = vadd.f32 %v3579, %v3607
      %v3621 = vadd.f32 %v3580, %v3607
      %v3622 = vadd.f32 %v3581, %v3607
      %v3623 = vadd.f32 %v3582, %v3607
      %v3624 = vadd.f32 %v3583, %v3607
      %v3625 = vadd.f32 %v3584, %v3607
      %v3626 = vadd.f32 %v3585, %v3607
      %v3627 = vadd.f32 %v3586, %v3607
      %v3628 = vadd.f32 %v3587, %v3607
      %v3629 = vadd.f32 %v3588, %v3607
      %v3630 = vadd.f32 %v3589, %v3607
      %v3631 = vadd.f32 %v3590, %v3607
      %v3632 = vadd.f32 %v3591, %v3607
      %v3633 = vadd.f32 %v3592, %v3607
      %v3634 = vadd.f32 %v3593, %v3607
      %v3635 = vadd.f32 %v3594, %v3607
      %v3636 = vadd.f32 %v3595, %v3607
      %v3637 = vadd.f32 %v3596, %v3607
      %v3638 = vadd.f32 %v3597, %v3607
      %v3639 = vadd.f32 %v3598, %v3607
      %v3640 = vadd.f32 %v3599, %v3607
      %v3641 = vadd.f32 %v3600, %v3607
      %v3642 = vadd.f32 %v3601, %v3607
      %v3643 = vmax.f32 %v3609, 0.0
      %v3644 = vmax.f32 %v3610, 0.0
      %v3645 = vmax.f32 %v3611, 0.0
      %v3646 = vmax.f32 %v3612, 0.0
      %v3647 = vmax.f32 %v3613, 0.0
      %v3648 = vmax.f32 %v3614, 0.0
      %v3649 = vmax.f32 %v3615, 0.0
      %v3650 = vmax.f32 %v3616, 0.0
      %v3651 = vmax.f32 %v3617, 0.0
      %v3652 = vmax.f32 %v3618, 0.0
      %v3653 = vmax.f32 %v3619, 0.0
      %v3654 = vmax.f32 %v3620, 0.0
      %v3655 = vmax.f32 %v3621, 0.0
      %v3656 = vmax.f32 %v3622, 0.0
      %v3657 = vmax.f32 %v3623, 0.0
      %v3658 = vmax.f32 %v3624, 0.0
      %v3659 = vmax.f32 %v3625, 0.0
      %v3660 = vmax.f32 %v3626, 0.0
      %v3661 = vmax.f32 %v3627, 0.0
      %v3662 = vmax.f32 %v3628, 0.0
      %v3663 = vmax.f32 %v3629, 0.0
      %v3664 = vmax.f32 %v3630, 0.0
      %v3665 = vmax.f32 %v3631, 0.0
      %v3666 = vmax.f32 %v3632, 0.0
      %v3667 = vmax.f32 %v3633, 0.0
      %v3668 = vmax.f32 %v3634, 0.0
      %v3669 = vmax.f32 %v3635, 0.0
      %v3670 = vmax.f32 %v3636, 0.0
      %v3671 = vmax.f32 %v3637, 0.0
      %v3672 = vmax.f32 %v3638, 0.0
      %v3673 = vmax.f32 %v3639, 0.0
      %v3674 = vmax.f32 %v3640, 0.0
      %v3675 = vmax.f32 %v3641, 0.0
      %v3676 = vmax.f32 %v3642, 0.0
      %v3677 = vpack.c.bf16 %v3644, %v3643
      %v3678 = vpack.c.bf16 %v3646, %v3645
      %v3679 = vpack.c.bf16 %v3648, %v3647
      %v3680 = vpack.c.bf16 %v3650, %v3649
      %v3681 = vpack.c.bf16 %v3652, %v3651
      %v3682 = vpack.c.bf16 %v3654, %v3653
      %v3683 = vpack.c.bf16 %v3656, %v3655
      %v3684 = vpack.c.bf16 %v3658, %v3657
      %v3685 = vpack.c.bf16 %v3660, %v3659
      %v3686 = vpack.c.bf16 %v3662, %v3661
      %v3687 = vpack.c.bf16 %v3664, %v3663
      %v3688 = vpack.c.bf16 %v3666, %v3665
      %v3689 = vpack.c.bf16 %v3668, %v3667
      %v3690 = vpack.c.bf16 %v3670, %v3669
      %v3691 = vpack.c.bf16 %v3672, %v3671
      %v3692 = vpack.c.bf16 %v3674, %v3673
      %v3693 = vpack.c.bf16 %v3676, %v3675
      %v3711 = vunpack.c.l.b16 %v3677
      %v3712 = vunpack.c.h.b16 %v3677
      %v3713 = vunpack.c.l.b16 %v3678
      %v3714 = vunpack.c.h.b16 %v3678
      %v3715 = vunpack.c.l.b16 %v3679
      %v3716 = vunpack.c.h.b16 %v3679
      %v3717 = vunpack.c.l.b16 %v3680
      %v3718 = vunpack.c.h.b16 %v3680
      %v3719 = vunpack.c.l.b16 %v3681
      %v3720 = vunpack.c.h.b16 %v3681
      %v3721 = vunpack.c.l.b16 %v3682
      %v3722 = vunpack.c.h.b16 %v3682
      %v3723 = vunpack.c.l.b16 %v3683
      %v3724 = vunpack.c.h.b16 %v3683
      %v3725 = vunpack.c.l.b16 %v3684
      %v3726 = vunpack.c.h.b16 %v3684
      %v3727 = vunpack.c.l.b16 %v3685
      %v3728 = vunpack.c.h.b16 %v3685
      %v3729 = vunpack.c.l.b16 %v3686
      %v3730 = vunpack.c.h.b16 %v3686
      %v3731 = vunpack.c.l.b16 %v3687
      %v3732 = vunpack.c.h.b16 %v3687
      %v3733 = vunpack.c.l.b16 %v3688
      %v3734 = vunpack.c.h.b16 %v3688
      %v3735 = vunpack.c.l.b16 %v3689
      %v3736 = vunpack.c.h.b16 %v3689
      %v3737 = vunpack.c.l.b16 %v3690
      %v3738 = vunpack.c.h.b16 %v3690
      %v3739 = vunpack.c.l.b16 %v3691
      %v3740 = vunpack.c.h.b16 %v3691
      %v3741 = vunpack.c.l.b16 %v3692
      %v3742 = vunpack.c.h.b16 %v3692
      %v3743 = vunpack.c.l.b16 %v3693
      %v3744 = vunpack.c.h.b16 %v3693
      %v3745 = vpack.c.b16 %v3711, %v3711
      %v3746 = vpack.c.b16 %v3712, %v3712
      %v3747 = vpack.c.b16 %v3713, %v3713
      %v3748 = vpack.c.b16 %v3714, %v3714
      %v3749 = vpack.c.b16 %v3715, %v3715
      %v3750 = vpack.c.b16 %v3716, %v3716
      %v3751 = vpack.c.b16 %v3717, %v3717
      %v3752 = vpack.c.b16 %v3718, %v3718
      %v3753 = vpack.c.b16 %v3719, %v3719
      %v3754 = vpack.c.b16 %v3720, %v3720
      %v3755 = vpack.c.b16 %v3721, %v3721
      %v3756 = vpack.c.b16 %v3722, %v3722
      %v3757 = vpack.c.b16 %v3723, %v3723
      %v3758 = vpack.c.b16 %v3724, %v3724
      %v3759 = vpack.c.b16 %v3725, %v3725
      %v3760 = vpack.c.b16 %v3726, %v3726
      %v3761 = vpack.c.b16 %v3727, %v3727
      %v3762 = vpack.c.b16 %v3728, %v3728
      %v3763 = vpack.c.b16 %v3729, %v3729
      %v3764 = vpack.c.b16 %v3730, %v3730
      %v3765 = vpack.c.b16 %v3731, %v3731
      %v3766 = vpack.c.b16 %v3732, %v3732
      %v3767 = vpack.c.b16 %v3733, %v3733
      %v3768 = vpack.c.b16 %v3734, %v3734
      %v3769 = vpack.c.b16 %v3735, %v3735
      %v3770 = vpack.c.b16 %v3736, %v3736
      %v3771 = vpack.c.b16 %v3737, %v3737
      %v3772 = vpack.c.b16 %v3738, %v3738
      %v3773 = vpack.c.b16 %v3739, %v3739
      %v3774 = vpack.c.b16 %v3740, %v3740
      %v3775 = vpack.c.b16 %v3741, %v3741
      %v3776 = vpack.c.b16 %v3742, %v3742
      %v3777 = vpack.c.b16 %v3743, %v3743
      %v3778 = vpack.c.b16 %v3744, %v3744
      %3813 = vst [vmem:[%s233] sm:$0xf] %v3745
      %3814 = vst [vmem:[%s233 + $0x4] sm:$0xf] %v3746
      %3815 = vst [vmem:[%s233 + $0x8] sm:$0xf] %v3747
      %3816 = vst [vmem:[%s233 + $0xc] sm:$0xf] %v3748
      %3817 = vst [vmem:[%s233 + $0x10] sm:$0xf] %v3749
      %3818 = vst [vmem:[%s233 + $0x14] sm:$0xf] %v3750
      %3819 = vst [vmem:[%s233 + $0x18] sm:$0xf] %v3751
      %3820 = vst [vmem:[%s233 + $0x1c] sm:$0xf] %v3752
      %3821 = vst [vmem:[%s233 + $0x20] sm:$0xf] %v3753
      %3822 = vst [vmem:[%s233 + $0x24] sm:$0xf] %v3754
      %3823 = vst [vmem:[%s233 + $0x28] sm:$0xf] %v3755
      %3824 = vst [vmem:[%s233 + $0x2c] sm:$0xf] %v3756
      %3825 = vst [vmem:[%s233 + $0x30] sm:$0xf] %v3757
      %3826 = vst [vmem:[%s233 + $0x34] sm:$0xf] %v3758
      %3827 = vst [vmem:[%s233 + $0x38] sm:$0xf] %v3759
      %3828 = vst [vmem:[%s233 + $0x3c] sm:$0xf] %v3760
      %3829 = vst [vmem:[%s233 + $0x40] sm:$0xf] %v3761
      %3830 = vst [vmem:[%s233 + $0x44] sm:$0xf] %v3762
      %3831 = vst [vmem:[%s233 + $0x48] sm:$0xf] %v3763
      %3832 = vst [vmem:[%s233 + $0x4c] sm:$0xf] %v3764
      %3833 = vst [vmem:[%s233 + $0x50] sm:$0xf] %v3765
      %3834 = vst [vmem:[%s233 + $0x54] sm:$0xf] %v3766
      %3835 = vst [vmem:[%s233 + $0x58] sm:$0xf] %v3767
      %3836 = vst [vmem:[%s233 + $0x5c] sm:$0xf] %v3768
      %3837 = vst [vmem:[%s233 + $0x60] sm:$0xf] %v3769
      %3838 = vst [vmem:[%s233 + $0x64] sm:$0xf] %v3770
      %3839 = vst [vmem:[%s233 + $0x68] sm:$0xf] %v3771
      %3840 = vst [vmem:[%s233 + $0x6c] sm:$0xf] %v3772
      %3841 = vst [vmem:[%s233 + $0x70] sm:$0xf] %v3773
      %3842 = vst [vmem:[%s233 + $0x74] sm:$0xf] %v3774
      %3843 = vst [vmem:[%s233 + $0x78] sm:$0xf] %v3775
      %3844 = vst [vmem:[%s233 + $0x7c] sm:$0xf] %v3776
      %3845 = vst [vmem:[%s233 + $0x80] sm:$0xf] %v3777
      %3846 = vst [vmem:[%s233 + $0x84] sm:$0xf] %v3778
      %s3847 = smul.u32 34, %s20
      %p3848 = scmp.lt.s32.totalorder %s19, 1
      %s3849 = scalar_select %p3848, %s19, 1
      %p3850 = scmp.lt.s32.totalorder %s3847, 33
      %s3851 = scalar_select %p3850, %s3847, 33
      %s3852 = smul.addr %s3849, 34
      %s3853 = sadd.s32 %s3851, %s3852
      %s3854 = smul.addr %s3853, 4
      %s3855 = scalar_lea.vmem %s4, %s3854
      // Predicated region
      $region37: #{backbone_base_forward.5} parent=35 // pred_check
        %p3856 = pneg %p138
      $region38: #{backbone_base_forward.5} parent=35 // pred_check_branch
        %3858 = sbr.rel (%p3856) target = $region40
      $region39: #{backbone_base_forward.5} parent=35 // pred_region
        %s3859 = smul.u32 34, %s20
      $region40: #{backbone_base_forward.5} parent=35 // pred_fallthru
        _
    $region36: #{backbone_base_forward.5} parent=5 // pred_fallthru
      _
    %p3860 = scmp.le.s32.totalorder 2, %s10
    // Predicated region
    $region41: #{backbone_base_forward.5} parent=5 // pred_check
      %p3861 = pneg %p3860
    $region42: #{backbone_base_forward.5} parent=5 // pred_check_branch
      %3863 = sbr.rel (%p3861) target = $region44
    $region43: #{backbone_base_forward.5} parent=5 // pred_region
      %s3864 = ssub.s32 %s10, 2
      // Predicated region
      $region45: #{backbone_base_forward.5} parent=43 // pred_check
        %p3865 = pneg %p144
      $region46: #{backbone_base_forward.5} parent=43 // pred_check_branch
        %3867 = sbr.rel (%p3865) target = $region48
      $region47: #{backbone_base_forward.5} parent=43 // pred_region
        %s3868 = smul.u32 34, %s22
        %p3869 = scmp.lt.s32.totalorder %s21, 1
        %s3870 = scalar_select %p3869, %s21, 1
        %p3871 = scmp.lt.s32.totalorder %s3868, 33
        %s3872 = scalar_select %p3871, %s3868, 33
        %s3873 = smul.addr %s3870, 34
        %s3874 = sadd.s32 %s3872, %s3873
        %s3875 = smul.addr %s3874, 4
        %s3876 = scalar_lea.vmem %s4, %s3875
      $region48: #{backbone_base_forward.5} parent=43 // pred_fallthru
        _
    $region44: #{backbone_base_forward.5} parent=5 // pred_fallthru
      _
  $region6: #{backbone_base_forward.5} parent=0 // loop_footer
    %s14 = sadd.s32 1, %s10
  $region7: #{backbone_base_forward.5} parent=0 // loop_footer_branch
    %9 = sbr.rel target = $region3
  $region8: #{backbone_base_forward.5} parent=0 // loop_exit
    _

// kernel: backbone_base_forward.6
$region0: #{backbone_base_forward.6}
  #allocation0 [shape = 'u32[]', space=smem, size = 0x4, offset = 0x4, fixed_abs, tag = 'smem constant byte address 0x4 - core index']
  #allocation1 [shape = 'u32[144,128]{1,0:T(1,128)}', space=vmem, size = 0x12000, scoped, tag = 'internal scratch']
  %s0 = inlined_call_operand.vmem [shape: bf16[2,1,2,90,256], index: 0, kind: input, shape index: {}]
  %s1 = inlined_call_operand.vmem [shape: bf16[3,256,128], index: 1, kind: input, shape index: {}]
  %s2 = inlined_call_operand.vmem [shape: bf16[3,128,128], index: 2, kind: input, shape index: {}]
  %s3 = inlined_call_operand.vmem [shape: f32[1,128], index: 3, kind: input, shape index: {}]
  %s4 = inlined_call_operand.vmem [shape: bf16[2,72,128], index: 4, kind: output, shape index: {}]
  %s5 = sld [smem:[#allocation0]]
  $region49: #{backbone_base_forward.6} parent=0
    _
  %s7 = ssub.s32 1, %s5
  %s8 = scalar_select 0, %s7, %s5
  loop: start=0, step=1, limit=4
  $region2: #{backbone_base_forward.6} parent=0 // loop_pre_header
    _
  $region3: #{backbone_base_forward.6} parent=0 // loop_header
    %s10 = sphi 0, %s14
    %p11 = scmp.ge.s32.totalorder %s10, 4
    %s17 = sphi 0, %s29
    %s18 = sphi 0, %s25
    %s19 = sphi 0, %s17
    %s20 = sphi 0, %s18
    %s21 = sphi 0, %s19
    %s22 = sphi 0, %s20
    %s34 = sphi 0, %s36
    %s37 = sphi 0, %s34
    %s38 = sphi 0, %s37
    %s54 = sphi 0, %s38
    %s58 = sphi 0, %s58
    %s60 = sphi 0, %s58
    %s61 = sphi 0, %s60
    %s75 = sphi 0, %s61
    %s79 = sphi 0, %s79
    %s81 = sphi 0, %s79
    %s82 = sphi 0, %s81
    %s96 = sphi 0, %s82
    %s100 = sphi 0, %s100
    %s102 = sphi 0, %s100
    %s103 = sphi 0, %s102
    %s117 = sphi 0, %s103
    %s125 = sphi 0, %s127
    %s128 = sphi 0, %s125
    %s129 = sphi 0, %s128
    %s145 = sphi 0, %s129
  $region4: #{backbone_base_forward.6} parent=0 // loop_header_branch
    %13 = sbr.rel (%p11) target = $region8
  $region5: #{backbone_base_forward.6} parent=0 // loop_body
    %s15 = ssub.s32 %s10, 1
    %s16 = ssub.s32 %s10, 2
    %s23 = sadd.s32 1, %s18
    %p24 = scmp.ge.s32.totalorder %s23, 1
    %s25 = scalar_select %p24, 0, %s23
    %s26 = sadd.s32 1, %s17
    %s27 = scalar_select %p24, %s26, %s17
    %p28 = scmp.ge.s32.totalorder %s27, 2
    %s29 = scalar_select %p28, 0, %s27
    %s30 = ssub.s32 %s17, %s29
    %s31 = ssub.s32 %s18, %s25
    %s32 = sor.u32 %s30, %s31
    %p33 = scmp.eq.s32.totalorder %s32, 0
    %s35 = sadd.s32 %s34, 1
    %s36 = scalar_select %p33, %s34, %s35
    %p39 = pneg %p33
    %p40 = scmp.eq.s32.totalorder %s10, 1
    %p41 = por %p39, %p40
    %p42 = scmp.ne.s32.totalorder %s34, %s37
    %p43 = scmp.eq.s32.totalorder %s10, 0
    %p44 = por %p42, %p43
    %p45 = scmp.ne.s32.totalorder %s34, %s37
    %p46 = scmp.eq.s32.totalorder %s15, 1
    %p47 = por %p45, %p46
    %p48 = scmp.ne.s32.totalorder %s37, %s38
    %p49 = scmp.eq.s32.totalorder %s15, 0
    %p50 = por %p48, %p49
    %p51 = scmp.ne.s32.totalorder %s37, %s38
    %p52 = scmp.eq.s32.totalorder %s16, 1
    %p53 = por %p51, %p52
    %p55 = scmp.ne.s32.totalorder %s38, %s54
    %p56 = scmp.eq.s32.totalorder %s16, 0
    %p57 = por %p55, %p56
    %s59 = sadd.s32 %s58, 1
    %p62 = scmp.eq.s32.totalorder %s10, 1
    %p63 = scmp.ne.s32.totalorder %s58, %s60
    %p64 = scmp.eq.s32.totalorder %s10, 0
    %p65 = por %p63, %p64
    %p66 = scmp.ne.s32.totalorder %s58, %s60
    %p67 = scmp.eq.s32.totalorder %s15, 1
    %p68 = por %p66, %p67
    %p69 = scmp.ne.s32.totalorder %s60, %s61
    %p70 = scmp.eq.s32.totalorder %s15, 0
    %p71 = por %p69, %p70
    %p72 = scmp.ne.s32.totalorder %s60, %s61
    %p73 = scmp.eq.s32.totalorder %s16, 1
    %p74 = por %p72, %p73
    %p76 = scmp.ne.s32.totalorder %s61, %s75
    %p77 = scmp.eq.s32.totalorder %s16, 0
    %p78 = por %p76, %p77
    %s80 = sadd.s32 %s79, 1
    %p83 = scmp.eq.s32.totalorder %s10, 1
    %p84 = scmp.ne.s32.totalorder %s79, %s81
    %p85 = scmp.eq.s32.totalorder %s10, 0
    %p86 = por %p84, %p85
    %p87 = scmp.ne.s32.totalorder %s79, %s81
    %p88 = scmp.eq.s32.totalorder %s15, 1
    %p89 = por %p87, %p88
    %p90 = scmp.ne.s32.totalorder %s81, %s82
    %p91 = scmp.eq.s32.totalorder %s15, 0
    %p92 = por %p90, %p91
    %p93 = scmp.ne.s32.totalorder %s81, %s82
    %p94 = scmp.eq.s32.totalorder %s16, 1
    %p95 = por %p93, %p94
    %p97 = scmp.ne.s32.totalorder %s82, %s96
    %p98 = scmp.eq.s32.totalorder %s16, 0
    %p99 = por %p97, %p98
    %s101 = sadd.s32 %s100, 1
    %p104 = scmp.eq.s32.totalorder %s10, 1
    %p105 = scmp.ne.s32.totalorder %s100, %s102
    %p106 = scmp.eq.s32.totalorder %s10, 0
    %p107 = por %p105, %p106
    %p108 = scmp.ne.s32.totalorder %s100, %s102
    %p109 = scmp.eq.s32.totalorder %s15, 1
    %p110 = por %p108, %p109
    %p111 = scmp.ne.s32.totalorder %s102, %s103
    %p112 = scmp.eq.s32.totalorder %s15, 0
    %p113 = por %p111, %p112
    %p114 = scmp.ne.s32.totalorder %s102, %s103
    %p115 = scmp.eq.s32.totalorder %s16, 1
    %p116 = por %p114, %p115
    %p118 = scmp.ne.s32.totalorder %s103, %s117
    %p119 = scmp.eq.s32.totalorder %s16, 0
    %p120 = por %p118, %p119
    %s121 = ssub.s32 %s17, %s29
    %s122 = ssub.s32 %s18, %s25
    %s123 = sor.u32 %s121, %s122
    %p124 = scmp.eq.s32.totalorder %s123, 0
    %s126 = sadd.s32 %s125, 1
    %s127 = scalar_select %p124, %s125, %s126
    %p130 = pneg %p124
    %p131 = scmp.eq.s32.totalorder %s10, 1
    %p132 = por %p130, %p131
    %p133 = scmp.ne.s32.totalorder %s125, %s128
    %p134 = scmp.eq.s32.totalorder %s10, 0
    %p135 = por %p133, %p134
    %p136 = scmp.ne.s32.totalorder %s125, %s128
    %p137 = scmp.eq.s32.totalorder %s15, 1
    %p138 = por %p136, %p137
    %p139 = scmp.ne.s32.totalorder %s128, %s129
    %p140 = scmp.eq.s32.totalorder %s15, 0
    %p141 = por %p139, %p140
    %p142 = scmp.ne.s32.totalorder %s128, %s129
    %p143 = scmp.eq.s32.totalorder %s16, 1
    %p144 = por %p142, %p143
    %p146 = scmp.ne.s32.totalorder %s129, %s145
    %p147 = scmp.eq.s32.totalorder %s16, 0
    %p148 = por %p146, %p147
    %p149 = scmp.le.s32.totalorder 1, %s10
    %p150 = scmp.lt.s32.totalorder %s10, 3
    %p151 = pnand %p149, %p150
    %p152 = pneg %p151
    // Predicated region
    $region9: #{backbone_base_forward.6} parent=5 // pred_check
      _
    $region10: #{backbone_base_forward.6} parent=5 // pred_check_branch
      %154 = sbr.rel (%p151) target = $region12
    $region11: #{backbone_base_forward.6} parent=5 // pred_region
      %s155 = ssub.s32 %s10, 1
      // Predicated region
      $region13: #{backbone_base_forward.6} parent=11 // pred_check
        %p156 = pneg %p71
      $region14: #{backbone_base_forward.6} parent=11 // pred_check_branch
        %158 = sbr.rel (%p156) target = $region16
      $region15: #{backbone_base_forward.6} parent=11 // pred_region
        _
      $region16: #{backbone_base_forward.6} parent=11 // pred_fallthru
        _
      // Predicated region
      $region17: #{backbone_base_forward.6} parent=11 // pred_check
        %p159 = pneg %p92
      $region18: #{backbone_base_forward.6} parent=11 // pred_check_branch
        %161 = sbr.rel (%p159) target = $region20
      $region19: #{backbone_base_forward.6} parent=11 // pred_region
        _
      $region20: #{backbone_base_forward.6} parent=11 // pred_fallthru
        _
      // Predicated region
      $region21: #{backbone_base_forward.6} parent=11 // pred_check
        %p162 = pneg %p113
      $region22: #{backbone_base_forward.6} parent=11 // pred_check_branch
        %164 = sbr.rel (%p162) target = $region24
      $region23: #{backbone_base_forward.6} parent=11 // pred_region
        _
      $region24: #{backbone_base_forward.6} parent=11 // pred_fallthru
        _
    $region12: #{backbone_base_forward.6} parent=5 // pred_fallthru
      _
    %p165 = scmp.lt.s32.totalorder %s10, 2
    // Predicated region
    $region25: #{backbone_base_forward.6} parent=5 // pred_check
      %p166 = pneg %p165
    $region26: #{backbone_base_forward.6} parent=5 // pred_check_branch
      %168 = sbr.rel (%p166) target = $region28
    $region27: #{backbone_base_forward.6} parent=5 // pred_region
      // Predicated region
      $region29: #{backbone_base_forward.6} parent=27 // pred_check
        %p169 = pneg %p44
      $region30: #{backbone_base_forward.6} parent=27 // pred_check_branch
        %171 = sbr.rel (%p169) target = $region32
      $region31: #{backbone_base_forward.6} parent=27 // pred_region
        %p172 = scmp.lt.s32.totalorder %s17, 1
        %s173 = scalar_select %p172, %s17, 1
        %p174 = scmp.lt.s32.totalorder %s18, 0
        %s175 = scalar_select %p174, %s18, 0
        %s176 = smul.addr %s175, 48
        %s177 = smul.addr %s173, 48
        %s178 = sadd.s32 %s176, %s177
        %s179 = smul.addr %s178, 4
        %s180 = scalar_lea.vmem %s0, %s179
      $region32: #{backbone_base_forward.6} parent=27 // pred_fallthru
        _
    $region28: #{backbone_base_forward.6} parent=5 // pred_fallthru
      _
    %p181 = scmp.le.s32.totalorder 1, %s10
    %p182 = scmp.lt.s32.totalorder %s10, 3
    %p183 = pnand %p181, %p182
    %p184 = pneg %p183
    // Predicated region
    $region33: #{backbone_base_forward.6} parent=5 // pred_check
      _
    $region34: #{backbone_base_forward.6} parent=5 // pred_check_branch
      %186 = sbr.rel (%p183) target = $region36
    $region35: #{backbone_base_forward.6} parent=5 // pred_region
      %s187 = ssub.s32 %s10, 1
      %p188 = scmp.lt.s32.totalorder %s19, 1
      %s189 = scalar_select %p188, %s19, 1
      %p190 = scmp.lt.s32.totalorder %s20, 0
      %s191 = scalar_select %p190, %s20, 0
      %s192 = smul.addr %s191, 48
      %s193 = smul.addr %s189, 48
      %s194 = sadd.s32 %s192, %s193
      %s195 = smul.addr %s194, 4
      %s196 = scalar_lea.vmem %s0, %s195
      %p197 = pneg %p50
      %p198 = pneg %p47
      %p199 = pneg %p71
      %p200 = pneg %p68
      %p201 = pneg %p92
      %p202 = pneg %p89
      %p203 = pneg %p113
      %p204 = pneg %p110
      %p205 = pneg %p141
      %p206 = pneg %p138
      %s207 = smul.u32 9, %s20
      %p208 = scmp.lt.s32.totalorder %s19, 1
      %s209 = scalar_select %p208, %s19, 1
      %p210 = scmp.lt.s32.totalorder %s207, 8
      %s211 = scalar_select %p210, %s207, 8
      %s212 = smul.addr %s209, 9
      %s213 = sadd.s32 %s211, %s212
      %s214 = smul.addr %s213, 4
      %s215 = scalar_lea.vmem %s4, %s214
      %p216 = scmp.lt.s32.totalorder %s19, 1
      %s217 = scalar_select %p216, %s19, 1
      %p218 = scmp.lt.s32.totalorder %s20, 0
      %s219 = scalar_select %p218, %s20, 0
      %s220 = smul.addr %s219, 48
      %s221 = smul.addr %s217, 48
      %s222 = sadd.s32 %s220, %s221
      %s223 = smul.addr %s222, 4
      %s224 = scalar_lea.vmem %s0, %s223
      %s225 = smul.u32 9, %s20
      %p226 = scmp.lt.s32.totalorder %s19, 1
      %s227 = scalar_select %p226, %s19, 1
      %p228 = scmp.lt.s32.totalorder %s225, 8
      %s229 = scalar_select %p228, %s225, 8
      %s230 = smul.addr %s227, 9
      %s231 = sadd.s32 %s229, %s230
      %s232 = smul.addr %s231, 4
      %s233 = scalar_lea.vmem %s4, %s232
      %s234 = smul.u32 9, %s20
      %v236 = vld [vmem:[%s224] sm:$0xff]
      %v237 = vld [vmem:[%s224 + $0x8] sm:$0xff]
      %v238 = vld [vmem:[%s224 + $0x10] sm:$0xff]
      %v239 = vld [vmem:[%s224 + $0x18] sm:$0xff]
      %v240 = vld [vmem:[%s224 + $0x20] sm:$0xff]
      %v241 = vld [vmem:[%s224 + $0x28] sm:$0xff]
      %v242 = vld [vmem:[%s224 + $0x30] sm:$0xff]
      %v243 = vld [vmem:[%s224 + $0x38] sm:$0xff]
      %v244 = vld [vmem:[%s224 + $0x40] sm:$0xff]
      %v245 = vld [vmem:[%s1] sm:$0xf]
      %v246 = vld [vmem:[%s1 + $0x4] sm:$0xf]
      %v247 = vld [vmem:[%s1 + $0x8] sm:$0xf]
      %v248 = vld [vmem:[%s1 + $0xc] sm:$0xf]
      %v249 = vld [vmem:[%s1 + $0x10] sm:$0xf]
      %v250 = vld [vmem:[%s1 + $0x14] sm:$0xf]
      %v251 = vld [vmem:[%s1 + $0x18] sm:$0xf]
      %v252 = vld [vmem:[%s1 + $0x1c] sm:$0xf]
      %v253 = vld [vmem:[%s1 + $0x20] sm:$0xf]
      %v254 = vld [vmem:[%s1 + $0x24] sm:$0xf]
      %v255 = vld [vmem:[%s1 + $0x28] sm:$0xf]
      %v256 = vld [vmem:[%s1 + $0x2c] sm:$0xf]
      %v257 = vld [vmem:[%s1 + $0x30] sm:$0xf]
      %v258 = vld [vmem:[%s1 + $0x34] sm:$0xf]
      %v259 = vld [vmem:[%s1 + $0x38] sm:$0xf]
      %v260 = vld [vmem:[%s1 + $0x3c] sm:$0xf]
      %v261 = vld [vmem:[%s1 + $0x40] sm:$0xf]
      %v262 = vld [vmem:[%s1 + $0x44] sm:$0xf]
      %v263 = vld [vmem:[%s1 + $0x48] sm:$0xf]
      %v264 = vld [vmem:[%s1 + $0x4c] sm:$0xf]
      %v265 = vld [vmem:[%s1 + $0x50] sm:$0xf]
      %v266 = vld [vmem:[%s1 + $0x54] sm:$0xf]
      %v267 = vld [vmem:[%s1 + $0x58] sm:$0xf]
      %v268 = vld [vmem:[%s1 + $0x5c] sm:$0xf]
      %v269 = vld [vmem:[%s1 + $0x60] sm:$0xf]
      %v270 = vld [vmem:[%s1 + $0x64] sm:$0xf]
      %v271 = vld [vmem:[%s1 + $0x68] sm:$0xf]
      %v272 = vld [vmem:[%s1 + $0x6c] sm:$0xf]
      %v273 = vld [vmem:[%s1 + $0x70] sm:$0xf]
      %v274 = vld [vmem:[%s1 + $0x74] sm:$0xf]
      %v275 = vld [vmem:[%s1 + $0x78] sm:$0xf]
      %v276 = vld [vmem:[%s1 + $0x7c] sm:$0xf]
      %v277 = vld [vmem:[%s224] sm:$0xf]
      %v278 = vld [vmem:[%s224 + $0x8] sm:$0xf]
      %v279 = vld [vmem:[%s224 + $0x10] sm:$0xf]
      %v280 = vld [vmem:[%s224 + $0x18] sm:$0xf]
      %v281 = vld [vmem:[%s224 + $0x20] sm:$0xf]
      %v282 = vld [vmem:[%s224 + $0x28] sm:$0xf]
      %v283 = vld [vmem:[%s224 + $0x30] sm:$0xf]
      %v284 = vld [vmem:[%s224 + $0x38] sm:$0xf]
      %v285 = vld [vmem:[%s224 + $0x40] sm:$0xf]
      %v286 = vld [vmem:[%s224 + $0x48] sm:$0x1]
      %v287 = vld [vmem:[%s2] sm:$0xf]
      %v288 = vld [vmem:[%s2 + $0x4] sm:$0xf]
      %v289 = vld [vmem:[%s2 + $0x8] sm:$0xf]
      %v290 = vld [vmem:[%s2 + $0xc] sm:$0xf]
      %v291 = vld [vmem:[%s2 + $0x10] sm:$0xf]
      %v292 = vld [vmem:[%s2 + $0x14] sm:$0xf]
      %v293 = vld [vmem:[%s2 + $0x18] sm:$0xf]
      %v294 = vld [vmem:[%s2 + $0x1c] sm:$0xf]
      %v295 = vld [vmem:[%s2 + $0x20] sm:$0xf]
      %v296 = vld [vmem:[%s2 + $0x24] sm:$0xf]
      %v297 = vld [vmem:[%s2 + $0x28] sm:$0xf]
      %v298 = vld [vmem:[%s2 + $0x2c] sm:$0xf]
      %v299 = vld [vmem:[%s2 + $0x30] sm:$0xf]
      %v300 = vld [vmem:[%s2 + $0x34] sm:$0xf]
      %v301 = vld [vmem:[%s2 + $0x38] sm:$0xf]
      %v302 = vld [vmem:[%s2 + $0x3c] sm:$0xf]
      %v313 = vunpack.c.l.b16 %v277
      %v314 = vunpack.c.l.b16 %v278
      %v315 = vunpack.c.l.b16 %v279
      %v316 = vunpack.c.l.b16 %v280
      %v317 = vunpack.c.l.b16 %v281
      %v318 = vunpack.c.l.b16 %v282
      %v319 = vunpack.c.l.b16 %v283
      %v320 = vunpack.c.l.b16 %v284
      %v321 = vunpack.c.l.b16 %v285
      %v322 = vunpack.c.l.b16 %v286
      %v323 = vpack.c.b16 %v314, %v313
      %v324 = vpack.c.b16 %v316, %v315
      %v325 = vpack.c.b16 %v318, %v317
      %v326 = vpack.c.b16 %v320, %v319
      %v327 = vpack.c.b16 %v322, %v321
      %vm328 = vsmask.f32 7424
      %v330 = vshrl.u32 %v323, 16
      %v332 = vshll.u32 %v323, 16
      %v334 = vrot.slane %v332, 1
      %v335 = vor.u32 %v330, %v334
      %v337 = vshll.u32 %v324, 16
      %v339 = vrot.slane %v337, 1
      %v340 = vsel %vm328, %v335, %v339
      %v341 = vshrl.u32 %v324, 16
      %v343 = vor.u32 %v341, %v339
      %v345 = vshll.u32 %v325, 16
      %v347 = vrot.slane %v345, 1
      %v348 = vsel %vm328, %v343, %v347
      %v349 = vshrl.u32 %v325, 16
      %v351 = vor.u32 %v349, %v347
      %v353 = vshll.u32 %v326, 16
      %v355 = vrot.slane %v353, 1
      %v356 = vsel %vm328, %v351, %v355
      %v357 = vshrl.u32 %v326, 16
      %v359 = vor.u32 %v357, %v355
      %v361 = vshll.u32 %v327, 16
      %v363 = vrot.slane %v361, 1
      %v364 = vsel %vm328, %v359, %v363
      %v365 = vshrl.u32 %v327, 16
      %v367 = vor.u32 %v365, %v363
      %v389 = vunpack.c.l.b16 %v287
      %v390 = vunpack.c.l.b16 %v288
      %v391 = vunpack.c.l.b16 %v289
      %v392 = vunpack.c.l.b16 %v290
      %v393 = vunpack.c.l.b16 %v291
      %v394 = vunpack.c.l.b16 %v292
      %v395 = vunpack.c.l.b16 %v293
      %v396 = vunpack.c.l.b16 %v294
      %v397 = vunpack.c.l.b16 %v295
      %v398 = vunpack.c.l.b16 %v296
      %v399 = vunpack.c.l.b16 %v297
      %v400 = vunpack.c.l.b16 %v298
      %v401 = vunpack.c.l.b16 %v299
      %v402 = vunpack.c.l.b16 %v300
      %v403 = vunpack.c.l.b16 %v301
      %v404 = vunpack.c.l.b16 %v302
      %v405 = vpack.c.b16 %v390, %v389
      %v406 = vpack.c.b16 %v392, %v391
      %v407 = vpack.c.b16 %v394, %v393
      %v408 = vpack.c.b16 %v396, %v395
      %v409 = vpack.c.b16 %v398, %v397
      %v410 = vpack.c.b16 %v400, %v399
      %v411 = vpack.c.b16 %v402, %v401
      %v412 = vpack.c.b16 %v404, %v403
      %421 = vmatprep.subr.bf16.mxu0 0
      %422 = vmatpush1.bf16.msra.mxu0 %v412
      %423 = vmatprep.subr.bf16.mxu0 0
      %424 = vmatpush1.bf16.msra.mxu0 %v411
      %425 = vmatprep.subr.bf16.mxu0 0
      %426 = vmatpush1.bf16.msra.mxu0 %v410
      %427 = vmatprep.subr.bf16.mxu0 0
      %428 = vmatpush1.bf16.msra.mxu0 %v409
      %429 = vmatprep.subr.bf16.mxu0 0
      %430 = vmatpush1.bf16.msra.mxu0 %v408
      %431 = vmatprep.subr.bf16.mxu0 0
      %432 = vmatpush1.bf16.msra.mxu0 %v407
      %433 = vmatprep.subr.bf16.mxu0 0
      %434 = vmatpush1.bf16.msra.mxu0 %v406
      %435 = vmatprep.subr.bf16.mxu0 0
      %436 = vmatpush1.bf16.msra.mxu0 %v405
      %437 = vmatprep.subr.bf16.mxu0 0
      %438 = vmatpush2.bf16.msra.mxu0 0
      %439 = vmatprep.subr.bf16.mxu0 0
      %440 = vmatpush2.bf16.msra.mxu0 0
      %441 = vmatprep.subr.bf16.mxu0 0
      %442 = vmatpush2.bf16.msra.mxu0 0
      %443 = vmatprep.subr.bf16.mxu0 0
      %444 = vmatpush2.bf16.msra.mxu0 0
      %445 = vmatprep.subr.bf16.mxu0 0
      %446 = vmatpush2.bf16.msra.mxu0 0
      %447 = vmatprep.subr.bf16.mxu0 0
      %448 = vmatpush2.bf16.msra.mxu0 0
      %449 = vmatprep.subr.bf16.mxu0 0
      %450 = vmatpush2.bf16.msra.mxu0 0
      %451 = vmatprep.subr.bf16.mxu0 0
      %452 = vmatpush2.bf16.msra.mxu0 0
      %453 = vmatprep.mubr.bf16.mxu0 0
      %454 = vmatmul.mubr.bf16.gmra.mxu0 %v340
      %v455 = vpop.f32.mrf.mxu0
      %v456 = vadd.f32 0.0, %v455
      %v457 = vpop.f32.mrf.mxu0
      %v458 = vpop.f32.mrf.mxu0
      %v459 = vadd.f32 0.0, %v458
      %v460 = vpop.f32.mrf.mxu0
      %461 = vmatprep.mubr.bf16.mxu0 0
      %462 = vmatmul.mubr.bf16.gmra.mxu0 %v348
      %v463 = vpop.f32.mrf.mxu0
      %v464 = vadd.f32 0.0, %v463
      %v465 = vpop.f32.mrf.mxu0
      %v466 = vpop.f32.mrf.mxu0
      %v467 = vadd.f32 0.0, %v466
      %v468 = vpop.f32.mrf.mxu0
      %469 = vmatprep.mubr.bf16.mxu0 0
      %470 = vmatmul.mubr.bf16.gmra.mxu0 %v356
      %v471 = vpop.f32.mrf.mxu0
      %v472 = vadd.f32 0.0, %v471
      %v473 = vpop.f32.mrf.mxu0
      %v474 = vpop.f32.mrf.mxu0
      %v475 = vadd.f32 0.0, %v474
      %v476 = vpop.f32.mrf.mxu0
      %477 = vmatprep.mubr.bf16.mxu0 0
      %478 = vmatmul.mubr.bf16.gmra.mxu0 %v364
      %v479 = vpop.f32.mrf.mxu0
      %v480 = vadd.f32 0.0, %v479
      %v481 = vpop.f32.mrf.mxu0
      %v482 = vpop.f32.mrf.mxu0
      %v483 = vadd.f32 0.0, %v482
      %v484 = vpop.f32.mrf.mxu0
      %485 = vmatprep.mubr.bf16.mxu0 0
      %486 = vmatmul.mubr.bf16.gmra.mxu0 %v367
      %v487 = vpop.f32.mrf.mxu0
      %v488 = vadd.f32 0.0, %v487
      %v489 = vpop.f32.mrf.mxu0
      %v490 = vpop.f32.mrf.mxu0
      %v491 = vpop.f32.mrf.mxu0
      %492 = vdwg.mxu0
      %v502 = vunpack.c.l.b16 %v236
      %v503 = vunpack.c.h.b16 %v236
      %v504 = vunpack.c.l.b16 %v237
      %v505 = vunpack.c.h.b16 %v237
      %v506 = vunpack.c.l.b16 %v238
      %v507 = vunpack.c.h.b16 %v238
      %v508 = vunpack.c.l.b16 %v239
      %v509 = vunpack.c.h.b16 %v239
      %v510 = vunpack.c.l.b16 %v240
      %v511 = vunpack.c.h.b16 %v240
      %v512 = vunpack.c.l.b16 %v241
      %v513 = vunpack.c.h.b16 %v241
      %v514 = vunpack.c.l.b16 %v242
      %v515 = vunpack.c.h.b16 %v242
      %v516 = vunpack.c.l.b16 %v243
      %v517 = vunpack.c.h.b16 %v243
      %v518 = vunpack.c.l.b16 %v244
      %v519 = vunpack.c.h.b16 %v244
      %v520 = vpack.c.b16 %v504, %v502
      %v521 = vpack.c.b16 %v505, %v503
      %v522 = vpack.c.b16 %v508, %v506
      %v523 = vpack.c.b16 %v509, %v507
      %v524 = vpack.c.b16 %v512, %v510
      %v525 = vpack.c.b16 %v513, %v511
      %v526 = vpack.c.b16 %v516, %v514
      %v527 = vpack.c.b16 %v517, %v515
      %v528 = vpack.c.b16 %v518, %v518
      %v529 = vpack.c.b16 %v519, %v519
      %v572 = vunpack.c.l.b16 %v245
      %v573 = vunpack.c.l.b16 %v246
      %v574 = vunpack.c.l.b16 %v247
      %v575 = vunpack.c.l.b16 %v248
      %v576 = vunpack.c.l.b16 %v249
      %v577 = vunpack.c.l.b16 %v250
      %v578 = vunpack.c.l.b16 %v251
      %v579 = vunpack.c.l.b16 %v252
      %v580 = vunpack.c.l.b16 %v253
      %v581 = vunpack.c.l.b16 %v254
      %v582 = vunpack.c.l.b16 %v255
      %v583 = vunpack.c.l.b16 %v256
      %v584 = vunpack.c.l.b16 %v257
      %v585 = vunpack.c.l.b16 %v258
      %v586 = vunpack.c.l.b16 %v259
      %v587 = vunpack.c.l.b16 %v260
      %v588 = vunpack.c.l.b16 %v261
      %v589 = vunpack.c.l.b16 %v262
      %v590 = vunpack.c.l.b16 %v263
      %v591 = vunpack.c.l.b16 %v264
      %v592 = vunpack.c.l.b16 %v265
      %v593 = vunpack.c.l.b16 %v266
      %v594 = vunpack.c.l.b16 %v267
      %v595 = vunpack.c.l.b16 %v268
      %v596 = vunpack.c.l.b16 %v269
      %v597 = vunpack.c.l.b16 %v270
      %v598 = vunpack.c.l.b16 %v271
      %v599 = vunpack.c.l.b16 %v272
      %v600 = vunpack.c.l.b16 %v273
      %v601 = vunpack.c.l.b16 %v274
      %v602 = vunpack.c.l.b16 %v275
      %v603 = vunpack.c.l.b16 %v276
      %v604 = vpack.c.b16 %v573, %v572
      %v605 = vpack.c.b16 %v575, %v574
      %v606 = vpack.c.b16 %v577, %v576
      %v607 = vpack.c.b16 %v579, %v578
      %v608 = vpack.c.b16 %v581, %v580
      %v609 = vpack.c.b16 %v583, %v582
      %v610 = vpack.c.b16 %v585, %v584
      %v611 = vpack.c.b16 %v587, %v586
      %v612 = vpack.c.b16 %v589, %v588
      %v613 = vpack.c.b16 %v591, %v590
      %v614 = vpack.c.b16 %v593, %v592
      %v615 = vpack.c.b16 %v595, %v594
      %v616 = vpack.c.b16 %v597, %v596
      %v617 = vpack.c.b16 %v599, %v598
      %v618 = vpack.c.b16 %v601, %v600
      %v619 = vpack.c.b16 %v603, %v602
      %636 = vmatprep.subr.bf16.mxu0 0
      %637 = vmatpush1.bf16.msra.mxu0 %v611
      %638 = vmatprep.subr.bf16.mxu0 0
      %639 = vmatpush1.bf16.msra.mxu0 %v610
      %640 = vmatprep.subr.bf16.mxu0 0
      %641 = vmatpush1.bf16.msra.mxu0 %v609
      %642 = vmatprep.subr.bf16.mxu0 0
      %643 = vmatpush1.bf16.msra.mxu0 %v608
      %644 = vmatprep.subr.bf16.mxu0 0
      %645 = vmatpush1.bf16.msra.mxu0 %v607
      %646 = vmatprep.subr.bf16.mxu0 0
      %647 = vmatpush1.bf16.msra.mxu0 %v606
      %648 = vmatprep.subr.bf16.mxu0 0
      %649 = vmatpush1.bf16.msra.mxu0 %v605
      %650 = vmatprep.subr.bf16.mxu0 0
      %651 = vmatpush1.bf16.msra.mxu0 %v604
      %652 = vmatprep.subr.bf16.mxu0 0
      %653 = vmatpush2.bf16.msra.mxu0 %v619
      %654 = vmatprep.subr.bf16.mxu0 0
      %655 = vmatpush2.bf16.msra.mxu0 %v618
      %656 = vmatprep.subr.bf16.mxu0 0
      %657 = vmatpush2.bf16.msra.mxu0 %v617
      %658 = vmatprep.subr.bf16.mxu0 0
      %659 = vmatpush2.bf16.msra.mxu0 %v616
      %660 = vmatprep.subr.bf16.mxu0 0
      %661 = vmatpush2.bf16.msra.mxu0 %v615
      %662 = vmatprep.subr.bf16.mxu0 0
      %663 = vmatpush2.bf16.msra.mxu0 %v614
      %664 = vmatprep.subr.bf16.mxu0 0
      %665 = vmatpush2.bf16.msra.mxu0 %v613
      %666 = vmatprep.subr.bf16.mxu0 0
      %667 = vmatpush2.bf16.msra.mxu0 %v612
      %668 = vmatprep.mubr.bf16.mxu0 %v521
      %669 = vmatmul.mubr.bf16.gmra.mxu0 %v520
      %v670 = vpop.f32.mrf.mxu0
      %v671 = vadd.f32 %v456, %v670
      %v672 = vpop.f32.mrf.mxu0
      %v673 = vpop.f32.mrf.mxu0
      %v674 = vadd.f32 %v459, %v673
      %v675 = vpop.f32.mrf.mxu0
      %676 = vmatprep.mubr.bf16.mxu0 %v523
      %677 = vmatmul.mubr.bf16.gmra.mxu0 %v522
      %v678 = vpop.f32.mrf.mxu0
      %v679 = vadd.f32 %v464, %v678
      %v680 = vpop.f32.mrf.mxu0
      %v681 = vpop.f32.mrf.mxu0
      %v682 = vadd.f32 %v467, %v681
      %v683 = vpop.f32.mrf.mxu0
      %684 = vmatprep.mubr.bf16.mxu0 %v525
      %685 = vmatmul.mubr.bf16.gmra.mxu0 %v524
      %v686 = vpop.f32.mrf.mxu0
      %v687 = vadd.f32 %v472, %v686
      %v688 = vpop.f32.mrf.mxu0
      %v689 = vpop.f32.mrf.mxu0
      %v690 = vadd.f32 %v475, %v689
      %v691 = vpop.f32.mrf.mxu0
      %692 = vmatprep.mubr.bf16.mxu0 %v527
      %693 = vmatmul.mubr.bf16.gmra.mxu0 %v526
      %v694 = vpop.f32.mrf.mxu0
      %v695 = vadd.f32 %v480, %v694
      %v696 = vpop.f32.mrf.mxu0
      %v697 = vpop.f32.mrf.mxu0
      %v698 = vadd.f32 %v483, %v697
      %v699 = vpop.f32.mrf.mxu0
      %700 = vmatprep.mubr.bf16.mxu0 %v529
      %701 = vmatmul.mubr.bf16.gmra.mxu0 %v528
      %v702 = vpop.f32.mrf.mxu0
      %v703 = vadd.f32 %v488, %v702
      %v704 = vpop.f32.mrf.mxu0
      %v705 = vpop.f32.mrf.mxu0
      %v706 = vpop.f32.mrf.mxu0
      %707 = vdwg.mxu0
      %s708 = scalar_lea.vmem %s224, 96
      %v709 = vld [vmem:[%s708] sm:$0xff]
      %v710 = vld [vmem:[%s708 + $0x8] sm:$0xff]
      %v711 = vld [vmem:[%s708 + $0x10] sm:$0xff]
      %v712 = vld [vmem:[%s708 + $0x18] sm:$0xff]
      %v713 = vld [vmem:[%s708 + $0x20] sm:$0xff]
      %v714 = vld [vmem:[%s708 + $0x28] sm:$0xff]
      %v715 = vld [vmem:[%s708 + $0x30] sm:$0xff]
      %v716 = vld [vmem:[%s708 + $0x38] sm:$0xff]
      %v717 = vld [vmem:[%s708 + $0x40] sm:$0xff]
      %s718 = scalar_lea.vmem %s1, 128
      %v719 = vld [vmem:[%s718] sm:$0xf]
      %v720 = vld [vmem:[%s718 + $0x4] sm:$0xf]
      %v721 = vld [vmem:[%s718 + $0x8] sm:$0xf]
      %v722 = vld [vmem:[%s718 + $0xc] sm:$0xf]
      %v723 = vld [vmem:[%s718 + $0x10] sm:$0xf]
      %v724 = vld [vmem:[%s718 + $0x14] sm:$0xf]
      %v725 = vld [vmem:[%s718 + $0x18] sm:$0xf]
      %v726 = vld [vmem:[%s718 + $0x1c] sm:$0xf]
      %v727 = vld [vmem:[%s718 + $0x20] sm:$0xf]
      %v728 = vld [vmem:[%s718 + $0x24] sm:$0xf]
      %v729 = vld [vmem:[%s718 + $0x28] sm:$0xf]
      %v730 = vld [vmem:[%s718 + $0x2c] sm:$0xf]
      %v731 = vld [vmem:[%s718 + $0x30] sm:$0xf]
      %v732 = vld [vmem:[%s718 + $0x34] sm:$0xf]
      %v733 = vld [vmem:[%s718 + $0x38] sm:$0xf]
      %v734 = vld [vmem:[%s718 + $0x3c] sm:$0xf]
      %v735 = vld [vmem:[%s718 + $0x40] sm:$0xf]
      %v736 = vld [vmem:[%s718 + $0x44] sm:$0xf]
      %v737 = vld [vmem:[%s718 + $0x48] sm:$0xf]
      %v738 = vld [vmem:[%s718 + $0x4c] sm:$0xf]
      %v739 = vld [vmem:[%s718 + $0x50] sm:$0xf]
      %v740 = vld [vmem:[%s718 + $0x54] sm:$0xf]
      %v741 = vld [vmem:[%s718 + $0x58] sm:$0xf]
      %v742 = vld [vmem:[%s718 + $0x5c] sm:$0xf]
      %v743 = vld [vmem:[%s718 + $0x60] sm:$0xf]
      %v744 = vld [vmem:[%s718 + $0x64] sm:$0xf]
      %v745 = vld [vmem:[%s718 + $0x68] sm:$0xf]
      %v746 = vld [vmem:[%s718 + $0x6c] sm:$0xf]
      %v747 = vld [vmem:[%s718 + $0x70] sm:$0xf]
      %v748 = vld [vmem:[%s718 + $0x74] sm:$0xf]
      %v749 = vld [vmem:[%s718 + $0x78] sm:$0xf]
      %v750 = vld [vmem:[%s718 + $0x7c] sm:$0xf]
      %v760 = vunpack.c.l.b16 %v709
      %v761 = vunpack.c.h.b16 %v709
      %v762 = vunpack.c.l.b16 %v710
      %v763 = vunpack.c.h.b16 %v710
      %v764 = vunpack.c.l.b16 %v711
      %v765 = vunpack.c.h.b16 %v711
      %v766 = vunpack.c.l.b16 %v712
      %v767 = vunpack.c.h.b16 %v712
      %v768 = vunpack.c.l.b16 %v713
      %v769 = vunpack.c.h.b16 %v713
      %v770 = vunpack.c.l.b16 %v714
      %v771 = vunpack.c.h.b16 %v714
      %v772 = vunpack.c.l.b16 %v715
      %v773 = vunpack.c.h.b16 %v715
      %v774 = vunpack.c.l.b16 %v716
      %v775 = vunpack.c.h.b16 %v716
      %v776 = vunpack.c.l.b16 %v717
      %v777 = vunpack.c.h.b16 %v717
      %v778 = vpack.c.b16 %v762, %v760
      %v779 = vpack.c.b16 %v763, %v761
      %v780 = vpack.c.b16 %v766, %v764
      %v781 = vpack.c.b16 %v767, %v765
      %v782 = vpack.c.b16 %v770, %v768
      %v783 = vpack.c.b16 %v771, %v769
      %v784 = vpack.c.b16 %v774, %v772
      %v785 = vpack.c.b16 %v775, %v773
      %v786 = vpack.c.b16 %v776, %v776
      %v787 = vpack.c.b16 %v777, %v777
      %v830 = vunpack.c.l.b16 %v719
      %v831 = vunpack.c.l.b16 %v720
      %v832 = vunpack.c.l.b16 %v721
      %v833 = vunpack.c.l.b16 %v722
      %v834 = vunpack.c.l.b16 %v723
      %v835 = vunpack.c.l.b16 %v724
      %v836 = vunpack.c.l.b16 %v725
      %v837 = vunpack.c.l.b16 %v726
      %v838 = vunpack.c.l.b16 %v727
      %v839 = vunpack.c.l.b16 %v728
      %v840 = vunpack.c.l.b16 %v729
      %v841 = vunpack.c.l.b16 %v730
      %v842 = vunpack.c.l.b16 %v731
      %v843 = vunpack.c.l.b16 %v732
      %v844 = vunpack.c.l.b16 %v733
      %v845 = vunpack.c.l.b16 %v734
      %v846 = vunpack.c.l.b16 %v735
      %v847 = vunpack.c.l.b16 %v736
      %v848 = vunpack.c.l.b16 %v737
      %v849 = vunpack.c.l.b16 %v738
      %v850 = vunpack.c.l.b16 %v739
      %v851 = vunpack.c.l.b16 %v740
      %v852 = vunpack.c.l.b16 %v741
      %v853 = vunpack.c.l.b16 %v742
      %v854 = vunpack.c.l.b16 %v743
      %v855 = vunpack.c.l.b16 %v744
      %v856 = vunpack.c.l.b16 %v745
      %v857 = vunpack.c.l.b16 %v746
      %v858 = vunpack.c.l.b16 %v747
      %v859 = vunpack.c.l.b16 %v748
      %v860 = vunpack.c.l.b16 %v749
      %v861 = vunpack.c.l.b16 %v750
      %v862 = vpack.c.b16 %v831, %v830
      %v863 = vpack.c.b16 %v833, %v832
      %v864 = vpack.c.b16 %v835, %v834
      %v865 = vpack.c.b16 %v837, %v836
      %v866 = vpack.c.b16 %v839, %v838
      %v867 = vpack.c.b16 %v841, %v840
      %v868 = vpack.c.b16 %v843, %v842
      %v869 = vpack.c.b16 %v845, %v844
      %v870 = vpack.c.b16 %v847, %v846
      %v871 = vpack.c.b16 %v849, %v848
      %v872 = vpack.c.b16 %v851, %v850
      %v873 = vpack.c.b16 %v853, %v852
      %v874 = vpack.c.b16 %v855, %v854
      %v875 = vpack.c.b16 %v857, %v856
      %v876 = vpack.c.b16 %v859, %v858
      %v877 = vpack.c.b16 %v861, %v860
      %894 = vmatprep.subr.bf16.mxu0 0
      %895 = vmatpush1.bf16.msra.mxu0 %v869
      %896 = vmatprep.subr.bf16.mxu0 0
      %897 = vmatpush1.bf16.msra.mxu0 %v868
      %898 = vmatprep.subr.bf16.mxu0 0
      %899 = vmatpush1.bf16.msra.mxu0 %v867
      %900 = vmatprep.subr.bf16.mxu0 0
      %901 = vmatpush1.bf16.msra.mxu0 %v866
      %902 = vmatprep.subr.bf16.mxu0 0
      %903 = vmatpush1.bf16.msra.mxu0 %v865
      %904 = vmatprep.subr.bf16.mxu0 0
      %905 = vmatpush1.bf16.msra.mxu0 %v864
      %906 = vmatprep.subr.bf16.mxu0 0
      %907 = vmatpush1.bf16.msra.mxu0 %v863
      %908 = vmatprep.subr.bf16.mxu0 0
      %909 = vmatpush1.bf16.msra.mxu0 %v862
      %910 = vmatprep.subr.bf16.mxu0 0
      %911 = vmatpush2.bf16.msra.mxu0 %v877
      %912 = vmatprep.subr.bf16.mxu0 0
      %913 = vmatpush2.bf16.msra.mxu0 %v876
      %914 = vmatprep.subr.bf16.mxu0 0
      %915 = vmatpush2.bf16.msra.mxu0 %v875
      %916 = vmatprep.subr.bf16.mxu0 0
      %917 = vmatpush2.bf16.msra.mxu0 %v874
      %918 = vmatprep.subr.bf16.mxu0 0
      %919 = vmatpush2.bf16.msra.mxu0 %v873
      %920 = vmatprep.subr.bf16.mxu0 0
      %921 = vmatpush2.bf16.msra.mxu0 %v872
      %922 = vmatprep.subr.bf16.mxu0 0
      %923 = vmatpush2.bf16.msra.mxu0 %v871
      %924 = vmatprep.subr.bf16.mxu0 0
      %925 = vmatpush2.bf16.msra.mxu0 %v870
      %926 = vmatprep.mubr.bf16.mxu0 %v779
      %927 = vmatmul.mubr.bf16.gmra.mxu0 %v778
      %v928 = vpop.f32.mrf.mxu0
      %v929 = vadd.f32 0.0, %v928
      %v930 = vpop.f32.mrf.mxu0
      %v931 = vpop.f32.mrf.mxu0
      %v932 = vadd.f32 0.0, %v931
      %v933 = vpop.f32.mrf.mxu0
      %934 = vmatprep.mubr.bf16.mxu0 %v781
      %935 = vmatmul.mubr.bf16.gmra.mxu0 %v780
      %v936 = vpop.f32.mrf.mxu0
      %v937 = vadd.f32 0.0, %v936
      %v938 = vpop.f32.mrf.mxu0
      %v939 = vpop.f32.mrf.mxu0
      %v940 = vadd.f32 0.0, %v939
      %v941 = vpop.f32.mrf.mxu0
      %942 = vmatprep.mubr.bf16.mxu0 %v783
      %943 = vmatmul.mubr.bf16.gmra.mxu0 %v782
      %v944 = vpop.f32.mrf.mxu0
      %v945 = vadd.f32 0.0, %v944
      %v946 = vpop.f32.mrf.mxu0
      %v947 = vpop.f32.mrf.mxu0
      %v948 = vadd.f32 0.0, %v947
      %v949 = vpop.f32.mrf.mxu0
      %950 = vmatprep.mubr.bf16.mxu0 %v785
      %951 = vmatmul.mubr.bf16.gmra.mxu0 %v784
      %v952 = vpop.f32.mrf.mxu0
      %v953 = vadd.f32 0.0, %v952
      %v954 = vpop.f32.mrf.mxu0
      %v955 = vpop.f32.mrf.mxu0
      %v956 = vadd.f32 0.0, %v955
      %v957 = vpop.f32.mrf.mxu0
      %958 = vmatprep.mubr.bf16.mxu0 %v787
      %959 = vmatmul.mubr.bf16.gmra.mxu0 %v786
      %v960 = vpop.f32.mrf.mxu0
      %v961 = vadd.f32 0.0, %v960
      %v962 = vpop.f32.mrf.mxu0
      %v963 = vpop.f32.mrf.mxu0
      %v964 = vpop.f32.mrf.mxu0
      %965 = vdwg.mxu0
      %v966 = vadd.f32 %v671, %v929
      %v967 = vadd.f32 %v674, %v932
      %v968 = vadd.f32 %v679, %v937
      %v969 = vadd.f32 %v682, %v940
      %v970 = vadd.f32 %v687, %v945
      %v971 = vadd.f32 %v690, %v948
      %v972 = vadd.f32 %v695, %v953
      %v973 = vadd.f32 %v698, %v956
      %v974 = vadd.f32 %v703, %v961
      %v975 = vld [vmem:[%s708] sm:$0xf]
      %v976 = vld [vmem:[%s708 + $0x8] sm:$0xf]
      %v977 = vld [vmem:[%s708 + $0x10] sm:$0xf]
      %v978 = vld [vmem:[%s708 + $0x18] sm:$0xf]
      %v979 = vld [vmem:[%s708 + $0x20] sm:$0xf]
      %v980 = vld [vmem:[%s708 + $0x28] sm:$0xf]
      %v981 = vld [vmem:[%s708 + $0x30] sm:$0xf]
      %v982 = vld [vmem:[%s708 + $0x38] sm:$0xf]
      %v983 = vld [vmem:[%s708 + $0x40] sm:$0xf]
      %v984 = vld [vmem:[%s708 + $0x48] sm:$0x1]
      %s985 = scalar_lea.vmem %s2, 64
      %v986 = vld [vmem:[%s985] sm:$0xf]
      %v987 = vld [vmem:[%s985 + $0x4] sm:$0xf]
      %v988 = vld [vmem:[%s985 + $0x8] sm:$0xf]
      %v989 = vld [vmem:[%s985 + $0xc] sm:$0xf]
      %v990 = vld [vmem:[%s985 + $0x10] sm:$0xf]
      %v991 = vld [vmem:[%s985 + $0x14] sm:$0xf]
      %v992 = vld [vmem:[%s985 + $0x18] sm:$0xf]
      %v993 = vld [vmem:[%s985 + $0x1c] sm:$0xf]
      %v994 = vld [vmem:[%s985 + $0x20] sm:$0xf]
      %v995 = vld [vmem:[%s985 + $0x24] sm:$0xf]
      %v996 = vld [vmem:[%s985 + $0x28] sm:$0xf]
      %v997 = vld [vmem:[%s985 + $0x2c] sm:$0xf]
      %v998 = vld [vmem:[%s985 + $0x30] sm:$0xf]
      %v999 = vld [vmem:[%s985 + $0x34] sm:$0xf]
      %v1000 = vld [vmem:[%s985 + $0x38] sm:$0xf]
      %v1001 = vld [vmem:[%s985 + $0x3c] sm:$0xf]
      %v1012 = vunpack.c.l.b16 %v975
      %v1013 = vunpack.c.l.b16 %v976
      %v1014 = vunpack.c.l.b16 %v977
      %v1015 = vunpack.c.l.b16 %v978
      %v1016 = vunpack.c.l.b16 %v979
      %v1017 = vunpack.c.l.b16 %v980
      %v1018 = vunpack.c.l.b16 %v981
      %v1019 = vunpack.c.l.b16 %v982
      %v1020 = vunpack.c.l.b16 %v983
      %v1021 = vunpack.c.l.b16 %v984
      %v1022 = vpack.c.b16 %v1013, %v1012
      %v1023 = vpack.c.b16 %v1015, %v1014
      %v1024 = vpack.c.b16 %v1017, %v1016
      %v1025 = vpack.c.b16 %v1019, %v1018
      %v1026 = vpack.c.b16 %v1021, %v1020
      %v1028 = vshrl.u32 %v1022, 16
      %v1030 = vshll.u32 %v1022, 16
      %v1032 = vrot.slane %v1030, 1
      %v1033 = vor.u32 %v1028, %v1032
      %v1035 = vshll.u32 %v1023, 16
      %v1037 = vrot.slane %v1035, 1
      %v1038 = vsel %vm328, %v1033, %v1037
      %v1039 = vshrl.u32 %v1023, 16
      %v1041 = vor.u32 %v1039, %v1037
      %v1043 = vshll.u32 %v1024, 16
      %v1045 = vrot.slane %v1043, 1
      %v1046 = vsel %vm328, %v1041, %v1045
      %v1047 = vshrl.u32 %v1024, 16
      %v1049 = vor.u32 %v1047, %v1045
      %v1051 = vshll.u32 %v1025, 16
      %v1053 = vrot.slane %v1051, 1
      %v1054 = vsel %vm328, %v1049, %v1053
      %v1055 = vshrl.u32 %v1025, 16
      %v1057 = vor.u32 %v1055, %v1053
      %v1059 = vshll.u32 %v1026, 16
      %v1061 = vrot.slane %v1059, 1
      %v1062 = vsel %vm328, %v1057, %v1061
      %v1063 = vshrl.u32 %v1026, 16
      %v1065 = vor.u32 %v1063, %v1061
      %v1087 = vunpack.c.l.b16 %v986
      %v1088 = vunpack.c.l.b16 %v987
      %v1089 = vunpack.c.l.b16 %v988
      %v1090 = vunpack.c.l.b16 %v989
      %v1091 = vunpack.c.l.b16 %v990
      %v1092 = vunpack.c.l.b16 %v991
      %v1093 = vunpack.c.l.b16 %v992
      %v1094 = vunpack.c.l.b16 %v993
      %v1095 = vunpack.c.l.b16 %v994
      %v1096 = vunpack.c.l.b16 %v995
      %v1097 = vunpack.c.l.b16 %v996
      %v1098 = vunpack.c.l.b16 %v997
      %v1099 = vunpack.c.l.b16 %v998
      %v1100 = vunpack.c.l.b16 %v999
      %v1101 = vunpack.c.l.b16 %v1000
      %v1102 = vunpack.c.l.b16 %v1001
      %v1103 = vpack.c.b16 %v1088, %v1087
      %v1104 = vpack.c.b16 %v1090, %v1089
      %v1105 = vpack.c.b16 %v1092, %v1091
      %v1106 = vpack.c.b16 %v1094, %v1093
      %v1107 = vpack.c.b16 %v1096, %v1095
      %v1108 = vpack.c.b16 %v1098, %v1097
      %v1109 = vpack.c.b16 %v1100, %v1099
      %v1110 = vpack.c.b16 %v1102, %v1101
      %1119 = vmatprep.subr.bf16.mxu0 0
      %1120 = vmatpush1.bf16.msra.mxu0 %v1110
      %1121 = vmatprep.subr.bf16.mxu0 0
      %1122 = vmatpush1.bf16.msra.mxu0 %v1109
      %1123 = vmatprep.subr.bf16.mxu0 0
      %1124 = vmatpush1.bf16.msra.mxu0 %v1108
      %1125 = vmatprep.subr.bf16.mxu0 0
      %1126 = vmatpush1.bf16.msra.mxu0 %v1107
      %1127 = vmatprep.subr.bf16.mxu0 0
      %1128 = vmatpush1.bf16.msra.mxu0 %v1106
      %1129 = vmatprep.subr.bf16.mxu0 0
      %1130 = vmatpush1.bf16.msra.mxu0 %v1105
      %1131 = vmatprep.subr.bf16.mxu0 0
      %1132 = vmatpush1.bf16.msra.mxu0 %v1104
      %1133 = vmatprep.subr.bf16.mxu0 0
      %1134 = vmatpush1.bf16.msra.mxu0 %v1103
      %1135 = vmatprep.subr.bf16.mxu0 0
      %1136 = vmatpush2.bf16.msra.mxu0 0
      %1137 = vmatprep.subr.bf16.mxu0 0
      %1138 = vmatpush2.bf16.msra.mxu0 0
      %1139 = vmatprep.subr.bf16.mxu0 0
      %1140 = vmatpush2.bf16.msra.mxu0 0
      %1141 = vmatprep.subr.bf16.mxu0 0
      %1142 = vmatpush2.bf16.msra.mxu0 0
      %1143 = vmatprep.subr.bf16.mxu0 0
      %1144 = vmatpush2.bf16.msra.mxu0 0
      %1145 = vmatprep.subr.bf16.mxu0 0
      %1146 = vmatpush2.bf16.msra.mxu0 0
      %1147 = vmatprep.subr.bf16.mxu0 0
      %1148 = vmatpush2.bf16.msra.mxu0 0
      %1149 = vmatprep.subr.bf16.mxu0 0
      %1150 = vmatpush2.bf16.msra.mxu0 0
      %1151 = vmatprep.mubr.bf16.mxu0 0
      %1152 = vmatmul.mubr.bf16.gmra.mxu0 %v1038
      %v1153 = vpop.f32.mrf.mxu0
      %v1154 = vadd.f32 0.0, %v1153
      %v1155 = vpop.f32.mrf.mxu0
      %v1156 = vpop.f32.mrf.mxu0
      %v1157 = vadd.f32 0.0, %v1156
      %v1158 = vpop.f32.mrf.mxu0
      %1159 = vmatprep.mubr.bf16.mxu0 0
      %1160 = vmatmul.mubr.bf16.gmra.mxu0 %v1046
      %v1161 = vpop.f32.mrf.mxu0
      %v1162 = vadd.f32 0.0, %v1161
      %v1163 = vpop.f32.mrf.mxu0
      %v1164 = vpop.f32.mrf.mxu0
      %v1165 = vadd.f32 0.0, %v1164
      %v1166 = vpop.f32.mrf.mxu0
      %1167 = vmatprep.mubr.bf16.mxu0 0
      %1168 = vmatmul.mubr.bf16.gmra.mxu0 %v1054
      %v1169 = vpop.f32.mrf.mxu0
      %v1170 = vadd.f32 0.0, %v1169
      %v1171 = vpop.f32.mrf.mxu0
      %v1172 = vpop.f32.mrf.mxu0
      %v1173 = vadd.f32 0.0, %v1172
      %v1174 = vpop.f32.mrf.mxu0
      %1175 = vmatprep.mubr.bf16.mxu0 0
      %1176 = vmatmul.mubr.bf16.gmra.mxu0 %v1062
      %v1177 = vpop.f32.mrf.mxu0
      %v1178 = vadd.f32 0.0, %v1177
      %v1179 = vpop.f32.mrf.mxu0
      %v1180 = vpop.f32.mrf.mxu0
      %v1181 = vadd.f32 0.0, %v1180
      %v1182 = vpop.f32.mrf.mxu0
      %1183 = vmatprep.mubr.bf16.mxu0 0
      %1184 = vmatmul.mubr.bf16.gmra.mxu0 %v1065
      %v1185 = vpop.f32.mrf.mxu0
      %v1186 = vadd.f32 0.0, %v1185
      %v1187 = vpop.f32.mrf.mxu0
      %v1188 = vpop.f32.mrf.mxu0
      %v1189 = vpop.f32.mrf.mxu0
      %1190 = vdwg.mxu0
      %v1191 = vadd.f32 %v966, %v1154
      %v1192 = vadd.f32 %v967, %v1157
      %v1193 = vadd.f32 %v968, %v1162
      %v1194 = vadd.f32 %v969, %v1165
      %v1195 = vadd.f32 %v970, %v1170
      %v1196 = vadd.f32 %v971, %v1173
      %v1197 = vadd.f32 %v972, %v1178
      %v1198 = vadd.f32 %v973, %v1181
      %v1199 = vadd.f32 %v974, %v1186
      %v1200 = vld [vmem:[%s224 + $0x8] sm:$0xff]
      %v1201 = vld [vmem:[%s224 + $0x10] sm:$0xff]
      %v1202 = vld [vmem:[%s224 + $0x18] sm:$0xff]
      %v1203 = vld [vmem:[%s224 + $0x20] sm:$0xff]
      %v1204 = vld [vmem:[%s224 + $0x28] sm:$0xff]
      %v1205 = vld [vmem:[%s224 + $0x30] sm:$0xff]
      %v1206 = vld [vmem:[%s224 + $0x38] sm:$0xff]
      %v1207 = vld [vmem:[%s224 + $0x40] sm:$0xff]
      %v1208 = vld [vmem:[%s224 + $0x48] sm:$0xff]
      %v1209 = vld [vmem:[%s224 + $0x50] sm:$0x11]
      %s1210 = scalar_lea.vmem %s1, 256
      %v1211 = vld [vmem:[%s1210] sm:$0xf]
      %v1212 = vld [vmem:[%s1210 + $0x4] sm:$0xf]
      %v1213 = vld [vmem:[%s1210 + $0x8] sm:$0xf]
      %v1214 = vld [vmem:[%s1210 + $0xc] sm:$0xf]
      %v1215 = vld [vmem:[%s1210 + $0x10] sm:$0xf]
      %v1216 = vld [vmem:[%s1210 + $0x14] sm:$0xf]
      %v1217 = vld [vmem:[%s1210 + $0x18] sm:$0xf]
      %v1218 = vld [vmem:[%s1210 + $0x1c] sm:$0xf]
      %v1219 = vld [vmem:[%s1210 + $0x20] sm:$0xf]
      %v1220 = vld [vmem:[%s1210 + $0x24] sm:$0xf]
      %v1221 = vld [vmem:[%s1210 + $0x28] sm:$0xf]
      %v1222 = vld [vmem:[%s1210 + $0x2c] sm:$0xf]
      %v1223 = vld [vmem:[%s1210 + $0x30] sm:$0xf]
      %v1224 = vld [vmem:[%s1210 + $0x34] sm:$0xf]
      %v1225 = vld [vmem:[%s1210 + $0x38] sm:$0xf]
      %v1226 = vld [vmem:[%s1210 + $0x3c] sm:$0xf]
      %v1227 = vld [vmem:[%s1210 + $0x40] sm:$0xf]
      %v1228 = vld [vmem:[%s1210 + $0x44] sm:$0xf]
      %v1229 = vld [vmem:[%s1210 + $0x48] sm:$0xf]
      %v1230 = vld [vmem:[%s1210 + $0x4c] sm:$0xf]
      %v1231 = vld [vmem:[%s1210 + $0x50] sm:$0xf]
      %v1232 = vld [vmem:[%s1210 + $0x54] sm:$0xf]
      %v1233 = vld [vmem:[%s1210 + $0x58] sm:$0xf]
      %v1234 = vld [vmem:[%s1210 + $0x5c] sm:$0xf]
      %v1235 = vld [vmem:[%s1210 + $0x60] sm:$0xf]
      %v1236 = vld [vmem:[%s1210 + $0x64] sm:$0xf]
      %v1237 = vld [vmem:[%s1210 + $0x68] sm:$0xf]
      %v1238 = vld [vmem:[%s1210 + $0x6c] sm:$0xf]
      %v1239 = vld [vmem:[%s1210 + $0x70] sm:$0xf]
      %v1240 = vld [vmem:[%s1210 + $0x74] sm:$0xf]
      %v1241 = vld [vmem:[%s1210 + $0x78] sm:$0xf]
      %v1242 = vld [vmem:[%s1210 + $0x7c] sm:$0xf]
      %v1253 = vunpack.c.l.b16 %v1200
      %v1254 = vunpack.c.h.b16 %v1200
      %v1255 = vunpack.c.l.b16 %v1201
      %v1256 = vunpack.c.h.b16 %v1201
      %v1257 = vunpack.c.l.b16 %v1202
      %v1258 = vunpack.c.h.b16 %v1202
      %v1259 = vunpack.c.l.b16 %v1203
      %v1260 = vunpack.c.h.b16 %v1203
      %v1261 = vunpack.c.l.b16 %v1204
      %v1262 = vunpack.c.h.b16 %v1204
      %v1263 = vunpack.c.l.b16 %v1205
      %v1264 = vunpack.c.h.b16 %v1205
      %v1265 = vunpack.c.l.b16 %v1206
      %v1266 = vunpack.c.h.b16 %v1206
      %v1267 = vunpack.c.l.b16 %v1207
      %v1268 = vunpack.c.h.b16 %v1207
      %v1269 = vunpack.c.l.b16 %v1208
      %v1270 = vunpack.c.h.b16 %v1208
      %v1271 = vunpack.c.l.b16 %v1209
      %v1272 = vunpack.c.h.b16 %v1209
      %v1273 = vpack.c.b16 %v1255, %v1253
      %v1274 = vpack.c.b16 %v1256, %v1254
      %v1275 = vpack.c.b16 %v1259, %v1257
      %v1276 = vpack.c.b16 %v1260, %v1258
      %v1277 = vpack.c.b16 %v1263, %v1261
      %v1278 = vpack.c.b16 %v1264, %v1262
      %v1279 = vpack.c.b16 %v1267, %v1265
      %v1280 = vpack.c.b16 %v1268, %v1266
      %v1281 = vpack.c.b16 %v1271, %v1269
      %v1282 = vpack.c.b16 %v1272, %v1270
      %v1284 = vshrl.u32 %v1273, 16
      %v1286 = vshll.u32 %v1273, 16
      %v1288 = vrot.slane %v1286, 1
      %v1289 = vor.u32 %v1284, %v1288
      %v1291 = vshll.u32 %v1275, 16
      %v1293 = vrot.slane %v1291, 1
      %v1294 = vsel %vm328, %v1289, %v1293
      %v1296 = vshrl.u32 %v1274, 16
      %v1298 = vshll.u32 %v1274, 16
      %v1300 = vrot.slane %v1298, 1
      %v1301 = vor.u32 %v1296, %v1300
      %v1303 = vshll.u32 %v1276, 16
      %v1305 = vrot.slane %v1303, 1
      %v1306 = vsel %vm328, %v1301, %v1305
      %v1307 = vshrl.u32 %v1275, 16
      %v1309 = vor.u32 %v1307, %v1293
      %v1311 = vshll.u32 %v1277, 16
      %v1313 = vrot.slane %v1311, 1
      %v1314 = vsel %vm328, %v1309, %v1313
      %v1315 = vshrl.u32 %v1276, 16
      %v1317 = vor.u32 %v1315, %v1305
      %v1319 = vshll.u32 %v1278, 16
      %v1321 = vrot.slane %v1319, 1
      %v1322 = vsel %vm328, %v1317, %v1321
      %v1323 = vshrl.u32 %v1277, 16
      %v1325 = vor.u32 %v1323, %v1313
      %v1327 = vshll.u32 %v1279, 16
      %v1329 = vrot.slane %v1327, 1
      %v1330 = vsel %vm328, %v1325, %v1329
      %v1331 = vshrl.u32 %v1278, 16
      %v1333 = vor.u32 %v1331, %v1321
      %v1335 = vshll.u32 %v1280, 16
      %v1337 = vrot.slane %v1335, 1
      %v1338 = vsel %vm328, %v1333, %v1337
      %v1339 = vshrl.u32 %v1279, 16
      %v1341 = vor.u32 %v1339, %v1329
      %v1343 = vshll.u32 %v1281, 16
      %v1345 = vrot.slane %v1343, 1
      %v1346 = vsel %vm328, %v1341, %v1345
      %v1347 = vshrl.u32 %v1280, 16
      %v1349 = vor.u32 %v1347, %v1337
      %v1351 = vshll.u32 %v1282, 16
      %v1353 = vrot.slane %v1351, 1
      %v1354 = vsel %vm328, %v1349, %v1353
      %v1355 = vshrl.u32 %v1281, 16
      %v1357 = vor.u32 %v1355, %v1345
      %v1358 = vshrl.u32 %v1282, 16
      %v1360 = vor.u32 %v1358, %v1353
      %v1403 = vunpack.c.l.b16 %v1211
      %v1404 = vunpack.c.l.b16 %v1212
      %v1405 = vunpack.c.l.b16 %v1213
      %v1406 = vunpack.c.l.b16 %v1214
      %v1407 = vunpack.c.l.b16 %v1215
      %v1408 = vunpack.c.l.b16 %v1216
      %v1409 = vunpack.c.l.b16 %v1217
      %v1410 = vunpack.c.l.b16 %v1218
      %v1411 = vunpack.c.l.b16 %v1219
      %v1412 = vunpack.c.l.b16 %v1220
      %v1413 = vunpack.c.l.b16 %v1221
      %v1414 = vunpack.c.l.b16 %v1222
      %v1415 = vunpack.c.l.b16 %v1223
      %v1416 = vunpack.c.l.b16 %v1224
      %v1417 = vunpack.c.l.b16 %v1225
      %v1418 = vunpack.c.l.b16 %v1226
      %v1419 = vunpack.c.l.b16 %v1227
      %v1420 = vunpack.c.l.b16 %v1228
      %v1421 = vunpack.c.l.b16 %v1229
      %v1422 = vunpack.c.l.b16 %v1230
      %v1423 = vunpack.c.l.b16 %v1231
      %v1424 = vunpack.c.l.b16 %v1232
      %v1425 = vunpack.c.l.b16 %v1233
      %v1426 = vunpack.c.l.b16 %v1234
      %v1427 = vunpack.c.l.b16 %v1235
      %v1428 = vunpack.c.l.b16 %v1236
      %v1429 = vunpack.c.l.b16 %v1237
      %v1430 = vunpack.c.l.b16 %v1238
      %v1431 = vunpack.c.l.b16 %v1239
      %v1432 = vunpack.c.l.b16 %v1240
      %v1433 = vunpack.c.l.b16 %v1241
      %v1434 = vunpack.c.l.b16 %v1242
      %v1435 = vpack.c.b16 %v1404, %v1403
      %v1436 = vpack.c.b16 %v1406, %v1405
      %v1437 = vpack.c.b16 %v1408, %v1407
      %v1438 = vpack.c.b16 %v1410, %v1409
      %v1439 = vpack.c.b16 %v1412, %v1411
      %v1440 = vpack.c.b16 %v1414, %v1413
      %v1441 = vpack.c.b16 %v1416, %v1415
      %v1442 = vpack.c.b16 %v1418, %v1417
      %v1443 = vpack.c.b16 %v1420, %v1419
      %v1444 = vpack.c.b16 %v1422, %v1421
      %v1445 = vpack.c.b16 %v1424, %v1423
      %v1446 = vpack.c.b16 %v1426, %v1425
      %v1447 = vpack.c.b16 %v1428, %v1427
      %v1448 = vpack.c.b16 %v1430, %v1429
      %v1449 = vpack.c.b16 %v1432, %v1431
      %v1450 = vpack.c.b16 %v1434, %v1433
      %1467 = vmatprep.subr.bf16.mxu0 0
      %1468 = vmatpush1.bf16.msra.mxu0 %v1442
      %1469 = vmatprep.subr.bf16.mxu0 0
      %1470 = vmatpush1.bf16.msra.mxu0 %v1441
      %1471 = vmatprep.subr.bf16.mxu0 0
      %1472 = vmatpush1.bf16.msra.mxu0 %v1440
      %1473 = vmatprep.subr.bf16.mxu0 0
      %1474 = vmatpush1.bf16.msra.mxu0 %v1439
      %1475 = vmatprep.subr.bf16.mxu0 0
      %1476 = vmatpush1.bf16.msra.mxu0 %v1438
      %1477 = vmatprep.subr.bf16.mxu0 0
      %1478 = vmatpush1.bf16.msra.mxu0 %v1437
      %1479 = vmatprep.subr.bf16.mxu0 0
      %1480 = vmatpush1.bf16.msra.mxu0 %v1436
      %1481 = vmatprep.subr.bf16.mxu0 0
      %1482 = vmatpush1.bf16.msra.mxu0 %v1435
      %1483 = vmatprep.subr.bf16.mxu0 0
      %1484 = vmatpush2.bf16.msra.mxu0 %v1450
      %1485 = vmatprep.subr.bf16.mxu0 0
      %1486 = vmatpush2.bf16.msra.mxu0 %v1449
      %1487 = vmatprep.subr.bf16.mxu0 0
      %1488 = vmatpush2.bf16.msra.mxu0 %v1448
      %1489 = vmatprep.subr.bf16.mxu0 0
      %1490 = vmatpush2.bf16.msra.mxu0 %v1447
      %1491 = vmatprep.subr.bf16.mxu0 0
      %1492 = vmatpush2.bf16.msra.mxu0 %v1446
      %1493 = vmatprep.subr.bf16.mxu0 0
      %1494 = vmatpush2.bf16.msra.mxu0 %v1445
      %1495 = vmatprep.subr.bf16.mxu0 0
      %1496 = vmatpush2.bf16.msra.mxu0 %v1444
      %1497 = vmatprep.subr.bf16.mxu0 0
      %1498 = vmatpush2.bf16.msra.mxu0 %v1443
      %1499 = vmatprep.mubr.bf16.mxu0 %v1306
      %1500 = vmatmul.mubr.bf16.gmra.mxu0 %v1294
      %v1501 = vpop.f32.mrf.mxu0
      %v1502 = vadd.f32 0.0, %v1501
      %v1503 = vpop.f32.mrf.mxu0
      %v1504 = vpop.f32.mrf.mxu0
      %v1505 = vadd.f32 0.0, %v1504
      %v1506 = vpop.f32.mrf.mxu0
      %1507 = vmatprep.mubr.bf16.mxu0 %v1322
      %1508 = vmatmul.mubr.bf16.gmra.mxu0 %v1314
      %v1509 = vpop.f32.mrf.mxu0
      %v1510 = vadd.f32 0.0, %v1509
      %v1511 = vpop.f32.mrf.mxu0
      %v1512 = vpop.f32.mrf.mxu0
      %v1513 = vadd.f32 0.0, %v1512
      %v1514 = vpop.f32.mrf.mxu0
      %1515 = vmatprep.mubr.bf16.mxu0 %v1338
      %1516 = vmatmul.mubr.bf16.gmra.mxu0 %v1330
      %v1517 = vpop.f32.mrf.mxu0
      %v1518 = vadd.f32 0.0, %v1517
      %v1519 = vpop.f32.mrf.mxu0
      %v1520 = vpop.f32.mrf.mxu0
      %v1521 = vadd.f32 0.0, %v1520
      %v1522 = vpop.f32.mrf.mxu0
      %1523 = vmatprep.mubr.bf16.mxu0 %v1354
      %1524 = vmatmul.mubr.bf16.gmra.mxu0 %v1346
      %v1525 = vpop.f32.mrf.mxu0
      %v1526 = vadd.f32 0.0, %v1525
      %v1527 = vpop.f32.mrf.mxu0
      %v1528 = vpop.f32.mrf.mxu0
      %v1529 = vadd.f32 0.0, %v1528
      %v1530 = vpop.f32.mrf.mxu0
      %1531 = vmatprep.mubr.bf16.mxu0 %v1360
      %1532 = vmatmul.mubr.bf16.gmra.mxu0 %v1357
      %v1533 = vpop.f32.mrf.mxu0
      %v1534 = vadd.f32 0.0, %v1533
      %v1535 = vpop.f32.mrf.mxu0
      %v1536 = vpop.f32.mrf.mxu0
      %v1537 = vpop.f32.mrf.mxu0
      %1538 = vdwg.mxu0
      %v1539 = vadd.f32 %v1191, %v1502
      %v1540 = vadd.f32 %v1192, %v1505
      %v1541 = vadd.f32 %v1193, %v1510
      %v1542 = vadd.f32 %v1194, %v1513
      %v1543 = vadd.f32 %v1195, %v1518
      %v1544 = vadd.f32 %v1196, %v1521
      %v1545 = vadd.f32 %v1197, %v1526
      %v1546 = vadd.f32 %v1198, %v1529
      %v1547 = vadd.f32 %v1199, %v1534
      %v1548 = vld [vmem:[%s224 + $0x8] sm:$0xe]
      %v1549 = vld [vmem:[%s224 + $0x10] sm:$0xf]
      %v1550 = vld [vmem:[%s224 + $0x18] sm:$0xf]
      %v1551 = vld [vmem:[%s224 + $0x20] sm:$0xf]
      %v1552 = vld [vmem:[%s224 + $0x28] sm:$0xf]
      %v1553 = vld [vmem:[%s224 + $0x30] sm:$0xf]
      %v1554 = vld [vmem:[%s224 + $0x38] sm:$0xf]
      %v1555 = vld [vmem:[%s224 + $0x40] sm:$0xf]
      %v1556 = vld [vmem:[%s224 + $0x48] sm:$0xf]
      %v1557 = vld [vmem:[%s224 + $0x50] sm:$0x1]
      %s1558 = scalar_lea.vmem %s2, 128
      %v1559 = vld [vmem:[%s1558] sm:$0xf]
      %v1560 = vld [vmem:[%s1558 + $0x4] sm:$0xf]
      %v1561 = vld [vmem:[%s1558 + $0x8] sm:$0xf]
      %v1562 = vld [vmem:[%s1558 + $0xc] sm:$0xf]
      %v1563 = vld [vmem:[%s1558 + $0x10] sm:$0xf]
      %v1564 = vld [vmem:[%s1558 + $0x14] sm:$0xf]
      %v1565 = vld [vmem:[%s1558 + $0x18] sm:$0xf]
      %v1566 = vld [vmem:[%s1558 + $0x1c] sm:$0xf]
      %v1567 = vld [vmem:[%s1558 + $0x20] sm:$0xf]
      %v1568 = vld [vmem:[%s1558 + $0x24] sm:$0xf]
      %v1569 = vld [vmem:[%s1558 + $0x28] sm:$0xf]
      %v1570 = vld [vmem:[%s1558 + $0x2c] sm:$0xf]
      %v1571 = vld [vmem:[%s1558 + $0x30] sm:$0xf]
      %v1572 = vld [vmem:[%s1558 + $0x34] sm:$0xf]
      %v1573 = vld [vmem:[%s1558 + $0x38] sm:$0xf]
      %v1574 = vld [vmem:[%s1558 + $0x3c] sm:$0xf]
      %v1585 = vunpack.c.l.b16 %v1548
      %v1586 = vunpack.c.l.b16 %v1549
      %v1587 = vunpack.c.l.b16 %v1550
      %v1588 = vunpack.c.l.b16 %v1551
      %v1589 = vunpack.c.l.b16 %v1552
      %v1590 = vunpack.c.l.b16 %v1553
      %v1591 = vunpack.c.l.b16 %v1554
      %v1592 = vunpack.c.l.b16 %v1555
      %v1593 = vunpack.c.l.b16 %v1556
      %v1594 = vunpack.c.l.b16 %v1557
      %v1595 = vpack.c.b16 %v1586, %v1585
      %v1596 = vpack.c.b16 %v1588, %v1587
      %v1597 = vpack.c.b16 %v1590, %v1589
      %v1598 = vpack.c.b16 %v1592, %v1591
      %v1599 = vpack.c.b16 %v1594, %v1593
      %vm1600 = vcmask 1046528
      %v1601 = vrot.slane %v1595, 1
      %v1602 = vrot.slane %v1596, 1
      %v1603 = vsel %vm1600, %v1601, %v1602
      %v1604 = vrot.slane %v1597, 1
      %v1605 = vsel %vm1600, %v1602, %v1604
      %v1606 = vrot.slane %v1598, 1
      %v1607 = vsel %vm1600, %v1604, %v1606
      %v1608 = vrot.slane %v1599, 1
      %v1609 = vsel %vm1600, %v1606, %v1608
      %v1631 = vunpack.c.l.b16 %v1559
      %v1632 = vunpack.c.l.b16 %v1560
      %v1633 = vunpack.c.l.b16 %v1561
      %v1634 = vunpack.c.l.b16 %v1562
      %v1635 = vunpack.c.l.b16 %v1563
      %v1636 = vunpack.c.l.b16 %v1564
      %v1637 = vunpack.c.l.b16 %v1565
      %v1638 = vunpack.c.l.b16 %v1566
      %v1639 = vunpack.c.l.b16 %v1567
      %v1640 = vunpack.c.l.b16 %v1568
      %v1641 = vunpack.c.l.b16 %v1569
      %v1642 = vunpack.c.l.b16 %v1570
      %v1643 = vunpack.c.l.b16 %v1571
      %v1644 = vunpack.c.l.b16 %v1572
      %v1645 = vunpack.c.l.b16 %v1573
      %v1646 = vunpack.c.l.b16 %v1574
      %v1647 = vpack.c.b16 %v1632, %v1631
      %v1648 = vpack.c.b16 %v1634, %v1633
      %v1649 = vpack.c.b16 %v1636, %v1635
      %v1650 = vpack.c.b16 %v1638, %v1637
      %v1651 = vpack.c.b16 %v1640, %v1639
      %v1652 = vpack.c.b16 %v1642, %v1641
      %v1653 = vpack.c.b16 %v1644, %v1643
      %v1654 = vpack.c.b16 %v1646, %v1645
      %1663 = vmatprep.subr.bf16.mxu0 0
      %1664 = vmatpush1.bf16.msra.mxu0 %v1654
      %1665 = vmatprep.subr.bf16.mxu0 0
      %1666 = vmatpush1.bf16.msra.mxu0 %v1653
      %1667 = vmatprep.subr.bf16.mxu0 0
      %1668 = vmatpush1.bf16.msra.mxu0 %v1652
      %1669 = vmatprep.subr.bf16.mxu0 0
      %1670 = vmatpush1.bf16.msra.mxu0 %v1651
      %1671 = vmatprep.subr.bf16.mxu0 0
      %1672 = vmatpush1.bf16.msra.mxu0 %v1650
      %1673 = vmatprep.subr.bf16.mxu0 0
      %1674 = vmatpush1.bf16.msra.mxu0 %v1649
      %1675 = vmatprep.subr.bf16.mxu0 0
      %1676 = vmatpush1.bf16.msra.mxu0 %v1648
      %1677 = vmatprep.subr.bf16.mxu0 0
      %1678 = vmatpush1.bf16.msra.mxu0 %v1647
      %1679 = vmatprep.subr.bf16.mxu0 0
      %1680 = vmatpush2.bf16.msra.mxu0 0
      %1681 = vmatprep.subr.bf16.mxu0 0
      %1682 = vmatpush2.bf16.msra.mxu0 0
      %1683 = vmatprep.subr.bf16.mxu0 0
      %1684 = vmatpush2.bf16.msra.mxu0 0
      %1685 = vmatprep.subr.bf16.mxu0 0
      %1686 = vmatpush2.bf16.msra.mxu0 0
      %1687 = vmatprep.subr.bf16.mxu0 0
      %1688 = vmatpush2.bf16.msra.mxu0 0
      %1689 = vmatprep.subr.bf16.mxu0 0
      %1690 = vmatpush2.bf16.msra.mxu0 0
      %1691 = vmatprep.subr.bf16.mxu0 0
      %1692 = vmatpush2.bf16.msra.mxu0 0
      %1693 = vmatprep.subr.bf16.mxu0 0
      %1694 = vmatpush2.bf16.msra.mxu0 0
      %1695 = vmatprep.mubr.bf16.mxu0 0
      %1696 = vmatmul.mubr.bf16.gmra.mxu0 %v1603
      %v1697 = vpop.f32.mrf.mxu0
      %v1698 = vadd.f32 0.0, %v1697
      %v1699 = vpop.f32.mrf.mxu0
      %v1700 = vpop.f32.mrf.mxu0
      %v1701 = vadd.f32 0.0, %v1700
      %v1702 = vpop.f32.mrf.mxu0
      %1703 = vmatprep.mubr.bf16.mxu0 0
      %1704 = vmatmul.mubr.bf16.gmra.mxu0 %v1605
      %v1705 = vpop.f32.mrf.mxu0
      %v1706 = vadd.f32 0.0, %v1705
      %v1707 = vpop.f32.mrf.mxu0
      %v1708 = vpop.f32.mrf.mxu0
      %v1709 = vadd.f32 0.0, %v1708
      %v1710 = vpop.f32.mrf.mxu0
      %1711 = vmatprep.mubr.bf16.mxu0 0
      %1712 = vmatmul.mubr.bf16.gmra.mxu0 %v1607
      %v1713 = vpop.f32.mrf.mxu0
      %v1714 = vadd.f32 0.0, %v1713
      %v1715 = vpop.f32.mrf.mxu0
      %v1716 = vpop.f32.mrf.mxu0
      %v1717 = vadd.f32 0.0, %v1716
      %v1718 = vpop.f32.mrf.mxu0
      %1719 = vmatprep.mubr.bf16.mxu0 0
      %1720 = vmatmul.mubr.bf16.gmra.mxu0 %v1609
      %v1721 = vpop.f32.mrf.mxu0
      %v1722 = vadd.f32 0.0, %v1721
      %v1723 = vpop.f32.mrf.mxu0
      %v1724 = vpop.f32.mrf.mxu0
      %v1725 = vadd.f32 0.0, %v1724
      %v1726 = vpop.f32.mrf.mxu0
      %1727 = vmatprep.mubr.bf16.mxu0 0
      %1728 = vmatmul.mubr.bf16.gmra.mxu0 %v1608
      %v1729 = vpop.f32.mrf.mxu0
      %v1730 = vadd.f32 0.0, %v1729
      %v1731 = vpop.f32.mrf.mxu0
      %v1732 = vpop.f32.mrf.mxu0
      %v1733 = vpop.f32.mrf.mxu0
      %1734 = vdwg.mxu0
      %v1735 = vadd.f32 %v1539, %v1698
      %v1736 = vadd.f32 %v1540, %v1701
      %v1737 = vadd.f32 %v1541, %v1706
      %v1738 = vadd.f32 %v1542, %v1709
      %v1739 = vadd.f32 %v1543, %v1714
      %v1740 = vadd.f32 %v1544, %v1717
      %v1741 = vadd.f32 %v1545, %v1722
      %v1742 = vadd.f32 %v1546, %v1725
      %v1743 = vadd.f32 %v1547, %v1730
      %v1744 = vld [vmem:[%s3] sm:$0x1]
      %v1746 = vlaneseq
      %v1747 = vshrl.u32 %v1746, 7
      %v1748 = vsub.s32 0, %v1747
      %v1749 = vrot.slane %v1744, %v1748
      %v1751 = vadd.f32 %v1735, %v1749
      %v1752 = vadd.f32 %v1736, %v1749
      %v1753 = vadd.f32 %v1737, %v1749
      %v1754 = vadd.f32 %v1738, %v1749
      %v1755 = vadd.f32 %v1739, %v1749
      %v1756 = vadd.f32 %v1740, %v1749
      %v1757 = vadd.f32 %v1741, %v1749
      %v1758 = vadd.f32 %v1742, %v1749
      %v1759 = vadd.f32 %v1743, %v1749
      %v1760 = vmax.f32 %v1751, 0.0
      %v1761 = vmax.f32 %v1752, 0.0
      %v1762 = vmax.f32 %v1753, 0.0
      %v1763 = vmax.f32 %v1754, 0.0
      %v1764 = vmax.f32 %v1755, 0.0
      %v1765 = vmax.f32 %v1756, 0.0
      %v1766 = vmax.f32 %v1757, 0.0
      %v1767 = vmax.f32 %v1758, 0.0
      %v1768 = vmax.f32 %v1759, 0.0
      %v1769 = vpack.c.bf16 %v1761, %v1760
      %v1770 = vpack.c.bf16 %v1763, %v1762
      %v1771 = vpack.c.bf16 %v1765, %v1764
      %v1772 = vpack.c.bf16 %v1767, %v1766
      %v1773 = vpack.c.bf16 %v1768, %v1768
      %v1779 = vunpack.c.l.b16 %v1769
      %v1780 = vunpack.c.h.b16 %v1769
      %v1781 = vunpack.c.l.b16 %v1770
      %v1782 = vunpack.c.h.b16 %v1770
      %v1783 = vunpack.c.l.b16 %v1771
      %v1784 = vunpack.c.h.b16 %v1771
      %v1785 = vunpack.c.l.b16 %v1772
      %v1786 = vunpack.c.h.b16 %v1772
      %v1787 = vunpack.c.l.b16 %v1773
      %v1788 = vpack.c.b16 %v1779, %v1779
      %v1789 = vpack.c.b16 %v1780, %v1780
      %v1790 = vpack.c.b16 %v1781, %v1781
      %v1791 = vpack.c.b16 %v1782, %v1782
      %v1792 = vpack.c.b16 %v1783, %v1783
      %v1793 = vpack.c.b16 %v1784, %v1784
      %v1794 = vpack.c.b16 %v1785, %v1785
      %v1795 = vpack.c.b16 %v1786, %v1786
      %v1796 = vpack.c.b16 %v1787, %v1787
      %1806 = vst [vmem:[%s233] sm:$0xf] %v1788
      %1807 = vst [vmem:[%s233 + $0x4] sm:$0xf] %v1789
      %1808 = vst [vmem:[%s233 + $0x8] sm:$0xf] %v1790
      %1809 = vst [vmem:[%s233 + $0xc] sm:$0xf] %v1791
      %1810 = vst [vmem:[%s233 + $0x10] sm:$0xf] %v1792
      %1811 = vst [vmem:[%s233 + $0x14] sm:$0xf] %v1793
      %1812 = vst [vmem:[%s233 + $0x18] sm:$0xf] %v1794
      %1813 = vst [vmem:[%s233 + $0x1c] sm:$0xf] %v1795
      %1814 = vst [vmem:[%s233 + $0x20] sm:$0xf] %v1796
      %s1815 = smul.u32 9, %s20
      %p1816 = scmp.lt.s32.totalorder %s19, 1
      %s1817 = scalar_select %p1816, %s19, 1
      %p1818 = scmp.lt.s32.totalorder %s1815, 8
      %s1819 = scalar_select %p1818, %s1815, 8
      %s1820 = smul.addr %s1817, 9
      %s1821 = sadd.s32 %s1819, %s1820
      %s1822 = smul.addr %s1821, 4
      %s1823 = scalar_lea.vmem %s4, %s1822
      // Predicated region
      $region37: #{backbone_base_forward.6} parent=35 // pred_check
        %p1824 = pneg %p138
      $region38: #{backbone_base_forward.6} parent=35 // pred_check_branch
        %1826 = sbr.rel (%p1824) target = $region40
      $region39: #{backbone_base_forward.6} parent=35 // pred_region
        %s1827 = smul.u32 9, %s20
      $region40: #{backbone_base_forward.6} parent=35 // pred_fallthru
        _
    $region36: #{backbone_base_forward.6} parent=5 // pred_fallthru
      _
    %p1828 = scmp.le.s32.totalorder 2, %s10
    // Predicated region
    $region41: #{backbone_base_forward.6} parent=5 // pred_check
      %p1829 = pneg %p1828
    $region42: #{backbone_base_forward.6} parent=5 // pred_check_branch
      %1831 = sbr.rel (%p1829) target = $region44
    $region43: #{backbone_base_forward.6} parent=5 // pred_region
      %s1832 = ssub.s32 %s10, 2
      // Predicated region
      $region45: #{backbone_base_forward.6} parent=43 // pred_check
        %p1833 = pneg %p144
      $region46: #{backbone_base_forward.6} parent=43 // pred_check_branch
        %1835 = sbr.rel (%p1833) target = $region48
      $region47: #{backbone_base_forward.6} parent=43 // pred_region
        %s1836 = smul.u32 9, %s22
        %p1837 = scmp.lt.s32.totalorder %s21, 1
        %s1838 = scalar_select %p1837, %s21, 1
        %p1839 = scmp.lt.s32.totalorder %s1836, 8
        %s1840 = scalar_select %p1839, %s1836, 8
        %s1841 = smul.addr %s1838, 9
        %s1842 = sadd.s32 %s1840, %s1841
        %s1843 = smul.addr %s1842, 4
        %s1844 = scalar_lea.vmem %s4, %s1843
      $region48: #{backbone_base_forward.6} parent=43 // pred_fallthru
        _
    $region44: #{backbone_base_forward.6} parent=5 // pred_fallthru
      _
  $region6: #{backbone_base_forward.6} parent=0 // loop_footer
    %s14 = sadd.s32 1, %s10
  $region7: #{backbone_base_forward.6} parent=0 // loop_footer_branch
    %9 = sbr.rel target = $region3
  $region8: #{backbone_base_forward.6} parent=0 // loop_exit
    _

// kernel: backbone_base_forward.7
$region0: #{backbone_base_forward.7}
  #allocation0 [shape = 'u32[]', space=smem, size = 0x4, offset = 0x4, fixed_abs, tag = 'smem constant byte address 0x4 - core index']
  #allocation1 [shape = 'u32[144,128]{1,0:T(1,128)}', space=vmem, size = 0x12000, scoped, tag = 'internal scratch']
  %s0 = inlined_call_operand.vmem [shape: bf16[2,1,2,30,256], index: 0, kind: input, shape index: {}]
  %s1 = inlined_call_operand.vmem [shape: bf16[3,256,128], index: 1, kind: input, shape index: {}]
  %s2 = inlined_call_operand.vmem [shape: bf16[3,128,128], index: 2, kind: input, shape index: {}]
  %s3 = inlined_call_operand.vmem [shape: f32[1,128], index: 3, kind: input, shape index: {}]
  %s4 = inlined_call_operand.vmem [shape: bf16[2,20,128], index: 4, kind: output, shape index: {}]
  %s5 = sld [smem:[#allocation0]]
  $region49: #{backbone_base_forward.7} parent=0
    _
  %s7 = ssub.s32 1, %s5
  %s8 = scalar_select 0, %s7, %s5
  loop: start=0, step=1, limit=4
  $region2: #{backbone_base_forward.7} parent=0 // loop_pre_header
    _
  $region3: #{backbone_base_forward.7} parent=0 // loop_header
    %s10 = sphi 0, %s14
    %p11 = scmp.ge.s32.totalorder %s10, 4
    %s17 = sphi 0, %s29
    %s18 = sphi 0, %s25
    %s19 = sphi 0, %s17
    %s20 = sphi 0, %s18
    %s21 = sphi 0, %s19
    %s22 = sphi 0, %s20
    %s34 = sphi 0, %s36
    %s37 = sphi 0, %s34
    %s38 = sphi 0, %s37
    %s54 = sphi 0, %s38
    %s58 = sphi 0, %s58
    %s60 = sphi 0, %s58
    %s61 = sphi 0, %s60
    %s75 = sphi 0, %s61
    %s79 = sphi 0, %s79
    %s81 = sphi 0, %s79
    %s82 = sphi 0, %s81
    %s96 = sphi 0, %s82
    %s100 = sphi 0, %s100
    %s102 = sphi 0, %s100
    %s103 = sphi 0, %s102
    %s117 = sphi 0, %s103
    %s125 = sphi 0, %s127
    %s128 = sphi 0, %s125
    %s129 = sphi 0, %s128
    %s145 = sphi 0, %s129
  $region4: #{backbone_base_forward.7} parent=0 // loop_header_branch
    %13 = sbr.rel (%p11) target = $region8
  $region5: #{backbone_base_forward.7} parent=0 // loop_body
    %s15 = ssub.s32 %s10, 1
    %s16 = ssub.s32 %s10, 2
    %s23 = sadd.s32 1, %s18
    %p24 = scmp.ge.s32.totalorder %s23, 1
    %s25 = scalar_select %p24, 0, %s23
    %s26 = sadd.s32 1, %s17
    %s27 = scalar_select %p24, %s26, %s17
    %p28 = scmp.ge.s32.totalorder %s27, 2
    %s29 = scalar_select %p28, 0, %s27
    %s30 = ssub.s32 %s17, %s29
    %s31 = ssub.s32 %s18, %s25
    %s32 = sor.u32 %s30, %s31
    %p33 = scmp.eq.s32.totalorder %s32, 0
    %s35 = sadd.s32 %s34, 1
    %s36 = scalar_select %p33, %s34, %s35
    %p39 = pneg %p33
    %p40 = scmp.eq.s32.totalorder %s10, 1
    %p41 = por %p39, %p40
    %p42 = scmp.ne.s32.totalorder %s34, %s37
    %p43 = scmp.eq.s32.totalorder %s10, 0
    %p44 = por %p42, %p43
    %p45 = scmp.ne.s32.totalorder %s34, %s37
    %p46 = scmp.eq.s32.totalorder %s15, 1
    %p47 = por %p45, %p46
    %p48 = scmp.ne.s32.totalorder %s37, %s38
    %p49 = scmp.eq.s32.totalorder %s15, 0
    %p50 = por %p48, %p49
    %p51 = scmp.ne.s32.totalorder %s37, %s38
    %p52 = scmp.eq.s32.totalorder %s16, 1
    %p53 = por %p51, %p52
    %p55 = scmp.ne.s32.totalorder %s38, %s54
    %p56 = scmp.eq.s32.totalorder %s16, 0
    %p57 = por %p55, %p56
    %s59 = sadd.s32 %s58, 1
    %p62 = scmp.eq.s32.totalorder %s10, 1
    %p63 = scmp.ne.s32.totalorder %s58, %s60
    %p64 = scmp.eq.s32.totalorder %s10, 0
    %p65 = por %p63, %p64
    %p66 = scmp.ne.s32.totalorder %s58, %s60
    %p67 = scmp.eq.s32.totalorder %s15, 1
    %p68 = por %p66, %p67
    %p69 = scmp.ne.s32.totalorder %s60, %s61
    %p70 = scmp.eq.s32.totalorder %s15, 0
    %p71 = por %p69, %p70
    %p72 = scmp.ne.s32.totalorder %s60, %s61
    %p73 = scmp.eq.s32.totalorder %s16, 1
    %p74 = por %p72, %p73
    %p76 = scmp.ne.s32.totalorder %s61, %s75
    %p77 = scmp.eq.s32.totalorder %s16, 0
    %p78 = por %p76, %p77
    %s80 = sadd.s32 %s79, 1
    %p83 = scmp.eq.s32.totalorder %s10, 1
    %p84 = scmp.ne.s32.totalorder %s79, %s81
    %p85 = scmp.eq.s32.totalorder %s10, 0
    %p86 = por %p84, %p85
    %p87 = scmp.ne.s32.totalorder %s79, %s81
    %p88 = scmp.eq.s32.totalorder %s15, 1
    %p89 = por %p87, %p88
    %p90 = scmp.ne.s32.totalorder %s81, %s82
    %p91 = scmp.eq.s32.totalorder %s15, 0
    %p92 = por %p90, %p91
    %p93 = scmp.ne.s32.totalorder %s81, %s82
    %p94 = scmp.eq.s32.totalorder %s16, 1
    %p95 = por %p93, %p94
    %p97 = scmp.ne.s32.totalorder %s82, %s96
    %p98 = scmp.eq.s32.totalorder %s16, 0
    %p99 = por %p97, %p98
    %s101 = sadd.s32 %s100, 1
    %p104 = scmp.eq.s32.totalorder %s10, 1
    %p105 = scmp.ne.s32.totalorder %s100, %s102
    %p106 = scmp.eq.s32.totalorder %s10, 0
    %p107 = por %p105, %p106
    %p108 = scmp.ne.s32.totalorder %s100, %s102
    %p109 = scmp.eq.s32.totalorder %s15, 1
    %p110 = por %p108, %p109
    %p111 = scmp.ne.s32.totalorder %s102, %s103
    %p112 = scmp.eq.s32.totalorder %s15, 0
    %p113 = por %p111, %p112
    %p114 = scmp.ne.s32.totalorder %s102, %s103
    %p115 = scmp.eq.s32.totalorder %s16, 1
    %p116 = por %p114, %p115
    %p118 = scmp.ne.s32.totalorder %s103, %s117
    %p119 = scmp.eq.s32.totalorder %s16, 0
    %p120 = por %p118, %p119
    %s121 = ssub.s32 %s17, %s29
    %s122 = ssub.s32 %s18, %s25
    %s123 = sor.u32 %s121, %s122
    %p124 = scmp.eq.s32.totalorder %s123, 0
    %s126 = sadd.s32 %s125, 1
    %s127 = scalar_select %p124, %s125, %s126
    %p130 = pneg %p124
    %p131 = scmp.eq.s32.totalorder %s10, 1
    %p132 = por %p130, %p131
    %p133 = scmp.ne.s32.totalorder %s125, %s128
    %p134 = scmp.eq.s32.totalorder %s10, 0
    %p135 = por %p133, %p134
    %p136 = scmp.ne.s32.totalorder %s125, %s128
    %p137 = scmp.eq.s32.totalorder %s15, 1
    %p138 = por %p136, %p137
    %p139 = scmp.ne.s32.totalorder %s128, %s129
    %p140 = scmp.eq.s32.totalorder %s15, 0
    %p141 = por %p139, %p140
    %p142 = scmp.ne.s32.totalorder %s128, %s129
    %p143 = scmp.eq.s32.totalorder %s16, 1
    %p144 = por %p142, %p143
    %p146 = scmp.ne.s32.totalorder %s129, %s145
    %p147 = scmp.eq.s32.totalorder %s16, 0
    %p148 = por %p146, %p147
    %p149 = scmp.le.s32.totalorder 1, %s10
    %p150 = scmp.lt.s32.totalorder %s10, 3
    %p151 = pnand %p149, %p150
    %p152 = pneg %p151
    // Predicated region
    $region9: #{backbone_base_forward.7} parent=5 // pred_check
      _
    $region10: #{backbone_base_forward.7} parent=5 // pred_check_branch
      %154 = sbr.rel (%p151) target = $region12
    $region11: #{backbone_base_forward.7} parent=5 // pred_region
      %s155 = ssub.s32 %s10, 1
      // Predicated region
      $region13: #{backbone_base_forward.7} parent=11 // pred_check
        %p156 = pneg %p71
      $region14: #{backbone_base_forward.7} parent=11 // pred_check_branch
        %158 = sbr.rel (%p156) target = $region16
      $region15: #{backbone_base_forward.7} parent=11 // pred_region
        _
      $region16: #{backbone_base_forward.7} parent=11 // pred_fallthru
        _
      // Predicated region
      $region17: #{backbone_base_forward.7} parent=11 // pred_check
        %p159 = pneg %p92
      $region18: #{backbone_base_forward.7} parent=11 // pred_check_branch
        %161 = sbr.rel (%p159) target = $region20
      $region19: #{backbone_base_forward.7} parent=11 // pred_region
        _
      $region20: #{backbone_base_forward.7} parent=11 // pred_fallthru
        _
      // Predicated region
      $region21: #{backbone_base_forward.7} parent=11 // pred_check
        %p162 = pneg %p113
      $region22: #{backbone_base_forward.7} parent=11 // pred_check_branch
        %164 = sbr.rel (%p162) target = $region24
      $region23: #{backbone_base_forward.7} parent=11 // pred_region
        _
      $region24: #{backbone_base_forward.7} parent=11 // pred_fallthru
        _
    $region12: #{backbone_base_forward.7} parent=5 // pred_fallthru
      _
    %p165 = scmp.lt.s32.totalorder %s10, 2
    // Predicated region
    $region25: #{backbone_base_forward.7} parent=5 // pred_check
      %p166 = pneg %p165
    $region26: #{backbone_base_forward.7} parent=5 // pred_check_branch
      %168 = sbr.rel (%p166) target = $region28
    $region27: #{backbone_base_forward.7} parent=5 // pred_region
      // Predicated region
      $region29: #{backbone_base_forward.7} parent=27 // pred_check
        %p169 = pneg %p44
      $region30: #{backbone_base_forward.7} parent=27 // pred_check_branch
        %171 = sbr.rel (%p169) target = $region32
      $region31: #{backbone_base_forward.7} parent=27 // pred_region
        %p172 = scmp.lt.s32.totalorder %s17, 1
        %s173 = scalar_select %p172, %s17, 1
        %p174 = scmp.lt.s32.totalorder %s18, 0
        %s175 = scalar_select %p174, %s18, 0
        %s176 = smul.addr %s175, 16
        %s177 = smul.addr %s173, 16
        %s178 = sadd.s32 %s176, %s177
        %s179 = smul.addr %s178, 4
        %s180 = scalar_lea.vmem %s0, %s179
      $region32: #{backbone_base_forward.7} parent=27 // pred_fallthru
        _
    $region28: #{backbone_base_forward.7} parent=5 // pred_fallthru
      _
    %p181 = scmp.le.s32.totalorder 1, %s10
    %p182 = scmp.lt.s32.totalorder %s10, 3
    %p183 = pnand %p181, %p182
    %p184 = pneg %p183
    // Predicated region
    $region33: #{backbone_base_forward.7} parent=5 // pred_check
      _
    $region34: #{backbone_base_forward.7} parent=5 // pred_check_branch
      %186 = sbr.rel (%p183) target = $region36
    $region35: #{backbone_base_forward.7} parent=5 // pred_region
      %s187 = ssub.s32 %s10, 1
      %p188 = scmp.lt.s32.totalorder %s19, 1
      %s189 = scalar_select %p188, %s19, 1
      %p190 = scmp.lt.s32.totalorder %s20, 0
      %s191 = scalar_select %p190, %s20, 0
      %s192 = smul.addr %s191, 16
      %s193 = smul.addr %s189, 16
      %s194 = sadd.s32 %s192, %s193
      %s195 = smul.addr %s194, 4
      %s196 = scalar_lea.vmem %s0, %s195
      %p197 = pneg %p50
      %p198 = pneg %p47
      %p199 = pneg %p71
      %p200 = pneg %p68
      %p201 = pneg %p92
      %p202 = pneg %p89
      %p203 = pneg %p113
      %p204 = pneg %p110
      %p205 = pneg %p141
      %p206 = pneg %p138
      %s207 = smul.u32 3, %s20
      %p208 = scmp.lt.s32.totalorder %s19, 1
      %s209 = scalar_select %p208, %s19, 1
      %p210 = scmp.lt.s32.totalorder %s207, 2
      %s211 = scalar_select %p210, %s207, 2
      %s212 = smul.addr %s209, 3
      %s213 = sadd.s32 %s211, %s212
      %s214 = smul.addr %s213, 4
      %s215 = scalar_lea.vmem %s4, %s214
      %p216 = scmp.lt.s32.totalorder %s19, 1
      %s217 = scalar_select %p216, %s19, 1
      %p218 = scmp.lt.s32.totalorder %s20, 0
      %s219 = scalar_select %p218, %s20, 0
      %s220 = smul.addr %s219, 16
      %s221 = smul.addr %s217, 16
      %s222 = sadd.s32 %s220, %s221
      %s223 = smul.addr %s222, 4
      %s224 = scalar_lea.vmem %s0, %s223
      %s225 = smul.u32 3, %s20
      %p226 = scmp.lt.s32.totalorder %s19, 1
      %s227 = scalar_select %p226, %s19, 1
      %p228 = scmp.lt.s32.totalorder %s225, 2
      %s229 = scalar_select %p228, %s225, 2
      %s230 = smul.addr %s227, 3
      %s231 = sadd.s32 %s229, %s230
      %s232 = smul.addr %s231, 4
      %s233 = scalar_lea.vmem %s4, %s232
      %s234 = smul.u32 3, %s20
      %v236 = vld [vmem:[%s224] sm:$0xff]
      %v237 = vld [vmem:[%s224 + $0x8] sm:$0xff]
      %v238 = vld [vmem:[%s224 + $0x10] sm:$0x33]
      %v239 = vld [vmem:[%s1] sm:$0xf]
      %v240 = vld [vmem:[%s1 + $0x4] sm:$0xf]
      %v241 = vld [vmem:[%s1 + $0x8] sm:$0xf]
      %v242 = vld [vmem:[%s1 + $0xc] sm:$0xf]
      %v243 = vld [vmem:[%s1 + $0x10] sm:$0xf]
      %v244 = vld [vmem:[%s1 + $0x14] sm:$0xf]
      %v245 = vld [vmem:[%s1 + $0x18] sm:$0xf]
      %v246 = vld [vmem:[%s1 + $0x1c] sm:$0xf]
      %v247 = vld [vmem:[%s1 + $0x20] sm:$0xf]
      %v248 = vld [vmem:[%s1 + $0x24] sm:$0xf]
      %v249 = vld [vmem:[%s1 + $0x28] sm:$0xf]
      %v250 = vld [vmem:[%s1 + $0x2c] sm:$0xf]
      %v251 = vld [vmem:[%s1 + $0x30] sm:$0xf]
      %v252 = vld [vmem:[%s1 + $0x34] sm:$0xf]
      %v253 = vld [vmem:[%s1 + $0x38] sm:$0xf]
      %v254 = vld [vmem:[%s1 + $0x3c] sm:$0xf]
      %v255 = vld [vmem:[%s1 + $0x40] sm:$0xf]
      %v256 = vld [vmem:[%s1 + $0x44] sm:$0xf]
      %v257 = vld [vmem:[%s1 + $0x48] sm:$0xf]
      %v258 = vld [vmem:[%s1 + $0x4c] sm:$0xf]
      %v259 = vld [vmem:[%s1 + $0x50] sm:$0xf]
      %v260 = vld [vmem:[%s1 + $0x54] sm:$0xf]
      %v261 = vld [vmem:[%s1 + $0x58] sm:$0xf]
      %v262 = vld [vmem:[%s1 + $0x5c] sm:$0xf]
      %v263 = vld [vmem:[%s1 + $0x60] sm:$0xf]
      %v264 = vld [vmem:[%s1 + $0x64] sm:$0xf]
      %v265 = vld [vmem:[%s1 + $0x68] sm:$0xf]
      %v266 = vld [vmem:[%s1 + $0x6c] sm:$0xf]
      %v267 = vld [vmem:[%s1 + $0x70] sm:$0xf]
      %v268 = vld [vmem:[%s1 + $0x74] sm:$0xf]
      %v269 = vld [vmem:[%s1 + $0x78] sm:$0xf]
      %v270 = vld [vmem:[%s1 + $0x7c] sm:$0xf]
      %v271 = vld [vmem:[%s224] sm:$0xf]
      %v272 = vld [vmem:[%s224 + $0x8] sm:$0xf]
      %v273 = vld [vmem:[%s224 + $0x10] sm:$0x7]
      %v274 = vld [vmem:[%s2] sm:$0xf]
      %v275 = vld [vmem:[%s2 + $0x4] sm:$0xf]
      %v276 = vld [vmem:[%s2 + $0x8] sm:$0xf]
      %v277 = vld [vmem:[%s2 + $0xc] sm:$0xf]
      %v278 = vld [vmem:[%s2 + $0x10] sm:$0xf]
      %v279 = vld [vmem:[%s2 + $0x14] sm:$0xf]
      %v280 = vld [vmem:[%s2 + $0x18] sm:$0xf]
      %v281 = vld [vmem:[%s2 + $0x1c] sm:$0xf]
      %v282 = vld [vmem:[%s2 + $0x20] sm:$0xf]
      %v283 = vld [vmem:[%s2 + $0x24] sm:$0xf]
      %v284 = vld [vmem:[%s2 + $0x28] sm:$0xf]
      %v285 = vld [vmem:[%s2 + $0x2c] sm:$0xf]
      %v286 = vld [vmem:[%s2 + $0x30] sm:$0xf]
      %v287 = vld [vmem:[%s2 + $0x34] sm:$0xf]
      %v288 = vld [vmem:[%s2 + $0x38] sm:$0xf]
      %v289 = vld [vmem:[%s2 + $0x3c] sm:$0xf]
      %v293 = vunpack.c.l.b16 %v271
      %v294 = vunpack.c.l.b16 %v272
      %v295 = vunpack.c.l.b16 %v273
      %v296 = vpack.c.b16 %v294, %v293
      %v297 = vpack.c.b16 %v295, %v295
      %vm298 = vsmask.f32 7424
      %v300 = vshrl.u32 %v296, 16
      %v302 = vshll.u32 %v296, 16
      %v304 = vrot.slane %v302, 1
      %v305 = vor.u32 %v300, %v304
      %v307 = vshll.u32 %v297, 16
      %v309 = vrot.slane %v307, 1
      %v310 = vsel %vm298, %v305, %v309
      %v311 = vshrl.u32 %v297, 16
      %v313 = vor.u32 %v311, %v309
      %v332 = vunpack.c.l.b16 %v274
      %v333 = vunpack.c.l.b16 %v275
      %v334 = vunpack.c.l.b16 %v276
      %v335 = vunpack.c.l.b16 %v277
      %v336 = vunpack.c.l.b16 %v278
      %v337 = vunpack.c.l.b16 %v279
      %v338 = vunpack.c.l.b16 %v280
      %v339 = vunpack.c.l.b16 %v281
      %v340 = vunpack.c.l.b16 %v282
      %v341 = vunpack.c.l.b16 %v283
      %v342 = vunpack.c.l.b16 %v284
      %v343 = vunpack.c.l.b16 %v285
      %v344 = vunpack.c.l.b16 %v286
      %v345 = vunpack.c.l.b16 %v287
      %v346 = vunpack.c.l.b16 %v288
      %v347 = vunpack.c.l.b16 %v289
      %v348 = vpack.c.b16 %v333, %v332
      %v349 = vpack.c.b16 %v335, %v334
      %v350 = vpack.c.b16 %v337, %v336
      %v351 = vpack.c.b16 %v339, %v338
      %v352 = vpack.c.b16 %v341, %v340
      %v353 = vpack.c.b16 %v343, %v342
      %v354 = vpack.c.b16 %v345, %v344
      %v355 = vpack.c.b16 %v347, %v346
      %364 = vmatprep.subr.bf16.mxu0 0
      %365 = vmatpush1.bf16.msra.mxu0 %v355
      %366 = vmatprep.subr.bf16.mxu0 0
      %367 = vmatpush1.bf16.msra.mxu0 %v354
      %368 = vmatprep.subr.bf16.mxu0 0
      %369 = vmatpush1.bf16.msra.mxu0 %v353
      %370 = vmatprep.subr.bf16.mxu0 0
      %371 = vmatpush1.bf16.msra.mxu0 %v352
      %372 = vmatprep.subr.bf16.mxu0 0
      %373 = vmatpush1.bf16.msra.mxu0 %v351
      %374 = vmatprep.subr.bf16.mxu0 0
      %375 = vmatpush1.bf16.msra.mxu0 %v350
      %376 = vmatprep.subr.bf16.mxu0 0
      %377 = vmatpush1.bf16.msra.mxu0 %v349
      %378 = vmatprep.subr.bf16.mxu0 0
      %379 = vmatpush1.bf16.msra.mxu0 %v348
      %380 = vmatprep.subr.bf16.mxu0 0
      %381 = vmatpush2.bf16.msra.mxu0 0
      %382 = vmatprep.subr.bf16.mxu0 0
      %383 = vmatpush2.bf16.msra.mxu0 0
      %384 = vmatprep.subr.bf16.mxu0 0
      %385 = vmatpush2.bf16.msra.mxu0 0
      %386 = vmatprep.subr.bf16.mxu0 0
      %387 = vmatpush2.bf16.msra.mxu0 0
      %388 = vmatprep.subr.bf16.mxu0 0
      %389 = vmatpush2.bf16.msra.mxu0 0
      %390 = vmatprep.subr.bf16.mxu0 0
      %391 = vmatpush2.bf16.msra.mxu0 0
      %392 = vmatprep.subr.bf16.mxu0 0
      %393 = vmatpush2.bf16.msra.mxu0 0
      %394 = vmatprep.subr.bf16.mxu0 0
      %395 = vmatpush2.bf16.msra.mxu0 0
      %396 = vmatprep.mubr.bf16.mxu0 0
      %397 = vmatmul.mubr.bf16.gmra.mxu0 %v310
      %v398 = vpop.f32.mrf.mxu0
      %v399 = vadd.f32 0.0, %v398
      %v400 = vpop.f32.mrf.mxu0
      %v401 = vpop.f32.mrf.mxu0
      %v402 = vadd.f32 0.0, %v401
      %v403 = vpop.f32.mrf.mxu0
      %404 = vmatprep.mubr.bf16.mxu0 0
      %405 = vmatmul.mubr.bf16.gmra.mxu0 %v313
      %v406 = vpop.f32.mrf.mxu0
      %v407 = vadd.f32 0.0, %v406
      %v408 = vpop.f32.mrf.mxu0
      %v409 = vpop.f32.mrf.mxu0
      %v410 = vpop.f32.mrf.mxu0
      %411 = vdwg.mxu0
      %v415 = vunpack.c.l.b16 %v236
      %v416 = vunpack.c.h.b16 %v236
      %v417 = vunpack.c.l.b16 %v237
      %v418 = vunpack.c.h.b16 %v237
      %v419 = vunpack.c.l.b16 %v238
      %v420 = vunpack.c.h.b16 %v238
      %v421 = vpack.c.b16 %v417, %v415
      %v422 = vpack.c.b16 %v418, %v416
      %v423 = vpack.c.b16 %v419, %v419
      %v424 = vpack.c.b16 %v420, %v420
      %v461 = vunpack.c.l.b16 %v239
      %v462 = vunpack.c.l.b16 %v240
      %v463 = vunpack.c.l.b16 %v241
      %v464 = vunpack.c.l.b16 %v242
      %v465 = vunpack.c.l.b16 %v243
      %v466 = vunpack.c.l.b16 %v244
      %v467 = vunpack.c.l.b16 %v245
      %v468 = vunpack.c.l.b16 %v246
      %v469 = vunpack.c.l.b16 %v247
      %v470 = vunpack.c.l.b16 %v248
      %v471 = vunpack.c.l.b16 %v249
      %v472 = vunpack.c.l.b16 %v250
      %v473 = vunpack.c.l.b16 %v251
      %v474 = vunpack.c.l.b16 %v252
      %v475 = vunpack.c.l.b16 %v253
      %v476 = vunpack.c.l.b16 %v254
      %v477 = vunpack.c.l.b16 %v255
      %v478 = vunpack.c.l.b16 %v256
      %v479 = vunpack.c.l.b16 %v257
      %v480 = vunpack.c.l.b16 %v258
      %v481 = vunpack.c.l.b16 %v259
      %v482 = vunpack.c.l.b16 %v260
      %v483 = vunpack.c.l.b16 %v261
      %v484 = vunpack.c.l.b16 %v262
      %v485 = vunpack.c.l.b16 %v263
      %v486 = vunpack.c.l.b16 %v264
      %v487 = vunpack.c.l.b16 %v265
      %v488 = vunpack.c.l.b16 %v266
      %v489 = vunpack.c.l.b16 %v267
      %v490 = vunpack.c.l.b16 %v268
      %v491 = vunpack.c.l.b16 %v269
      %v492 = vunpack.c.l.b16 %v270
      %v493 = vpack.c.b16 %v462, %v461
      %v494 = vpack.c.b16 %v464, %v463
      %v495 = vpack.c.b16 %v466, %v465
      %v496 = vpack.c.b16 %v468, %v467
      %v497 = vpack.c.b16 %v470, %v469
      %v498 = vpack.c.b16 %v472, %v471
      %v499 = vpack.c.b16 %v474, %v473
      %v500 = vpack.c.b16 %v476, %v475
      %v501 = vpack.c.b16 %v478, %v477
      %v502 = vpack.c.b16 %v480, %v479
      %v503 = vpack.c.b16 %v482, %v481
      %v504 = vpack.c.b16 %v484, %v483
      %v505 = vpack.c.b16 %v486, %v485
      %v506 = vpack.c.b16 %v488, %v487
      %v507 = vpack.c.b16 %v490, %v489
      %v508 = vpack.c.b16 %v492, %v491
      %525 = vmatprep.subr.bf16.mxu0 0
      %526 = vmatpush1.bf16.msra.mxu0 %v500
      %527 = vmatprep.subr.bf16.mxu0 0
      %528 = vmatpush1.bf16.msra.mxu0 %v499
      %529 = vmatprep.subr.bf16.mxu0 0
      %530 = vmatpush1.bf16.msra.mxu0 %v498
      %531 = vmatprep.subr.bf16.mxu0 0
      %532 = vmatpush1.bf16.msra.mxu0 %v497
      %533 = vmatprep.subr.bf16.mxu0 0
      %534 = vmatpush1.bf16.msra.mxu0 %v496
      %535 = vmatprep.subr.bf16.mxu0 0
      %536 = vmatpush1.bf16.msra.mxu0 %v495
      %537 = vmatprep.subr.bf16.mxu0 0
      %538 = vmatpush1.bf16.msra.mxu0 %v494
      %539 = vmatprep.subr.bf16.mxu0 0
      %540 = vmatpush1.bf16.msra.mxu0 %v493
      %541 = vmatprep.subr.bf16.mxu0 0
      %542 = vmatpush2.bf16.msra.mxu0 %v508
      %543 = vmatprep.subr.bf16.mxu0 0
      %544 = vmatpush2.bf16.msra.mxu0 %v507
      %545 = vmatprep.subr.bf16.mxu0 0
      %546 = vmatpush2.bf16.msra.mxu0 %v506
      %547 = vmatprep.subr.bf16.mxu0 0
      %548 = vmatpush2.bf16.msra.mxu0 %v505
      %549 = vmatprep.subr.bf16.mxu0 0
      %550 = vmatpush2.bf16.msra.mxu0 %v504
      %551 = vmatprep.subr.bf16.mxu0 0
      %552 = vmatpush2.bf16.msra.mxu0 %v503
      %553 = vmatprep.subr.bf16.mxu0 0
      %554 = vmatpush2.bf16.msra.mxu0 %v502
      %555 = vmatprep.subr.bf16.mxu0 0
      %556 = vmatpush2.bf16.msra.mxu0 %v501
      %557 = vmatprep.mubr.bf16.mxu0 %v422
      %558 = vmatmul.mubr.bf16.gmra.mxu0 %v421
      %v559 = vpop.f32.mrf.mxu0
      %v560 = vadd.f32 %v399, %v559
      %v561 = vpop.f32.mrf.mxu0
      %v562 = vpop.f32.mrf.mxu0
      %v563 = vadd.f32 %v402, %v562
      %v564 = vpop.f32.mrf.mxu0
      %565 = vmatprep.mubr.bf16.mxu0 %v424
      %566 = vmatmul.mubr.bf16.gmra.mxu0 %v423
      %v567 = vpop.f32.mrf.mxu0
      %v568 = vadd.f32 %v407, %v567
      %v569 = vpop.f32.mrf.mxu0
      %v570 = vpop.f32.mrf.mxu0
      %v571 = vpop.f32.mrf.mxu0
      %572 = vdwg.mxu0
      %s573 = scalar_lea.vmem %s224, 32
      %v574 = vld [vmem:[%s573] sm:$0xff]
      %v575 = vld [vmem:[%s573 + $0x8] sm:$0xff]
      %v576 = vld [vmem:[%s573 + $0x10] sm:$0x33]
      %s577 = scalar_lea.vmem %s1, 128
      %v578 = vld [vmem:[%s577] sm:$0xf]
      %v579 = vld [vmem:[%s577 + $0x4] sm:$0xf]
      %v580 = vld [vmem:[%s577 + $0x8] sm:$0xf]
      %v581 = vld [vmem:[%s577 + $0xc] sm:$0xf]
      %v582 = vld [vmem:[%s577 + $0x10] sm:$0xf]
      %v583 = vld [vmem:[%s577 + $0x14] sm:$0xf]
      %v584 = vld [vmem:[%s577 + $0x18] sm:$0xf]
      %v585 = vld [vmem:[%s577 + $0x1c] sm:$0xf]
      %v586 = vld [vmem:[%s577 + $0x20] sm:$0xf]
      %v587 = vld [vmem:[%s577 + $0x24] sm:$0xf]
      %v588 = vld [vmem:[%s577 + $0x28] sm:$0xf]
      %v589 = vld [vmem:[%s577 + $0x2c] sm:$0xf]
      %v590 = vld [vmem:[%s577 + $0x30] sm:$0xf]
      %v591 = vld [vmem:[%s577 + $0x34] sm:$0xf]
      %v592 = vld [vmem:[%s577 + $0x38] sm:$0xf]
      %v593 = vld [vmem:[%s577 + $0x3c] sm:$0xf]
      %v594 = vld [vmem:[%s577 + $0x40] sm:$0xf]
      %v595 = vld [vmem:[%s577 + $0x44] sm:$0xf]
      %v596 = vld [vmem:[%s577 + $0x48] sm:$0xf]
      %v597 = vld [vmem:[%s577 + $0x4c] sm:$0xf]
      %v598 = vld [vmem:[%s577 + $0x50] sm:$0xf]
      %v599 = vld [vmem:[%s577 + $0x54] sm:$0xf]
      %v600 = vld [vmem:[%s577 + $0x58] sm:$0xf]
      %v601 = vld [vmem:[%s577 + $0x5c] sm:$0xf]
      %v602 = vld [vmem:[%s577 + $0x60] sm:$0xf]
      %v603 = vld [vmem:[%s577 + $0x64] sm:$0xf]
      %v604 = vld [vmem:[%s577 + $0x68] sm:$0xf]
      %v605 = vld [vmem:[%s577 + $0x6c] sm:$0xf]
      %v606 = vld [vmem:[%s577 + $0x70] sm:$0xf]
      %v607 = vld [vmem:[%s577 + $0x74] sm:$0xf]
      %v608 = vld [vmem:[%s577 + $0x78] sm:$0xf]
      %v609 = vld [vmem:[%s577 + $0x7c] sm:$0xf]
      %v613 = vunpack.c.l.b16 %v574
      %v614 = vunpack.c.h.b16 %v574
      %v615 = vunpack.c.l.b16 %v575
      %v616 = vunpack.c.h.b16 %v575
      %v617 = vunpack.c.l.b16 %v576
      %v618 = vunpack.c.h.b16 %v576
      %v619 = vpack.c.b16 %v615, %v613
      %v620 = vpack.c.b16 %v616, %v614
      %v621 = vpack.c.b16 %v617, %v617
      %v622 = vpack.c.b16 %v618, %v618
      %v659 = vunpack.c.l.b16 %v578
      %v660 = vunpack.c.l.b16 %v579
      %v661 = vunpack.c.l.b16 %v580
      %v662 = vunpack.c.l.b16 %v581
      %v663 = vunpack.c.l.b16 %v582
      %v664 = vunpack.c.l.b16 %v583
      %v665 = vunpack.c.l.b16 %v584
      %v666 = vunpack.c.l.b16 %v585
      %v667 = vunpack.c.l.b16 %v586
      %v668 = vunpack.c.l.b16 %v587
      %v669 = vunpack.c.l.b16 %v588
      %v670 = vunpack.c.l.b16 %v589
      %v671 = vunpack.c.l.b16 %v590
      %v672 = vunpack.c.l.b16 %v591
      %v673 = vunpack.c.l.b16 %v592
      %v674 = vunpack.c.l.b16 %v593
      %v675 = vunpack.c.l.b16 %v594
      %v676 = vunpack.c.l.b16 %v595
      %v677 = vunpack.c.l.b16 %v596
      %v678 = vunpack.c.l.b16 %v597
      %v679 = vunpack.c.l.b16 %v598
      %v680 = vunpack.c.l.b16 %v599
      %v681 = vunpack.c.l.b16 %v600
      %v682 = vunpack.c.l.b16 %v601
      %v683 = vunpack.c.l.b16 %v602
      %v684 = vunpack.c.l.b16 %v603
      %v685 = vunpack.c.l.b16 %v604
      %v686 = vunpack.c.l.b16 %v605
      %v687 = vunpack.c.l.b16 %v606
      %v688 = vunpack.c.l.b16 %v607
      %v689 = vunpack.c.l.b16 %v608
      %v690 = vunpack.c.l.b16 %v609
      %v691 = vpack.c.b16 %v660, %v659
      %v692 = vpack.c.b16 %v662, %v661
      %v693 = vpack.c.b16 %v664, %v663
      %v694 = vpack.c.b16 %v666, %v665
      %v695 = vpack.c.b16 %v668, %v667
      %v696 = vpack.c.b16 %v670, %v669
      %v697 = vpack.c.b16 %v672, %v671
      %v698 = vpack.c.b16 %v674, %v673
      %v699 = vpack.c.b16 %v676, %v675
      %v700 = vpack.c.b16 %v678, %v677
      %v701 = vpack.c.b16 %v680, %v679
      %v702 = vpack.c.b16 %v682, %v681
      %v703 = vpack.c.b16 %v684, %v683
      %v704 = vpack.c.b16 %v686, %v685
      %v705 = vpack.c.b16 %v688, %v687
      %v706 = vpack.c.b16 %v690, %v689
      %723 = vmatprep.subr.bf16.mxu0 0
      %724 = vmatpush1.bf16.msra.mxu0 %v698
      %725 = vmatprep.subr.bf16.mxu0 0
      %726 = vmatpush1.bf16.msra.mxu0 %v697
      %727 = vmatprep.subr.bf16.mxu0 0
      %728 = vmatpush1.bf16.msra.mxu0 %v696
      %729 = vmatprep.subr.bf16.mxu0 0
      %730 = vmatpush1.bf16.msra.mxu0 %v695
      %731 = vmatprep.subr.bf16.mxu0 0
      %732 = vmatpush1.bf16.msra.mxu0 %v694
      %733 = vmatprep.subr.bf16.mxu0 0
      %734 = vmatpush1.bf16.msra.mxu0 %v693
      %735 = vmatprep.subr.bf16.mxu0 0
      %736 = vmatpush1.bf16.msra.mxu0 %v692
      %737 = vmatprep.subr.bf16.mxu0 0
      %738 = vmatpush1.bf16.msra.mxu0 %v691
      %739 = vmatprep.subr.bf16.mxu0 0
      %740 = vmatpush2.bf16.msra.mxu0 %v706
      %741 = vmatprep.subr.bf16.mxu0 0
      %742 = vmatpush2.bf16.msra.mxu0 %v705
      %743 = vmatprep.subr.bf16.mxu0 0
      %744 = vmatpush2.bf16.msra.mxu0 %v704
      %745 = vmatprep.subr.bf16.mxu0 0
      %746 = vmatpush2.bf16.msra.mxu0 %v703
      %747 = vmatprep.subr.bf16.mxu0 0
      %748 = vmatpush2.bf16.msra.mxu0 %v702
      %749 = vmatprep.subr.bf16.mxu0 0
      %750 = vmatpush2.bf16.msra.mxu0 %v701
      %751 = vmatprep.subr.bf16.mxu0 0
      %752 = vmatpush2.bf16.msra.mxu0 %v700
      %753 = vmatprep.subr.bf16.mxu0 0
      %754 = vmatpush2.bf16.msra.mxu0 %v699
      %755 = vmatprep.mubr.bf16.mxu0 %v620
      %756 = vmatmul.mubr.bf16.gmra.mxu0 %v619
      %v757 = vpop.f32.mrf.mxu0
      %v758 = vadd.f32 0.0, %v757
      %v759 = vpop.f32.mrf.mxu0
      %v760 = vpop.f32.mrf.mxu0
      %v761 = vadd.f32 0.0, %v760
      %v762 = vpop.f32.mrf.mxu0
      %763 = vmatprep.mubr.bf16.mxu0 %v622
      %764 = vmatmul.mubr.bf16.gmra.mxu0 %v621
      %v765 = vpop.f32.mrf.mxu0
      %v766 = vadd.f32 0.0, %v765
      %v767 = vpop.f32.mrf.mxu0
      %v768 = vpop.f32.mrf.mxu0
      %v769 = vpop.f32.mrf.mxu0
      %770 = vdwg.mxu0
      %v771 = vadd.f32 %v560, %v758
      %v772 = vadd.f32 %v563, %v761
      %v773 = vadd.f32 %v568, %v766
      %v774 = vld [vmem:[%s573] sm:$0xf]
      %v775 = vld [vmem:[%s573 + $0x8] sm:$0xf]
      %v776 = vld [vmem:[%s573 + $0x10] sm:$0x7]
      %s777 = scalar_lea.vmem %s2, 64
      %v778 = vld [vmem:[%s777] sm:$0xf]
      %v779 = vld [vmem:[%s777 + $0x4] sm:$0xf]
      %v780 = vld [vmem:[%s777 + $0x8] sm:$0xf]
      %v781 = vld [vmem:[%s777 + $0xc] sm:$0xf]
      %v782 = vld [vmem:[%s777 + $0x10] sm:$0xf]
      %v783 = vld [vmem:[%s777 + $0x14] sm:$0xf]
      %v784 = vld [vmem:[%s777 + $0x18] sm:$0xf]
      %v785 = vld [vmem:[%s777 + $0x1c] sm:$0xf]
      %v786 = vld [vmem:[%s777 + $0x20] sm:$0xf]
      %v787 = vld [vmem:[%s777 + $0x24] sm:$0xf]
      %v788 = vld [vmem:[%s777 + $0x28] sm:$0xf]
      %v789 = vld [vmem:[%s777 + $0x2c] sm:$0xf]
      %v790 = vld [vmem:[%s777 + $0x30] sm:$0xf]
      %v791 = vld [vmem:[%s777 + $0x34] sm:$0xf]
      %v792 = vld [vmem:[%s777 + $0x38] sm:$0xf]
      %v793 = vld [vmem:[%s777 + $0x3c] sm:$0xf]
      %v797 = vunpack.c.l.b16 %v774
      %v798 = vunpack.c.l.b16 %v775
      %v799 = vunpack.c.l.b16 %v776
      %v800 = vpack.c.b16 %v798, %v797
      %v801 = vpack.c.b16 %v799, %v799
      %v803 = vshrl.u32 %v800, 16
      %v805 = vshll.u32 %v800, 16
      %v807 = vrot.slane %v805, 1
      %v808 = vor.u32 %v803, %v807
      %v810 = vshll.u32 %v801, 16
      %v812 = vrot.slane %v810, 1
      %v813 = vsel %vm298, %v808, %v812
      %v814 = vshrl.u32 %v801, 16
      %v816 = vor.u32 %v814, %v812
      %v835 = vunpack.c.l.b16 %v778
      %v836 = vunpack.c.l.b16 %v779
      %v837 = vunpack.c.l.b16 %v780
      %v838 = vunpack.c.l.b16 %v781
      %v839 = vunpack.c.l.b16 %v782
      %v840 = vunpack.c.l.b16 %v783
      %v841 = vunpack.c.l.b16 %v784
      %v842 = vunpack.c.l.b16 %v785
      %v843 = vunpack.c.l.b16 %v786
      %v844 = vunpack.c.l.b16 %v787
      %v845 = vunpack.c.l.b16 %v788
      %v846 = vunpack.c.l.b16 %v789
      %v847 = vunpack.c.l.b16 %v790
      %v848 = vunpack.c.l.b16 %v791
      %v849 = vunpack.c.l.b16 %v792
      %v850 = vunpack.c.l.b16 %v793
      %v851 = vpack.c.b16 %v836, %v835
      %v852 = vpack.c.b16 %v838, %v837
      %v853 = vpack.c.b16 %v840, %v839
      %v854 = vpack.c.b16 %v842, %v841
      %v855 = vpack.c.b16 %v844, %v843
      %v856 = vpack.c.b16 %v846, %v845
      %v857 = vpack.c.b16 %v848, %v847
      %v858 = vpack.c.b16 %v850, %v849
      %867 = vmatprep.subr.bf16.mxu0 0
      %868 = vmatpush1.bf16.msra.mxu0 %v858
      %869 = vmatprep.subr.bf16.mxu0 0
      %870 = vmatpush1.bf16.msra.mxu0 %v857
      %871 = vmatprep.subr.bf16.mxu0 0
      %872 = vmatpush1.bf16.msra.mxu0 %v856
      %873 = vmatprep.subr.bf16.mxu0 0
      %874 = vmatpush1.bf16.msra.mxu0 %v855
      %875 = vmatprep.subr.bf16.mxu0 0
      %876 = vmatpush1.bf16.msra.mxu0 %v854
      %877 = vmatprep.subr.bf16.mxu0 0
      %878 = vmatpush1.bf16.msra.mxu0 %v853
      %879 = vmatprep.subr.bf16.mxu0 0
      %880 = vmatpush1.bf16.msra.mxu0 %v852
      %881 = vmatprep.subr.bf16.mxu0 0
      %882 = vmatpush1.bf16.msra.mxu0 %v851
      %883 = vmatprep.subr.bf16.mxu0 0
      %884 = vmatpush2.bf16.msra.mxu0 0
      %885 = vmatprep.subr.bf16.mxu0 0
      %886 = vmatpush2.bf16.msra.mxu0 0
      %887 = vmatprep.subr.bf16.mxu0 0
      %888 = vmatpush2.bf16.msra.mxu0 0
      %889 = vmatprep.subr.bf16.mxu0 0
      %890 = vmatpush2.bf16.msra.mxu0 0
      %891 = vmatprep.subr.bf16.mxu0 0
      %892 = vmatpush2.bf16.msra.mxu0 0
      %893 = vmatprep.subr.bf16.mxu0 0
      %894 = vmatpush2.bf16.msra.mxu0 0
      %895 = vmatprep.subr.bf16.mxu0 0
      %896 = vmatpush2.bf16.msra.mxu0 0
      %897 = vmatprep.subr.bf16.mxu0 0
      %898 = vmatpush2.bf16.msra.mxu0 0
      %899 = vmatprep.mubr.bf16.mxu0 0
      %900 = vmatmul.mubr.bf16.gmra.mxu0 %v813
      %v901 = vpop.f32.mrf.mxu0
      %v902 = vadd.f32 0.0, %v901
      %v903 = vpop.f32.mrf.mxu0
      %v904 = vpop.f32.mrf.mxu0
      %v905 = vadd.f32 0.0, %v904
      %v906 = vpop.f32.mrf.mxu0
      %907 = vmatprep.mubr.bf16.mxu0 0
      %908 = vmatmul.mubr.bf16.gmra.mxu0 %v816
      %v909 = vpop.f32.mrf.mxu0
      %v910 = vadd.f32 0.0, %v909
      %v911 = vpop.f32.mrf.mxu0
      %v912 = vpop.f32.mrf.mxu0
      %v913 = vpop.f32.mrf.mxu0
      %914 = vdwg.mxu0
      %v915 = vadd.f32 %v771, %v902
      %v916 = vadd.f32 %v772, %v905
      %v917 = vadd.f32 %v773, %v910
      %v918 = vld [vmem:[%s224] sm:$0xcc]
      %v919 = vld [vmem:[%s224 + $0x8] sm:$0xff]
      %v920 = vld [vmem:[%s224 + $0x10] sm:$0xff]
      %v921 = vld [vmem:[%s224 + $0x18] sm:$0x11]
      %s922 = scalar_lea.vmem %s1, 256
      %v923 = vld [vmem:[%s922] sm:$0xf]
      %v924 = vld [vmem:[%s922 + $0x4] sm:$0xf]
      %v925 = vld [vmem:[%s922 + $0x8] sm:$0xf]
      %v926 = vld [vmem:[%s922 + $0xc] sm:$0xf]
      %v927 = vld [vmem:[%s922 + $0x10] sm:$0xf]
      %v928 = vld [vmem:[%s922 + $0x14] sm:$0xf]
      %v929 = vld [vmem:[%s922 + $0x18] sm:$0xf]
      %v930 = vld [vmem:[%s922 + $0x1c] sm:$0xf]
      %v931 = vld [vmem:[%s922 + $0x20] sm:$0xf]
      %v932 = vld [vmem:[%s922 + $0x24] sm:$0xf]
      %v933 = vld [vmem:[%s922 + $0x28] sm:$0xf]
      %v934 = vld [vmem:[%s922 + $0x2c] sm:$0xf]
      %v935 = vld [vmem:[%s922 + $0x30] sm:$0xf]
      %v936 = vld [vmem:[%s922 + $0x34] sm:$0xf]
      %v937 = vld [vmem:[%s922 + $0x38] sm:$0xf]
      %v938 = vld [vmem:[%s922 + $0x3c] sm:$0xf]
      %v939 = vld [vmem:[%s922 + $0x40] sm:$0xf]
      %v940 = vld [vmem:[%s922 + $0x44] sm:$0xf]
      %v941 = vld [vmem:[%s922 + $0x48] sm:$0xf]
      %v942 = vld [vmem:[%s922 + $0x4c] sm:$0xf]
      %v943 = vld [vmem:[%s922 + $0x50] sm:$0xf]
      %v944 = vld [vmem:[%s922 + $0x54] sm:$0xf]
      %v945 = vld [vmem:[%s922 + $0x58] sm:$0xf]
      %v946 = vld [vmem:[%s922 + $0x5c] sm:$0xf]
      %v947 = vld [vmem:[%s922 + $0x60] sm:$0xf]
      %v948 = vld [vmem:[%s922 + $0x64] sm:$0xf]
      %v949 = vld [vmem:[%s922 + $0x68] sm:$0xf]
      %v950 = vld [vmem:[%s922 + $0x6c] sm:$0xf]
      %v951 = vld [vmem:[%s922 + $0x70] sm:$0xf]
      %v952 = vld [vmem:[%s922 + $0x74] sm:$0xf]
      %v953 = vld [vmem:[%s922 + $0x78] sm:$0xf]
      %v954 = vld [vmem:[%s922 + $0x7c] sm:$0xf]
      %v959 = vunpack.c.l.b16 %v918
      %v960 = vunpack.c.h.b16 %v918
      %v961 = vunpack.c.l.b16 %v919
      %v962 = vunpack.c.h.b16 %v919
      %v963 = vunpack.c.l.b16 %v920
      %v964 = vunpack.c.h.b16 %v920
      %v965 = vunpack.c.l.b16 %v921
      %v966 = vunpack.c.h.b16 %v921
      %v967 = vpack.c.b16 %v961, %v959
      %v968 = vpack.c.b16 %v962, %v960
      %v969 = vpack.c.b16 %v965, %v963
      %v970 = vpack.c.b16 %v966, %v964
      %vm971 = vsmask.f32 5376
      %v973 = vshrl.u32 %v967, 16
      %v975 = vrot.slane %v973, 2
      %v976 = vshll.u32 %v967, 16
      %v978 = vrot.slane %v976, 3
      %v979 = vor.u32 %v975, %v978
      %v981 = vshrl.u32 %v969, 16
      %v983 = vrot.slane %v981, 2
      %v984 = vshll.u32 %v969, 16
      %v986 = vrot.slane %v984, 3
      %v987 = vor.u32 %v983, %v986
      %v988 = vsel %vm971, %v979, %v987
      %v990 = vshrl.u32 %v968, 16
      %v992 = vrot.slane %v990, 2
      %v993 = vshll.u32 %v968, 16
      %v995 = vrot.slane %v993, 3
      %v996 = vor.u32 %v992, %v995
      %v998 = vshrl.u32 %v970, 16
      %v1000 = vrot.slane %v998, 2
      %v1001 = vshll.u32 %v970, 16
      %v1003 = vrot.slane %v1001, 3
      %v1004 = vor.u32 %v1000, %v1003
      %v1005 = vsel %vm971, %v996, %v1004
      %v1042 = vunpack.c.l.b16 %v923
      %v1043 = vunpack.c.l.b16 %v924
      %v1044 = vunpack.c.l.b16 %v925
      %v1045 = vunpack.c.l.b16 %v926
      %v1046 = vunpack.c.l.b16 %v927
      %v1047 = vunpack.c.l.b16 %v928
      %v1048 = vunpack.c.l.b16 %v929
      %v1049 = vunpack.c.l.b16 %v930
      %v1050 = vunpack.c.l.b16 %v931
      %v1051 = vunpack.c.l.b16 %v932
      %v1052 = vunpack.c.l.b16 %v933
      %v1053 = vunpack.c.l.b16 %v934
      %v1054 = vunpack.c.l.b16 %v935
      %v1055 = vunpack.c.l.b16 %v936
      %v1056 = vunpack.c.l.b16 %v937
      %v1057 = vunpack.c.l.b16 %v938
      %v1058 = vunpack.c.l.b16 %v939
      %v1059 = vunpack.c.l.b16 %v940
      %v1060 = vunpack.c.l.b16 %v941
      %v1061 = vunpack.c.l.b16 %v942
      %v1062 = vunpack.c.l.b16 %v943
      %v1063 = vunpack.c.l.b16 %v944
      %v1064 = vunpack.c.l.b16 %v945
      %v1065 = vunpack.c.l.b16 %v946
      %v1066 = vunpack.c.l.b16 %v947
      %v1067 = vunpack.c.l.b16 %v948
      %v1068 = vunpack.c.l.b16 %v949
      %v1069 = vunpack.c.l.b16 %v950
      %v1070 = vunpack.c.l.b16 %v951
      %v1071 = vunpack.c.l.b16 %v952
      %v1072 = vunpack.c.l.b16 %v953
      %v1073 = vunpack.c.l.b16 %v954
      %v1074 = vpack.c.b16 %v1043, %v1042
      %v1075 = vpack.c.b16 %v1045, %v1044
      %v1076 = vpack.c.b16 %v1047, %v1046
      %v1077 = vpack.c.b16 %v1049, %v1048
      %v1078 = vpack.c.b16 %v1051, %v1050
      %v1079 = vpack.c.b16 %v1053, %v1052
      %v1080 = vpack.c.b16 %v1055, %v1054
      %v1081 = vpack.c.b16 %v1057, %v1056
      %v1082 = vpack.c.b16 %v1059, %v1058
      %v1083 = vpack.c.b16 %v1061, %v1060
      %v1084 = vpack.c.b16 %v1063, %v1062
      %v1085 = vpack.c.b16 %v1065, %v1064
      %v1086 = vpack.c.b16 %v1067, %v1066
      %v1087 = vpack.c.b16 %v1069, %v1068
      %v1088 = vpack.c.b16 %v1071, %v1070
      %v1089 = vpack.c.b16 %v1073, %v1072
      %1106 = vmatprep.subr.bf16.mxu0 0
      %1107 = vmatpush1.bf16.msra.mxu0 %v1081
      %1108 = vmatprep.subr.bf16.mxu0 0
      %1109 = vmatpush1.bf16.msra.mxu0 %v1080
      %1110 = vmatprep.subr.bf16.mxu0 0
      %1111 = vmatpush1.bf16.msra.mxu0 %v1079
      %1112 = vmatprep.subr.bf16.mxu0 0
      %1113 = vmatpush1.bf16.msra.mxu0 %v1078
      %1114 = vmatprep.subr.bf16.mxu0 0
      %1115 = vmatpush1.bf16.msra.mxu0 %v1077
      %1116 = vmatprep.subr.bf16.mxu0 0
      %1117 = vmatpush1.bf16.msra.mxu0 %v1076
      %1118 = vmatprep.subr.bf16.mxu0 0
      %1119 = vmatpush1.bf16.msra.mxu0 %v1075
      %1120 = vmatprep.subr.bf16.mxu0 0
      %1121 = vmatpush1.bf16.msra.mxu0 %v1074
      %1122 = vmatprep.subr.bf16.mxu0 0
      %1123 = vmatpush2.bf16.msra.mxu0 %v1089
      %1124 = vmatprep.subr.bf16.mxu0 0
      %1125 = vmatpush2.bf16.msra.mxu0 %v1088
      %1126 = vmatprep.subr.bf16.mxu0 0
      %1127 = vmatpush2.bf16.msra.mxu0 %v1087
      %1128 = vmatprep.subr.bf16.mxu0 0
      %1129 = vmatpush2.bf16.msra.mxu0 %v1086
      %1130 = vmatprep.subr.bf16.mxu0 0
      %1131 = vmatpush2.bf16.msra.mxu0 %v1085
      %1132 = vmatprep.subr.bf16.mxu0 0
      %1133 = vmatpush2.bf16.msra.mxu0 %v1084
      %1134 = vmatprep.subr.bf16.mxu0 0
      %1135 = vmatpush2.bf16.msra.mxu0 %v1083
      %1136 = vmatprep.subr.bf16.mxu0 0
      %1137 = vmatpush2.bf16.msra.mxu0 %v1082
      %1138 = vmatprep.mubr.bf16.mxu0 %v1005
      %1139 = vmatmul.mubr.bf16.gmra.mxu0 %v988
      %v1140 = vpop.f32.mrf.mxu0
      %v1141 = vadd.f32 0.0, %v1140
      %v1142 = vpop.f32.mrf.mxu0
      %v1143 = vpop.f32.mrf.mxu0
      %v1144 = vadd.f32 0.0, %v1143
      %v1145 = vpop.f32.mrf.mxu0
      %1146 = vmatprep.mubr.bf16.mxu0 %v1004
      %1147 = vmatmul.mubr.bf16.gmra.mxu0 %v987
      %v1148 = vpop.f32.mrf.mxu0
      %v1149 = vadd.f32 0.0, %v1148
      %v1150 = vpop.f32.mrf.mxu0
      %v1151 = vpop.f32.mrf.mxu0
      %v1152 = vpop.f32.mrf.mxu0
      %1153 = vdwg.mxu0
      %v1154 = vadd.f32 %v915, %v1141
      %v1155 = vadd.f32 %v916, %v1144
      %v1156 = vadd.f32 %v917, %v1149
      %v1157 = vld [vmem:[%s224] sm:$0x8]
      %v1158 = vld [vmem:[%s224 + $0x8] sm:$0xf]
      %v1159 = vld [vmem:[%s224 + $0x10] sm:$0xf]
      %v1160 = vld [vmem:[%s224 + $0x18] sm:$0x1]
      %s1161 = scalar_lea.vmem %s2, 128
      %v1162 = vld [vmem:[%s1161] sm:$0xf]
      %v1163 = vld [vmem:[%s1161 + $0x4] sm:$0xf]
      %v1164 = vld [vmem:[%s1161 + $0x8] sm:$0xf]
      %v1165 = vld [vmem:[%s1161 + $0xc] sm:$0xf]
      %v1166 = vld [vmem:[%s1161 + $0x10] sm:$0xf]
      %v1167 = vld [vmem:[%s1161 + $0x14] sm:$0xf]
      %v1168 = vld [vmem:[%s1161 + $0x18] sm:$0xf]
      %v1169 = vld [vmem:[%s1161 + $0x1c] sm:$0xf]
      %v1170 = vld [vmem:[%s1161 + $0x20] sm:$0xf]
      %v1171 = vld [vmem:[%s1161 + $0x24] sm:$0xf]
      %v1172 = vld [vmem:[%s1161 + $0x28] sm:$0xf]
      %v1173 = vld [vmem:[%s1161 + $0x2c] sm:$0xf]
      %v1174 = vld [vmem:[%s1161 + $0x30] sm:$0xf]
      %v1175 = vld [vmem:[%s1161 + $0x34] sm:$0xf]
      %v1176 = vld [vmem:[%s1161 + $0x38] sm:$0xf]
      %v1177 = vld [vmem:[%s1161 + $0x3c] sm:$0xf]
      %v1182 = vunpack.c.l.b16 %v1157
      %v1183 = vunpack.c.l.b16 %v1158
      %v1184 = vunpack.c.l.b16 %v1159
      %v1185 = vunpack.c.l.b16 %v1160
      %v1186 = vpack.c.b16 %v1183, %v1182
      %v1187 = vpack.c.b16 %v1185, %v1184
      %vm1188 = vcmask 1044480
      %v1189 = vrot.slane %v1186, 3
      %v1190 = vrot.slane %v1187, 3
      %v1191 = vsel %vm1188, %v1189, %v1190
      %v1210 = vunpack.c.l.b16 %v1162
      %v1211 = vunpack.c.l.b16 %v1163
      %v1212 = vunpack.c.l.b16 %v1164
      %v1213 = vunpack.c.l.b16 %v1165
      %v1214 = vunpack.c.l.b16 %v1166
      %v1215 = vunpack.c.l.b16 %v1167
      %v1216 = vunpack.c.l.b16 %v1168
      %v1217 = vunpack.c.l.b16 %v1169
      %v1218 = vunpack.c.l.b16 %v1170
      %v1219 = vunpack.c.l.b16 %v1171
      %v1220 = vunpack.c.l.b16 %v1172
      %v1221 = vunpack.c.l.b16 %v1173
      %v1222 = vunpack.c.l.b16 %v1174
      %v1223 = vunpack.c.l.b16 %v1175
      %v1224 = vunpack.c.l.b16 %v1176
      %v1225 = vunpack.c.l.b16 %v1177
      %v1226 = vpack.c.b16 %v1211, %v1210
      %v1227 = vpack.c.b16 %v1213, %v1212
      %v1228 = vpack.c.b16 %v1215, %v1214
      %v1229 = vpack.c.b16 %v1217, %v1216
      %v1230 = vpack.c.b16 %v1219, %v1218
      %v1231 = vpack.c.b16 %v1221, %v1220
      %v1232 = vpack.c.b16 %v1223, %v1222
      %v1233 = vpack.c.b16 %v1225, %v1224
      %1242 = vmatprep.subr.bf16.mxu0 0
      %1243 = vmatpush1.bf16.msra.mxu0 %v1233
      %1244 = vmatprep.subr.bf16.mxu0 0
      %1245 = vmatpush1.bf16.msra.mxu0 %v1232
      %1246 = vmatprep.subr.bf16.mxu0 0
      %1247 = vmatpush1.bf16.msra.mxu0 %v1231
      %1248 = vmatprep.subr.bf16.mxu0 0
      %1249 = vmatpush1.bf16.msra.mxu0 %v1230
      %1250 = vmatprep.subr.bf16.mxu0 0
      %1251 = vmatpush1.bf16.msra.mxu0 %v1229
      %1252 = vmatprep.subr.bf16.mxu0 0
      %1253 = vmatpush1.bf16.msra.mxu0 %v1228
      %1254 = vmatprep.subr.bf16.mxu0 0
      %1255 = vmatpush1.bf16.msra.mxu0 %v1227
      %1256 = vmatprep.subr.bf16.mxu0 0
      %1257 = vmatpush1.bf16.msra.mxu0 %v1226
      %1258 = vmatprep.subr.bf16.mxu0 0
      %1259 = vmatpush2.bf16.msra.mxu0 0
      %1260 = vmatprep.subr.bf16.mxu0 0
      %1261 = vmatpush2.bf16.msra.mxu0 0
      %1262 = vmatprep.subr.bf16.mxu0 0
      %1263 = vmatpush2.bf16.msra.mxu0 0
      %1264 = vmatprep.subr.bf16.mxu0 0
      %1265 = vmatpush2.bf16.msra.mxu0 0
      %1266 = vmatprep.subr.bf16.mxu0 0
      %1267 = vmatpush2.bf16.msra.mxu0 0
      %1268 = vmatprep.subr.bf16.mxu0 0
      %1269 = vmatpush2.bf16.msra.mxu0 0
      %1270 = vmatprep.subr.bf16.mxu0 0
      %1271 = vmatpush2.bf16.msra.mxu0 0
      %1272 = vmatprep.subr.bf16.mxu0 0
      %1273 = vmatpush2.bf16.msra.mxu0 0
      %1274 = vmatprep.mubr.bf16.mxu0 0
      %1275 = vmatmul.mubr.bf16.gmra.mxu0 %v1191
      %v1276 = vpop.f32.mrf.mxu0
      %v1277 = vadd.f32 0.0, %v1276
      %v1278 = vpop.f32.mrf.mxu0
      %v1279 = vpop.f32.mrf.mxu0
      %v1280 = vadd.f32 0.0, %v1279
      %v1281 = vpop.f32.mrf.mxu0
      %1282 = vmatprep.mubr.bf16.mxu0 0
      %1283 = vmatmul.mubr.bf16.gmra.mxu0 %v1190
      %v1284 = vpop.f32.mrf.mxu0
      %v1285 = vadd.f32 0.0, %v1284
      %v1286 = vpop.f32.mrf.mxu0
      %v1287 = vpop.f32.mrf.mxu0
      %v1288 = vpop.f32.mrf.mxu0
      %1289 = vdwg.mxu0
      %v1290 = vadd.f32 %v1154, %v1277
      %v1291 = vadd.f32 %v1155, %v1280
      %v1292 = vadd.f32 %v1156, %v1285
      %v1293 = vld [vmem:[%s3] sm:$0x1]
      %v1295 = vlaneseq
      %v1296 = vshrl.u32 %v1295, 7
      %v1297 = vsub.s32 0, %v1296
      %v1298 = vrot.slane %v1293, %v1297
      %v1300 = vadd.f32 %v1290, %v1298
      %v1301 = vadd.f32 %v1291, %v1298
      %v1302 = vadd.f32 %v1292, %v1298
      %v1303 = vmax.f32 %v1300, 0.0
      %v1304 = vmax.f32 %v1301, 0.0
      %v1305 = vmax.f32 %v1302, 0.0
      %v1306 = vpack.c.bf16 %v1304, %v1303
      %v1307 = vpack.c.bf16 %v1305, %v1305
      %v1310 = vunpack.c.l.b16 %v1306
      %v1311 = vunpack.c.h.b16 %v1306
      %v1312 = vunpack.c.l.b16 %v1307
      %v1313 = vpack.c.b16 %v1310, %v1310
      %v1314 = vpack.c.b16 %v1311, %v1311
      %v1315 = vpack.c.b16 %v1312, %v1312
      %1319 = vst [vmem:[%s233] sm:$0xf] %v1313
      %1320 = vst [vmem:[%s233 + $0x4] sm:$0xf] %v1314
      %1321 = vst [vmem:[%s233 + $0x8] sm:$0x3] %v1315
      %s1322 = smul.u32 3, %s20
      %p1323 = scmp.lt.s32.totalorder %s19, 1
      %s1324 = scalar_select %p1323, %s19, 1
      %p1325 = scmp.lt.s32.totalorder %s1322, 2
      %s1326 = scalar_select %p1325, %s1322, 2
      %s1327 = smul.addr %s1324, 3
      %s1328 = sadd.s32 %s1326, %s1327
      %s1329 = smul.addr %s1328, 4
      %s1330 = scalar_lea.vmem %s4, %s1329
      // Predicated region
      $region37: #{backbone_base_forward.7} parent=35 // pred_check
        %p1331 = pneg %p138
      $region38: #{backbone_base_forward.7} parent=35 // pred_check_branch
        %1333 = sbr.rel (%p1331) target = $region40
      $region39: #{backbone_base_forward.7} parent=35 // pred_region
        %s1334 = smul.u32 3, %s20
      $region40: #{backbone_base_forward.7} parent=35 // pred_fallthru
        _
    $region36: #{backbone_base_forward.7} parent=5 // pred_fallthru
      _
    %p1335 = scmp.le.s32.totalorder 2, %s10
    // Predicated region
    $region41: #{backbone_base_forward.7} parent=5 // pred_check
      %p1336 = pneg %p1335
    $region42: #{backbone_base_forward.7} parent=5 // pred_check_branch
      %1338 = sbr.rel (%p1336) target = $region44
    $region43: #{backbone_base_forward.7} parent=5 // pred_region
      %s1339 = ssub.s32 %s10, 2
      // Predicated region
      $region45: #{backbone_base_forward.7} parent=43 // pred_check
        %p1340 = pneg %p144
      $region46: #{backbone_base_forward.7} parent=43 // pred_check_branch
        %1342 = sbr.rel (%p1340) target = $region48
      $region47: #{backbone_base_forward.7} parent=43 // pred_region
        %s1343 = smul.u32 3, %s22
        %p1344 = scmp.lt.s32.totalorder %s21, 1
        %s1345 = scalar_select %p1344, %s21, 1
        %p1346 = scmp.lt.s32.totalorder %s1343, 2
        %s1347 = scalar_select %p1346, %s1343, 2
        %s1348 = smul.addr %s1345, 3
        %s1349 = sadd.s32 %s1347, %s1348
        %s1350 = smul.addr %s1349, 4
        %s1351 = scalar_lea.vmem %s4, %s1350
      $region48: #{backbone_base_forward.7} parent=43 // pred_fallthru
        _
    $region44: #{backbone_base_forward.7} parent=5 // pred_fallthru
      _
  $region6: #{backbone_base_forward.7} parent=0 // loop_footer
    %s14 = sadd.s32 1, %s10
  $region7: #{backbone_base_forward.7} parent=0 // loop_footer_branch
    %9 = sbr.rel target = $region3
  $region8: #{backbone_base_forward.7} parent=0 // loop_exit
    _

// kernel: backbone_base_forward.8
$region0: #{backbone_base_forward.8}
  #allocation0 [shape = 'u32[]', space=smem, size = 0x4, offset = 0x4, fixed_abs, tag = 'smem constant byte address 0x4 - core index']
  #allocation1 [shape = 'u32[144,128]{1,0:T(1,128)}', space=vmem, size = 0x12000, scoped, tag = 'internal scratch']
  %s0 = inlined_call_operand.vmem [shape: bf16[2,1,2,12,256], index: 0, kind: input, shape index: {}]
  %s1 = inlined_call_operand.vmem [shape: bf16[3,256,128], index: 1, kind: input, shape index: {}]
  %s2 = inlined_call_operand.vmem [shape: bf16[3,128,128], index: 2, kind: input, shape index: {}]
  %s3 = inlined_call_operand.vmem [shape: f32[1,128], index: 3, kind: input, shape index: {}]
  %s4 = inlined_call_operand.vmem [shape: bf16[2,6,128], index: 4, kind: output, shape index: {}]
  %s5 = sld [smem:[#allocation0]]
  $region49: #{backbone_base_forward.8} parent=0
    _
  %s7 = ssub.s32 1, %s5
  %s8 = scalar_select 0, %s7, %s5
  loop: start=0, step=1, limit=4
  $region2: #{backbone_base_forward.8} parent=0 // loop_pre_header
    _
  $region3: #{backbone_base_forward.8} parent=0 // loop_header
    %s10 = sphi 0, %s14
    %p11 = scmp.ge.s32.totalorder %s10, 4
    %s17 = sphi 0, %s29
    %s18 = sphi 0, %s25
    %s19 = sphi 0, %s17
    %s20 = sphi 0, %s18
    %s21 = sphi 0, %s19
    %s22 = sphi 0, %s20
    %s34 = sphi 0, %s36
    %s37 = sphi 0, %s34
    %s38 = sphi 0, %s37
    %s54 = sphi 0, %s38
    %s58 = sphi 0, %s58
    %s60 = sphi 0, %s58
    %s61 = sphi 0, %s60
    %s75 = sphi 0, %s61
    %s79 = sphi 0, %s79
    %s81 = sphi 0, %s79
    %s82 = sphi 0, %s81
    %s96 = sphi 0, %s82
    %s100 = sphi 0, %s100
    %s102 = sphi 0, %s100
    %s103 = sphi 0, %s102
    %s117 = sphi 0, %s103
    %s125 = sphi 0, %s127
    %s128 = sphi 0, %s125
    %s129 = sphi 0, %s128
    %s145 = sphi 0, %s129
  $region4: #{backbone_base_forward.8} parent=0 // loop_header_branch
    %13 = sbr.rel (%p11) target = $region8
  $region5: #{backbone_base_forward.8} parent=0 // loop_body
    %s15 = ssub.s32 %s10, 1
    %s16 = ssub.s32 %s10, 2
    %s23 = sadd.s32 1, %s18
    %p24 = scmp.ge.s32.totalorder %s23, 1
    %s25 = scalar_select %p24, 0, %s23
    %s26 = sadd.s32 1, %s17
    %s27 = scalar_select %p24, %s26, %s17
    %p28 = scmp.ge.s32.totalorder %s27, 2
    %s29 = scalar_select %p28, 0, %s27
    %s30 = ssub.s32 %s17, %s29
    %s31 = ssub.s32 %s18, %s25
    %s32 = sor.u32 %s30, %s31
    %p33 = scmp.eq.s32.totalorder %s32, 0
    %s35 = sadd.s32 %s34, 1
    %s36 = scalar_select %p33, %s34, %s35
    %p39 = pneg %p33
    %p40 = scmp.eq.s32.totalorder %s10, 1
    %p41 = por %p39, %p40
    %p42 = scmp.ne.s32.totalorder %s34, %s37
    %p43 = scmp.eq.s32.totalorder %s10, 0
    %p44 = por %p42, %p43
    %p45 = scmp.ne.s32.totalorder %s34, %s37
    %p46 = scmp.eq.s32.totalorder %s15, 1
    %p47 = por %p45, %p46
    %p48 = scmp.ne.s32.totalorder %s37, %s38
    %p49 = scmp.eq.s32.totalorder %s15, 0
    %p50 = por %p48, %p49
    %p51 = scmp.ne.s32.totalorder %s37, %s38
    %p52 = scmp.eq.s32.totalorder %s16, 1
    %p53 = por %p51, %p52
    %p55 = scmp.ne.s32.totalorder %s38, %s54
    %p56 = scmp.eq.s32.totalorder %s16, 0
    %p57 = por %p55, %p56
    %s59 = sadd.s32 %s58, 1
    %p62 = scmp.eq.s32.totalorder %s10, 1
    %p63 = scmp.ne.s32.totalorder %s58, %s60
    %p64 = scmp.eq.s32.totalorder %s10, 0
    %p65 = por %p63, %p64
    %p66 = scmp.ne.s32.totalorder %s58, %s60
    %p67 = scmp.eq.s32.totalorder %s15, 1
    %p68 = por %p66, %p67
    %p69 = scmp.ne.s32.totalorder %s60, %s61
    %p70 = scmp.eq.s32.totalorder %s15, 0
    %p71 = por %p69, %p70
    %p72 = scmp.ne.s32.totalorder %s60, %s61
    %p73 = scmp.eq.s32.totalorder %s16, 1
    %p74 = por %p72, %p73
    %p76 = scmp.ne.s32.totalorder %s61, %s75
    %p77 = scmp.eq.s32.totalorder %s16, 0
    %p78 = por %p76, %p77
    %s80 = sadd.s32 %s79, 1
    %p83 = scmp.eq.s32.totalorder %s10, 1
    %p84 = scmp.ne.s32.totalorder %s79, %s81
    %p85 = scmp.eq.s32.totalorder %s10, 0
    %p86 = por %p84, %p85
    %p87 = scmp.ne.s32.totalorder %s79, %s81
    %p88 = scmp.eq.s32.totalorder %s15, 1
    %p89 = por %p87, %p88
    %p90 = scmp.ne.s32.totalorder %s81, %s82
    %p91 = scmp.eq.s32.totalorder %s15, 0
    %p92 = por %p90, %p91
    %p93 = scmp.ne.s32.totalorder %s81, %s82
    %p94 = scmp.eq.s32.totalorder %s16, 1
    %p95 = por %p93, %p94
    %p97 = scmp.ne.s32.totalorder %s82, %s96
    %p98 = scmp.eq.s32.totalorder %s16, 0
    %p99 = por %p97, %p98
    %s101 = sadd.s32 %s100, 1
    %p104 = scmp.eq.s32.totalorder %s10, 1
    %p105 = scmp.ne.s32.totalorder %s100, %s102
    %p106 = scmp.eq.s32.totalorder %s10, 0
    %p107 = por %p105, %p106
    %p108 = scmp.ne.s32.totalorder %s100, %s102
    %p109 = scmp.eq.s32.totalorder %s15, 1
    %p110 = por %p108, %p109
    %p111 = scmp.ne.s32.totalorder %s102, %s103
    %p112 = scmp.eq.s32.totalorder %s15, 0
    %p113 = por %p111, %p112
    %p114 = scmp.ne.s32.totalorder %s102, %s103
    %p115 = scmp.eq.s32.totalorder %s16, 1
    %p116 = por %p114, %p115
    %p118 = scmp.ne.s32.totalorder %s103, %s117
    %p119 = scmp.eq.s32.totalorder %s16, 0
    %p120 = por %p118, %p119
    %s121 = ssub.s32 %s17, %s29
    %s122 = ssub.s32 %s18, %s25
    %s123 = sor.u32 %s121, %s122
    %p124 = scmp.eq.s32.totalorder %s123, 0
    %s126 = sadd.s32 %s125, 1
    %s127 = scalar_select %p124, %s125, %s126
    %p130 = pneg %p124
    %p131 = scmp.eq.s32.totalorder %s10, 1
    %p132 = por %p130, %p131
    %p133 = scmp.ne.s32.totalorder %s125, %s128
    %p134 = scmp.eq.s32.totalorder %s10, 0
    %p135 = por %p133, %p134
    %p136 = scmp.ne.s32.totalorder %s125, %s128
    %p137 = scmp.eq.s32.totalorder %s15, 1
    %p138 = por %p136, %p137
    %p139 = scmp.ne.s32.totalorder %s128, %s129
    %p140 = scmp.eq.s32.totalorder %s15, 0
    %p141 = por %p139, %p140
    %p142 = scmp.ne.s32.totalorder %s128, %s129
    %p143 = scmp.eq.s32.totalorder %s16, 1
    %p144 = por %p142, %p143
    %p146 = scmp.ne.s32.totalorder %s129, %s145
    %p147 = scmp.eq.s32.totalorder %s16, 0
    %p148 = por %p146, %p147
    %p149 = scmp.le.s32.totalorder 1, %s10
    %p150 = scmp.lt.s32.totalorder %s10, 3
    %p151 = pnand %p149, %p150
    %p152 = pneg %p151
    // Predicated region
    $region9: #{backbone_base_forward.8} parent=5 // pred_check
      _
    $region10: #{backbone_base_forward.8} parent=5 // pred_check_branch
      %154 = sbr.rel (%p151) target = $region12
    $region11: #{backbone_base_forward.8} parent=5 // pred_region
      %s155 = ssub.s32 %s10, 1
      // Predicated region
      $region13: #{backbone_base_forward.8} parent=11 // pred_check
        %p156 = pneg %p71
      $region14: #{backbone_base_forward.8} parent=11 // pred_check_branch
        %158 = sbr.rel (%p156) target = $region16
      $region15: #{backbone_base_forward.8} parent=11 // pred_region
        _
      $region16: #{backbone_base_forward.8} parent=11 // pred_fallthru
        _
      // Predicated region
      $region17: #{backbone_base_forward.8} parent=11 // pred_check
        %p159 = pneg %p92
      $region18: #{backbone_base_forward.8} parent=11 // pred_check_branch
        %161 = sbr.rel (%p159) target = $region20
      $region19: #{backbone_base_forward.8} parent=11 // pred_region
        _
      $region20: #{backbone_base_forward.8} parent=11 // pred_fallthru
        _
      // Predicated region
      $region21: #{backbone_base_forward.8} parent=11 // pred_check
        %p162 = pneg %p113
      $region22: #{backbone_base_forward.8} parent=11 // pred_check_branch
        %164 = sbr.rel (%p162) target = $region24
      $region23: #{backbone_base_forward.8} parent=11 // pred_region
        _
      $region24: #{backbone_base_forward.8} parent=11 // pred_fallthru
        _
    $region12: #{backbone_base_forward.8} parent=5 // pred_fallthru
      _
    %p165 = scmp.lt.s32.totalorder %s10, 2
    // Predicated region
    $region25: #{backbone_base_forward.8} parent=5 // pred_check
      %p166 = pneg %p165
    $region26: #{backbone_base_forward.8} parent=5 // pred_check_branch
      %168 = sbr.rel (%p166) target = $region28
    $region27: #{backbone_base_forward.8} parent=5 // pred_region
      // Predicated region
      $region29: #{backbone_base_forward.8} parent=27 // pred_check
        %p169 = pneg %p44
      $region30: #{backbone_base_forward.8} parent=27 // pred_check_branch
        %171 = sbr.rel (%p169) target = $region32
      $region31: #{backbone_base_forward.8} parent=27 // pred_region
        %p172 = scmp.lt.s32.totalorder %s17, 1
        %s173 = scalar_select %p172, %s17, 1
        %p174 = scmp.lt.s32.totalorder %s18, 0
        %s175 = scalar_select %p174, %s18, 0
        %s176 = smul.addr %s175, 8
        %s177 = smul.addr %s173, 8
        %s178 = sadd.s32 %s176, %s177
        %s179 = smul.addr %s178, 4
        %s180 = scalar_lea.vmem %s0, %s179
      $region32: #{backbone_base_forward.8} parent=27 // pred_fallthru
        _
    $region28: #{backbone_base_forward.8} parent=5 // pred_fallthru
      _
    %p181 = scmp.le.s32.totalorder 1, %s10
    %p182 = scmp.lt.s32.totalorder %s10, 3
    %p183 = pnand %p181, %p182
    %p184 = pneg %p183
    // Predicated region
    $region33: #{backbone_base_forward.8} parent=5 // pred_check
      _
    $region34: #{backbone_base_forward.8} parent=5 // pred_check_branch
      %186 = sbr.rel (%p183) target = $region36
    $region35: #{backbone_base_forward.8} parent=5 // pred_region
      %s187 = ssub.s32 %s10, 1
      %p188 = scmp.lt.s32.totalorder %s19, 1
      %s189 = scalar_select %p188, %s19, 1
      %p190 = scmp.lt.s32.totalorder %s20, 0
      %s191 = scalar_select %p190, %s20, 0
      %s192 = smul.addr %s191, 8
      %s193 = smul.addr %s189, 8
      %s194 = sadd.s32 %s192, %s193
      %s195 = smul.addr %s194, 4
      %s196 = scalar_lea.vmem %s0, %s195
      %p197 = pneg %p50
      %p198 = pneg %p47
      %p199 = pneg %p71
      %p200 = pneg %p68
      %p201 = pneg %p92
      %p202 = pneg %p89
      %p203 = pneg %p113
      %p204 = pneg %p110
      %p205 = pneg %p141
      %p206 = pneg %p138
      %p207 = scmp.lt.s32.totalorder %s19, 1
      %s208 = scalar_select %p207, %s19, 1
      %p209 = scmp.lt.s32.totalorder %s20, 0
      %s210 = scalar_select %p209, %s20, 0
      %s211 = sadd.s32 %s210, %s208
      %s212 = smul.addr %s211, 4
      %s213 = scalar_lea.vmem %s4, %s212
      %p214 = scmp.lt.s32.totalorder %s19, 1
      %s215 = scalar_select %p214, %s19, 1
      %p216 = scmp.lt.s32.totalorder %s20, 0
      %s217 = scalar_select %p216, %s20, 0
      %s218 = smul.addr %s217, 8
      %s219 = smul.addr %s215, 8
      %s220 = sadd.s32 %s218, %s219
      %s221 = smul.addr %s220, 4
      %s222 = scalar_lea.vmem %s0, %s221
      %p223 = scmp.lt.s32.totalorder %s19, 1
      %s224 = scalar_select %p223, %s19, 1
      %p225 = scmp.lt.s32.totalorder %s20, 0
      %s226 = scalar_select %p225, %s20, 0
      %s227 = sadd.s32 %s226, %s224
      %s228 = smul.addr %s227, 4
      %s229 = scalar_lea.vmem %s4, %s228
      %v231 = vld [vmem:[%s222] sm:$0x77]
      %v232 = vld [vmem:[%s1] sm:$0xf]
      %v233 = vld [vmem:[%s1 + $0x4] sm:$0xf]
      %v234 = vld [vmem:[%s1 + $0x8] sm:$0xf]
      %v235 = vld [vmem:[%s1 + $0xc] sm:$0xf]
      %v236 = vld [vmem:[%s1 + $0x10] sm:$0xf]
      %v237 = vld [vmem:[%s1 + $0x14] sm:$0xf]
      %v238 = vld [vmem:[%s1 + $0x18] sm:$0xf]
      %v239 = vld [vmem:[%s1 + $0x1c] sm:$0xf]
      %v240 = vld [vmem:[%s1 + $0x20] sm:$0xf]
      %v241 = vld [vmem:[%s1 + $0x24] sm:$0xf]
      %v242 = vld [vmem:[%s1 + $0x28] sm:$0xf]
      %v243 = vld [vmem:[%s1 + $0x2c] sm:$0xf]
      %v244 = vld [vmem:[%s1 + $0x30] sm:$0xf]
      %v245 = vld [vmem:[%s1 + $0x34] sm:$0xf]
      %v246 = vld [vmem:[%s1 + $0x38] sm:$0xf]
      %v247 = vld [vmem:[%s1 + $0x3c] sm:$0xf]
      %v248 = vld [vmem:[%s1 + $0x40] sm:$0xf]
      %v249 = vld [vmem:[%s1 + $0x44] sm:$0xf]
      %v250 = vld [vmem:[%s1 + $0x48] sm:$0xf]
      %v251 = vld [vmem:[%s1 + $0x4c] sm:$0xf]
      %v252 = vld [vmem:[%s1 + $0x50] sm:$0xf]
      %v253 = vld [vmem:[%s1 + $0x54] sm:$0xf]
      %v254 = vld [vmem:[%s1 + $0x58] sm:$0xf]
      %v255 = vld [vmem:[%s1 + $0x5c] sm:$0xf]
      %v256 = vld [vmem:[%s1 + $0x60] sm:$0xf]
      %v257 = vld [vmem:[%s1 + $0x64] sm:$0xf]
      %v258 = vld [vmem:[%s1 + $0x68] sm:$0xf]
      %v259 = vld [vmem:[%s1 + $0x6c] sm:$0xf]
      %v260 = vld [vmem:[%s1 + $0x70] sm:$0xf]
      %v261 = vld [vmem:[%s1 + $0x74] sm:$0xf]
      %v262 = vld [vmem:[%s1 + $0x78] sm:$0xf]
      %v263 = vld [vmem:[%s1 + $0x7c] sm:$0xf]
      %v264 = vld [vmem:[%s222] sm:$0xf]
      %v265 = vld [vmem:[%s2] sm:$0xf]
      %v266 = vld [vmem:[%s2 + $0x4] sm:$0xf]
      %v267 = vld [vmem:[%s2 + $0x8] sm:$0xf]
      %v268 = vld [vmem:[%s2 + $0xc] sm:$0xf]
      %v269 = vld [vmem:[%s2 + $0x10] sm:$0xf]
      %v270 = vld [vmem:[%s2 + $0x14] sm:$0xf]
      %v271 = vld [vmem:[%s2 + $0x18] sm:$0xf]
      %v272 = vld [vmem:[%s2 + $0x1c] sm:$0xf]
      %v273 = vld [vmem:[%s2 + $0x20] sm:$0xf]
      %v274 = vld [vmem:[%s2 + $0x24] sm:$0xf]
      %v275 = vld [vmem:[%s2 + $0x28] sm:$0xf]
      %v276 = vld [vmem:[%s2 + $0x2c] sm:$0xf]
      %v277 = vld [vmem:[%s2 + $0x30] sm:$0xf]
      %v278 = vld [vmem:[%s2 + $0x34] sm:$0xf]
      %v279 = vld [vmem:[%s2 + $0x38] sm:$0xf]
      %v280 = vld [vmem:[%s2 + $0x3c] sm:$0xf]
      %v282 = vunpack.c.l.b16 %v264
      %v283 = vpack.c.b16 %v282, %v282
      %v285 = vshrl.u32 %v283, 16
      %v287 = vshll.u32 %v283, 16
      %v289 = vrot.slane %v287, 1
      %v290 = vor.u32 %v285, %v289
      %v308 = vunpack.c.l.b16 %v265
      %v309 = vunpack.c.l.b16 %v266
      %v310 = vunpack.c.l.b16 %v267
      %v311 = vunpack.c.l.b16 %v268
      %v312 = vunpack.c.l.b16 %v269
      %v313 = vunpack.c.l.b16 %v270
      %v314 = vunpack.c.l.b16 %v271
      %v315 = vunpack.c.l.b16 %v272
      %v316 = vunpack.c.l.b16 %v273
      %v317 = vunpack.c.l.b16 %v274
      %v318 = vunpack.c.l.b16 %v275
      %v319 = vunpack.c.l.b16 %v276
      %v320 = vunpack.c.l.b16 %v277
      %v321 = vunpack.c.l.b16 %v278
      %v322 = vunpack.c.l.b16 %v279
      %v323 = vunpack.c.l.b16 %v280
      %v324 = vpack.c.b16 %v309, %v308
      %v325 = vpack.c.b16 %v311, %v310
      %v326 = vpack.c.b16 %v313, %v312
      %v327 = vpack.c.b16 %v315, %v314
      %v328 = vpack.c.b16 %v317, %v316
      %v329 = vpack.c.b16 %v319, %v318
      %v330 = vpack.c.b16 %v321, %v320
      %v331 = vpack.c.b16 %v323, %v322
      %340 = vmatprep.subr.bf16.mxu0 0
      %341 = vmatpush1.bf16.msra.mxu0 %v331
      %342 = vmatprep.subr.bf16.mxu0 0
      %343 = vmatpush1.bf16.msra.mxu0 %v330
      %344 = vmatprep.subr.bf16.mxu0 0
      %345 = vmatpush1.bf16.msra.mxu0 %v329
      %346 = vmatprep.subr.bf16.mxu0 0
      %347 = vmatpush1.bf16.msra.mxu0 %v328
      %348 = vmatprep.subr.bf16.mxu0 0
      %349 = vmatpush1.bf16.msra.mxu0 %v327
      %350 = vmatprep.subr.bf16.mxu0 0
      %351 = vmatpush1.bf16.msra.mxu0 %v326
      %352 = vmatprep.subr.bf16.mxu0 0
      %353 = vmatpush1.bf16.msra.mxu0 %v325
      %354 = vmatprep.subr.bf16.mxu0 0
      %355 = vmatpush1.bf16.msra.mxu0 %v324
      %356 = vmatprep.subr.bf16.mxu0 0
      %357 = vmatpush2.bf16.msra.mxu0 0
      %358 = vmatprep.subr.bf16.mxu0 0
      %359 = vmatpush2.bf16.msra.mxu0 0
      %360 = vmatprep.subr.bf16.mxu0 0
      %361 = vmatpush2.bf16.msra.mxu0 0
      %362 = vmatprep.subr.bf16.mxu0 0
      %363 = vmatpush2.bf16.msra.mxu0 0
      %364 = vmatprep.subr.bf16.mxu0 0
      %365 = vmatpush2.bf16.msra.mxu0 0
      %366 = vmatprep.subr.bf16.mxu0 0
      %367 = vmatpush2.bf16.msra.mxu0 0
      %368 = vmatprep.subr.bf16.mxu0 0
      %369 = vmatpush2.bf16.msra.mxu0 0
      %370 = vmatprep.subr.bf16.mxu0 0
      %371 = vmatpush2.bf16.msra.mxu0 0
      %372 = vmatprep.mubr.bf16.mxu0 0
      %373 = vmatmul.mubr.bf16.gmra.mxu0 %v290
      %v374 = vpop.f32.mrf.mxu0
      %v375 = vadd.f32 0.0, %v374
      %v376 = vpop.f32.mrf.mxu0
      %v377 = vpop.f32.mrf.mxu0
      %v378 = vpop.f32.mrf.mxu0
      %379 = vdwg.mxu0
      %v381 = vunpack.c.l.b16 %v231
      %v382 = vunpack.c.h.b16 %v231
      %v383 = vpack.c.b16 %v381, %v381
      %v384 = vpack.c.b16 %v382, %v382
      %v419 = vunpack.c.l.b16 %v232
      %v420 = vunpack.c.l.b16 %v233
      %v421 = vunpack.c.l.b16 %v234
      %v422 = vunpack.c.l.b16 %v235
      %v423 = vunpack.c.l.b16 %v236
      %v424 = vunpack.c.l.b16 %v237
      %v425 = vunpack.c.l.b16 %v238
      %v426 = vunpack.c.l.b16 %v239
      %v427 = vunpack.c.l.b16 %v240
      %v428 = vunpack.c.l.b16 %v241
      %v429 = vunpack.c.l.b16 %v242
      %v430 = vunpack.c.l.b16 %v243
      %v431 = vunpack.c.l.b16 %v244
      %v432 = vunpack.c.l.b16 %v245
      %v433 = vunpack.c.l.b16 %v246
      %v434 = vunpack.c.l.b16 %v247
      %v435 = vunpack.c.l.b16 %v248
      %v436 = vunpack.c.l.b16 %v249
      %v437 = vunpack.c.l.b16 %v250
      %v438 = vunpack.c.l.b16 %v251
      %v439 = vunpack.c.l.b16 %v252
      %v440 = vunpack.c.l.b16 %v253
      %v441 = vunpack.c.l.b16 %v254
      %v442 = vunpack.c.l.b16 %v255
      %v443 = vunpack.c.l.b16 %v256
      %v444 = vunpack.c.l.b16 %v257
      %v445 = vunpack.c.l.b16 %v258
      %v446 = vunpack.c.l.b16 %v259
      %v447 = vunpack.c.l.b16 %v260
      %v448 = vunpack.c.l.b16 %v261
      %v449 = vunpack.c.l.b16 %v262
      %v450 = vunpack.c.l.b16 %v263
      %v451 = vpack.c.b16 %v420, %v419
      %v452 = vpack.c.b16 %v422, %v421
      %v453 = vpack.c.b16 %v424, %v423
      %v454 = vpack.c.b16 %v426, %v425
      %v455 = vpack.c.b16 %v428, %v427
      %v456 = vpack.c.b16 %v430, %v429
      %v457 = vpack.c.b16 %v432, %v431
      %v458 = vpack.c.b16 %v434, %v433
      %v459 = vpack.c.b16 %v436, %v435
      %v460 = vpack.c.b16 %v438, %v437
      %v461 = vpack.c.b16 %v440, %v439
      %v462 = vpack.c.b16 %v442, %v441
      %v463 = vpack.c.b16 %v444, %v443
      %v464 = vpack.c.b16 %v446, %v445
      %v465 = vpack.c.b16 %v448, %v447
      %v466 = vpack.c.b16 %v450, %v449
      %483 = vmatprep.subr.bf16.mxu0 0
      %484 = vmatpush1.bf16.msra.mxu0 %v458
      %485 = vmatprep.subr.bf16.mxu0 0
      %486 = vmatpush1.bf16.msra.mxu0 %v457
      %487 = vmatprep.subr.bf16.mxu0 0
      %488 = vmatpush1.bf16.msra.mxu0 %v456
      %489 = vmatprep.subr.bf16.mxu0 0
      %490 = vmatpush1.bf16.msra.mxu0 %v455
      %491 = vmatprep.subr.bf16.mxu0 0
      %492 = vmatpush1.bf16.msra.mxu0 %v454
      %493 = vmatprep.subr.bf16.mxu0 0
      %494 = vmatpush1.bf16.msra.mxu0 %v453
      %495 = vmatprep.subr.bf16.mxu0 0
      %496 = vmatpush1.bf16.msra.mxu0 %v452
      %497 = vmatprep.subr.bf16.mxu0 0
      %498 = vmatpush1.bf16.msra.mxu0 %v451
      %499 = vmatprep.subr.bf16.mxu0 0
      %500 = vmatpush2.bf16.msra.mxu0 %v466
      %501 = vmatprep.subr.bf16.mxu0 0
      %502 = vmatpush2.bf16.msra.mxu0 %v465
      %503 = vmatprep.subr.bf16.mxu0 0
      %504 = vmatpush2.bf16.msra.mxu0 %v464
      %505 = vmatprep.subr.bf16.mxu0 0
      %506 = vmatpush2.bf16.msra.mxu0 %v463
      %507 = vmatprep.subr.bf16.mxu0 0
      %508 = vmatpush2.bf16.msra.mxu0 %v462
      %509 = vmatprep.subr.bf16.mxu0 0
      %510 = vmatpush2.bf16.msra.mxu0 %v461
      %511 = vmatprep.subr.bf16.mxu0 0
      %512 = vmatpush2.bf16.msra.mxu0 %v460
      %513 = vmatprep.subr.bf16.mxu0 0
      %514 = vmatpush2.bf16.msra.mxu0 %v459
      %515 = vmatprep.mubr.bf16.mxu0 %v384
      %516 = vmatmul.mubr.bf16.gmra.mxu0 %v383
      %v517 = vpop.f32.mrf.mxu0
      %v518 = vadd.f32 %v375, %v517
      %v519 = vpop.f32.mrf.mxu0
      %v520 = vpop.f32.mrf.mxu0
      %v521 = vpop.f32.mrf.mxu0
      %522 = vdwg.mxu0
      %s523 = scalar_lea.vmem %s222, 16
      %v524 = vld [vmem:[%s523] sm:$0x77]
      %s525 = scalar_lea.vmem %s1, 128
      %v526 = vld [vmem:[%s525] sm:$0xf]
      %v527 = vld [vmem:[%s525 + $0x4] sm:$0xf]
      %v528 = vld [vmem:[%s525 + $0x8] sm:$0xf]
      %v529 = vld [vmem:[%s525 + $0xc] sm:$0xf]
      %v530 = vld [vmem:[%s525 + $0x10] sm:$0xf]
      %v531 = vld [vmem:[%s525 + $0x14] sm:$0xf]
      %v532 = vld [vmem:[%s525 + $0x18] sm:$0xf]
      %v533 = vld [vmem:[%s525 + $0x1c] sm:$0xf]
      %v534 = vld [vmem:[%s525 + $0x20] sm:$0xf]
      %v535 = vld [vmem:[%s525 + $0x24] sm:$0xf]
      %v536 = vld [vmem:[%s525 + $0x28] sm:$0xf]
      %v537 = vld [vmem:[%s525 + $0x2c] sm:$0xf]
      %v538 = vld [vmem:[%s525 + $0x30] sm:$0xf]
      %v539 = vld [vmem:[%s525 + $0x34] sm:$0xf]
      %v540 = vld [vmem:[%s525 + $0x38] sm:$0xf]
      %v541 = vld [vmem:[%s525 + $0x3c] sm:$0xf]
      %v542 = vld [vmem:[%s525 + $0x40] sm:$0xf]
      %v543 = vld [vmem:[%s525 + $0x44] sm:$0xf]
      %v544 = vld [vmem:[%s525 + $0x48] sm:$0xf]
      %v545 = vld [vmem:[%s525 + $0x4c] sm:$0xf]
      %v546 = vld [vmem:[%s525 + $0x50] sm:$0xf]
      %v547 = vld [vmem:[%s525 + $0x54] sm:$0xf]
      %v548 = vld [vmem:[%s525 + $0x58] sm:$0xf]
      %v549 = vld [vmem:[%s525 + $0x5c] sm:$0xf]
      %v550 = vld [vmem:[%s525 + $0x60] sm:$0xf]
      %v551 = vld [vmem:[%s525 + $0x64] sm:$0xf]
      %v552 = vld [vmem:[%s525 + $0x68] sm:$0xf]
      %v553 = vld [vmem:[%s525 + $0x6c] sm:$0xf]
      %v554 = vld [vmem:[%s525 + $0x70] sm:$0xf]
      %v555 = vld [vmem:[%s525 + $0x74] sm:$0xf]
      %v556 = vld [vmem:[%s525 + $0x78] sm:$0xf]
      %v557 = vld [vmem:[%s525 + $0x7c] sm:$0xf]
      %v559 = vunpack.c.l.b16 %v524
      %v560 = vunpack.c.h.b16 %v524
      %v561 = vpack.c.b16 %v559, %v559
      %v562 = vpack.c.b16 %v560, %v560
      %v597 = vunpack.c.l.b16 %v526
      %v598 = vunpack.c.l.b16 %v527
      %v599 = vunpack.c.l.b16 %v528
      %v600 = vunpack.c.l.b16 %v529
      %v601 = vunpack.c.l.b16 %v530
      %v602 = vunpack.c.l.b16 %v531
      %v603 = vunpack.c.l.b16 %v532
      %v604 = vunpack.c.l.b16 %v533
      %v605 = vunpack.c.l.b16 %v534
      %v606 = vunpack.c.l.b16 %v535
      %v607 = vunpack.c.l.b16 %v536
      %v608 = vunpack.c.l.b16 %v537
      %v609 = vunpack.c.l.b16 %v538
      %v610 = vunpack.c.l.b16 %v539
      %v611 = vunpack.c.l.b16 %v540
      %v612 = vunpack.c.l.b16 %v541
      %v613 = vunpack.c.l.b16 %v542
      %v614 = vunpack.c.l.b16 %v543
      %v615 = vunpack.c.l.b16 %v544
      %v616 = vunpack.c.l.b16 %v545
      %v617 = vunpack.c.l.b16 %v546
      %v618 = vunpack.c.l.b16 %v547
      %v619 = vunpack.c.l.b16 %v548
      %v620 = vunpack.c.l.b16 %v549
      %v621 = vunpack.c.l.b16 %v550
      %v622 = vunpack.c.l.b16 %v551
      %v623 = vunpack.c.l.b16 %v552
      %v624 = vunpack.c.l.b16 %v553
      %v625 = vunpack.c.l.b16 %v554
      %v626 = vunpack.c.l.b16 %v555
      %v627 = vunpack.c.l.b16 %v556
      %v628 = vunpack.c.l.b16 %v557
      %v629 = vpack.c.b16 %v598, %v597
      %v630 = vpack.c.b16 %v600, %v599
      %v631 = vpack.c.b16 %v602, %v601
      %v632 = vpack.c.b16 %v604, %v603
      %v633 = vpack.c.b16 %v606, %v605
      %v634 = vpack.c.b16 %v608, %v607
      %v635 = vpack.c.b16 %v610, %v609
      %v636 = vpack.c.b16 %v612, %v611
      %v637 = vpack.c.b16 %v614, %v613
      %v638 = vpack.c.b16 %v616, %v615
      %v639 = vpack.c.b16 %v618, %v617
      %v640 = vpack.c.b16 %v620, %v619
      %v641 = vpack.c.b16 %v622, %v621
      %v642 = vpack.c.b16 %v624, %v623
      %v643 = vpack.c.b16 %v626, %v625
      %v644 = vpack.c.b16 %v628, %v627
      %661 = vmatprep.subr.bf16.mxu0 0
      %662 = vmatpush1.bf16.msra.mxu0 %v636
      %663 = vmatprep.subr.bf16.mxu0 0
      %664 = vmatpush1.bf16.msra.mxu0 %v635
      %665 = vmatprep.subr.bf16.mxu0 0
      %666 = vmatpush1.bf16.msra.mxu0 %v634
      %667 = vmatprep.subr.bf16.mxu0 0
      %668 = vmatpush1.bf16.msra.mxu0 %v633
      %669 = vmatprep.subr.bf16.mxu0 0
      %670 = vmatpush1.bf16.msra.mxu0 %v632
      %671 = vmatprep.subr.bf16.mxu0 0
      %672 = vmatpush1.bf16.msra.mxu0 %v631
      %673 = vmatprep.subr.bf16.mxu0 0
      %674 = vmatpush1.bf16.msra.mxu0 %v630
      %675 = vmatprep.subr.bf16.mxu0 0
      %676 = vmatpush1.bf16.msra.mxu0 %v629
      %677 = vmatprep.subr.bf16.mxu0 0
      %678 = vmatpush2.bf16.msra.mxu0 %v644
      %679 = vmatprep.subr.bf16.mxu0 0
      %680 = vmatpush2.bf16.msra.mxu0 %v643
      %681 = vmatprep.subr.bf16.mxu0 0
      %682 = vmatpush2.bf16.msra.mxu0 %v642
      %683 = vmatprep.subr.bf16.mxu0 0
      %684 = vmatpush2.bf16.msra.mxu0 %v641
      %685 = vmatprep.subr.bf16.mxu0 0
      %686 = vmatpush2.bf16.msra.mxu0 %v640
      %687 = vmatprep.subr.bf16.mxu0 0
      %688 = vmatpush2.bf16.msra.mxu0 %v639
      %689 = vmatprep.subr.bf16.mxu0 0
      %690 = vmatpush2.bf16.msra.mxu0 %v638
      %691 = vmatprep.subr.bf16.mxu0 0
      %692 = vmatpush2.bf16.msra.mxu0 %v637
      %693 = vmatprep.mubr.bf16.mxu0 %v562
      %694 = vmatmul.mubr.bf16.gmra.mxu0 %v561
      %v695 = vpop.f32.mrf.mxu0
      %v696 = vadd.f32 0.0, %v695
      %v697 = vpop.f32.mrf.mxu0
      %v698 = vpop.f32.mrf.mxu0
      %v699 = vpop.f32.mrf.mxu0
      %700 = vdwg.mxu0
      %v701 = vadd.f32 %v518, %v696
      %v702 = vld [vmem:[%s523] sm:$0xf]
      %s703 = scalar_lea.vmem %s2, 64
      %v704 = vld [vmem:[%s703] sm:$0xf]
      %v705 = vld [vmem:[%s703 + $0x4] sm:$0xf]
      %v706 = vld [vmem:[%s703 + $0x8] sm:$0xf]
      %v707 = vld [vmem:[%s703 + $0xc] sm:$0xf]
      %v708 = vld [vmem:[%s703 + $0x10] sm:$0xf]
      %v709 = vld [vmem:[%s703 + $0x14] sm:$0xf]
      %v710 = vld [vmem:[%s703 + $0x18] sm:$0xf]
      %v711 = vld [vmem:[%s703 + $0x1c] sm:$0xf]
      %v712 = vld [vmem:[%s703 + $0x20] sm:$0xf]
      %v713 = vld [vmem:[%s703 + $0x24] sm:$0xf]
      %v714 = vld [vmem:[%s703 + $0x28] sm:$0xf]
      %v715 = vld [vmem:[%s703 + $0x2c] sm:$0xf]
      %v716 = vld [vmem:[%s703 + $0x30] sm:$0xf]
      %v717 = vld [vmem:[%s703 + $0x34] sm:$0xf]
      %v718 = vld [vmem:[%s703 + $0x38] sm:$0xf]
      %v719 = vld [vmem:[%s703 + $0x3c] sm:$0xf]
      %v721 = vunpack.c.l.b16 %v702
      %v722 = vpack.c.b16 %v721, %v721
      %v724 = vshrl.u32 %v722, 16
      %v726 = vshll.u32 %v722, 16
      %v728 = vrot.slane %v726, 1
      %v729 = vor.u32 %v724, %v728
      %v747 = vunpack.c.l.b16 %v704
      %v748 = vunpack.c.l.b16 %v705
      %v749 = vunpack.c.l.b16 %v706
      %v750 = vunpack.c.l.b16 %v707
      %v751 = vunpack.c.l.b16 %v708
      %v752 = vunpack.c.l.b16 %v709
      %v753 = vunpack.c.l.b16 %v710
      %v754 = vunpack.c.l.b16 %v711
      %v755 = vunpack.c.l.b16 %v712
      %v756 = vunpack.c.l.b16 %v713
      %v757 = vunpack.c.l.b16 %v714
      %v758 = vunpack.c.l.b16 %v715
      %v759 = vunpack.c.l.b16 %v716
      %v760 = vunpack.c.l.b16 %v717
      %v761 = vunpack.c.l.b16 %v718
      %v762 = vunpack.c.l.b16 %v719
      %v763 = vpack.c.b16 %v748, %v747
      %v764 = vpack.c.b16 %v750, %v749
      %v765 = vpack.c.b16 %v752, %v751
      %v766 = vpack.c.b16 %v754, %v753
      %v767 = vpack.c.b16 %v756, %v755
      %v768 = vpack.c.b16 %v758, %v757
      %v769 = vpack.c.b16 %v760, %v759
      %v770 = vpack.c.b16 %v762, %v761
      %779 = vmatprep.subr.bf16.mxu0 0
      %780 = vmatpush1.bf16.msra.mxu0 %v770
      %781 = vmatprep.subr.bf16.mxu0 0
      %782 = vmatpush1.bf16.msra.mxu0 %v769
      %783 = vmatprep.subr.bf16.mxu0 0
      %784 = vmatpush1.bf16.msra.mxu0 %v768
      %785 = vmatprep.subr.bf16.mxu0 0
      %786 = vmatpush1.bf16.msra.mxu0 %v767
      %787 = vmatprep.subr.bf16.mxu0 0
      %788 = vmatpush1.bf16.msra.mxu0 %v766
      %789 = vmatprep.subr.bf16.mxu0 0
      %790 = vmatpush1.bf16.msra.mxu0 %v765
      %791 = vmatprep.subr.bf16.mxu0 0
      %792 = vmatpush1.bf16.msra.mxu0 %v764
      %793 = vmatprep.subr.bf16.mxu0 0
      %794 = vmatpush1.bf16.msra.mxu0 %v763
      %795 = vmatprep.subr.bf16.mxu0 0
      %796 = vmatpush2.bf16.msra.mxu0 0
      %797 = vmatprep.subr.bf16.mxu0 0
      %798 = vmatpush2.bf16.msra.mxu0 0
      %799 = vmatprep.subr.bf16.mxu0 0
      %800 = vmatpush2.bf16.msra.mxu0 0
      %801 = vmatprep.subr.bf16.mxu0 0
      %802 = vmatpush2.bf16.msra.mxu0 0
      %803 = vmatprep.subr.bf16.mxu0 0
      %804 = vmatpush2.bf16.msra.mxu0 0
      %805 = vmatprep.subr.bf16.mxu0 0
      %806 = vmatpush2.bf16.msra.mxu0 0
      %807 = vmatprep.subr.bf16.mxu0 0
      %808 = vmatpush2.bf16.msra.mxu0 0
      %809 = vmatprep.subr.bf16.mxu0 0
      %810 = vmatpush2.bf16.msra.mxu0 0
      %811 = vmatprep.mubr.bf16.mxu0 0
      %812 = vmatmul.mubr.bf16.gmra.mxu0 %v729
      %v813 = vpop.f32.mrf.mxu0
      %v814 = vadd.f32 0.0, %v813
      %v815 = vpop.f32.mrf.mxu0
      %v816 = vpop.f32.mrf.mxu0
      %v817 = vpop.f32.mrf.mxu0
      %818 = vdwg.mxu0
      %v819 = vadd.f32 %v701, %v814
      %v820 = vld [vmem:[%s222] sm:$0xee]
      %v821 = vld [vmem:[%s222 + $0x8] sm:$0x11]
      %s822 = scalar_lea.vmem %s1, 256
      %v823 = vld [vmem:[%s822] sm:$0xf]
      %v824 = vld [vmem:[%s822 + $0x4] sm:$0xf]
      %v825 = vld [vmem:[%s822 + $0x8] sm:$0xf]
      %v826 = vld [vmem:[%s822 + $0xc] sm:$0xf]
      %v827 = vld [vmem:[%s822 + $0x10] sm:$0xf]
      %v828 = vld [vmem:[%s822 + $0x14] sm:$0xf]
      %v829 = vld [vmem:[%s822 + $0x18] sm:$0xf]
      %v830 = vld [vmem:[%s822 + $0x1c] sm:$0xf]
      %v831 = vld [vmem:[%s822 + $0x20] sm:$0xf]
      %v832 = vld [vmem:[%s822 + $0x24] sm:$0xf]
      %v833 = vld [vmem:[%s822 + $0x28] sm:$0xf]
      %v834 = vld [vmem:[%s822 + $0x2c] sm:$0xf]
      %v835 = vld [vmem:[%s822 + $0x30] sm:$0xf]
      %v836 = vld [vmem:[%s822 + $0x34] sm:$0xf]
      %v837 = vld [vmem:[%s822 + $0x38] sm:$0xf]
      %v838 = vld [vmem:[%s822 + $0x3c] sm:$0xf]
      %v839 = vld [vmem:[%s822 + $0x40] sm:$0xf]
      %v840 = vld [vmem:[%s822 + $0x44] sm:$0xf]
      %v841 = vld [vmem:[%s822 + $0x48] sm:$0xf]
      %v842 = vld [vmem:[%s822 + $0x4c] sm:$0xf]
      %v843 = vld [vmem:[%s822 + $0x50] sm:$0xf]
      %v844 = vld [vmem:[%s822 + $0x54] sm:$0xf]
      %v845 = vld [vmem:[%s822 + $0x58] sm:$0xf]
      %v846 = vld [vmem:[%s822 + $0x5c] sm:$0xf]
      %v847 = vld [vmem:[%s822 + $0x60] sm:$0xf]
      %v848 = vld [vmem:[%s822 + $0x64] sm:$0xf]
      %v849 = vld [vmem:[%s822 + $0x68] sm:$0xf]
      %v850 = vld [vmem:[%s822 + $0x6c] sm:$0xf]
      %v851 = vld [vmem:[%s822 + $0x70] sm:$0xf]
      %v852 = vld [vmem:[%s822 + $0x74] sm:$0xf]
      %v853 = vld [vmem:[%s822 + $0x78] sm:$0xf]
      %v854 = vld [vmem:[%s822 + $0x7c] sm:$0xf]
      %v857 = vunpack.c.l.b16 %v820
      %v858 = vunpack.c.h.b16 %v820
      %v859 = vunpack.c.l.b16 %v821
      %v860 = vunpack.c.h.b16 %v821
      %v861 = vpack.c.b16 %v859, %v857
      %v862 = vpack.c.b16 %v860, %v858
      %v864 = vshrl.u32 %v861, 16
      %v866 = vrot.slane %v864, 1
      %v867 = vshll.u32 %v861, 16
      %v869 = vrot.slane %v867, 2
      %v870 = vor.u32 %v866, %v869
      %v872 = vshrl.u32 %v862, 16
      %v874 = vrot.slane %v872, 1
      %v875 = vshll.u32 %v862, 16
      %v877 = vrot.slane %v875, 2
      %v878 = vor.u32 %v874, %v877
      %v913 = vunpack.c.l.b16 %v823
      %v914 = vunpack.c.l.b16 %v824
      %v915 = vunpack.c.l.b16 %v825
      %v916 = vunpack.c.l.b16 %v826
      %v917 = vunpack.c.l.b16 %v827
      %v918 = vunpack.c.l.b16 %v828
      %v919 = vunpack.c.l.b16 %v829
      %v920 = vunpack.c.l.b16 %v830
      %v921 = vunpack.c.l.b16 %v831
      %v922 = vunpack.c.l.b16 %v832
      %v923 = vunpack.c.l.b16 %v833
      %v924 = vunpack.c.l.b16 %v834
      %v925 = vunpack.c.l.b16 %v835
      %v926 = vunpack.c.l.b16 %v836
      %v927 = vunpack.c.l.b16 %v837
      %v928 = vunpack.c.l.b16 %v838
      %v929 = vunpack.c.l.b16 %v839
      %v930 = vunpack.c.l.b16 %v840
      %v931 = vunpack.c.l.b16 %v841
      %v932 = vunpack.c.l.b16 %v842
      %v933 = vunpack.c.l.b16 %v843
      %v934 = vunpack.c.l.b16 %v844
      %v935 = vunpack.c.l.b16 %v845
      %v936 = vunpack.c.l.b16 %v846
      %v937 = vunpack.c.l.b16 %v847
      %v938 = vunpack.c.l.b16 %v848
      %v939 = vunpack.c.l.b16 %v849
      %v940 = vunpack.c.l.b16 %v850
      %v941 = vunpack.c.l.b16 %v851
      %v942 = vunpack.c.l.b16 %v852
      %v943 = vunpack.c.l.b16 %v853
      %v944 = vunpack.c.l.b16 %v854
      %v945 = vpack.c.b16 %v914, %v913
      %v946 = vpack.c.b16 %v916, %v915
      %v947 = vpack.c.b16 %v918, %v917
      %v948 = vpack.c.b16 %v920, %v919
      %v949 = vpack.c.b16 %v922, %v921
      %v950 = vpack.c.b16 %v924, %v923
      %v951 = vpack.c.b16 %v926, %v925
      %v952 = vpack.c.b16 %v928, %v927
      %v953 = vpack.c.b16 %v930, %v929
      %v954 = vpack.c.b16 %v932, %v931
      %v955 = vpack.c.b16 %v934, %v933
      %v956 = vpack.c.b16 %v936, %v935
      %v957 = vpack.c.b16 %v938, %v937
      %v958 = vpack.c.b16 %v940, %v939
      %v959 = vpack.c.b16 %v942, %v941
      %v960 = vpack.c.b16 %v944, %v943
      %977 = vmatprep.subr.bf16.mxu0 0
      %978 = vmatpush1.bf16.msra.mxu0 %v952
      %979 = vmatprep.subr.bf16.mxu0 0
      %980 = vmatpush1.bf16.msra.mxu0 %v951
      %981 = vmatprep.subr.bf16.mxu0 0
      %982 = vmatpush1.bf16.msra.mxu0 %v950
      %983 = vmatprep.subr.bf16.mxu0 0
      %984 = vmatpush1.bf16.msra.mxu0 %v949
      %985 = vmatprep.subr.bf16.mxu0 0
      %986 = vmatpush1.bf16.msra.mxu0 %v948
      %987 = vmatprep.subr.bf16.mxu0 0
      %988 = vmatpush1.bf16.msra.mxu0 %v947
      %989 = vmatprep.subr.bf16.mxu0 0
      %990 = vmatpush1.bf16.msra.mxu0 %v946
      %991 = vmatprep.subr.bf16.mxu0 0
      %992 = vmatpush1.bf16.msra.mxu0 %v945
      %993 = vmatprep.subr.bf16.mxu0 0
      %994 = vmatpush2.bf16.msra.mxu0 %v960
      %995 = vmatprep.subr.bf16.mxu0 0
      %996 = vmatpush2.bf16.msra.mxu0 %v959
      %997 = vmatprep.subr.bf16.mxu0 0
      %998 = vmatpush2.bf16.msra.mxu0 %v958
      %999 = vmatprep.subr.bf16.mxu0 0
      %1000 = vmatpush2.bf16.msra.mxu0 %v957
      %1001 = vmatprep.subr.bf16.mxu0 0
      %1002 = vmatpush2.bf16.msra.mxu0 %v956
      %1003 = vmatprep.subr.bf16.mxu0 0
      %1004 = vmatpush2.bf16.msra.mxu0 %v955
      %1005 = vmatprep.subr.bf16.mxu0 0
      %1006 = vmatpush2.bf16.msra.mxu0 %v954
      %1007 = vmatprep.subr.bf16.mxu0 0
      %1008 = vmatpush2.bf16.msra.mxu0 %v953
      %1009 = vmatprep.mubr.bf16.mxu0 %v878
      %1010 = vmatmul.mubr.bf16.gmra.mxu0 %v870
      %v1011 = vpop.f32.mrf.mxu0
      %v1012 = vadd.f32 0.0, %v1011
      %v1013 = vpop.f32.mrf.mxu0
      %v1014 = vpop.f32.mrf.mxu0
      %v1015 = vpop.f32.mrf.mxu0
      %1016 = vdwg.mxu0
      %v1017 = vadd.f32 %v819, %v1012
      %v1018 = vld [vmem:[%s222] sm:$0xc]
      %v1019 = vld [vmem:[%s222 + $0x8] sm:$0x1]
      %s1020 = scalar_lea.vmem %s2, 128
      %v1021 = vld [vmem:[%s1020] sm:$0xf]
      %v1022 = vld [vmem:[%s1020 + $0x4] sm:$0xf]
      %v1023 = vld [vmem:[%s1020 + $0x8] sm:$0xf]
      %v1024 = vld [vmem:[%s1020 + $0xc] sm:$0xf]
      %v1025 = vld [vmem:[%s1020 + $0x10] sm:$0xf]
      %v1026 = vld [vmem:[%s1020 + $0x14] sm:$0xf]
      %v1027 = vld [vmem:[%s1020 + $0x18] sm:$0xf]
      %v1028 = vld [vmem:[%s1020 + $0x1c] sm:$0xf]
      %v1029 = vld [vmem:[%s1020 + $0x20] sm:$0xf]
      %v1030 = vld [vmem:[%s1020 + $0x24] sm:$0xf]
      %v1031 = vld [vmem:[%s1020 + $0x28] sm:$0xf]
      %v1032 = vld [vmem:[%s1020 + $0x2c] sm:$0xf]
      %v1033 = vld [vmem:[%s1020 + $0x30] sm:$0xf]
      %v1034 = vld [vmem:[%s1020 + $0x34] sm:$0xf]
      %v1035 = vld [vmem:[%s1020 + $0x38] sm:$0xf]
      %v1036 = vld [vmem:[%s1020 + $0x3c] sm:$0xf]
      %v1039 = vunpack.c.l.b16 %v1018
      %v1040 = vunpack.c.l.b16 %v1019
      %v1041 = vpack.c.b16 %v1040, %v1039
      %v1042 = vrot.slane %v1041, 2
      %v1060 = vunpack.c.l.b16 %v1021
      %v1061 = vunpack.c.l.b16 %v1022
      %v1062 = vunpack.c.l.b16 %v1023
      %v1063 = vunpack.c.l.b16 %v1024
      %v1064 = vunpack.c.l.b16 %v1025
      %v1065 = vunpack.c.l.b16 %v1026
      %v1066 = vunpack.c.l.b16 %v1027
      %v1067 = vunpack.c.l.b16 %v1028
      %v1068 = vunpack.c.l.b16 %v1029
      %v1069 = vunpack.c.l.b16 %v1030
      %v1070 = vunpack.c.l.b16 %v1031
      %v1071 = vunpack.c.l.b16 %v1032
      %v1072 = vunpack.c.l.b16 %v1033
      %v1073 = vunpack.c.l.b16 %v1034
      %v1074 = vunpack.c.l.b16 %v1035
      %v1075 = vunpack.c.l.b16 %v1036
      %v1076 = vpack.c.b16 %v1061, %v1060
      %v1077 = vpack.c.b16 %v1063, %v1062
      %v1078 = vpack.c.b16 %v1065, %v1064
      %v1079 = vpack.c.b16 %v1067, %v1066
      %v1080 = vpack.c.b16 %v1069, %v1068
      %v1081 = vpack.c.b16 %v1071, %v1070
      %v1082 = vpack.c.b16 %v1073, %v1072
      %v1083 = vpack.c.b16 %v1075, %v1074
      %1092 = vmatprep.subr.bf16.mxu0 0
      %1093 = vmatpush1.bf16.msra.mxu0 %v1083
      %1094 = vmatprep.subr.bf16.mxu0 0
      %1095 = vmatpush1.bf16.msra.mxu0 %v1082
      %1096 = vmatprep.subr.bf16.mxu0 0
      %1097 = vmatpush1.bf16.msra.mxu0 %v1081
      %1098 = vmatprep.subr.bf16.mxu0 0
      %1099 = vmatpush1.bf16.msra.mxu0 %v1080
      %1100 = vmatprep.subr.bf16.mxu0 0
      %1101 = vmatpush1.bf16.msra.mxu0 %v1079
      %1102 = vmatprep.subr.bf16.mxu0 0
      %1103 = vmatpush1.bf16.msra.mxu0 %v1078
      %1104 = vmatprep.subr.bf16.mxu0 0
      %1105 = vmatpush1.bf16.msra.mxu0 %v1077
      %1106 = vmatprep.subr.bf16.mxu0 0
      %1107 = vmatpush1.bf16.msra.mxu0 %v1076
      %1108 = vmatprep.subr.bf16.mxu0 0
      %1109 = vmatpush2.bf16.msra.mxu0 0
      %1110 = vmatprep.subr.bf16.mxu0 0
      %1111 = vmatpush2.bf16.msra.mxu0 0
      %1112 = vmatprep.subr.bf16.mxu0 0
      %1113 = vmatpush2.bf16.msra.mxu0 0
      %1114 = vmatprep.subr.bf16.mxu0 0
      %1115 = vmatpush2.bf16.msra.mxu0 0
      %1116 = vmatprep.subr.bf16.mxu0 0
      %1117 = vmatpush2.bf16.msra.mxu0 0
      %1118 = vmatprep.subr.bf16.mxu0 0
      %1119 = vmatpush2.bf16.msra.mxu0 0
      %1120 = vmatprep.subr.bf16.mxu0 0
      %1121 = vmatpush2.bf16.msra.mxu0 0
      %1122 = vmatprep.subr.bf16.mxu0 0
      %1123 = vmatpush2.bf16.msra.mxu0 0
      %1124 = vmatprep.mubr.bf16.mxu0 0
      %1125 = vmatmul.mubr.bf16.gmra.mxu0 %v1042
      %v1126 = vpop.f32.mrf.mxu0
      %v1127 = vadd.f32 0.0, %v1126
      %v1128 = vpop.f32.mrf.mxu0
      %v1129 = vpop.f32.mrf.mxu0
      %v1130 = vpop.f32.mrf.mxu0
      %1131 = vdwg.mxu0
      %v1132 = vadd.f32 %v1017, %v1127
      %v1133 = vld [vmem:[%s3] sm:$0x1]
      %v1135 = vlaneseq
      %v1136 = vshrl.u32 %v1135, 7
      %v1137 = vsub.s32 0, %v1136
      %v1138 = vrot.slane %v1133, %v1137
      %v1140 = vadd.f32 %v1132, %v1138
      %v1141 = vmax.f32 %v1140, 0.0
      %v1142 = vpack.c.bf16 %v1141, %v1141
      %1143 = vst [vmem:[%s229] sm:$0x7] %v1142
      %p1144 = scmp.lt.s32.totalorder %s19, 1
      %s1145 = scalar_select %p1144, %s19, 1
      %p1146 = scmp.lt.s32.totalorder %s20, 0
      %s1147 = scalar_select %p1146, %s20, 0
      %s1148 = sadd.s32 %s1147, %s1145
      %s1149 = smul.addr %s1148, 4
      %s1150 = scalar_lea.vmem %s4, %s1149
      // Predicated region
      $region37: #{backbone_base_forward.8} parent=35 // pred_check
        %p1151 = pneg %p138
      $region38: #{backbone_base_forward.8} parent=35 // pred_check_branch
        %1153 = sbr.rel (%p1151) target = $region40
      $region39: #{backbone_base_forward.8} parent=35 // pred_region
        _
      $region40: #{backbone_base_forward.8} parent=35 // pred_fallthru
        _
    $region36: #{backbone_base_forward.8} parent=5 // pred_fallthru
      _
    %p1154 = scmp.le.s32.totalorder 2, %s10
    // Predicated region
    $region41: #{backbone_base_forward.8} parent=5 // pred_check
      %p1155 = pneg %p1154
    $region42: #{backbone_base_forward.8} parent=5 // pred_check_branch
      %1157 = sbr.rel (%p1155) target = $region44
    $region43: #{backbone_base_forward.8} parent=5 // pred_region
      %s1158 = ssub.s32 %s10, 2
      // Predicated region
      $region45: #{backbone_base_forward.8} parent=43 // pred_check
        %p1159 = pneg %p144
      $region46: #{backbone_base_forward.8} parent=43 // pred_check_branch
        %1161 = sbr.rel (%p1159) target = $region48
      $region47: #{backbone_base_forward.8} parent=43 // pred_region
        %p1162 = scmp.lt.s32.totalorder %s21, 1
        %s1163 = scalar_select %p1162, %s21, 1
        %p1164 = scmp.lt.s32.totalorder %s22, 0
        %s1165 = scalar_select %p1164, %s22, 0
        %s1166 = sadd.s32 %s1165, %s1163
        %s1167 = smul.addr %s1166, 4
        %s1168 = scalar_lea.vmem %s4, %s1167
      $region48: #{backbone_base_forward.8} parent=43 // pred_fallthru
        _
    $region44: #{backbone_base_forward.8} parent=5 // pred_fallthru
      _
  $region6: #{backbone_base_forward.8} parent=0 // loop_footer
    %s14 = sadd.s32 1, %s10
  $region7: #{backbone_base_forward.8} parent=0 // loop_footer_branch
    %9 = sbr.rel target = $region3
  $region8: #{backbone_base_forward.8} parent=0 // loop_exit
    _

// kernel: backbone_base_forward.9
$region0: #{backbone_base_forward.9}
  #allocation0 [shape = 'u32[]', space=smem, size = 0x4, offset = 0x4, fixed_abs, tag = 'smem constant byte address 0x4 - core index']
  #allocation1 [shape = 'u32[144,128]{1,0:T(1,128)}', space=vmem, size = 0x12000, scoped, tag = 'internal scratch']
  %s0 = inlined_call_operand.vmem [shape: bf16[2,1,2,6,256], index: 0, kind: input, shape index: {}]
  %s1 = inlined_call_operand.vmem [shape: bf16[3,256,128], index: 1, kind: input, shape index: {}]
  %s2 = inlined_call_operand.vmem [shape: bf16[3,128,128], index: 2, kind: input, shape index: {}]
  %s3 = inlined_call_operand.vmem [shape: f32[1,128], index: 3, kind: input, shape index: {}]
  %s4 = inlined_call_operand.vmem [shape: bf16[2,2,128], index: 4, kind: output, shape index: {}]
  %s5 = sld [smem:[#allocation0]]
  $region49: #{backbone_base_forward.9} parent=0
    _
  %s7 = ssub.s32 1, %s5
  %s8 = scalar_select 0, %s7, %s5
  loop: start=0, step=1, limit=4
  $region2: #{backbone_base_forward.9} parent=0 // loop_pre_header
    _
  $region3: #{backbone_base_forward.9} parent=0 // loop_header
    %s10 = sphi 0, %s14
    %p11 = scmp.ge.s32.totalorder %s10, 4
    %s17 = sphi 0, %s29
    %s18 = sphi 0, %s25
    %s19 = sphi 0, %s17
    %s20 = sphi 0, %s18
    %s21 = sphi 0, %s19
    %s22 = sphi 0, %s20
    %s34 = sphi 0, %s36
    %s37 = sphi 0, %s34
    %s38 = sphi 0, %s37
    %s54 = sphi 0, %s38
    %s58 = sphi 0, %s58
    %s60 = sphi 0, %s58
    %s61 = sphi 0, %s60
    %s75 = sphi 0, %s61
    %s79 = sphi 0, %s79
    %s81 = sphi 0, %s79
    %s82 = sphi 0, %s81
    %s96 = sphi 0, %s82
    %s100 = sphi 0, %s100
    %s102 = sphi 0, %s100
    %s103 = sphi 0, %s102
    %s117 = sphi 0, %s103
    %s125 = sphi 0, %s127
    %s128 = sphi 0, %s125
    %s129 = sphi 0, %s128
    %s145 = sphi 0, %s129
  $region4: #{backbone_base_forward.9} parent=0 // loop_header_branch
    %13 = sbr.rel (%p11) target = $region8
  $region5: #{backbone_base_forward.9} parent=0 // loop_body
    %s15 = ssub.s32 %s10, 1
    %s16 = ssub.s32 %s10, 2
    %s23 = sadd.s32 1, %s18
    %p24 = scmp.ge.s32.totalorder %s23, 1
    %s25 = scalar_select %p24, 0, %s23
    %s26 = sadd.s32 1, %s17
    %s27 = scalar_select %p24, %s26, %s17
    %p28 = scmp.ge.s32.totalorder %s27, 2
    %s29 = scalar_select %p28, 0, %s27
    %s30 = ssub.s32 %s17, %s29
    %s31 = ssub.s32 %s18, %s25
    %s32 = sor.u32 %s30, %s31
    %p33 = scmp.eq.s32.totalorder %s32, 0
    %s35 = sadd.s32 %s34, 1
    %s36 = scalar_select %p33, %s34, %s35
    %p39 = pneg %p33
    %p40 = scmp.eq.s32.totalorder %s10, 1
    %p41 = por %p39, %p40
    %p42 = scmp.ne.s32.totalorder %s34, %s37
    %p43 = scmp.eq.s32.totalorder %s10, 0
    %p44 = por %p42, %p43
    %p45 = scmp.ne.s32.totalorder %s34, %s37
    %p46 = scmp.eq.s32.totalorder %s15, 1
    %p47 = por %p45, %p46
    %p48 = scmp.ne.s32.totalorder %s37, %s38
    %p49 = scmp.eq.s32.totalorder %s15, 0
    %p50 = por %p48, %p49
    %p51 = scmp.ne.s32.totalorder %s37, %s38
    %p52 = scmp.eq.s32.totalorder %s16, 1
    %p53 = por %p51, %p52
    %p55 = scmp.ne.s32.totalorder %s38, %s54
    %p56 = scmp.eq.s32.totalorder %s16, 0
    %p57 = por %p55, %p56
    %s59 = sadd.s32 %s58, 1
    %p62 = scmp.eq.s32.totalorder %s10, 1
    %p63 = scmp.ne.s32.totalorder %s58, %s60
    %p64 = scmp.eq.s32.totalorder %s10, 0
    %p65 = por %p63, %p64
    %p66 = scmp.ne.s32.totalorder %s58, %s60
    %p67 = scmp.eq.s32.totalorder %s15, 1
    %p68 = por %p66, %p67
    %p69 = scmp.ne.s32.totalorder %s60, %s61
    %p70 = scmp.eq.s32.totalorder %s15, 0
    %p71 = por %p69, %p70
    %p72 = scmp.ne.s32.totalorder %s60, %s61
    %p73 = scmp.eq.s32.totalorder %s16, 1
    %p74 = por %p72, %p73
    %p76 = scmp.ne.s32.totalorder %s61, %s75
    %p77 = scmp.eq.s32.totalorder %s16, 0
    %p78 = por %p76, %p77
    %s80 = sadd.s32 %s79, 1
    %p83 = scmp.eq.s32.totalorder %s10, 1
    %p84 = scmp.ne.s32.totalorder %s79, %s81
    %p85 = scmp.eq.s32.totalorder %s10, 0
    %p86 = por %p84, %p85
    %p87 = scmp.ne.s32.totalorder %s79, %s81
    %p88 = scmp.eq.s32.totalorder %s15, 1
    %p89 = por %p87, %p88
    %p90 = scmp.ne.s32.totalorder %s81, %s82
    %p91 = scmp.eq.s32.totalorder %s15, 0
    %p92 = por %p90, %p91
    %p93 = scmp.ne.s32.totalorder %s81, %s82
    %p94 = scmp.eq.s32.totalorder %s16, 1
    %p95 = por %p93, %p94
    %p97 = scmp.ne.s32.totalorder %s82, %s96
    %p98 = scmp.eq.s32.totalorder %s16, 0
    %p99 = por %p97, %p98
    %s101 = sadd.s32 %s100, 1
    %p104 = scmp.eq.s32.totalorder %s10, 1
    %p105 = scmp.ne.s32.totalorder %s100, %s102
    %p106 = scmp.eq.s32.totalorder %s10, 0
    %p107 = por %p105, %p106
    %p108 = scmp.ne.s32.totalorder %s100, %s102
    %p109 = scmp.eq.s32.totalorder %s15, 1
    %p110 = por %p108, %p109
    %p111 = scmp.ne.s32.totalorder %s102, %s103
    %p112 = scmp.eq.s32.totalorder %s15, 0
    %p113 = por %p111, %p112
    %p114 = scmp.ne.s32.totalorder %s102, %s103
    %p115 = scmp.eq.s32.totalorder %s16, 1
    %p116 = por %p114, %p115
    %p118 = scmp.ne.s32.totalorder %s103, %s117
    %p119 = scmp.eq.s32.totalorder %s16, 0
    %p120 = por %p118, %p119
    %s121 = ssub.s32 %s17, %s29
    %s122 = ssub.s32 %s18, %s25
    %s123 = sor.u32 %s121, %s122
    %p124 = scmp.eq.s32.totalorder %s123, 0
    %s126 = sadd.s32 %s125, 1
    %s127 = scalar_select %p124, %s125, %s126
    %p130 = pneg %p124
    %p131 = scmp.eq.s32.totalorder %s10, 1
    %p132 = por %p130, %p131
    %p133 = scmp.ne.s32.totalorder %s125, %s128
    %p134 = scmp.eq.s32.totalorder %s10, 0
    %p135 = por %p133, %p134
    %p136 = scmp.ne.s32.totalorder %s125, %s128
    %p137 = scmp.eq.s32.totalorder %s15, 1
    %p138 = por %p136, %p137
    %p139 = scmp.ne.s32.totalorder %s128, %s129
    %p140 = scmp.eq.s32.totalorder %s15, 0
    %p141 = por %p139, %p140
    %p142 = scmp.ne.s32.totalorder %s128, %s129
    %p143 = scmp.eq.s32.totalorder %s16, 1
    %p144 = por %p142, %p143
    %p146 = scmp.ne.s32.totalorder %s129, %s145
    %p147 = scmp.eq.s32.totalorder %s16, 0
    %p148 = por %p146, %p147
    %p149 = scmp.le.s32.totalorder 1, %s10
    %p150 = scmp.lt.s32.totalorder %s10, 3
    %p151 = pnand %p149, %p150
    %p152 = pneg %p151
    // Predicated region
    $region9: #{backbone_base_forward.9} parent=5 // pred_check
      _
    $region10: #{backbone_base_forward.9} parent=5 // pred_check_branch
      %154 = sbr.rel (%p151) target = $region12
    $region11: #{backbone_base_forward.9} parent=5 // pred_region
      %s155 = ssub.s32 %s10, 1
      // Predicated region
      $region13: #{backbone_base_forward.9} parent=11 // pred_check
        %p156 = pneg %p71
      $region14: #{backbone_base_forward.9} parent=11 // pred_check_branch
        %158 = sbr.rel (%p156) target = $region16
      $region15: #{backbone_base_forward.9} parent=11 // pred_region
        _
      $region16: #{backbone_base_forward.9} parent=11 // pred_fallthru
        _
      // Predicated region
      $region17: #{backbone_base_forward.9} parent=11 // pred_check
        %p159 = pneg %p92
      $region18: #{backbone_base_forward.9} parent=11 // pred_check_branch
        %161 = sbr.rel (%p159) target = $region20
      $region19: #{backbone_base_forward.9} parent=11 // pred_region
        _
      $region20: #{backbone_base_forward.9} parent=11 // pred_fallthru
        _
      // Predicated region
      $region21: #{backbone_base_forward.9} parent=11 // pred_check
        %p162 = pneg %p113
      $region22: #{backbone_base_forward.9} parent=11 // pred_check_branch
        %164 = sbr.rel (%p162) target = $region24
      $region23: #{backbone_base_forward.9} parent=11 // pred_region
        _
      $region24: #{backbone_base_forward.9} parent=11 // pred_fallthru
        _
    $region12: #{backbone_base_forward.9} parent=5 // pred_fallthru
      _
    %p165 = scmp.lt.s32.totalorder %s10, 2
    // Predicated region
    $region25: #{backbone_base_forward.9} parent=5 // pred_check
      %p166 = pneg %p165
    $region26: #{backbone_base_forward.9} parent=5 // pred_check_branch
      %168 = sbr.rel (%p166) target = $region28
    $region27: #{backbone_base_forward.9} parent=5 // pred_region
      // Predicated region
      $region29: #{backbone_base_forward.9} parent=27 // pred_check
        %p169 = pneg %p44
      $region30: #{backbone_base_forward.9} parent=27 // pred_check_branch
        %171 = sbr.rel (%p169) target = $region32
      $region31: #{backbone_base_forward.9} parent=27 // pred_region
        %p172 = scmp.lt.s32.totalorder %s17, 1
        %s173 = scalar_select %p172, %s17, 1
        %p174 = scmp.lt.s32.totalorder %s18, 0
        %s175 = scalar_select %p174, %s18, 0
        %s176 = smul.addr %s175, 4
        %s177 = smul.addr %s173, 4
        %s178 = sadd.s32 %s176, %s177
        %s179 = smul.addr %s178, 4
        %s180 = scalar_lea.vmem %s0, %s179
      $region32: #{backbone_base_forward.9} parent=27 // pred_fallthru
        _
    $region28: #{backbone_base_forward.9} parent=5 // pred_fallthru
      _
    %p181 = scmp.le.s32.totalorder 1, %s10
    %p182 = scmp.lt.s32.totalorder %s10, 3
    %p183 = pnand %p181, %p182
    %p184 = pneg %p183
    // Predicated region
    $region33: #{backbone_base_forward.9} parent=5 // pred_check
      _
    $region34: #{backbone_base_forward.9} parent=5 // pred_check_branch
      %186 = sbr.rel (%p183) target = $region36
    $region35: #{backbone_base_forward.9} parent=5 // pred_region
      %s187 = ssub.s32 %s10, 1
      %p188 = scmp.lt.s32.totalorder %s19, 1
      %s189 = scalar_select %p188, %s19, 1
      %p190 = scmp.lt.s32.totalorder %s20, 0
      %s191 = scalar_select %p190, %s20, 0
      %s192 = smul.addr %s191, 4
      %s193 = smul.addr %s189, 4
      %s194 = sadd.s32 %s192, %s193
      %s195 = smul.addr %s194, 4
      %s196 = scalar_lea.vmem %s0, %s195
      %p197 = pneg %p50
      %p198 = pneg %p47
      %p199 = pneg %p71
      %p200 = pneg %p68
      %p201 = pneg %p92
      %p202 = pneg %p89
      %p203 = pneg %p113
      %p204 = pneg %p110
      %p205 = pneg %p141
      %p206 = pneg %p138
      %p207 = scmp.lt.s32.totalorder %s19, 1
      %s208 = scalar_select %p207, %s19, 1
      %p209 = scmp.lt.s32.totalorder %s20, 0
      %s210 = scalar_select %p209, %s20, 0
      %s211 = sadd.s32 %s210, %s208
      %s212 = scalar_lea.vmem %s4, %s211
      %p213 = scmp.lt.s32.totalorder %s19, 1
      %s214 = scalar_select %p213, %s19, 1
      %p215 = scmp.lt.s32.totalorder %s20, 0
      %s216 = scalar_select %p215, %s20, 0
      %s217 = smul.addr %s216, 4
      %s218 = smul.addr %s214, 4
      %s219 = sadd.s32 %s217, %s218
      %s220 = smul.addr %s219, 4
      %s221 = scalar_lea.vmem %s0, %s220
      %p222 = scmp.lt.s32.totalorder %s19, 1
      %s223 = scalar_select %p222, %s19, 1
      %p224 = scmp.lt.s32.totalorder %s20, 0
      %s225 = scalar_select %p224, %s20, 0
      %s226 = sadd.s32 %s225, %s223
      %s227 = scalar_lea.vmem %s4, %s226
      %v229 = vld [vmem:[%s221] sm:$0x11]
      %v230 = vld [vmem:[%s1] sm:$0xf]
      %v231 = vld [vmem:[%s1 + $0x4] sm:$0xf]
      %v232 = vld [vmem:[%s1 + $0x8] sm:$0xf]
      %v233 = vld [vmem:[%s1 + $0xc] sm:$0xf]
      %v234 = vld [vmem:[%s1 + $0x10] sm:$0xf]
      %v235 = vld [vmem:[%s1 + $0x14] sm:$0xf]
      %v236 = vld [vmem:[%s1 + $0x18] sm:$0xf]
      %v237 = vld [vmem:[%s1 + $0x1c] sm:$0xf]
      %v238 = vld [vmem:[%s1 + $0x20] sm:$0xf]
      %v239 = vld [vmem:[%s1 + $0x24] sm:$0xf]
      %v240 = vld [vmem:[%s1 + $0x28] sm:$0xf]
      %v241 = vld [vmem:[%s1 + $0x2c] sm:$0xf]
      %v242 = vld [vmem:[%s1 + $0x30] sm:$0xf]
      %v243 = vld [vmem:[%s1 + $0x34] sm:$0xf]
      %v244 = vld [vmem:[%s1 + $0x38] sm:$0xf]
      %v245 = vld [vmem:[%s1 + $0x3c] sm:$0xf]
      %v246 = vld [vmem:[%s1 + $0x40] sm:$0xf]
      %v247 = vld [vmem:[%s1 + $0x44] sm:$0xf]
      %v248 = vld [vmem:[%s1 + $0x48] sm:$0xf]
      %v249 = vld [vmem:[%s1 + $0x4c] sm:$0xf]
      %v250 = vld [vmem:[%s1 + $0x50] sm:$0xf]
      %v251 = vld [vmem:[%s1 + $0x54] sm:$0xf]
      %v252 = vld [vmem:[%s1 + $0x58] sm:$0xf]
      %v253 = vld [vmem:[%s1 + $0x5c] sm:$0xf]
      %v254 = vld [vmem:[%s1 + $0x60] sm:$0xf]
      %v255 = vld [vmem:[%s1 + $0x64] sm:$0xf]
      %v256 = vld [vmem:[%s1 + $0x68] sm:$0xf]
      %v257 = vld [vmem:[%s1 + $0x6c] sm:$0xf]
      %v258 = vld [vmem:[%s1 + $0x70] sm:$0xf]
      %v259 = vld [vmem:[%s1 + $0x74] sm:$0xf]
      %v260 = vld [vmem:[%s1 + $0x78] sm:$0xf]
      %v261 = vld [vmem:[%s1 + $0x7c] sm:$0xf]
      %v262 = vld [vmem:[%s221] sm:$0x3]
      %v263 = vld [vmem:[%s2] sm:$0xf]
      %v264 = vld [vmem:[%s2 + $0x4] sm:$0xf]
      %v265 = vld [vmem:[%s2 + $0x8] sm:$0xf]
      %v266 = vld [vmem:[%s2 + $0xc] sm:$0xf]
      %v267 = vld [vmem:[%s2 + $0x10] sm:$0xf]
      %v268 = vld [vmem:[%s2 + $0x14] sm:$0xf]
      %v269 = vld [vmem:[%s2 + $0x18] sm:$0xf]
      %v270 = vld [vmem:[%s2 + $0x1c] sm:$0xf]
      %v271 = vld [vmem:[%s2 + $0x20] sm:$0xf]
      %v272 = vld [vmem:[%s2 + $0x24] sm:$0xf]
      %v273 = vld [vmem:[%s2 + $0x28] sm:$0xf]
      %v274 = vld [vmem:[%s2 + $0x2c] sm:$0xf]
      %v275 = vld [vmem:[%s2 + $0x30] sm:$0xf]
      %v276 = vld [vmem:[%s2 + $0x34] sm:$0xf]
      %v277 = vld [vmem:[%s2 + $0x38] sm:$0xf]
      %v278 = vld [vmem:[%s2 + $0x3c] sm:$0xf]
      %v280 = vunpack.c.l.b16 %v262
      %v281 = vpack.c.b16 %v280, %v280
      %v283 = vshrl.u32 %v281, 16
      %v285 = vshll.u32 %v281, 16
      %v287 = vrot.slane %v285, 1
      %v288 = vor.u32 %v283, %v287
      %v306 = vunpack.c.l.b16 %v263
      %v307 = vunpack.c.l.b16 %v264
      %v308 = vunpack.c.l.b16 %v265
      %v309 = vunpack.c.l.b16 %v266
      %v310 = vunpack.c.l.b16 %v267
      %v311 = vunpack.c.l.b16 %v268
      %v312 = vunpack.c.l.b16 %v269
      %v313 = vunpack.c.l.b16 %v270
      %v314 = vunpack.c.l.b16 %v271
      %v315 = vunpack.c.l.b16 %v272
      %v316 = vunpack.c.l.b16 %v273
      %v317 = vunpack.c.l.b16 %v274
      %v318 = vunpack.c.l.b16 %v275
      %v319 = vunpack.c.l.b16 %v276
      %v320 = vunpack.c.l.b16 %v277
      %v321 = vunpack.c.l.b16 %v278
      %v322 = vpack.c.b16 %v307, %v306
      %v323 = vpack.c.b16 %v309, %v308
      %v324 = vpack.c.b16 %v311, %v310
      %v325 = vpack.c.b16 %v313, %v312
      %v326 = vpack.c.b16 %v315, %v314
      %v327 = vpack.c.b16 %v317, %v316
      %v328 = vpack.c.b16 %v319, %v318
      %v329 = vpack.c.b16 %v321, %v320
      %338 = vmatprep.subr.bf16.mxu0 0
      %339 = vmatpush1.bf16.msra.mxu0 %v329
      %340 = vmatprep.subr.bf16.mxu0 0
      %341 = vmatpush1.bf16.msra.mxu0 %v328
      %342 = vmatprep.subr.bf16.mxu0 0
      %343 = vmatpush1.bf16.msra.mxu0 %v327
      %344 = vmatprep.subr.bf16.mxu0 0
      %345 = vmatpush1.bf16.msra.mxu0 %v326
      %346 = vmatprep.subr.bf16.mxu0 0
      %347 = vmatpush1.bf16.msra.mxu0 %v325
      %348 = vmatprep.subr.bf16.mxu0 0
      %349 = vmatpush1.bf16.msra.mxu0 %v324
      %350 = vmatprep.subr.bf16.mxu0 0
      %351 = vmatpush1.bf16.msra.mxu0 %v323
      %352 = vmatprep.subr.bf16.mxu0 0
      %353 = vmatpush1.bf16.msra.mxu0 %v322
      %354 = vmatprep.subr.bf16.mxu0 0
      %355 = vmatpush2.bf16.msra.mxu0 0
      %356 = vmatprep.subr.bf16.mxu0 0
      %357 = vmatpush2.bf16.msra.mxu0 0
      %358 = vmatprep.subr.bf16.mxu0 0
      %359 = vmatpush2.bf16.msra.mxu0 0
      %360 = vmatprep.subr.bf16.mxu0 0
      %361 = vmatpush2.bf16.msra.mxu0 0
      %362 = vmatprep.subr.bf16.mxu0 0
      %363 = vmatpush2.bf16.msra.mxu0 0
      %364 = vmatprep.subr.bf16.mxu0 0
      %365 = vmatpush2.bf16.msra.mxu0 0
      %366 = vmatprep.subr.bf16.mxu0 0
      %367 = vmatpush2.bf16.msra.mxu0 0
      %368 = vmatprep.subr.bf16.mxu0 0
      %369 = vmatpush2.bf16.msra.mxu0 0
      %370 = vmatprep.mubr.bf16.mxu0 0
      %371 = vmatmul.mubr.bf16.gmra.mxu0 %v288
      %v372 = vpop.f32.mrf.mxu0
      %v373 = vadd.f32 0.0, %v372
      %v374 = vpop.f32.mrf.mxu0
      %v375 = vpop.f32.mrf.mxu0
      %v376 = vpop.f32.mrf.mxu0
      %377 = vdwg.mxu0
      %v379 = vunpack.c.l.b16 %v229
      %v380 = vunpack.c.h.b16 %v229
      %v381 = vpack.c.b16 %v379, %v379
      %v382 = vpack.c.b16 %v380, %v380
      %v417 = vunpack.c.l.b16 %v230
      %v418 = vunpack.c.l.b16 %v231
      %v419 = vunpack.c.l.b16 %v232
      %v420 = vunpack.c.l.b16 %v233
      %v421 = vunpack.c.l.b16 %v234
      %v422 = vunpack.c.l.b16 %v235
      %v423 = vunpack.c.l.b16 %v236
      %v424 = vunpack.c.l.b16 %v237
      %v425 = vunpack.c.l.b16 %v238
      %v426 = vunpack.c.l.b16 %v239
      %v427 = vunpack.c.l.b16 %v240
      %v428 = vunpack.c.l.b16 %v241
      %v429 = vunpack.c.l.b16 %v242
      %v430 = vunpack.c.l.b16 %v243
      %v431 = vunpack.c.l.b16 %v244
      %v432 = vunpack.c.l.b16 %v245
      %v433 = vunpack.c.l.b16 %v246
      %v434 = vunpack.c.l.b16 %v247
      %v435 = vunpack.c.l.b16 %v248
      %v436 = vunpack.c.l.b16 %v249
      %v437 = vunpack.c.l.b16 %v250
      %v438 = vunpack.c.l.b16 %v251
      %v439 = vunpack.c.l.b16 %v252
      %v440 = vunpack.c.l.b16 %v253
      %v441 = vunpack.c.l.b16 %v254
      %v442 = vunpack.c.l.b16 %v255
      %v443 = vunpack.c.l.b16 %v256
      %v444 = vunpack.c.l.b16 %v257
      %v445 = vunpack.c.l.b16 %v258
      %v446 = vunpack.c.l.b16 %v259
      %v447 = vunpack.c.l.b16 %v260
      %v448 = vunpack.c.l.b16 %v261
      %v449 = vpack.c.b16 %v418, %v417
      %v450 = vpack.c.b16 %v420, %v419
      %v451 = vpack.c.b16 %v422, %v421
      %v452 = vpack.c.b16 %v424, %v423
      %v453 = vpack.c.b16 %v426, %v425
      %v454 = vpack.c.b16 %v428, %v427
      %v455 = vpack.c.b16 %v430, %v429
      %v456 = vpack.c.b16 %v432, %v431
      %v457 = vpack.c.b16 %v434, %v433
      %v458 = vpack.c.b16 %v436, %v435
      %v459 = vpack.c.b16 %v438, %v437
      %v460 = vpack.c.b16 %v440, %v439
      %v461 = vpack.c.b16 %v442, %v441
      %v462 = vpack.c.b16 %v444, %v443
      %v463 = vpack.c.b16 %v446, %v445
      %v464 = vpack.c.b16 %v448, %v447
      %481 = vmatprep.subr.bf16.mxu0 0
      %482 = vmatpush1.bf16.msra.mxu0 %v456
      %483 = vmatprep.subr.bf16.mxu0 0
      %484 = vmatpush1.bf16.msra.mxu0 %v455
      %485 = vmatprep.subr.bf16.mxu0 0
      %486 = vmatpush1.bf16.msra.mxu0 %v454
      %487 = vmatprep.subr.bf16.mxu0 0
      %488 = vmatpush1.bf16.msra.mxu0 %v453
      %489 = vmatprep.subr.bf16.mxu0 0
      %490 = vmatpush1.bf16.msra.mxu0 %v452
      %491 = vmatprep.subr.bf16.mxu0 0
      %492 = vmatpush1.bf16.msra.mxu0 %v451
      %493 = vmatprep.subr.bf16.mxu0 0
      %494 = vmatpush1.bf16.msra.mxu0 %v450
      %495 = vmatprep.subr.bf16.mxu0 0
      %496 = vmatpush1.bf16.msra.mxu0 %v449
      %497 = vmatprep.subr.bf16.mxu0 0
      %498 = vmatpush2.bf16.msra.mxu0 %v464
      %499 = vmatprep.subr.bf16.mxu0 0
      %500 = vmatpush2.bf16.msra.mxu0 %v463
      %501 = vmatprep.subr.bf16.mxu0 0
      %502 = vmatpush2.bf16.msra.mxu0 %v462
      %503 = vmatprep.subr.bf16.mxu0 0
      %504 = vmatpush2.bf16.msra.mxu0 %v461
      %505 = vmatprep.subr.bf16.mxu0 0
      %506 = vmatpush2.bf16.msra.mxu0 %v460
      %507 = vmatprep.subr.bf16.mxu0 0
      %508 = vmatpush2.bf16.msra.mxu0 %v459
      %509 = vmatprep.subr.bf16.mxu0 0
      %510 = vmatpush2.bf16.msra.mxu0 %v458
      %511 = vmatprep.subr.bf16.mxu0 0
      %512 = vmatpush2.bf16.msra.mxu0 %v457
      %513 = vmatprep.mubr.bf16.mxu0 %v382
      %514 = vmatmul.mubr.bf16.gmra.mxu0 %v381
      %v515 = vpop.f32.mrf.mxu0
      %v516 = vadd.f32 %v373, %v515
      %v517 = vpop.f32.mrf.mxu0
      %v518 = vpop.f32.mrf.mxu0
      %v519 = vpop.f32.mrf.mxu0
      %520 = vdwg.mxu0
      %s521 = scalar_lea.vmem %s221, 8
      %v522 = vld [vmem:[%s521] sm:$0x11]
      %s523 = scalar_lea.vmem %s1, 128
      %v524 = vld [vmem:[%s523] sm:$0xf]
      %v525 = vld [vmem:[%s523 + $0x4] sm:$0xf]
      %v526 = vld [vmem:[%s523 + $0x8] sm:$0xf]
      %v527 = vld [vmem:[%s523 + $0xc] sm:$0xf]
      %v528 = vld [vmem:[%s523 + $0x10] sm:$0xf]
      %v529 = vld [vmem:[%s523 + $0x14] sm:$0xf]
      %v530 = vld [vmem:[%s523 + $0x18] sm:$0xf]
      %v531 = vld [vmem:[%s523 + $0x1c] sm:$0xf]
      %v532 = vld [vmem:[%s523 + $0x20] sm:$0xf]
      %v533 = vld [vmem:[%s523 + $0x24] sm:$0xf]
      %v534 = vld [vmem:[%s523 + $0x28] sm:$0xf]
      %v535 = vld [vmem:[%s523 + $0x2c] sm:$0xf]
      %v536 = vld [vmem:[%s523 + $0x30] sm:$0xf]
      %v537 = vld [vmem:[%s523 + $0x34] sm:$0xf]
      %v538 = vld [vmem:[%s523 + $0x38] sm:$0xf]
      %v539 = vld [vmem:[%s523 + $0x3c] sm:$0xf]
      %v540 = vld [vmem:[%s523 + $0x40] sm:$0xf]
      %v541 = vld [vmem:[%s523 + $0x44] sm:$0xf]
      %v542 = vld [vmem:[%s523 + $0x48] sm:$0xf]
      %v543 = vld [vmem:[%s523 + $0x4c] sm:$0xf]
      %v544 = vld [vmem:[%s523 + $0x50] sm:$0xf]
      %v545 = vld [vmem:[%s523 + $0x54] sm:$0xf]
      %v546 = vld [vmem:[%s523 + $0x58] sm:$0xf]
      %v547 = vld [vmem:[%s523 + $0x5c] sm:$0xf]
      %v548 = vld [vmem:[%s523 + $0x60] sm:$0xf]
      %v549 = vld [vmem:[%s523 + $0x64] sm:$0xf]
      %v550 = vld [vmem:[%s523 + $0x68] sm:$0xf]
      %v551 = vld [vmem:[%s523 + $0x6c] sm:$0xf]
      %v552 = vld [vmem:[%s523 + $0x70] sm:$0xf]
      %v553 = vld [vmem:[%s523 + $0x74] sm:$0xf]
      %v554 = vld [vmem:[%s523 + $0x78] sm:$0xf]
      %v555 = vld [vmem:[%s523 + $0x7c] sm:$0xf]
      %v557 = vunpack.c.l.b16 %v522
      %v558 = vunpack.c.h.b16 %v522
      %v559 = vpack.c.b16 %v557, %v557
      %v560 = vpack.c.b16 %v558, %v558
      %v595 = vunpack.c.l.b16 %v524
      %v596 = vunpack.c.l.b16 %v525
      %v597 = vunpack.c.l.b16 %v526
      %v598 = vunpack.c.l.b16 %v527
      %v599 = vunpack.c.l.b16 %v528
      %v600 = vunpack.c.l.b16 %v529
      %v601 = vunpack.c.l.b16 %v530
      %v602 = vunpack.c.l.b16 %v531
      %v603 = vunpack.c.l.b16 %v532
      %v604 = vunpack.c.l.b16 %v533
      %v605 = vunpack.c.l.b16 %v534
      %v606 = vunpack.c.l.b16 %v535
      %v607 = vunpack.c.l.b16 %v536
      %v608 = vunpack.c.l.b16 %v537
      %v609 = vunpack.c.l.b16 %v538
      %v610 = vunpack.c.l.b16 %v539
      %v611 = vunpack.c.l.b16 %v540
      %v612 = vunpack.c.l.b16 %v541
      %v613 = vunpack.c.l.b16 %v542
      %v614 = vunpack.c.l.b16 %v543
      %v615 = vunpack.c.l.b16 %v544
      %v616 = vunpack.c.l.b16 %v545
      %v617 = vunpack.c.l.b16 %v546
      %v618 = vunpack.c.l.b16 %v547
      %v619 = vunpack.c.l.b16 %v548
      %v620 = vunpack.c.l.b16 %v549
      %v621 = vunpack.c.l.b16 %v550
      %v622 = vunpack.c.l.b16 %v551
      %v623 = vunpack.c.l.b16 %v552
      %v624 = vunpack.c.l.b16 %v553
      %v625 = vunpack.c.l.b16 %v554
      %v626 = vunpack.c.l.b16 %v555
      %v627 = vpack.c.b16 %v596, %v595
      %v628 = vpack.c.b16 %v598, %v597
      %v629 = vpack.c.b16 %v600, %v599
      %v630 = vpack.c.b16 %v602, %v601
      %v631 = vpack.c.b16 %v604, %v603
      %v632 = vpack.c.b16 %v606, %v605
      %v633 = vpack.c.b16 %v608, %v607
      %v634 = vpack.c.b16 %v610, %v609
      %v635 = vpack.c.b16 %v612, %v611
      %v636 = vpack.c.b16 %v614, %v613
      %v637 = vpack.c.b16 %v616, %v615
      %v638 = vpack.c.b16 %v618, %v617
      %v639 = vpack.c.b16 %v620, %v619
      %v640 = vpack.c.b16 %v622, %v621
      %v641 = vpack.c.b16 %v624, %v623
      %v642 = vpack.c.b16 %v626, %v625
      %659 = vmatprep.subr.bf16.mxu0 0
      %660 = vmatpush1.bf16.msra.mxu0 %v634
      %661 = vmatprep.subr.bf16.mxu0 0
      %662 = vmatpush1.bf16.msra.mxu0 %v633
      %663 = vmatprep.subr.bf16.mxu0 0
      %664 = vmatpush1.bf16.msra.mxu0 %v632
      %665 = vmatprep.subr.bf16.mxu0 0
      %666 = vmatpush1.bf16.msra.mxu0 %v631
      %667 = vmatprep.subr.bf16.mxu0 0
      %668 = vmatpush1.bf16.msra.mxu0 %v630
      %669 = vmatprep.subr.bf16.mxu0 0
      %670 = vmatpush1.bf16.msra.mxu0 %v629
      %671 = vmatprep.subr.bf16.mxu0 0
      %672 = vmatpush1.bf16.msra.mxu0 %v628
      %673 = vmatprep.subr.bf16.mxu0 0
      %674 = vmatpush1.bf16.msra.mxu0 %v627
      %675 = vmatprep.subr.bf16.mxu0 0
      %676 = vmatpush2.bf16.msra.mxu0 %v642
      %677 = vmatprep.subr.bf16.mxu0 0
      %678 = vmatpush2.bf16.msra.mxu0 %v641
      %679 = vmatprep.subr.bf16.mxu0 0
      %680 = vmatpush2.bf16.msra.mxu0 %v640
      %681 = vmatprep.subr.bf16.mxu0 0
      %682 = vmatpush2.bf16.msra.mxu0 %v639
      %683 = vmatprep.subr.bf16.mxu0 0
      %684 = vmatpush2.bf16.msra.mxu0 %v638
      %685 = vmatprep.subr.bf16.mxu0 0
      %686 = vmatpush2.bf16.msra.mxu0 %v637
      %687 = vmatprep.subr.bf16.mxu0 0
      %688 = vmatpush2.bf16.msra.mxu0 %v636
      %689 = vmatprep.subr.bf16.mxu0 0
      %690 = vmatpush2.bf16.msra.mxu0 %v635
      %691 = vmatprep.mubr.bf16.mxu0 %v560
      %692 = vmatmul.mubr.bf16.gmra.mxu0 %v559
      %v693 = vpop.f32.mrf.mxu0
      %v694 = vadd.f32 0.0, %v693
      %v695 = vpop.f32.mrf.mxu0
      %v696 = vpop.f32.mrf.mxu0
      %v697 = vpop.f32.mrf.mxu0
      %698 = vdwg.mxu0
      %v699 = vadd.f32 %v516, %v694
      %v700 = vld [vmem:[%s521] sm:$0x3]
      %s701 = scalar_lea.vmem %s2, 64
      %v702 = vld [vmem:[%s701] sm:$0xf]
      %v703 = vld [vmem:[%s701 + $0x4] sm:$0xf]
      %v704 = vld [vmem:[%s701 + $0x8] sm:$0xf]
      %v705 = vld [vmem:[%s701 + $0xc] sm:$0xf]
      %v706 = vld [vmem:[%s701 + $0x10] sm:$0xf]
      %v707 = vld [vmem:[%s701 + $0x14] sm:$0xf]
      %v708 = vld [vmem:[%s701 + $0x18] sm:$0xf]
      %v709 = vld [vmem:[%s701 + $0x1c] sm:$0xf]
      %v710 = vld [vmem:[%s701 + $0x20] sm:$0xf]
      %v711 = vld [vmem:[%s701 + $0x24] sm:$0xf]
      %v712 = vld [vmem:[%s701 + $0x28] sm:$0xf]
      %v713 = vld [vmem:[%s701 + $0x2c] sm:$0xf]
      %v714 = vld [vmem:[%s701 + $0x30] sm:$0xf]
      %v715 = vld [vmem:[%s701 + $0x34] sm:$0xf]
      %v716 = vld [vmem:[%s701 + $0x38] sm:$0xf]
      %v717 = vld [vmem:[%s701 + $0x3c] sm:$0xf]
      %v719 = vunpack.c.l.b16 %v700
      %v720 = vpack.c.b16 %v719, %v719
      %v722 = vshrl.u32 %v720, 16
      %v724 = vshll.u32 %v720, 16
      %v726 = vrot.slane %v724, 1
      %v727 = vor.u32 %v722, %v726
      %v745 = vunpack.c.l.b16 %v702
      %v746 = vunpack.c.l.b16 %v703
      %v747 = vunpack.c.l.b16 %v704
      %v748 = vunpack.c.l.b16 %v705
      %v749 = vunpack.c.l.b16 %v706
      %v750 = vunpack.c.l.b16 %v707
      %v751 = vunpack.c.l.b16 %v708
      %v752 = vunpack.c.l.b16 %v709
      %v753 = vunpack.c.l.b16 %v710
      %v754 = vunpack.c.l.b16 %v711
      %v755 = vunpack.c.l.b16 %v712
      %v756 = vunpack.c.l.b16 %v713
      %v757 = vunpack.c.l.b16 %v714
      %v758 = vunpack.c.l.b16 %v715
      %v759 = vunpack.c.l.b16 %v716
      %v760 = vunpack.c.l.b16 %v717
      %v761 = vpack.c.b16 %v746, %v745
      %v762 = vpack.c.b16 %v748, %v747
      %v763 = vpack.c.b16 %v750, %v749
      %v764 = vpack.c.b16 %v752, %v751
      %v765 = vpack.c.b16 %v754, %v753
      %v766 = vpack.c.b16 %v756, %v755
      %v767 = vpack.c.b16 %v758, %v757
      %v768 = vpack.c.b16 %v760, %v759
      %777 = vmatprep.subr.bf16.mxu0 0
      %778 = vmatpush1.bf16.msra.mxu0 %v768
      %779 = vmatprep.subr.bf16.mxu0 0
      %780 = vmatpush1.bf16.msra.mxu0 %v767
      %781 = vmatprep.subr.bf16.mxu0 0
      %782 = vmatpush1.bf16.msra.mxu0 %v766
      %783 = vmatprep.subr.bf16.mxu0 0
      %784 = vmatpush1.bf16.msra.mxu0 %v765
      %785 = vmatprep.subr.bf16.mxu0 0
      %786 = vmatpush1.bf16.msra.mxu0 %v764
      %787 = vmatprep.subr.bf16.mxu0 0
      %788 = vmatpush1.bf16.msra.mxu0 %v763
      %789 = vmatprep.subr.bf16.mxu0 0
      %790 = vmatpush1.bf16.msra.mxu0 %v762
      %791 = vmatprep.subr.bf16.mxu0 0
      %792 = vmatpush1.bf16.msra.mxu0 %v761
      %793 = vmatprep.subr.bf16.mxu0 0
      %794 = vmatpush2.bf16.msra.mxu0 0
      %795 = vmatprep.subr.bf16.mxu0 0
      %796 = vmatpush2.bf16.msra.mxu0 0
      %797 = vmatprep.subr.bf16.mxu0 0
      %798 = vmatpush2.bf16.msra.mxu0 0
      %799 = vmatprep.subr.bf16.mxu0 0
      %800 = vmatpush2.bf16.msra.mxu0 0
      %801 = vmatprep.subr.bf16.mxu0 0
      %802 = vmatpush2.bf16.msra.mxu0 0
      %803 = vmatprep.subr.bf16.mxu0 0
      %804 = vmatpush2.bf16.msra.mxu0 0
      %805 = vmatprep.subr.bf16.mxu0 0
      %806 = vmatpush2.bf16.msra.mxu0 0
      %807 = vmatprep.subr.bf16.mxu0 0
      %808 = vmatpush2.bf16.msra.mxu0 0
      %809 = vmatprep.mubr.bf16.mxu0 0
      %810 = vmatmul.mubr.bf16.gmra.mxu0 %v727
      %v811 = vpop.f32.mrf.mxu0
      %v812 = vadd.f32 0.0, %v811
      %v813 = vpop.f32.mrf.mxu0
      %v814 = vpop.f32.mrf.mxu0
      %v815 = vpop.f32.mrf.mxu0
      %816 = vdwg.mxu0
      %v817 = vadd.f32 %v699, %v812
      %v818 = vld [vmem:[%s221] sm:$0x22]
      %s819 = scalar_lea.vmem %s1, 256
      %v820 = vld [vmem:[%s819] sm:$0xf]
      %v821 = vld [vmem:[%s819 + $0x4] sm:$0xf]
      %v822 = vld [vmem:[%s819 + $0x8] sm:$0xf]
      %v823 = vld [vmem:[%s819 + $0xc] sm:$0xf]
      %v824 = vld [vmem:[%s819 + $0x10] sm:$0xf]
      %v825 = vld [vmem:[%s819 + $0x14] sm:$0xf]
      %v826 = vld [vmem:[%s819 + $0x18] sm:$0xf]
      %v827 = vld [vmem:[%s819 + $0x1c] sm:$0xf]
      %v828 = vld [vmem:[%s819 + $0x20] sm:$0xf]
      %v829 = vld [vmem:[%s819 + $0x24] sm:$0xf]
      %v830 = vld [vmem:[%s819 + $0x28] sm:$0xf]
      %v831 = vld [vmem:[%s819 + $0x2c] sm:$0xf]
      %v832 = vld [vmem:[%s819 + $0x30] sm:$0xf]
      %v833 = vld [vmem:[%s819 + $0x34] sm:$0xf]
      %v834 = vld [vmem:[%s819 + $0x38] sm:$0xf]
      %v835 = vld [vmem:[%s819 + $0x3c] sm:$0xf]
      %v836 = vld [vmem:[%s819 + $0x40] sm:$0xf]
      %v837 = vld [vmem:[%s819 + $0x44] sm:$0xf]
      %v838 = vld [vmem:[%s819 + $0x48] sm:$0xf]
      %v839 = vld [vmem:[%s819 + $0x4c] sm:$0xf]
      %v840 = vld [vmem:[%s819 + $0x50] sm:$0xf]
      %v841 = vld [vmem:[%s819 + $0x54] sm:$0xf]
      %v842 = vld [vmem:[%s819 + $0x58] sm:$0xf]
      %v843 = vld [vmem:[%s819 + $0x5c] sm:$0xf]
      %v844 = vld [vmem:[%s819 + $0x60] sm:$0xf]
      %v845 = vld [vmem:[%s819 + $0x64] sm:$0xf]
      %v846 = vld [vmem:[%s819 + $0x68] sm:$0xf]
      %v847 = vld [vmem:[%s819 + $0x6c] sm:$0xf]
      %v848 = vld [vmem:[%s819 + $0x70] sm:$0xf]
      %v849 = vld [vmem:[%s819 + $0x74] sm:$0xf]
      %v850 = vld [vmem:[%s819 + $0x78] sm:$0xf]
      %v851 = vld [vmem:[%s819 + $0x7c] sm:$0xf]
      %v853 = vunpack.c.l.b16 %v818
      %v854 = vunpack.c.h.b16 %v818
      %v855 = vpack.c.b16 %v853, %v853
      %v856 = vpack.c.b16 %v854, %v854
      %v857 = vrot.slane %v855, 1
      %v858 = vrot.slane %v856, 1
      %v893 = vunpack.c.l.b16 %v820
      %v894 = vunpack.c.l.b16 %v821
      %v895 = vunpack.c.l.b16 %v822
      %v896 = vunpack.c.l.b16 %v823
      %v897 = vunpack.c.l.b16 %v824
      %v898 = vunpack.c.l.b16 %v825
      %v899 = vunpack.c.l.b16 %v826
      %v900 = vunpack.c.l.b16 %v827
      %v901 = vunpack.c.l.b16 %v828
      %v902 = vunpack.c.l.b16 %v829
      %v903 = vunpack.c.l.b16 %v830
      %v904 = vunpack.c.l.b16 %v831
      %v905 = vunpack.c.l.b16 %v832
      %v906 = vunpack.c.l.b16 %v833
      %v907 = vunpack.c.l.b16 %v834
      %v908 = vunpack.c.l.b16 %v835
      %v909 = vunpack.c.l.b16 %v836
      %v910 = vunpack.c.l.b16 %v837
      %v911 = vunpack.c.l.b16 %v838
      %v912 = vunpack.c.l.b16 %v839
      %v913 = vunpack.c.l.b16 %v840
      %v914 = vunpack.c.l.b16 %v841
      %v915 = vunpack.c.l.b16 %v842
      %v916 = vunpack.c.l.b16 %v843
      %v917 = vunpack.c.l.b16 %v844
      %v918 = vunpack.c.l.b16 %v845
      %v919 = vunpack.c.l.b16 %v846
      %v920 = vunpack.c.l.b16 %v847
      %v921 = vunpack.c.l.b16 %v848
      %v922 = vunpack.c.l.b16 %v849
      %v923 = vunpack.c.l.b16 %v850
      %v924 = vunpack.c.l.b16 %v851
      %v925 = vpack.c.b16 %v894, %v893
      %v926 = vpack.c.b16 %v896, %v895
      %v927 = vpack.c.b16 %v898, %v897
      %v928 = vpack.c.b16 %v900, %v899
      %v929 = vpack.c.b16 %v902, %v901
      %v930 = vpack.c.b16 %v904, %v903
      %v931 = vpack.c.b16 %v906, %v905
      %v932 = vpack.c.b16 %v908, %v907
      %v933 = vpack.c.b16 %v910, %v909
      %v934 = vpack.c.b16 %v912, %v911
      %v935 = vpack.c.b16 %v914, %v913
      %v936 = vpack.c.b16 %v916, %v915
      %v937 = vpack.c.b16 %v918, %v917
      %v938 = vpack.c.b16 %v920, %v919
      %v939 = vpack.c.b16 %v922, %v921
      %v940 = vpack.c.b16 %v924, %v923
      %957 = vmatprep.subr.bf16.mxu0 0
      %958 = vmatpush1.bf16.msra.mxu0 %v932
      %959 = vmatprep.subr.bf16.mxu0 0
      %960 = vmatpush1.bf16.msra.mxu0 %v931
      %961 = vmatprep.subr.bf16.mxu0 0
      %962 = vmatpush1.bf16.msra.mxu0 %v930
      %963 = vmatprep.subr.bf16.mxu0 0
      %964 = vmatpush1.bf16.msra.mxu0 %v929
      %965 = vmatprep.subr.bf16.mxu0 0
      %966 = vmatpush1.bf16.msra.mxu0 %v928
      %967 = vmatprep.subr.bf16.mxu0 0
      %968 = vmatpush1.bf16.msra.mxu0 %v927
      %969 = vmatprep.subr.bf16.mxu0 0
      %970 = vmatpush1.bf16.msra.mxu0 %v926
      %971 = vmatprep.subr.bf16.mxu0 0
      %972 = vmatpush1.bf16.msra.mxu0 %v925
      %973 = vmatprep.subr.bf16.mxu0 0
      %974 = vmatpush2.bf16.msra.mxu0 %v940
      %975 = vmatprep.subr.bf16.mxu0 0
      %976 = vmatpush2.bf16.msra.mxu0 %v939
      %977 = vmatprep.subr.bf16.mxu0 0
      %978 = vmatpush2.bf16.msra.mxu0 %v938
      %979 = vmatprep.subr.bf16.mxu0 0
      %980 = vmatpush2.bf16.msra.mxu0 %v937
      %981 = vmatprep.subr.bf16.mxu0 0
      %982 = vmatpush2.bf16.msra.mxu0 %v936
      %983 = vmatprep.subr.bf16.mxu0 0
      %984 = vmatpush2.bf16.msra.mxu0 %v935
      %985 = vmatprep.subr.bf16.mxu0 0
      %986 = vmatpush2.bf16.msra.mxu0 %v934
      %987 = vmatprep.subr.bf16.mxu0 0
      %988 = vmatpush2.bf16.msra.mxu0 %v933
      %989 = vmatprep.mubr.bf16.mxu0 %v858
      %990 = vmatmul.mubr.bf16.gmra.mxu0 %v857
      %v991 = vpop.f32.mrf.mxu0
      %v992 = vadd.f32 0.0, %v991
      %v993 = vpop.f32.mrf.mxu0
      %v994 = vpop.f32.mrf.mxu0
      %v995 = vpop.f32.mrf.mxu0
      %996 = vdwg.mxu0
      %v997 = vadd.f32 %v817, %v992
      %v998 = vld [vmem:[%s221] sm:$0x6]
      %s999 = scalar_lea.vmem %s2, 128
      %v1000 = vld [vmem:[%s999] sm:$0xf]
      %v1001 = vld [vmem:[%s999 + $0x4] sm:$0xf]
      %v1002 = vld [vmem:[%s999 + $0x8] sm:$0xf]
      %v1003 = vld [vmem:[%s999 + $0xc] sm:$0xf]
      %v1004 = vld [vmem:[%s999 + $0x10] sm:$0xf]
      %v1005 = vld [vmem:[%s999 + $0x14] sm:$0xf]
      %v1006 = vld [vmem:[%s999 + $0x18] sm:$0xf]
      %v1007 = vld [vmem:[%s999 + $0x1c] sm:$0xf]
      %v1008 = vld [vmem:[%s999 + $0x20] sm:$0xf]
      %v1009 = vld [vmem:[%s999 + $0x24] sm:$0xf]
      %v1010 = vld [vmem:[%s999 + $0x28] sm:$0xf]
      %v1011 = vld [vmem:[%s999 + $0x2c] sm:$0xf]
      %v1012 = vld [vmem:[%s999 + $0x30] sm:$0xf]
      %v1013 = vld [vmem:[%s999 + $0x34] sm:$0xf]
      %v1014 = vld [vmem:[%s999 + $0x38] sm:$0xf]
      %v1015 = vld [vmem:[%s999 + $0x3c] sm:$0xf]
      %v1017 = vunpack.c.l.b16 %v998
      %v1018 = vpack.c.b16 %v1017, %v1017
      %v1020 = vshrl.u32 %v1018, 16
      %v1022 = vrot.slane %v1020, 1
      %v1023 = vshll.u32 %v1018, 16
      %v1025 = vrot.slane %v1023, 2
      %v1026 = vor.u32 %v1022, %v1025
      %v1044 = vunpack.c.l.b16 %v1000
      %v1045 = vunpack.c.l.b16 %v1001
      %v1046 = vunpack.c.l.b16 %v1002
      %v1047 = vunpack.c.l.b16 %v1003
      %v1048 = vunpack.c.l.b16 %v1004
      %v1049 = vunpack.c.l.b16 %v1005
      %v1050 = vunpack.c.l.b16 %v1006
      %v1051 = vunpack.c.l.b16 %v1007
      %v1052 = vunpack.c.l.b16 %v1008
      %v1053 = vunpack.c.l.b16 %v1009
      %v1054 = vunpack.c.l.b16 %v1010
      %v1055 = vunpack.c.l.b16 %v1011
      %v1056 = vunpack.c.l.b16 %v1012
      %v1057 = vunpack.c.l.b16 %v1013
      %v1058 = vunpack.c.l.b16 %v1014
      %v1059 = vunpack.c.l.b16 %v1015
      %v1060 = vpack.c.b16 %v1045, %v1044
      %v1061 = vpack.c.b16 %v1047, %v1046
      %v1062 = vpack.c.b16 %v1049, %v1048
      %v1063 = vpack.c.b16 %v1051, %v1050
      %v1064 = vpack.c.b16 %v1053, %v1052
      %v1065 = vpack.c.b16 %v1055, %v1054
      %v1066 = vpack.c.b16 %v1057, %v1056
      %v1067 = vpack.c.b16 %v1059, %v1058
      %1076 = vmatprep.subr.bf16.mxu0 0
      %1077 = vmatpush1.bf16.msra.mxu0 %v1067
      %1078 = vmatprep.subr.bf16.mxu0 0
      %1079 = vmatpush1.bf16.msra.mxu0 %v1066
      %1080 = vmatprep.subr.bf16.mxu0 0
      %1081 = vmatpush1.bf16.msra.mxu0 %v1065
      %1082 = vmatprep.subr.bf16.mxu0 0
      %1083 = vmatpush1.bf16.msra.mxu0 %v1064
      %1084 = vmatprep.subr.bf16.mxu0 0
      %1085 = vmatpush1.bf16.msra.mxu0 %v1063
      %1086 = vmatprep.subr.bf16.mxu0 0
      %1087 = vmatpush1.bf16.msra.mxu0 %v1062
      %1088 = vmatprep.subr.bf16.mxu0 0
      %1089 = vmatpush1.bf16.msra.mxu0 %v1061
      %1090 = vmatprep.subr.bf16.mxu0 0
      %1091 = vmatpush1.bf16.msra.mxu0 %v1060
      %1092 = vmatprep.subr.bf16.mxu0 0
      %1093 = vmatpush2.bf16.msra.mxu0 0
      %1094 = vmatprep.subr.bf16.mxu0 0
      %1095 = vmatpush2.bf16.msra.mxu0 0
      %1096 = vmatprep.subr.bf16.mxu0 0
      %1097 = vmatpush2.bf16.msra.mxu0 0
      %1098 = vmatprep.subr.bf16.mxu0 0
      %1099 = vmatpush2.bf16.msra.mxu0 0
      %1100 = vmatprep.subr.bf16.mxu0 0
      %1101 = vmatpush2.bf16.msra.mxu0 0
      %1102 = vmatprep.subr.bf16.mxu0 0
      %1103 = vmatpush2.bf16.msra.mxu0 0
      %1104 = vmatprep.subr.bf16.mxu0 0
      %1105 = vmatpush2.bf16.msra.mxu0 0
      %1106 = vmatprep.subr.bf16.mxu0 0
      %1107 = vmatpush2.bf16.msra.mxu0 0
      %1108 = vmatprep.mubr.bf16.mxu0 0
      %1109 = vmatmul.mubr.bf16.gmra.mxu0 %v1026
      %v1110 = vpop.f32.mrf.mxu0
      %v1111 = vadd.f32 0.0, %v1110
      %v1112 = vpop.f32.mrf.mxu0
      %v1113 = vpop.f32.mrf.mxu0
      %v1114 = vpop.f32.mrf.mxu0
      %1115 = vdwg.mxu0
      %v1116 = vadd.f32 %v997, %v1111
      %v1117 = vld [vmem:[%s3] sm:$0x1]
      %v1119 = vlaneseq
      %v1120 = vshrl.u32 %v1119, 7
      %v1121 = vsub.s32 0, %v1120
      %v1122 = vrot.slane %v1117, %v1121
      %v1124 = vadd.f32 %v1116, %v1122
      %v1125 = vmax.f32 %v1124, 0.0
      %v1126 = vpack.c.bf16 %v1125, %v1125
      %1127 = vst [vmem:[%s227] sm:$0x1] %v1126
      %p1128 = scmp.lt.s32.totalorder %s19, 1
      %s1129 = scalar_select %p1128, %s19, 1
      %p1130 = scmp.lt.s32.totalorder %s20, 0
      %s1131 = scalar_select %p1130, %s20, 0
      %s1132 = sadd.s32 %s1131, %s1129
      %s1133 = scalar_lea.vmem %s4, %s1132
      // Predicated region
      $region37: #{backbone_base_forward.9} parent=35 // pred_check
        %p1134 = pneg %p138
      $region38: #{backbone_base_forward.9} parent=35 // pred_check_branch
        %1136 = sbr.rel (%p1134) target = $region40
      $region39: #{backbone_base_forward.9} parent=35 // pred_region
        _
      $region40: #{backbone_base_forward.9} parent=35 // pred_fallthru
        _
    $region36: #{backbone_base_forward.9} parent=5 // pred_fallthru
      _
    %p1137 = scmp.le.s32.totalorder 2, %s10
    // Predicated region
    $region41: #{backbone_base_forward.9} parent=5 // pred_check
      %p1138 = pneg %p1137
    $region42: #{backbone_base_forward.9} parent=5 // pred_check_branch
      %1140 = sbr.rel (%p1138) target = $region44
    $region43: #{backbone_base_forward.9} parent=5 // pred_region
      %s1141 = ssub.s32 %s10, 2
      // Predicated region
      $region45: #{backbone_base_forward.9} parent=43 // pred_check
        %p1142 = pneg %p144
      $region46: #{backbone_base_forward.9} parent=43 // pred_check_branch
        %1144 = sbr.rel (%p1142) target = $region48
      $region47: #{backbone_base_forward.9} parent=43 // pred_region
        %p1145 = scmp.lt.s32.totalorder %s21, 1
        %s1146 = scalar_select %p1145, %s21, 1
        %p1147 = scmp.lt.s32.totalorder %s22, 0
        %s1148 = scalar_select %p1147, %s22, 0
        %s1149 = sadd.s32 %s1148, %s1146
        %s1150 = scalar_lea.vmem %s4, %s1149
      $region48: #{backbone_base_forward.9} parent=43 // pred_fallthru
        _
    $region44: #{backbone_base_forward.9} parent=5 // pred_fallthru
      _
  $region6: #{backbone_base_forward.9} parent=0 // loop_footer
    %s14 = sadd.s32 1, %s10
  $region7: #{backbone_base_forward.9} parent=0 // loop_footer_branch
    %9 = sbr.rel target = $region3
  $region8: #{backbone_base_forward.9} parent=0 // loop_exit
    _

</llo_original>
